<compile_context>
chip_gen: v6e
topology: v6e:2x2x1
jax: 0.10.0
libtpu: 0.0.40
codegen_flags: <defaults>
</compile_context>

<pallas_src>
import jax
import jax.numpy as jnp
from jax import lax
from jax.experimental import pallas as pl
from jax.experimental.pallas import tpu as pltpu

BN_EPS = 1e-5
_W_ALIGN = 8   # sublane-aligned left zero-pad for the conv2 scratch (aligned store)


def _fused_forward_kernel(x_ref, w1_ref, b1_ref, w2_ref, b2_ref, wfc_ref, bfc_ref,
                          out_ref, pool1_scr, xp2_scr, pool2_scr, feat_scr):
    # x_ref:    (B, H+2, W+2, C) f32   'same'-padded NHWC features
    # w1_/w2_:  (9, C, C) bf16         BN-folded conv weights, tap t = 3*dy+dx
    # b1_/b2_:  (1, C) f32             BN-folded conv bias
    # wfc_ref:  (H2*W2, C, ncls) bf16  linear weight, NHWC-ordered positions
    # bfc_ref:  (1, ncls) f32
    # out_ref:  (B, ncls) f32          logits
    B = x_ref.shape[0]
    H = x_ref.shape[1] - 2
    W = x_ref.shape[2] - 2
    C = x_ref.shape[3]
    Ho, Wo = H // 2, W // 2
    Ho2, Wo2 = Ho // 2, Wo // 2
    ncls = out_ref.shape[-1]

    # ----- block 1: conv3x3 'same' (BN folded) -> maxpool 2x2 -> ReLU ---------------
    # 9-tap shift-and-matmul: each tap is a (B*H*W, C) x (C, C) bf16 GEMM on the MXU.
    acc = jnp.zeros((B * H * W, C), jnp.float32)
    for dy in range(3):
        for dx in range(3):
            t = 3 * dy + dx
            xs = x_ref[:, dy:dy + H, dx:dx + W, :]                 # (B,H,W,C) f32
            xs = xs.reshape(B * H * W, C).astype(jnp.bfloat16)
            acc = acc + jnp.dot(xs, w1_ref[t],
                                preferred_element_type=jnp.float32)
    y = (acc + b1_ref[...]).reshape(B, Ho, 2, W, C)                # split H (major dim)
    yh = jnp.maximum(y[:, :, 0], y[:, :, 1])                       # row pool (B,Ho,W,C)
    pool1_scr[...] = yh
    m = jnp.maximum(pool1_scr[:, :, pl.ds(0, Wo, stride=2), :],    # column pool
                    pool1_scr[:, :, pl.ds(1, Wo, stride=2), :])
    a1 = jnp.maximum(m, 0.0)                                       # ReLU, (B,Ho,Wo,C)

    # ----- block 2: conv3x3 'same' (BN folded) -> maxpool 2x2 -> ReLU ---------------
    # Zero-padded activation stays in VMEM scratch (never leaves the chip).
    xp2_scr[...] = jnp.zeros_like(xp2_scr)
    xp2_scr[:, 1:1 + Ho, _W_ALIGN:_W_ALIGN + Wo, :] = a1           # aligned interior

    acc2 = jnp.zeros((B * Ho * Wo, C), jnp.float32)
    for dy in range(3):
        for dx in range(3):
            t = 3 * dy + dx
            c0 = _W_ALIGN - 1 + dx
            xs = xp2_scr[:, dy:dy + Ho, c0:c0 + Wo, :]             # (B,Ho,Wo,C) f32
            xs = xs.reshape(B * Ho * Wo, C).astype(jnp.bfloat16)
            acc2 = acc2 + jnp.dot(xs, w2_ref[t],
                                  preferred_element_type=jnp.float32)
    y2 = (acc2 + b2_ref[...]).reshape(B, Ho2, 2, Wo, C)
    y2h = jnp.maximum(y2[:, :, 0], y2[:, :, 1])                    # (B,Ho2,Wo,C)
    pool2_scr[...] = y2h
    m2 = jnp.maximum(pool2_scr[:, :, pl.ds(0, Wo2, stride=2), :],
                     pool2_scr[:, :, pl.ds(1, Wo2, stride=2), :])
    feat_scr[...] = jnp.maximum(m2, 0.0)                           # (B,Ho2,Wo2,C)

    # ----- flatten + linear (done as per-position (B,C)x(C,ncls) MXU dots) ----------
    logits = jnp.zeros((B, ncls), jnp.float32)
    for p in range(Ho2 * Wo2):
        h2, w2 = p // Wo2, p % Wo2
        xv = feat_scr[:, h2, w2, :].astype(jnp.bfloat16)           # (B, C)
        logits = logits + jnp.dot(xv, wfc_ref[p],
                                  preferred_element_type=jnp.float32)
    out_ref[...] = (logits + bfc_ref[...]).astype(out_ref.dtype)


def _fold_bn(w_hwio, b, gamma, beta, mean, var):
    """Fold eval-mode BatchNorm into the conv weight/bias (exact, affine)."""
    scale = gamma * lax.rsqrt(var + BN_EPS)                        # (Cout,)
    w_f = (w_hwio * scale).reshape(9, w_hwio.shape[2], w_hwio.shape[3])
    b_f = (b - mean) * scale + beta
    return w_f.astype(jnp.bfloat16), b_f.reshape(1, -1).astype(jnp.float32)


def cnn_celeba_server_forward(params, x_nchw):
    """PyTorch-style NCHW features in, (N, num_class) logits out."""
    x = jnp.transpose(x_nchw, (0, 2, 3, 1)).astype(jnp.float32)    # NHWC internally
    N, H, W, C = x.shape
    # TODO(synk): kernel assumes pool-friendly, 16-divisible spatial dims (true for the
    #             test shape); odd CelebA-sized server features (e.g. 21x21) would need
    #             extra edge handling.
    assert H % 4 == 0 and W % 16 == 0 and C == 32, (H, W, C)

    Ho, Wo = H // 2, W // 2
    H2, W2 = H // 4, W // 4
    ncls = params["w_fc"].shape[0]

    xp = jnp.pad(x, ((0, 0), (1, 1), (1, 1), (0, 0)))              # 'same' pad, conv1
    w1, b1 = _fold_bn(params["w1"], params["b1"], params["gamma1"],
                      params["beta1"], params["mean1"], params["var1"])
    w2, b2 = _fold_bn(params["w2"], params["b2"], params["gamma2"],
                      params["beta2"], params["mean2"], params["var2"])
    # PyTorch Linear weight is (ncls, C*H2*W2) over an NCHW flatten; re-order it for
    # the kernel's NHWC features -> (H2*W2, C, ncls).
    wfc = params["w_fc"].reshape(ncls, C, H2, W2).transpose(2, 3, 1, 0)
    wfc = wfc.reshape(H2 * W2, C, ncls).astype(jnp.bfloat16)
    bfc = params["b_fc"].reshape(1, ncls).astype(jnp.float32)

    return pl.pallas_call(
        _fused_forward_kernel,
        out_shape=jax.ShapeDtypeStruct((N, ncls), jnp.float32),
        grid_spec=pltpu.PrefetchScalarGridSpec(
            num_scalar_prefetch=0,
            grid=(1,),                        # whole (small) batch per grid step
            in_specs=[
                pl.BlockSpec((N, H + 2, W + 2, C), lambda i: (0, 0, 0, 0)),
                pl.BlockSpec((9, C, C), lambda i: (0, 0, 0)),
                pl.BlockSpec((1, C), lambda i: (0, 0)),
                pl.BlockSpec((9, C, C), lambda i: (0, 0, 0)),
                pl.BlockSpec((1, C), lambda i: (0, 0)),
                pl.BlockSpec((H2 * W2, C, ncls), lambda i: (0, 0, 0)),
                pl.BlockSpec((1, ncls), lambda i: (0, 0)),
            ],
            out_specs=pl.BlockSpec((N, ncls), lambda i: (0, 0)),
            scratch_shapes=[
                pltpu.VMEM((N, Ho, W, C), jnp.float32),                      # pool1
                pltpu.VMEM((N, Ho + 2, Wo + _W_ALIGN + 1, C), jnp.float32),  # padded act
                pltpu.VMEM((N, H2, Wo, C), jnp.float32),                     # pool2
                pltpu.VMEM((N, H2, W2, C), jnp.float32),                     # features
            ],
        ),
        compiler_params=pltpu.CompilerParams(dimension_semantics=("arbitrary",)),
    )(xp, w1, b1, w2, b2, wfc, bfc)


def init_params(key, *, num_class=2, h2w2=16):
    ks = jax.random.split(key, 14)
    p = {
        # conv1: 32 -> 32, kernel 3x3 (stored HWIO)
        "w1": 0.05 * jax.random.normal(ks[0], (3, 3, 32, 32), jnp.float32),
        "b1": 0.10 * jax.random.normal(ks[1], (32,), jnp.float32),
        "gamma1": 1.0 + 0.10 * jax.random.normal(ks[2], (32,), jnp.float32),
        "beta1": 0.10 * jax.random.normal(ks[3], (32,), jnp.float32),
        "mean1": 0.10 * jax.random.normal(ks[4], (32,), jnp.float32),
        "var1": 1.0 + 0.10 * jnp.abs(jax.random.normal(ks[5], (32,), jnp.float32)),
        # conv2: 32 -> 32, kernel 3x3 (stored HWIO)
        "w2": 0.05 * jax.random.normal(ks[6], (3, 3, 32, 32), jnp.float32),
        "b2": 0.10 * jax.random.normal(ks[7], (32,), jnp.float32),
        "gamma2": 1.0 + 0.10 * jax.random.normal(ks[8], (32,), jnp.float32),
        "beta2": 0.10 * jax.random.normal(ks[9], (32,), jnp.float32),
        "mean2": 0.10 * jax.random.normal(ks[10], (32,), jnp.float32),
        "var2": 1.0 + 0.10 * jnp.abs(jax.random.normal(ks[11], (32,), jnp.float32)),
        # fc: PyTorch layout (num_class, 32 * (H/4) * (W/4)), NCHW flatten order
        "w_fc": 0.05 * jax.random.normal(ks[12], (num_class, 32 * h2w2), jnp.float32),
        "b_fc": 0.10 * jax.random.normal(ks[13], (num_class,), jnp.float32),
    }
    return p


if __name__ == "__main__":
    key = jax.random.PRNGKey(0)
    pkey, xkey = jax.random.split(key)

    # Small shapes consistent with the module: the server consumes the 32-channel
    # feature map produced by the client. Spatial 16 corresponds to image_size=64
    # (Linear in_features = 32 * int(64/16)^2 = 512), num_class=2.
    params = init_params(pkey, num_class=2, h2w2=(16 // 4) * (16 // 4))
    x = jax.random.normal(xkey, (2, 32, 16, 16), jnp.float32)   # NCHW, like PyTorch

    out = jax.jit(cnn_celeba_server_forward)(params, x)
    jax.block_until_ready(out)

    assert out.shape == (2, 2), out.shape      # 16 -> pool -> 8 -> pool -> 4 -> fc
    assert out.dtype == jnp.float32
    print("KERNEL_OK")
</pallas_src>

<mosaic_0001>
module attributes {stable_mosaic.version = 11 : i64} {
  func.func @_fused_forward_kernel(%arg0: i32, %arg1: memref<2x18x18x32xf32, #tpu.memory_space<vmem>>, %arg2: memref<9x32x32xbf16, #tpu.memory_space<vmem>>, %arg3: memref<1x32xf32, #tpu.memory_space<vmem>>, %arg4: memref<9x32x32xbf16, #tpu.memory_space<vmem>>, %arg5: memref<1x32xf32, #tpu.memory_space<vmem>>, %arg6: memref<16x32x2xbf16, #tpu.memory_space<vmem>>, %arg7: memref<1x2xf32, #tpu.memory_space<vmem>>, %arg8: memref<2x2xf32, #tpu.memory_space<vmem>>, %arg9: memref<2x8x16x32xf32, #tpu.memory_space<vmem>>, %arg10: memref<2x10x17x32xf32, #tpu.memory_space<vmem>>, %arg11: memref<2x4x8x32xf32, #tpu.memory_space<vmem>>, %arg12: memref<2x4x4x32xf32, #tpu.memory_space<vmem>>) attributes {dimension_semantics = [#tpu.dimension_semantics<arbitrary>], iteration_bounds = array<i64: 1>, scalar_prefetch = 0 : i64, scratch_operands = 4 : i64, tpu.core_type = #tpu.core_type<tc>, window_params = [{pipeline_mode = #tpu.pipeline_mode<synchronous>, transform_indices = @transform_0, window_bounds = array<i64: 2, 18, 18, 32>}, {pipeline_mode = #tpu.pipeline_mode<synchronous>, transform_indices = @transform_1, window_bounds = array<i64: 9, 32, 32>}, {pipeline_mode = #tpu.pipeline_mode<synchronous>, transform_indices = @transform_2, window_bounds = array<i64: 1, 32>}, {pipeline_mode = #tpu.pipeline_mode<synchronous>, transform_indices = @transform_3, window_bounds = array<i64: 9, 32, 32>}, {pipeline_mode = #tpu.pipeline_mode<synchronous>, transform_indices = @transform_4, window_bounds = array<i64: 1, 32>}, {pipeline_mode = #tpu.pipeline_mode<synchronous>, transform_indices = @transform_5, window_bounds = array<i64: 16, 32, 2>}, {pipeline_mode = #tpu.pipeline_mode<synchronous>, transform_indices = @transform_6, window_bounds = array<i64: 1, 2>}, {pipeline_mode = #tpu.pipeline_mode<synchronous>, transform_indices = @transform_7, window_bounds = array<i64: 2, 2>}]} {
    %cst = arith.constant 0.000000e+00 : f32
    %0 = vector.broadcast %cst : f32 to vector<512x32xf32>
    %c0 = arith.constant 0 : index
    %c0_0 = arith.constant 0 : index
    %c0_1 = arith.constant 0 : index
    %c0_2 = arith.constant 0 : index
    %1 = vector.load %arg1[%c0, %c0_0, %c0_1, %c0_2] : memref<2x18x18x32xf32, #tpu.memory_space<vmem>>, vector<2x16x16x32xf32>
    %2 = vector.shape_cast %1 : vector<2x16x16x32xf32> to vector<512x32xf32>
    %3 = arith.truncf %2 : vector<512x32xf32> to vector<512x32xbf16>
    %c0_3 = arith.constant 0 : index
    %c0_4 = arith.constant 0 : index
    %c0_5 = arith.constant 0 : index
    %4 = vector.load %arg2[%c0_3, %c0_4, %c0_5] : memref<9x32x32xbf16, #tpu.memory_space<vmem>>, vector<1x32x32xbf16>
    %5 = vector.shape_cast %4 : vector<1x32x32xbf16> to vector<32x32xbf16>
    %cst_6 = arith.constant dense<0.000000e+00> : vector<512x32xf32>
    %6 = tpu.matmul %3, %5, %cst_6 {dimension_numbers = #tpu.dot_dimension_numbers<[1], [0], [0], [1], [0, 0, 1, 1], [], []>} : vector<512x32xbf16>, vector<32x32xbf16>, vector<512x32xf32> -> vector<512x32xf32>
    %7 = arith.addf %0, %6 : vector<512x32xf32>
    %c0_7 = arith.constant 0 : index
    %c0_8 = arith.constant 0 : index
    %c1 = arith.constant 1 : index
    %c0_9 = arith.constant 0 : index
    %8 = vector.load %arg1[%c0_7, %c0_8, %c1, %c0_9] : memref<2x18x18x32xf32, #tpu.memory_space<vmem>>, vector<2x16x16x32xf32>
    %9 = vector.shape_cast %8 : vector<2x16x16x32xf32> to vector<512x32xf32>
    %10 = arith.truncf %9 : vector<512x32xf32> to vector<512x32xbf16>
    %c1_10 = arith.constant 1 : index
    %c0_11 = arith.constant 0 : index
    %c0_12 = arith.constant 0 : index
    %11 = vector.load %arg2[%c1_10, %c0_11, %c0_12] : memref<9x32x32xbf16, #tpu.memory_space<vmem>>, vector<1x32x32xbf16>
    %12 = vector.shape_cast %11 : vector<1x32x32xbf16> to vector<32x32xbf16>
    %cst_13 = arith.constant dense<0.000000e+00> : vector<512x32xf32>
    %13 = tpu.matmul %10, %12, %cst_13 {dimension_numbers = #tpu.dot_dimension_numbers<[1], [0], [0], [1], [0, 0, 1, 1], [], []>} : vector<512x32xbf16>, vector<32x32xbf16>, vector<512x32xf32> -> vector<512x32xf32>
    %14 = arith.addf %7, %13 : vector<512x32xf32>
    %c0_14 = arith.constant 0 : index
    %c0_15 = arith.constant 0 : index
    %c2 = arith.constant 2 : index
    %c0_16 = arith.constant 0 : index
    %15 = vector.load %arg1[%c0_14, %c0_15, %c2, %c0_16] : memref<2x18x18x32xf32, #tpu.memory_space<vmem>>, vector<2x16x16x32xf32>
    %16 = vector.shape_cast %15 : vector<2x16x16x32xf32> to vector<512x32xf32>
    %17 = arith.truncf %16 : vector<512x32xf32> to vector<512x32xbf16>
    %c2_17 = arith.constant 2 : index
    %c0_18 = arith.constant 0 : index
    %c0_19 = arith.constant 0 : index
    %18 = vector.load %arg2[%c2_17, %c0_18, %c0_19] : memref<9x32x32xbf16, #tpu.memory_space<vmem>>, vector<1x32x32xbf16>
    %19 = vector.shape_cast %18 : vector<1x32x32xbf16> to vector<32x32xbf16>
    %cst_20 = arith.constant dense<0.000000e+00> : vector<512x32xf32>
    %20 = tpu.matmul %17, %19, %cst_20 {dimension_numbers = #tpu.dot_dimension_numbers<[1], [0], [0], [1], [0, 0, 1, 1], [], []>} : vector<512x32xbf16>, vector<32x32xbf16>, vector<512x32xf32> -> vector<512x32xf32>
    %21 = arith.addf %14, %20 : vector<512x32xf32>
    %c0_21 = arith.constant 0 : index
    %c1_22 = arith.constant 1 : index
    %c0_23 = arith.constant 0 : index
    %c0_24 = arith.constant 0 : index
    %22 = vector.load %arg1[%c0_21, %c1_22, %c0_23, %c0_24] : memref<2x18x18x32xf32, #tpu.memory_space<vmem>>, vector<2x16x16x32xf32>
    %23 = vector.shape_cast %22 : vector<2x16x16x32xf32> to vector<512x32xf32>
    %24 = arith.truncf %23 : vector<512x32xf32> to vector<512x32xbf16>
    %c3 = arith.constant 3 : index
    %c0_25 = arith.constant 0 : index
    %c0_26 = arith.constant 0 : index
    %25 = vector.load %arg2[%c3, %c0_25, %c0_26] : memref<9x32x32xbf16, #tpu.memory_space<vmem>>, vector<1x32x32xbf16>
    %26 = vector.shape_cast %25 : vector<1x32x32xbf16> to vector<32x32xbf16>
    %cst_27 = arith.constant dense<0.000000e+00> : vector<512x32xf32>
    %27 = tpu.matmul %24, %26, %cst_27 {dimension_numbers = #tpu.dot_dimension_numbers<[1], [0], [0], [1], [0, 0, 1, 1], [], []>} : vector<512x32xbf16>, vector<32x32xbf16>, vector<512x32xf32> -> vector<512x32xf32>
    %28 = arith.addf %21, %27 : vector<512x32xf32>
    %c0_28 = arith.constant 0 : index
    %c1_29 = arith.constant 1 : index
    %c1_30 = arith.constant 1 : index
    %c0_31 = arith.constant 0 : index
    %29 = vector.load %arg1[%c0_28, %c1_29, %c1_30, %c0_31] : memref<2x18x18x32xf32, #tpu.memory_space<vmem>>, vector<2x16x16x32xf32>
    %30 = vector.shape_cast %29 : vector<2x16x16x32xf32> to vector<512x32xf32>
    %31 = arith.truncf %30 : vector<512x32xf32> to vector<512x32xbf16>
    %c4 = arith.constant 4 : index
    %c0_32 = arith.constant 0 : index
    %c0_33 = arith.constant 0 : index
    %32 = vector.load %arg2[%c4, %c0_32, %c0_33] : memref<9x32x32xbf16, #tpu.memory_space<vmem>>, vector<1x32x32xbf16>
    %33 = vector.shape_cast %32 : vector<1x32x32xbf16> to vector<32x32xbf16>
    %cst_34 = arith.constant dense<0.000000e+00> : vector<512x32xf32>
    %34 = tpu.matmul %31, %33, %cst_34 {dimension_numbers = #tpu.dot_dimension_numbers<[1], [0], [0], [1], [0, 0, 1, 1], [], []>} : vector<512x32xbf16>, vector<32x32xbf16>, vector<512x32xf32> -> vector<512x32xf32>
    %35 = arith.addf %28, %34 : vector<512x32xf32>
    %c0_35 = arith.constant 0 : index
    %c1_36 = arith.constant 1 : index
    %c2_37 = arith.constant 2 : index
    %c0_38 = arith.constant 0 : index
    %36 = vector.load %arg1[%c0_35, %c1_36, %c2_37, %c0_38] : memref<2x18x18x32xf32, #tpu.memory_space<vmem>>, vector<2x16x16x32xf32>
    %37 = vector.shape_cast %36 : vector<2x16x16x32xf32> to vector<512x32xf32>
    %38 = arith.truncf %37 : vector<512x32xf32> to vector<512x32xbf16>
    %c5 = arith.constant 5 : index
    %c0_39 = arith.constant 0 : index
    %c0_40 = arith.constant 0 : index
    %39 = vector.load %arg2[%c5, %c0_39, %c0_40] : memref<9x32x32xbf16, #tpu.memory_space<vmem>>, vector<1x32x32xbf16>
    %40 = vector.shape_cast %39 : vector<1x32x32xbf16> to vector<32x32xbf16>
    %cst_41 = arith.constant dense<0.000000e+00> : vector<512x32xf32>
    %41 = tpu.matmul %38, %40, %cst_41 {dimension_numbers = #tpu.dot_dimension_numbers<[1], [0], [0], [1], [0, 0, 1, 1], [], []>} : vector<512x32xbf16>, vector<32x32xbf16>, vector<512x32xf32> -> vector<512x32xf32>
    %42 = arith.addf %35, %41 : vector<512x32xf32>
    %c0_42 = arith.constant 0 : index
    %c2_43 = arith.constant 2 : index
    %c0_44 = arith.constant 0 : index
    %c0_45 = arith.constant 0 : index
    %43 = vector.load %arg1[%c0_42, %c2_43, %c0_44, %c0_45] : memref<2x18x18x32xf32, #tpu.memory_space<vmem>>, vector<2x16x16x32xf32>
    %44 = vector.shape_cast %43 : vector<2x16x16x32xf32> to vector<512x32xf32>
    %45 = arith.truncf %44 : vector<512x32xf32> to vector<512x32xbf16>
    %c6 = arith.constant 6 : index
    %c0_46 = arith.constant 0 : index
    %c0_47 = arith.constant 0 : index
    %46 = vector.load %arg2[%c6, %c0_46, %c0_47] : memref<9x32x32xbf16, #tpu.memory_space<vmem>>, vector<1x32x32xbf16>
    %47 = vector.shape_cast %46 : vector<1x32x32xbf16> to vector<32x32xbf16>
    %cst_48 = arith.constant dense<0.000000e+00> : vector<512x32xf32>
    %48 = tpu.matmul %45, %47, %cst_48 {dimension_numbers = #tpu.dot_dimension_numbers<[1], [0], [0], [1], [0, 0, 1, 1], [], []>} : vector<512x32xbf16>, vector<32x32xbf16>, vector<512x32xf32> -> vector<512x32xf32>
    %49 = arith.addf %42, %48 : vector<512x32xf32>
    %c0_49 = arith.constant 0 : index
    %c2_50 = arith.constant 2 : index
    %c1_51 = arith.constant 1 : index
    %c0_52 = arith.constant 0 : index
    %50 = vector.load %arg1[%c0_49, %c2_50, %c1_51, %c0_52] : memref<2x18x18x32xf32, #tpu.memory_space<vmem>>, vector<2x16x16x32xf32>
    %51 = vector.shape_cast %50 : vector<2x16x16x32xf32> to vector<512x32xf32>
    %52 = arith.truncf %51 : vector<512x32xf32> to vector<512x32xbf16>
    %c7 = arith.constant 7 : index
    %c0_53 = arith.constant 0 : index
    %c0_54 = arith.constant 0 : index
    %53 = vector.load %arg2[%c7, %c0_53, %c0_54] : memref<9x32x32xbf16, #tpu.memory_space<vmem>>, vector<1x32x32xbf16>
    %54 = vector.shape_cast %53 : vector<1x32x32xbf16> to vector<32x32xbf16>
    %cst_55 = arith.constant dense<0.000000e+00> : vector<512x32xf32>
    %55 = tpu.matmul %52, %54, %cst_55 {dimension_numbers = #tpu.dot_dimension_numbers<[1], [0], [0], [1], [0, 0, 1, 1], [], []>} : vector<512x32xbf16>, vector<32x32xbf16>, vector<512x32xf32> -> vector<512x32xf32>
    %56 = arith.addf %49, %55 : vector<512x32xf32>
    %c0_56 = arith.constant 0 : index
    %c2_57 = arith.constant 2 : index
    %c2_58 = arith.constant 2 : index
    %c0_59 = arith.constant 0 : index
    %57 = vector.load %arg1[%c0_56, %c2_57, %c2_58, %c0_59] : memref<2x18x18x32xf32, #tpu.memory_space<vmem>>, vector<2x16x16x32xf32>
    %58 = vector.shape_cast %57 : vector<2x16x16x32xf32> to vector<512x32xf32>
    %59 = arith.truncf %58 : vector<512x32xf32> to vector<512x32xbf16>
    %c8 = arith.constant 8 : index
    %c0_60 = arith.constant 0 : index
    %c0_61 = arith.constant 0 : index
    %60 = vector.load %arg2[%c8, %c0_60, %c0_61] : memref<9x32x32xbf16, #tpu.memory_space<vmem>>, vector<1x32x32xbf16>
    %61 = vector.shape_cast %60 : vector<1x32x32xbf16> to vector<32x32xbf16>
    %cst_62 = arith.constant dense<0.000000e+00> : vector<512x32xf32>
    %62 = tpu.matmul %59, %61, %cst_62 {dimension_numbers = #tpu.dot_dimension_numbers<[1], [0], [0], [1], [0, 0, 1, 1], [], []>} : vector<512x32xbf16>, vector<32x32xbf16>, vector<512x32xf32> -> vector<512x32xf32>
    %63 = arith.addf %56, %62 : vector<512x32xf32>
    %c0_63 = arith.constant 0 : index
    %c0_64 = arith.constant 0 : index
    %64 = vector.load %arg3[%c0_63, %c0_64] : memref<1x32xf32, #tpu.memory_space<vmem>>, vector<1x32xf32>
    %65 = vector.broadcast %64 : vector<1x32xf32> to vector<512x32xf32>
    %66 = arith.addf %63, %65 : vector<512x32xf32>
    %67 = vector.shape_cast %66 : vector<512x32xf32> to vector<2x8x2x16x32xf32>
    %68 = vector.extract_strided_slice %67 {offsets = [0, 0, 0, 0, 0], sizes = [2, 8, 1, 16, 32], strides = [1, 1, 1, 1, 1]} : vector<2x8x2x16x32xf32> to vector<2x8x1x16x32xf32>
    %69 = vector.shape_cast %68 : vector<2x8x1x16x32xf32> to vector<2x8x16x32xf32>
    %70 = vector.extract_strided_slice %67 {offsets = [0, 0, 1, 0, 0], sizes = [2, 8, 1, 16, 32], strides = [1, 1, 1, 1, 1]} : vector<2x8x2x16x32xf32> to vector<2x8x1x16x32xf32>
    %71 = vector.shape_cast %70 : vector<2x8x1x16x32xf32> to vector<2x8x16x32xf32>
    %72 = arith.maximumf %69, %71 : vector<2x8x16x32xf32>
    %c0_65 = arith.constant 0 : index
    %c0_66 = arith.constant 0 : index
    %c0_67 = arith.constant 0 : index
    %c0_68 = arith.constant 0 : index
    %73 = vector.load %arg9[%c0_65, %c0_66, %c0_67, %c0_68] : memref<2x8x16x32xf32, #tpu.memory_space<vmem>>, vector<2x8x16x32xf32>
    tpu.vector_store %arg9[%c0_65, %c0_66, %c0_67, %c0_68], %72 {strides = array<i32>} : memref<2x8x16x32xf32, #tpu.memory_space<vmem>>, vector<2x8x16x32xf32>,
    %c0_69 = arith.constant 0 : index
    %c0_70 = arith.constant 0 : index
    %c0_71 = arith.constant 0 : index
    %c0_72 = arith.constant 0 : index
    %74 = tpu.strided_load %arg9[%c0_69, %c0_70, %c0_71, %c0_72] {strides = array<i32: 1, 1, 2, 1>} : memref<2x8x16x32xf32, #tpu.memory_space<vmem>>, vector<2x8x8x32xf32>
    %c0_73 = arith.constant 0 : index
    %c0_74 = arith.constant 0 : index
    %c1_75 = arith.constant 1 : index
    %c0_76 = arith.constant 0 : index
    %75 = tpu.strided_load %arg9[%c0_73, %c0_74, %c1_75, %c0_76] {strides = array<i32: 1, 1, 2, 1>} : memref<2x8x16x32xf32, #tpu.memory_space<vmem>>, vector<2x8x8x32xf32>
    %76 = arith.maximumf %74, %75 : vector<2x8x8x32xf32>
    %cst_77 = arith.constant 0.000000e+00 : f32
    %77 = vector.broadcast %cst_77 : f32 to vector<2x8x8x32xf32>
    %78 = arith.maximumf %76, %77 : vector<2x8x8x32xf32>
    %cst_78 = arith.constant 0.000000e+00 : f32
    %79 = vector.broadcast %cst_78 : f32 to vector<2x10x17x32xf32>
    %c0_79 = arith.constant 0 : index
    %c0_80 = arith.constant 0 : index
    %c0_81 = arith.constant 0 : index
    %c0_82 = arith.constant 0 : index
    %80 = vector.load %arg10[%c0_79, %c0_80, %c0_81, %c0_82] : memref<2x10x17x32xf32, #tpu.memory_space<vmem>>, vector<2x10x17x32xf32>
    tpu.vector_store %arg10[%c0_79, %c0_80, %c0_81, %c0_82], %79 {strides = array<i32>} : memref<2x10x17x32xf32, #tpu.memory_space<vmem>>, vector<2x10x17x32xf32>,
    %c0_83 = arith.constant 0 : index
    %c1_84 = arith.constant 1 : index
    %c8_85 = arith.constant 8 : index
    %c0_86 = arith.constant 0 : index
    %81 = vector.load %arg10[%c0_83, %c1_84, %c8_85, %c0_86] : memref<2x10x17x32xf32, #tpu.memory_space<vmem>>, vector<2x8x8x32xf32>
    tpu.vector_store %arg10[%c0_83, %c1_84, %c8_85, %c0_86], %78 {strides = array<i32>} : memref<2x10x17x32xf32, #tpu.memory_space<vmem>>, vector<2x8x8x32xf32>,
    %cst_87 = arith.constant 0.000000e+00 : f32
    %82 = vector.broadcast %cst_87 : f32 to vector<128x32xf32>
    %c0_88 = arith.constant 0 : index
    %c0_89 = arith.constant 0 : index
    %c7_90 = arith.constant 7 : index
    %c0_91 = arith.constant 0 : index
    %83 = vector.load %arg10[%c0_88, %c0_89, %c7_90, %c0_91] : memref<2x10x17x32xf32, #tpu.memory_space<vmem>>, vector<2x8x8x32xf32>
    %84 = vector.shape_cast %83 : vector<2x8x8x32xf32> to vector<128x32xf32>
    %85 = arith.truncf %84 : vector<128x32xf32> to vector<128x32xbf16>
    %c0_92 = arith.constant 0 : index
    %c0_93 = arith.constant 0 : index
    %c0_94 = arith.constant 0 : index
    %86 = vector.load %arg4[%c0_92, %c0_93, %c0_94] : memref<9x32x32xbf16, #tpu.memory_space<vmem>>, vector<1x32x32xbf16>
    %87 = vector.shape_cast %86 : vector<1x32x32xbf16> to vector<32x32xbf16>
    %cst_95 = arith.constant dense<0.000000e+00> : vector<128x32xf32>
    %88 = tpu.matmul %85, %87, %cst_95 {dimension_numbers = #tpu.dot_dimension_numbers<[1], [0], [0], [1], [0, 0, 1, 1], [], []>} : vector<128x32xbf16>, vector<32x32xbf16>, vector<128x32xf32> -> vector<128x32xf32>
    %89 = arith.addf %82, %88 : vector<128x32xf32>
    %c0_96 = arith.constant 0 : index
    %c0_97 = arith.constant 0 : index
    %c8_98 = arith.constant 8 : index
    %c0_99 = arith.constant 0 : index
    %90 = vector.load %arg10[%c0_96, %c0_97, %c8_98, %c0_99] : memref<2x10x17x32xf32, #tpu.memory_space<vmem>>, vector<2x8x8x32xf32>
    %91 = vector.shape_cast %90 : vector<2x8x8x32xf32> to vector<128x32xf32>
    %92 = arith.truncf %91 : vector<128x32xf32> to vector<128x32xbf16>
    %c1_100 = arith.constant 1 : index
    %c0_101 = arith.constant 0 : index
    %c0_102 = arith.constant 0 : index
    %93 = vector.load %arg4[%c1_100, %c0_101, %c0_102] : memref<9x32x32xbf16, #tpu.memory_space<vmem>>, vector<1x32x32xbf16>
    %94 = vector.shape_cast %93 : vector<1x32x32xbf16> to vector<32x32xbf16>
    %cst_103 = arith.constant dense<0.000000e+00> : vector<128x32xf32>
    %95 = tpu.matmul %92, %94, %cst_103 {dimension_numbers = #tpu.dot_dimension_numbers<[1], [0], [0], [1], [0, 0, 1, 1], [], []>} : vector<128x32xbf16>, vector<32x32xbf16>, vector<128x32xf32> -> vector<128x32xf32>
    %96 = arith.addf %89, %95 : vector<128x32xf32>
    %c0_104 = arith.constant 0 : index
    %c0_105 = arith.constant 0 : index
    %c9 = arith.constant 9 : index
    %c0_106 = arith.constant 0 : index
    %97 = vector.load %arg10[%c0_104, %c0_105, %c9, %c0_106] : memref<2x10x17x32xf32, #tpu.memory_space<vmem>>, vector<2x8x8x32xf32>
    %98 = vector.shape_cast %97 : vector<2x8x8x32xf32> to vector<128x32xf32>
    %99 = arith.truncf %98 : vector<128x32xf32> to vector<128x32xbf16>
    %c2_107 = arith.constant 2 : index
    %c0_108 = arith.constant 0 : index
    %c0_109 = arith.constant 0 : index
    %100 = vector.load %arg4[%c2_107, %c0_108, %c0_109] : memref<9x32x32xbf16, #tpu.memory_space<vmem>>, vector<1x32x32xbf16>
    %101 = vector.shape_cast %100 : vector<1x32x32xbf16> to vector<32x32xbf16>
    %cst_110 = arith.constant dense<0.000000e+00> : vector<128x32xf32>
    %102 = tpu.matmul %99, %101, %cst_110 {dimension_numbers = #tpu.dot_dimension_numbers<[1], [0], [0], [1], [0, 0, 1, 1], [], []>} : vector<128x32xbf16>, vector<32x32xbf16>, vector<128x32xf32> -> vector<128x32xf32>
    %103 = arith.addf %96, %102 : vector<128x32xf32>
    %c0_111 = arith.constant 0 : index
    %c1_112 = arith.constant 1 : index
    %c7_113 = arith.constant 7 : index
    %c0_114 = arith.constant 0 : index
    %104 = vector.load %arg10[%c0_111, %c1_112, %c7_113, %c0_114] : memref<2x10x17x32xf32, #tpu.memory_space<vmem>>, vector<2x8x8x32xf32>
    %105 = vector.shape_cast %104 : vector<2x8x8x32xf32> to vector<128x32xf32>
    %106 = arith.truncf %105 : vector<128x32xf32> to vector<128x32xbf16>
    %c3_115 = arith.constant 3 : index
    %c0_116 = arith.constant 0 : index
    %c0_117 = arith.constant 0 : index
    %107 = vector.load %arg4[%c3_115, %c0_116, %c0_117] : memref<9x32x32xbf16, #tpu.memory_space<vmem>>, vector<1x32x32xbf16>
    %108 = vector.shape_cast %107 : vector<1x32x32xbf16> to vector<32x32xbf16>
    %cst_118 = arith.constant dense<0.000000e+00> : vector<128x32xf32>
    %109 = tpu.matmul %106, %108, %cst_118 {dimension_numbers = #tpu.dot_dimension_numbers<[1], [0], [0], [1], [0, 0, 1, 1], [], []>} : vector<128x32xbf16>, vector<32x32xbf16>, vector<128x32xf32> -> vector<128x32xf32>
    %110 = arith.addf %103, %109 : vector<128x32xf32>
    %c0_119 = arith.constant 0 : index
    %c1_120 = arith.constant 1 : index
    %c8_121 = arith.constant 8 : index
    %c0_122 = arith.constant 0 : index
    %111 = vector.load %arg10[%c0_119, %c1_120, %c8_121, %c0_122] : memref<2x10x17x32xf32, #tpu.memory_space<vmem>>, vector<2x8x8x32xf32>
    %112 = vector.shape_cast %111 : vector<2x8x8x32xf32> to vector<128x32xf32>
    %113 = arith.truncf %112 : vector<128x32xf32> to vector<128x32xbf16>
    %c4_123 = arith.constant 4 : index
    %c0_124 = arith.constant 0 : index
    %c0_125 = arith.constant 0 : index
    %114 = vector.load %arg4[%c4_123, %c0_124, %c0_125] : memref<9x32x32xbf16, #tpu.memory_space<vmem>>, vector<1x32x32xbf16>
    %115 = vector.shape_cast %114 : vector<1x32x32xbf16> to vector<32x32xbf16>
    %cst_126 = arith.constant dense<0.000000e+00> : vector<128x32xf32>
    %116 = tpu.matmul %113, %115, %cst_126 {dimension_numbers = #tpu.dot_dimension_numbers<[1], [0], [0], [1], [0, 0, 1, 1], [], []>} : vector<128x32xbf16>, vector<32x32xbf16>, vector<128x32xf32> -> vector<128x32xf32>
    %117 = arith.addf %110, %116 : vector<128x32xf32>
    %c0_127 = arith.constant 0 : index
    %c1_128 = arith.constant 1 : index
    %c9_129 = arith.constant 9 : index
    %c0_130 = arith.constant 0 : index
    %118 = vector.load %arg10[%c0_127, %c1_128, %c9_129, %c0_130] : memref<2x10x17x32xf32, #tpu.memory_space<vmem>>, vector<2x8x8x32xf32>
    %119 = vector.shape_cast %118 : vector<2x8x8x32xf32> to vector<128x32xf32>
    %120 = arith.truncf %119 : vector<128x32xf32> to vector<128x32xbf16>
    %c5_131 = arith.constant 5 : index
    %c0_132 = arith.constant 0 : index
    %c0_133 = arith.constant 0 : index
    %121 = vector.load %arg4[%c5_131, %c0_132, %c0_133] : memref<9x32x32xbf16, #tpu.memory_space<vmem>>, vector<1x32x32xbf16>
    %122 = vector.shape_cast %121 : vector<1x32x32xbf16> to vector<32x32xbf16>
    %cst_134 = arith.constant dense<0.000000e+00> : vector<128x32xf32>
    %123 = tpu.matmul %120, %122, %cst_134 {dimension_numbers = #tpu.dot_dimension_numbers<[1], [0], [0], [1], [0, 0, 1, 1], [], []>} : vector<128x32xbf16>, vector<32x32xbf16>, vector<128x32xf32> -> vector<128x32xf32>
    %124 = arith.addf %117, %123 : vector<128x32xf32>
    %c0_135 = arith.constant 0 : index
    %c2_136 = arith.constant 2 : index
    %c7_137 = arith.constant 7 : index
    %c0_138 = arith.constant 0 : index
    %125 = vector.load %arg10[%c0_135, %c2_136, %c7_137, %c0_138] : memref<2x10x17x32xf32, #tpu.memory_space<vmem>>, vector<2x8x8x32xf32>
    %126 = vector.shape_cast %125 : vector<2x8x8x32xf32> to vector<128x32xf32>
    %127 = arith.truncf %126 : vector<128x32xf32> to vector<128x32xbf16>
    %c6_139 = arith.constant 6 : index
    %c0_140 = arith.constant 0 : index
    %c0_141 = arith.constant 0 : index
    %128 = vector.load %arg4[%c6_139, %c0_140, %c0_141] : memref<9x32x32xbf16, #tpu.memory_space<vmem>>, vector<1x32x32xbf16>
    %129 = vector.shape_cast %128 : vector<1x32x32xbf16> to vector<32x32xbf16>
    %cst_142 = arith.constant dense<0.000000e+00> : vector<128x32xf32>
    %130 = tpu.matmul %127, %129, %cst_142 {dimension_numbers = #tpu.dot_dimension_numbers<[1], [0], [0], [1], [0, 0, 1, 1], [], []>} : vector<128x32xbf16>, vector<32x32xbf16>, vector<128x32xf32> -> vector<128x32xf32>
    %131 = arith.addf %124, %130 : vector<128x32xf32>
    %c0_143 = arith.constant 0 : index
    %c2_144 = arith.constant 2 : index
    %c8_145 = arith.constant 8 : index
    %c0_146 = arith.constant 0 : index
    %132 = vector.load %arg10[%c0_143, %c2_144, %c8_145, %c0_146] : memref<2x10x17x32xf32, #tpu.memory_space<vmem>>, vector<2x8x8x32xf32>
    %133 = vector.shape_cast %132 : vector<2x8x8x32xf32> to vector<128x32xf32>
    %134 = arith.truncf %133 : vector<128x32xf32> to vector<128x32xbf16>
    %c7_147 = arith.constant 7 : index
    %c0_148 = arith.constant 0 : index
    %c0_149 = arith.constant 0 : index
    %135 = vector.load %arg4[%c7_147, %c0_148, %c0_149] : memref<9x32x32xbf16, #tpu.memory_space<vmem>>, vector<1x32x32xbf16>
    %136 = vector.shape_cast %135 : vector<1x32x32xbf16> to vector<32x32xbf16>
    %cst_150 = arith.constant dense<0.000000e+00> : vector<128x32xf32>
    %137 = tpu.matmul %134, %136, %cst_150 {dimension_numbers = #tpu.dot_dimension_numbers<[1], [0], [0], [1], [0, 0, 1, 1], [], []>} : vector<128x32xbf16>, vector<32x32xbf16>, vector<128x32xf32> -> vector<128x32xf32>
    %138 = arith.addf %131, %137 : vector<128x32xf32>
    %c0_151 = arith.constant 0 : index
    %c2_152 = arith.constant 2 : index
    %c9_153 = arith.constant 9 : index
    %c0_154 = arith.constant 0 : index
    %139 = vector.load %arg10[%c0_151, %c2_152, %c9_153, %c0_154] : memref<2x10x17x32xf32, #tpu.memory_space<vmem>>, vector<2x8x8x32xf32>
    %140 = vector.shape_cast %139 : vector<2x8x8x32xf32> to vector<128x32xf32>
    %141 = arith.truncf %140 : vector<128x32xf32> to vector<128x32xbf16>
    %c8_155 = arith.constant 8 : index
    %c0_156 = arith.constant 0 : index
    %c0_157 = arith.constant 0 : index
    %142 = vector.load %arg4[%c8_155, %c0_156, %c0_157] : memref<9x32x32xbf16, #tpu.memory_space<vmem>>, vector<1x32x32xbf16>
    %143 = vector.shape_cast %142 : vector<1x32x32xbf16> to vector<32x32xbf16>
    %cst_158 = arith.constant dense<0.000000e+00> : vector<128x32xf32>
    %144 = tpu.matmul %141, %143, %cst_158 {dimension_numbers = #tpu.dot_dimension_numbers<[1], [0], [0], [1], [0, 0, 1, 1], [], []>} : vector<128x32xbf16>, vector<32x32xbf16>, vector<128x32xf32> -> vector<128x32xf32>
    %145 = arith.addf %138, %144 : vector<128x32xf32>
    %c0_159 = arith.constant 0 : index
    %c0_160 = arith.constant 0 : index
    %146 = vector.load %arg5[%c0_159, %c0_160] : memref<1x32xf32, #tpu.memory_space<vmem>>, vector<1x32xf32>
    %147 = vector.broadcast %146 : vector<1x32xf32> to vector<128x32xf32>
    %148 = arith.addf %145, %147 : vector<128x32xf32>
    %149 = vector.shape_cast %148 : vector<128x32xf32> to vector<2x4x2x8x32xf32>
    %150 = vector.extract_strided_slice %149 {offsets = [0, 0, 0, 0, 0], sizes = [2, 4, 1, 8, 32], strides = [1, 1, 1, 1, 1]} : vector<2x4x2x8x32xf32> to vector<2x4x1x8x32xf32>
    %151 = vector.shape_cast %150 : vector<2x4x1x8x32xf32> to vector<2x4x8x32xf32>
    %152 = vector.extract_strided_slice %149 {offsets = [0, 0, 1, 0, 0], sizes = [2, 4, 1, 8, 32], strides = [1, 1, 1, 1, 1]} : vector<2x4x2x8x32xf32> to vector<2x4x1x8x32xf32>
    %153 = vector.shape_cast %152 : vector<2x4x1x8x32xf32> to vector<2x4x8x32xf32>
    %154 = arith.maximumf %151, %153 : vector<2x4x8x32xf32>
    %c0_161 = arith.constant 0 : index
    %c0_162 = arith.constant 0 : index
    %c0_163 = arith.constant 0 : index
    %c0_164 = arith.constant 0 : index
    %155 = vector.load %arg11[%c0_161, %c0_162, %c0_163, %c0_164] : memref<2x4x8x32xf32, #tpu.memory_space<vmem>>, vector<2x4x8x32xf32>
    tpu.vector_store %arg11[%c0_161, %c0_162, %c0_163, %c0_164], %154 {strides = array<i32>} : memref<2x4x8x32xf32, #tpu.memory_space<vmem>>, vector<2x4x8x32xf32>,
    %c0_165 = arith.constant 0 : index
    %c0_166 = arith.constant 0 : index
    %c0_167 = arith.constant 0 : index
    %c0_168 = arith.constant 0 : index
    %156 = tpu.strided_load %arg11[%c0_165, %c0_166, %c0_167, %c0_168] {strides = array<i32: 1, 1, 2, 1>} : memref<2x4x8x32xf32, #tpu.memory_space<vmem>>, vector<2x4x4x32xf32>
    %c0_169 = arith.constant 0 : index
    %c0_170 = arith.constant 0 : index
    %c1_171 = arith.constant 1 : index
    %c0_172 = arith.constant 0 : index
    %157 = tpu.strided_load %arg11[%c0_169, %c0_170, %c1_171, %c0_172] {strides = array<i32: 1, 1, 2, 1>} : memref<2x4x8x32xf32, #tpu.memory_space<vmem>>, vector<2x4x4x32xf32>
    %158 = arith.maximumf %156, %157 : vector<2x4x4x32xf32>
    %cst_173 = arith.constant 0.000000e+00 : f32
    %159 = vector.broadcast %cst_173 : f32 to vector<2x4x4x32xf32>
    %160 = arith.maximumf %158, %159 : vector<2x4x4x32xf32>
    %c0_174 = arith.constant 0 : index
    %c0_175 = arith.constant 0 : index
    %c0_176 = arith.constant 0 : index
    %c0_177 = arith.constant 0 : index
    %161 = vector.load %arg12[%c0_174, %c0_175, %c0_176, %c0_177] : memref<2x4x4x32xf32, #tpu.memory_space<vmem>>, vector<2x4x4x32xf32>
    tpu.vector_store %arg12[%c0_174, %c0_175, %c0_176, %c0_177], %160 {strides = array<i32>} : memref<2x4x4x32xf32, #tpu.memory_space<vmem>>, vector<2x4x4x32xf32>,
    %cst_178 = arith.constant 0.000000e+00 : f32
    %162 = vector.broadcast %cst_178 : f32 to vector<2x2xf32>
    %c0_179 = arith.constant 0 : index
    %c0_180 = arith.constant 0 : index
    %c0_181 = arith.constant 0 : index
    %c0_182 = arith.constant 0 : index
    %163 = vector.load %arg12[%c0_179, %c0_180, %c0_181, %c0_182] : memref<2x4x4x32xf32, #tpu.memory_space<vmem>>, vector<2x1x1x32xf32>
    %164 = vector.shape_cast %163 : vector<2x1x1x32xf32> to vector<2x32xf32>
    %165 = arith.truncf %164 : vector<2x32xf32> to vector<2x32xbf16>
    %c0_183 = arith.constant 0 : index
    %c0_184 = arith.constant 0 : index
    %c0_185 = arith.constant 0 : index
    %166 = vector.load %arg6[%c0_183, %c0_184, %c0_185] : memref<16x32x2xbf16, #tpu.memory_space<vmem>>, vector<1x32x2xbf16>
    %167 = vector.shape_cast %166 : vector<1x32x2xbf16> to vector<32x2xbf16>
    %cst_186 = arith.constant dense<0.000000e+00> : vector<2x2xf32>
    %168 = tpu.matmul %165, %167, %cst_186 {dimension_numbers = #tpu.dot_dimension_numbers<[1], [0], [0], [1], [0, 0, 1, 1], [], []>} : vector<2x32xbf16>, vector<32x2xbf16>, vector<2x2xf32> -> vector<2x2xf32>
    %169 = arith.addf %162, %168 : vector<2x2xf32>
    %c0_187 = arith.constant 0 : index
    %c0_188 = arith.constant 0 : index
    %c1_189 = arith.constant 1 : index
    %c0_190 = arith.constant 0 : index
    %170 = vector.load %arg12[%c0_187, %c0_188, %c1_189, %c0_190] : memref<2x4x4x32xf32, #tpu.memory_space<vmem>>, vector<2x1x1x32xf32>
    %171 = vector.shape_cast %170 : vector<2x1x1x32xf32> to vector<2x32xf32>
    %172 = arith.truncf %171 : vector<2x32xf32> to vector<2x32xbf16>
    %c1_191 = arith.constant 1 : index
    %c0_192 = arith.constant 0 : index
    %c0_193 = arith.constant 0 : index
    %173 = vector.load %arg6[%c1_191, %c0_192, %c0_193] : memref<16x32x2xbf16, #tpu.memory_space<vmem>>, vector<1x32x2xbf16>
    %174 = vector.shape_cast %173 : vector<1x32x2xbf16> to vector<32x2xbf16>
    %cst_194 = arith.constant dense<0.000000e+00> : vector<2x2xf32>
    %175 = tpu.matmul %172, %174, %cst_194 {dimension_numbers = #tpu.dot_dimension_numbers<[1], [0], [0], [1], [0, 0, 1, 1], [], []>} : vector<2x32xbf16>, vector<32x2xbf16>, vector<2x2xf32> -> vector<2x2xf32>
    %176 = arith.addf %169, %175 : vector<2x2xf32>
    %c0_195 = arith.constant 0 : index
    %c0_196 = arith.constant 0 : index
    %c2_197 = arith.constant 2 : index
    %c0_198 = arith.constant 0 : index
    %177 = vector.load %arg12[%c0_195, %c0_196, %c2_197, %c0_198] : memref<2x4x4x32xf32, #tpu.memory_space<vmem>>, vector<2x1x1x32xf32>
    %178 = vector.shape_cast %177 : vector<2x1x1x32xf32> to vector<2x32xf32>
    %179 = arith.truncf %178 : vector<2x32xf32> to vector<2x32xbf16>
    %c2_199 = arith.constant 2 : index
    %c0_200 = arith.constant 0 : index
    %c0_201 = arith.constant 0 : index
    %180 = vector.load %arg6[%c2_199, %c0_200, %c0_201] : memref<16x32x2xbf16, #tpu.memory_space<vmem>>, vector<1x32x2xbf16>
    %181 = vector.shape_cast %180 : vector<1x32x2xbf16> to vector<32x2xbf16>
    %cst_202 = arith.constant dense<0.000000e+00> : vector<2x2xf32>
    %182 = tpu.matmul %179, %181, %cst_202 {dimension_numbers = #tpu.dot_dimension_numbers<[1], [0], [0], [1], [0, 0, 1, 1], [], []>} : vector<2x32xbf16>, vector<32x2xbf16>, vector<2x2xf32> -> vector<2x2xf32>
    %183 = arith.addf %176, %182 : vector<2x2xf32>
    %c0_203 = arith.constant 0 : index
    %c0_204 = arith.constant 0 : index
    %c3_205 = arith.constant 3 : index
    %c0_206 = arith.constant 0 : index
    %184 = vector.load %arg12[%c0_203, %c0_204, %c3_205, %c0_206] : memref<2x4x4x32xf32, #tpu.memory_space<vmem>>, vector<2x1x1x32xf32>
    %185 = vector.shape_cast %184 : vector<2x1x1x32xf32> to vector<2x32xf32>
    %186 = arith.truncf %185 : vector<2x32xf32> to vector<2x32xbf16>
    %c3_207 = arith.constant 3 : index
    %c0_208 = arith.constant 0 : index
    %c0_209 = arith.constant 0 : index
    %187 = vector.load %arg6[%c3_207, %c0_208, %c0_209] : memref<16x32x2xbf16, #tpu.memory_space<vmem>>, vector<1x32x2xbf16>
    %188 = vector.shape_cast %187 : vector<1x32x2xbf16> to vector<32x2xbf16>
    %cst_210 = arith.constant dense<0.000000e+00> : vector<2x2xf32>
    %189 = tpu.matmul %186, %188, %cst_210 {dimension_numbers = #tpu.dot_dimension_numbers<[1], [0], [0], [1], [0, 0, 1, 1], [], []>} : vector<2x32xbf16>, vector<32x2xbf16>, vector<2x2xf32> -> vector<2x2xf32>
    %190 = arith.addf %183, %189 : vector<2x2xf32>
    %c0_211 = arith.constant 0 : index
    %c1_212 = arith.constant 1 : index
    %c0_213 = arith.constant 0 : index
    %c0_214 = arith.constant 0 : index
    %191 = vector.load %arg12[%c0_211, %c1_212, %c0_213, %c0_214] : memref<2x4x4x32xf32, #tpu.memory_space<vmem>>, vector<2x1x1x32xf32>
    %192 = vector.shape_cast %191 : vector<2x1x1x32xf32> to vector<2x32xf32>
    %193 = arith.truncf %192 : vector<2x32xf32> to vector<2x32xbf16>
    %c4_215 = arith.constant 4 : index
    %c0_216 = arith.constant 0 : index
    %c0_217 = arith.constant 0 : index
    %194 = vector.load %arg6[%c4_215, %c0_216, %c0_217] : memref<16x32x2xbf16, #tpu.memory_space<vmem>>, vector<1x32x2xbf16>
    %195 = vector.shape_cast %194 : vector<1x32x2xbf16> to vector<32x2xbf16>
    %cst_218 = arith.constant dense<0.000000e+00> : vector<2x2xf32>
    %196 = tpu.matmul %193, %195, %cst_218 {dimension_numbers = #tpu.dot_dimension_numbers<[1], [0], [0], [1], [0, 0, 1, 1], [], []>} : vector<2x32xbf16>, vector<32x2xbf16>, vector<2x2xf32> -> vector<2x2xf32>
    %197 = arith.addf %190, %196 : vector<2x2xf32>
    %c0_219 = arith.constant 0 : index
    %c1_220 = arith.constant 1 : index
    %c1_221 = arith.constant 1 : index
    %c0_222 = arith.constant 0 : index
    %198 = vector.load %arg12[%c0_219, %c1_220, %c1_221, %c0_222] : memref<2x4x4x32xf32, #tpu.memory_space<vmem>>, vector<2x1x1x32xf32>
    %199 = vector.shape_cast %198 : vector<2x1x1x32xf32> to vector<2x32xf32>
    %200 = arith.truncf %199 : vector<2x32xf32> to vector<2x32xbf16>
    %c5_223 = arith.constant 5 : index
    %c0_224 = arith.constant 0 : index
    %c0_225 = arith.constant 0 : index
    %201 = vector.load %arg6[%c5_223, %c0_224, %c0_225] : memref<16x32x2xbf16, #tpu.memory_space<vmem>>, vector<1x32x2xbf16>
    %202 = vector.shape_cast %201 : vector<1x32x2xbf16> to vector<32x2xbf16>
    %cst_226 = arith.constant dense<0.000000e+00> : vector<2x2xf32>
    %203 = tpu.matmul %200, %202, %cst_226 {dimension_numbers = #tpu.dot_dimension_numbers<[1], [0], [0], [1], [0, 0, 1, 1], [], []>} : vector<2x32xbf16>, vector<32x2xbf16>, vector<2x2xf32> -> vector<2x2xf32>
    %204 = arith.addf %197, %203 : vector<2x2xf32>
    %c0_227 = arith.constant 0 : index
    %c1_228 = arith.constant 1 : index
    %c2_229 = arith.constant 2 : index
    %c0_230 = arith.constant 0 : index
    %205 = vector.load %arg12[%c0_227, %c1_228, %c2_229, %c0_230] : memref<2x4x4x32xf32, #tpu.memory_space<vmem>>, vector<2x1x1x32xf32>
    %206 = vector.shape_cast %205 : vector<2x1x1x32xf32> to vector<2x32xf32>
    %207 = arith.truncf %206 : vector<2x32xf32> to vector<2x32xbf16>
    %c6_231 = arith.constant 6 : index
    %c0_232 = arith.constant 0 : index
    %c0_233 = arith.constant 0 : index
    %208 = vector.load %arg6[%c6_231, %c0_232, %c0_233] : memref<16x32x2xbf16, #tpu.memory_space<vmem>>, vector<1x32x2xbf16>
    %209 = vector.shape_cast %208 : vector<1x32x2xbf16> to vector<32x2xbf16>
    %cst_234 = arith.constant dense<0.000000e+00> : vector<2x2xf32>
    %210 = tpu.matmul %207, %209, %cst_234 {dimension_numbers = #tpu.dot_dimension_numbers<[1], [0], [0], [1], [0, 0, 1, 1], [], []>} : vector<2x32xbf16>, vector<32x2xbf16>, vector<2x2xf32> -> vector<2x2xf32>
    %211 = arith.addf %204, %210 : vector<2x2xf32>
    %c0_235 = arith.constant 0 : index
    %c1_236 = arith.constant 1 : index
    %c3_237 = arith.constant 3 : index
    %c0_238 = arith.constant 0 : index
    %212 = vector.load %arg12[%c0_235, %c1_236, %c3_237, %c0_238] : memref<2x4x4x32xf32, #tpu.memory_space<vmem>>, vector<2x1x1x32xf32>
    %213 = vector.shape_cast %212 : vector<2x1x1x32xf32> to vector<2x32xf32>
    %214 = arith.truncf %213 : vector<2x32xf32> to vector<2x32xbf16>
    %c7_239 = arith.constant 7 : index
    %c0_240 = arith.constant 0 : index
    %c0_241 = arith.constant 0 : index
    %215 = vector.load %arg6[%c7_239, %c0_240, %c0_241] : memref<16x32x2xbf16, #tpu.memory_space<vmem>>, vector<1x32x2xbf16>
    %216 = vector.shape_cast %215 : vector<1x32x2xbf16> to vector<32x2xbf16>
    %cst_242 = arith.constant dense<0.000000e+00> : vector<2x2xf32>
    %217 = tpu.matmul %214, %216, %cst_242 {dimension_numbers = #tpu.dot_dimension_numbers<[1], [0], [0], [1], [0, 0, 1, 1], [], []>} : vector<2x32xbf16>, vector<32x2xbf16>, vector<2x2xf32> -> vector<2x2xf32>
    %218 = arith.addf %211, %217 : vector<2x2xf32>
    %c0_243 = arith.constant 0 : index
    %c2_244 = arith.constant 2 : index
    %c0_245 = arith.constant 0 : index
    %c0_246 = arith.constant 0 : index
    %219 = vector.load %arg12[%c0_243, %c2_244, %c0_245, %c0_246] : memref<2x4x4x32xf32, #tpu.memory_space<vmem>>, vector<2x1x1x32xf32>
    %220 = vector.shape_cast %219 : vector<2x1x1x32xf32> to vector<2x32xf32>
    %221 = arith.truncf %220 : vector<2x32xf32> to vector<2x32xbf16>
    %c8_247 = arith.constant 8 : index
    %c0_248 = arith.constant 0 : index
    %c0_249 = arith.constant 0 : index
    %222 = vector.load %arg6[%c8_247, %c0_248, %c0_249] : memref<16x32x2xbf16, #tpu.memory_space<vmem>>, vector<1x32x2xbf16>
    %223 = vector.shape_cast %222 : vector<1x32x2xbf16> to vector<32x2xbf16>
    %cst_250 = arith.constant dense<0.000000e+00> : vector<2x2xf32>
    %224 = tpu.matmul %221, %223, %cst_250 {dimension_numbers = #tpu.dot_dimension_numbers<[1], [0], [0], [1], [0, 0, 1, 1], [], []>} : vector<2x32xbf16>, vector<32x2xbf16>, vector<2x2xf32> -> vector<2x2xf32>
    %225 = arith.addf %218, %224 : vector<2x2xf32>
    %c0_251 = arith.constant 0 : index
    %c2_252 = arith.constant 2 : index
    %c1_253 = arith.constant 1 : index
    %c0_254 = arith.constant 0 : index
    %226 = vector.load %arg12[%c0_251, %c2_252, %c1_253, %c0_254] : memref<2x4x4x32xf32, #tpu.memory_space<vmem>>, vector<2x1x1x32xf32>
    %227 = vector.shape_cast %226 : vector<2x1x1x32xf32> to vector<2x32xf32>
    %228 = arith.truncf %227 : vector<2x32xf32> to vector<2x32xbf16>
    %c9_255 = arith.constant 9 : index
    %c0_256 = arith.constant 0 : index
    %c0_257 = arith.constant 0 : index
    %229 = vector.load %arg6[%c9_255, %c0_256, %c0_257] : memref<16x32x2xbf16, #tpu.memory_space<vmem>>, vector<1x32x2xbf16>
    %230 = vector.shape_cast %229 : vector<1x32x2xbf16> to vector<32x2xbf16>
    %cst_258 = arith.constant dense<0.000000e+00> : vector<2x2xf32>
    %231 = tpu.matmul %228, %230, %cst_258 {dimension_numbers = #tpu.dot_dimension_numbers<[1], [0], [0], [1], [0, 0, 1, 1], [], []>} : vector<2x32xbf16>, vector<32x2xbf16>, vector<2x2xf32> -> vector<2x2xf32>
    %232 = arith.addf %225, %231 : vector<2x2xf32>
    %c0_259 = arith.constant 0 : index
    %c2_260 = arith.constant 2 : index
    %c2_261 = arith.constant 2 : index
    %c0_262 = arith.constant 0 : index
    %233 = vector.load %arg12[%c0_259, %c2_260, %c2_261, %c0_262] : memref<2x4x4x32xf32, #tpu.memory_space<vmem>>, vector<2x1x1x32xf32>
    %234 = vector.shape_cast %233 : vector<2x1x1x32xf32> to vector<2x32xf32>
    %235 = arith.truncf %234 : vector<2x32xf32> to vector<2x32xbf16>
    %c10 = arith.constant 10 : index
    %c0_263 = arith.constant 0 : index
    %c0_264 = arith.constant 0 : index
    %236 = vector.load %arg6[%c10, %c0_263, %c0_264] : memref<16x32x2xbf16, #tpu.memory_space<vmem>>, vector<1x32x2xbf16>
    %237 = vector.shape_cast %236 : vector<1x32x2xbf16> to vector<32x2xbf16>
    %cst_265 = arith.constant dense<0.000000e+00> : vector<2x2xf32>
    %238 = tpu.matmul %235, %237, %cst_265 {dimension_numbers = #tpu.dot_dimension_numbers<[1], [0], [0], [1], [0, 0, 1, 1], [], []>} : vector<2x32xbf16>, vector<32x2xbf16>, vector<2x2xf32> -> vector<2x2xf32>
    %239 = arith.addf %232, %238 : vector<2x2xf32>
    %c0_266 = arith.constant 0 : index
    %c2_267 = arith.constant 2 : index
    %c3_268 = arith.constant 3 : index
    %c0_269 = arith.constant 0 : index
    %240 = vector.load %arg12[%c0_266, %c2_267, %c3_268, %c0_269] : memref<2x4x4x32xf32, #tpu.memory_space<vmem>>, vector<2x1x1x32xf32>
    %241 = vector.shape_cast %240 : vector<2x1x1x32xf32> to vector<2x32xf32>
    %242 = arith.truncf %241 : vector<2x32xf32> to vector<2x32xbf16>
    %c11 = arith.constant 11 : index
    %c0_270 = arith.constant 0 : index
    %c0_271 = arith.constant 0 : index
    %243 = vector.load %arg6[%c11, %c0_270, %c0_271] : memref<16x32x2xbf16, #tpu.memory_space<vmem>>, vector<1x32x2xbf16>
    %244 = vector.shape_cast %243 : vector<1x32x2xbf16> to vector<32x2xbf16>
    %cst_272 = arith.constant dense<0.000000e+00> : vector<2x2xf32>
    %245 = tpu.matmul %242, %244, %cst_272 {dimension_numbers = #tpu.dot_dimension_numbers<[1], [0], [0], [1], [0, 0, 1, 1], [], []>} : vector<2x32xbf16>, vector<32x2xbf16>, vector<2x2xf32> -> vector<2x2xf32>
    %246 = arith.addf %239, %245 : vector<2x2xf32>
    %c0_273 = arith.constant 0 : index
    %c3_274 = arith.constant 3 : index
    %c0_275 = arith.constant 0 : index
    %c0_276 = arith.constant 0 : index
    %247 = vector.load %arg12[%c0_273, %c3_274, %c0_275, %c0_276] : memref<2x4x4x32xf32, #tpu.memory_space<vmem>>, vector<2x1x1x32xf32>
    %248 = vector.shape_cast %247 : vector<2x1x1x32xf32> to vector<2x32xf32>
    %249 = arith.truncf %248 : vector<2x32xf32> to vector<2x32xbf16>
    %c12 = arith.constant 12 : index
    %c0_277 = arith.constant 0 : index
    %c0_278 = arith.constant 0 : index
    %250 = vector.load %arg6[%c12, %c0_277, %c0_278] : memref<16x32x2xbf16, #tpu.memory_space<vmem>>, vector<1x32x2xbf16>
    %251 = vector.shape_cast %250 : vector<1x32x2xbf16> to vector<32x2xbf16>
    %cst_279 = arith.constant dense<0.000000e+00> : vector<2x2xf32>
    %252 = tpu.matmul %249, %251, %cst_279 {dimension_numbers = #tpu.dot_dimension_numbers<[1], [0], [0], [1], [0, 0, 1, 1], [], []>} : vector<2x32xbf16>, vector<32x2xbf16>, vector<2x2xf32> -> vector<2x2xf32>
    %253 = arith.addf %246, %252 : vector<2x2xf32>
    %c0_280 = arith.constant 0 : index
    %c3_281 = arith.constant 3 : index
    %c1_282 = arith.constant 1 : index
    %c0_283 = arith.constant 0 : index
    %254 = vector.load %arg12[%c0_280, %c3_281, %c1_282, %c0_283] : memref<2x4x4x32xf32, #tpu.memory_space<vmem>>, vector<2x1x1x32xf32>
    %255 = vector.shape_cast %254 : vector<2x1x1x32xf32> to vector<2x32xf32>
    %256 = arith.truncf %255 : vector<2x32xf32> to vector<2x32xbf16>
    %c13 = arith.constant 13 : index
    %c0_284 = arith.constant 0 : index
    %c0_285 = arith.constant 0 : index
    %257 = vector.load %arg6[%c13, %c0_284, %c0_285] : memref<16x32x2xbf16, #tpu.memory_space<vmem>>, vector<1x32x2xbf16>
    %258 = vector.shape_cast %257 : vector<1x32x2xbf16> to vector<32x2xbf16>
    %cst_286 = arith.constant dense<0.000000e+00> : vector<2x2xf32>
    %259 = tpu.matmul %256, %258, %cst_286 {dimension_numbers = #tpu.dot_dimension_numbers<[1], [0], [0], [1], [0, 0, 1, 1], [], []>} : vector<2x32xbf16>, vector<32x2xbf16>, vector<2x2xf32> -> vector<2x2xf32>
    %260 = arith.addf %253, %259 : vector<2x2xf32>
    %c0_287 = arith.constant 0 : index
    %c3_288 = arith.constant 3 : index
    %c2_289 = arith.constant 2 : index
    %c0_290 = arith.constant 0 : index
    %261 = vector.load %arg12[%c0_287, %c3_288, %c2_289, %c0_290] : memref<2x4x4x32xf32, #tpu.memory_space<vmem>>, vector<2x1x1x32xf32>
    %262 = vector.shape_cast %261 : vector<2x1x1x32xf32> to vector<2x32xf32>
    %263 = arith.truncf %262 : vector<2x32xf32> to vector<2x32xbf16>
    %c14 = arith.constant 14 : index
    %c0_291 = arith.constant 0 : index
    %c0_292 = arith.constant 0 : index
    %264 = vector.load %arg6[%c14, %c0_291, %c0_292] : memref<16x32x2xbf16, #tpu.memory_space<vmem>>, vector<1x32x2xbf16>
    %265 = vector.shape_cast %264 : vector<1x32x2xbf16> to vector<32x2xbf16>
    %cst_293 = arith.constant dense<0.000000e+00> : vector<2x2xf32>
    %266 = tpu.matmul %263, %265, %cst_293 {dimension_numbers = #tpu.dot_dimension_numbers<[1], [0], [0], [1], [0, 0, 1, 1], [], []>} : vector<2x32xbf16>, vector<32x2xbf16>, vector<2x2xf32> -> vector<2x2xf32>
    %267 = arith.addf %260, %266 : vector<2x2xf32>
    %c0_294 = arith.constant 0 : index
    %c3_295 = arith.constant 3 : index
    %c3_296 = arith.constant 3 : index
    %c0_297 = arith.constant 0 : index
    %268 = vector.load %arg12[%c0_294, %c3_295, %c3_296, %c0_297] : memref<2x4x4x32xf32, #tpu.memory_space<vmem>>, vector<2x1x1x32xf32>
    %269 = vector.shape_cast %268 : vector<2x1x1x32xf32> to vector<2x32xf32>
    %270 = arith.truncf %269 : vector<2x32xf32> to vector<2x32xbf16>
    %c15 = arith.constant 15 : index
    %c0_298 = arith.constant 0 : index
    %c0_299 = arith.constant 0 : index
    %271 = vector.load %arg6[%c15, %c0_298, %c0_299] : memref<16x32x2xbf16, #tpu.memory_space<vmem>>, vector<1x32x2xbf16>
    %272 = vector.shape_cast %271 : vector<1x32x2xbf16> to vector<32x2xbf16>
    %cst_300 = arith.constant dense<0.000000e+00> : vector<2x2xf32>
    %273 = tpu.matmul %270, %272, %cst_300 {dimension_numbers = #tpu.dot_dimension_numbers<[1], [0], [0], [1], [0, 0, 1, 1], [], []>} : vector<2x32xbf16>, vector<32x2xbf16>, vector<2x2xf32> -> vector<2x2xf32>
    %274 = arith.addf %267, %273 : vector<2x2xf32>
    %c0_301 = arith.constant 0 : index
    %c0_302 = arith.constant 0 : index
    %275 = vector.load %arg7[%c0_301, %c0_302] : memref<1x2xf32, #tpu.memory_space<vmem>>, vector<1x2xf32>
    %276 = vector.broadcast %275 : vector<1x2xf32> to vector<2x2xf32>
    %277 = arith.addf %274, %276 : vector<2x2xf32>
    %c0_303 = arith.constant 0 : index
    %c0_304 = arith.constant 0 : index
    %278 = vector.load %arg8[%c0_303, %c0_304] : memref<2x2xf32, #tpu.memory_space<vmem>>, vector<2x2xf32>
    tpu.vector_store %arg8[%c0_303, %c0_304], %277 {strides = array<i32>} : memref<2x2xf32, #tpu.memory_space<vmem>>, vector<2x2xf32>,
    return
  }
  func.func @transform_0(%arg0: i32) -> (i32, i32, i32, i32) {
    %c0_i32 = arith.constant 0 : i32
    %c0_i32_0 = arith.constant 0 : i32
    %c0_i32_1 = arith.constant 0 : i32
    %c0_i32_2 = arith.constant 0 : i32
    %c0_i32_3 = arith.constant 0 : i32
    return %c0_i32, %c0_i32_0, %c0_i32_1, %c0_i32_2 : i32, i32, i32, i32
  }
  func.func @transform_1(%arg0: i32) -> (i32, i32, i32) {
    %c0_i32 = arith.constant 0 : i32
    %c0_i32_0 = arith.constant 0 : i32
    %c0_i32_1 = arith.constant 0 : i32
    %c0_i32_2 = arith.constant 0 : i32
    return %c0_i32, %c0_i32_0, %c0_i32_1 : i32, i32, i32
  }
  func.func @transform_2(%arg0: i32) -> (i32, i32) {
    %c0_i32 = arith.constant 0 : i32
    %c0_i32_0 = arith.constant 0 : i32
    %c0_i32_1 = arith.constant 0 : i32
    return %c0_i32, %c0_i32_0 : i32, i32
  }
  func.func @transform_3(%arg0: i32) -> (i32, i32, i32) {
    %c0_i32 = arith.constant 0 : i32
    %c0_i32_0 = arith.constant 0 : i32
    %c0_i32_1 = arith.constant 0 : i32
    %c0_i32_2 = arith.constant 0 : i32
    return %c0_i32, %c0_i32_0, %c0_i32_1 : i32, i32, i32
  }
  func.func @transform_4(%arg0: i32) -> (i32, i32) {
    %c0_i32 = arith.constant 0 : i32
    %c0_i32_0 = arith.constant 0 : i32
    %c0_i32_1 = arith.constant 0 : i32
    return %c0_i32, %c0_i32_0 : i32, i32
  }
  func.func @transform_5(%arg0: i32) -> (i32, i32, i32) {
    %c0_i32 = arith.constant 0 : i32
    %c0_i32_0 = arith.constant 0 : i32
    %c0_i32_1 = arith.constant 0 : i32
    %c0_i32_2 = arith.constant 0 : i32
    return %c0_i32, %c0_i32_0, %c0_i32_1 : i32, i32, i32
  }
  func.func @transform_6(%arg0: i32) -> (i32, i32) {
    %c0_i32 = arith.constant 0 : i32
    %c0_i32_0 = arith.constant 0 : i32
    %c0_i32_1 = arith.constant 0 : i32
    return %c0_i32, %c0_i32_0 : i32, i32
  }
  func.func @transform_7(%arg0: i32) -> (i32, i32) {
    %c0_i32 = arith.constant 0 : i32
    %c0_i32_0 = arith.constant 0 : i32
    %c0_i32_1 = arith.constant 0 : i32
    return %c0_i32, %c0_i32_0 : i32, i32
  }
}

</mosaic_0001>

<llo_original>
// kernel: cnn_celeba_server_forward.1
$region0: #{cnn_celeba_server_forward.1}
  #allocation0 [shape = 'u32[]', space=smem, size = 0x4, offset = 0x4, fixed_abs, tag = 'smem constant byte address 0x4 - core index']
  #allocation1 [shape = 'u32[144,128]{1,0:T(1,128)}', space=vmem, size = 0x12000, scoped, tag = 'internal scratch']
  #allocation2 [shape = 'f32[2,8,16,32]{3,2,1,0:T(8,128)}', space=vmem, size = 0x20000, scoped, tag = 'scratch operand']
  #allocation3 [shape = 'f32[2,10,17,32]{3,2,1,0:T(8,128)}', space=vmem, size = 0x3c000, scoped, tag = 'scratch operand']
  #allocation4 [shape = 'f32[2,4,8,32]{3,2,1,0:T(8,128)}', space=vmem, size = 0x8000, scoped, tag = 'scratch operand']
  #allocation5 [shape = 'f32[2,4,4,32]{3,2,1,0:T(4,128)}', space=vmem, size = 0x4000, scoped, tag = 'scratch operand']
  %s0 = inlined_call_operand.vmem [shape: f32[2,18,18,32], index: 0, kind: input, shape index: {}]
  %s1 = inlined_call_operand.vmem [shape: bf16[9,32,32], index: 1, kind: input, shape index: {}]
  %s2 = inlined_call_operand.vmem [shape: f32[1,32], index: 2, kind: input, shape index: {}]
  %s3 = inlined_call_operand.vmem [shape: bf16[9,32,32], index: 3, kind: input, shape index: {}]
  %s4 = inlined_call_operand.vmem [shape: f32[1,32], index: 4, kind: input, shape index: {}]
  %s5 = inlined_call_operand.vmem [shape: bf16[16,32,2], index: 5, kind: input, shape index: {}]
  %s6 = inlined_call_operand.vmem [shape: f32[1,2], index: 6, kind: input, shape index: {}]
  %s7 = inlined_call_operand.hbm [shape: f32[2,2], index: 7, kind: output, shape index: {}]
  %s8 = sld [smem:[#allocation0]]
  $region38: #{cnn_celeba_server_forward.1} parent=0
    _
  %s10 = ssub.s32 1, %s8
  %s11 = scalar_select 0, %s10, %s8
  $region1: #{cnn_celeba_server_forward.1} parent=0
    #allocation6 [shape = 'u8[1024]{0}', space=vmem, size = 0x400, scoped, tag = 'output window, operand 0, single buffered']
    #allocation7 [shape = 's32[1]{0}', space=sflag, size = 0x4, scoped, tag = 'scoped memory for cnn_celeba_server_forward.1']
    %12 = vsyncpa [#allocation7], 0
    // Predicated region
    $region2: #{cnn_celeba_server_forward.1} parent=1 // pred_check
      _
    $region3: #{cnn_celeba_server_forward.1} parent=1 // pred_check_branch
      %14 = sbr.rel (0) target = $region5
    $region4: #{cnn_celeba_server_forward.1} parent=1 // pred_region
      _
    $region5: #{cnn_celeba_server_forward.1} parent=1 // pred_fallthru
      _
    // Predicated region
    $region6: #{cnn_celeba_server_forward.1} parent=1 // pred_check
      _
    $region7: #{cnn_celeba_server_forward.1} parent=1 // pred_check_branch
      %16 = sbr.rel (0) target = $region9
    $region8: #{cnn_celeba_server_forward.1} parent=1 // pred_region
      _
    $region9: #{cnn_celeba_server_forward.1} parent=1 // pred_fallthru
      _
    // Predicated region
    $region10: #{cnn_celeba_server_forward.1} parent=1 // pred_check
      _
    $region11: #{cnn_celeba_server_forward.1} parent=1 // pred_check_branch
      %18 = sbr.rel (0) target = $region13
    $region12: #{cnn_celeba_server_forward.1} parent=1 // pred_region
      _
    $region13: #{cnn_celeba_server_forward.1} parent=1 // pred_fallthru
      _
    // Predicated region
    $region14: #{cnn_celeba_server_forward.1} parent=1 // pred_check
      _
    $region15: #{cnn_celeba_server_forward.1} parent=1 // pred_check_branch
      %20 = sbr.rel (0) target = $region17
    $region16: #{cnn_celeba_server_forward.1} parent=1 // pred_region
      _
    $region17: #{cnn_celeba_server_forward.1} parent=1 // pred_fallthru
      _
    // Predicated region
    $region18: #{cnn_celeba_server_forward.1} parent=1 // pred_check
      _
    $region19: #{cnn_celeba_server_forward.1} parent=1 // pred_check_branch
      %22 = sbr.rel (0) target = $region21
    $region20: #{cnn_celeba_server_forward.1} parent=1 // pred_region
      _
    $region21: #{cnn_celeba_server_forward.1} parent=1 // pred_fallthru
      _
    // Predicated region
    $region22: #{cnn_celeba_server_forward.1} parent=1 // pred_check
      _
    $region23: #{cnn_celeba_server_forward.1} parent=1 // pred_check_branch
      %24 = sbr.rel (0) target = $region25
    $region24: #{cnn_celeba_server_forward.1} parent=1 // pred_region
      _
    $region25: #{cnn_celeba_server_forward.1} parent=1 // pred_fallthru
      _
    // Predicated region
    $region26: #{cnn_celeba_server_forward.1} parent=1 // pred_check
      _
    $region27: #{cnn_celeba_server_forward.1} parent=1 // pred_check_branch
      %26 = sbr.rel (0) target = $region29
    $region28: #{cnn_celeba_server_forward.1} parent=1 // pred_region
      _
    $region29: #{cnn_celeba_server_forward.1} parent=1 // pred_fallthru
      _
    %v28 = vld [vmem:[%s0] sm:$0xff]
    %v29 = vld [vmem:[%s0 + $0x8] sm:$0xff]
    %v30 = vld [vmem:[%s0 + $0x18] sm:$0xff]
    %v31 = vld [vmem:[%s0 + $0x20] sm:$0xff]
    %v32 = vld [vmem:[%s0 + $0x30] sm:$0xff]
    %v33 = vld [vmem:[%s0 + $0x38] sm:$0xff]
    %v34 = vld [vmem:[%s0 + $0x48] sm:$0xff]
    %v35 = vld [vmem:[%s0 + $0x50] sm:$0xff]
    %v36 = vld [vmem:[%s0 + $0x60] sm:$0xff]
    %v37 = vld [vmem:[%s0 + $0x68] sm:$0xff]
    %v38 = vld [vmem:[%s0 + $0x78] sm:$0xff]
    %v39 = vld [vmem:[%s0 + $0x80] sm:$0xff]
    %v40 = vld [vmem:[%s0 + $0x90] sm:$0xff]
    %v41 = vld [vmem:[%s0 + $0x98] sm:$0xff]
    %v42 = vld [vmem:[%s0 + $0xa8] sm:$0xff]
    %v43 = vld [vmem:[%s0 + $0xb0] sm:$0xff]
    %v44 = vld [vmem:[%s0 + $0xc0] sm:$0xff]
    %v45 = vld [vmem:[%s0 + $0xc8] sm:$0xff]
    %v46 = vld [vmem:[%s0 + $0xd8] sm:$0xff]
    %v47 = vld [vmem:[%s0 + $0xe0] sm:$0xff]
    %v48 = vld [vmem:[%s0 + $0xf0] sm:$0xff]
    %v49 = vld [vmem:[%s0 + $0xf8] sm:$0xff]
    %v50 = vld [vmem:[%s0 + $0x108] sm:$0xff]
    %v51 = vld [vmem:[%s0 + $0x110] sm:$0xff]
    %v52 = vld [vmem:[%s0 + $0x120] sm:$0xff]
    %v53 = vld [vmem:[%s0 + $0x128] sm:$0xff]
    %v54 = vld [vmem:[%s0 + $0x138] sm:$0xff]
    %v55 = vld [vmem:[%s0 + $0x140] sm:$0xff]
    %v56 = vld [vmem:[%s0 + $0x150] sm:$0xff]
    %v57 = vld [vmem:[%s0 + $0x158] sm:$0xff]
    %v58 = vld [vmem:[%s0 + $0x168] sm:$0xff]
    %v59 = vld [vmem:[%s0 + $0x170] sm:$0xff]
    %v60 = vld [vmem:[%s0 + $0x1b0] sm:$0xff]
    %v61 = vld [vmem:[%s0 + $0x1b8] sm:$0xff]
    %v62 = vld [vmem:[%s0 + $0x1c8] sm:$0xff]
    %v63 = vld [vmem:[%s0 + $0x1d0] sm:$0xff]
    %v64 = vld [vmem:[%s0 + $0x1e0] sm:$0xff]
    %v65 = vld [vmem:[%s0 + $0x1e8] sm:$0xff]
    %v66 = vld [vmem:[%s0 + $0x1f8] sm:$0xff]
    %v67 = vld [vmem:[%s0 + $0x200] sm:$0xff]
    %v68 = vld [vmem:[%s0 + $0x210] sm:$0xff]
    %v69 = vld [vmem:[%s0 + $0x218] sm:$0xff]
    %v70 = vld [vmem:[%s0 + $0x228] sm:$0xff]
    %v71 = vld [vmem:[%s0 + $0x230] sm:$0xff]
    %v72 = vld [vmem:[%s0 + $0x240] sm:$0xff]
    %v73 = vld [vmem:[%s0 + $0x248] sm:$0xff]
    %v74 = vld [vmem:[%s0 + $0x258] sm:$0xff]
    %v75 = vld [vmem:[%s0 + $0x260] sm:$0xff]
    %v76 = vld [vmem:[%s0 + $0x270] sm:$0xff]
    %v77 = vld [vmem:[%s0 + $0x278] sm:$0xff]
    %v78 = vld [vmem:[%s0 + $0x288] sm:$0xff]
    %v79 = vld [vmem:[%s0 + $0x290] sm:$0xff]
    %v80 = vld [vmem:[%s0 + $0x2a0] sm:$0xff]
    %v81 = vld [vmem:[%s0 + $0x2a8] sm:$0xff]
    %v82 = vld [vmem:[%s0 + $0x2b8] sm:$0xff]
    %v83 = vld [vmem:[%s0 + $0x2c0] sm:$0xff]
    %v84 = vld [vmem:[%s0 + $0x2d0] sm:$0xff]
    %v85 = vld [vmem:[%s0 + $0x2d8] sm:$0xff]
    %v86 = vld [vmem:[%s0 + $0x2e8] sm:$0xff]
    %v87 = vld [vmem:[%s0 + $0x2f0] sm:$0xff]
    %v88 = vld [vmem:[%s0 + $0x300] sm:$0xff]
    %v89 = vld [vmem:[%s0 + $0x308] sm:$0xff]
    %v90 = vld [vmem:[%s0 + $0x318] sm:$0xff]
    %v91 = vld [vmem:[%s0 + $0x320] sm:$0xff]
    %v92 = vpack.c.bf16 %v29, %v28
    %v93 = vpack.c.bf16 %v31, %v30
    %v94 = vpack.c.bf16 %v33, %v32
    %v95 = vpack.c.bf16 %v35, %v34
    %v96 = vpack.c.bf16 %v37, %v36
    %v97 = vpack.c.bf16 %v39, %v38
    %v98 = vpack.c.bf16 %v41, %v40
    %v99 = vpack.c.bf16 %v43, %v42
    %v100 = vpack.c.bf16 %v45, %v44
    %v101 = vpack.c.bf16 %v47, %v46
    %v102 = vpack.c.bf16 %v49, %v48
    %v103 = vpack.c.bf16 %v51, %v50
    %v104 = vpack.c.bf16 %v53, %v52
    %v105 = vpack.c.bf16 %v55, %v54
    %v106 = vpack.c.bf16 %v57, %v56
    %v107 = vpack.c.bf16 %v59, %v58
    %v108 = vpack.c.bf16 %v61, %v60
    %v109 = vpack.c.bf16 %v63, %v62
    %v110 = vpack.c.bf16 %v65, %v64
    %v111 = vpack.c.bf16 %v67, %v66
    %v112 = vpack.c.bf16 %v69, %v68
    %v113 = vpack.c.bf16 %v71, %v70
    %v114 = vpack.c.bf16 %v73, %v72
    %v115 = vpack.c.bf16 %v75, %v74
    %v116 = vpack.c.bf16 %v77, %v76
    %v117 = vpack.c.bf16 %v79, %v78
    %v118 = vpack.c.bf16 %v81, %v80
    %v119 = vpack.c.bf16 %v83, %v82
    %v120 = vpack.c.bf16 %v85, %v84
    %v121 = vpack.c.bf16 %v87, %v86
    %v122 = vpack.c.bf16 %v89, %v88
    %v123 = vpack.c.bf16 %v91, %v90
    %v124 = vld [vmem:[%s1] sm:$0xf]
    %v125 = vld [vmem:[%s1 + $0x4] sm:$0xf]
    %v126 = vld [vmem:[%s1 + $0x8] sm:$0xf]
    %v127 = vld [vmem:[%s1 + $0xc] sm:$0xf]
    %v128 = vld [vmem:[%s0 + $0x1] sm:$0xff]
    %v129 = vld [vmem:[%s0 + $0x9] sm:$0xff]
    %v130 = vld [vmem:[%s0 + $0x19] sm:$0xff]
    %v131 = vld [vmem:[%s0 + $0x21] sm:$0xff]
    %v132 = vld [vmem:[%s0 + $0x31] sm:$0xff]
    %v133 = vld [vmem:[%s0 + $0x39] sm:$0xff]
    %v134 = vld [vmem:[%s0 + $0x49] sm:$0xff]
    %v135 = vld [vmem:[%s0 + $0x51] sm:$0xff]
    %v136 = vld [vmem:[%s0 + $0x61] sm:$0xff]
    %v137 = vld [vmem:[%s0 + $0x69] sm:$0xff]
    %v138 = vld [vmem:[%s0 + $0x79] sm:$0xff]
    %v139 = vld [vmem:[%s0 + $0x81] sm:$0xff]
    %v140 = vld [vmem:[%s0 + $0x91] sm:$0xff]
    %v141 = vld [vmem:[%s0 + $0x99] sm:$0xff]
    %v142 = vld [vmem:[%s0 + $0xa9] sm:$0xff]
    %v143 = vld [vmem:[%s0 + $0xb1] sm:$0xff]
    %v144 = vld [vmem:[%s0 + $0xc1] sm:$0xff]
    %v145 = vld [vmem:[%s0 + $0xc9] sm:$0xff]
    %v146 = vld [vmem:[%s0 + $0xd9] sm:$0xff]
    %v147 = vld [vmem:[%s0 + $0xe1] sm:$0xff]
    %v148 = vld [vmem:[%s0 + $0xf1] sm:$0xff]
    %v149 = vld [vmem:[%s0 + $0xf9] sm:$0xff]
    %v150 = vld [vmem:[%s0 + $0x109] sm:$0xff]
    %v151 = vld [vmem:[%s0 + $0x111] sm:$0xff]
    %v152 = vld [vmem:[%s0 + $0x121] sm:$0xff]
    %v153 = vld [vmem:[%s0 + $0x129] sm:$0xff]
    %v154 = vld [vmem:[%s0 + $0x139] sm:$0xff]
    %v155 = vld [vmem:[%s0 + $0x141] sm:$0xff]
    %v156 = vld [vmem:[%s0 + $0x151] sm:$0xff]
    %v157 = vld [vmem:[%s0 + $0x159] sm:$0xff]
    %v158 = vld [vmem:[%s0 + $0x169] sm:$0xff]
    %v159 = vld [vmem:[%s0 + $0x171] sm:$0xff]
    %v160 = vld [vmem:[%s0 + $0x1b1] sm:$0xff]
    %v161 = vld [vmem:[%s0 + $0x1b9] sm:$0xff]
    %v162 = vld [vmem:[%s0 + $0x1c9] sm:$0xff]
    %v163 = vld [vmem:[%s0 + $0x1d1] sm:$0xff]
    %v164 = vld [vmem:[%s0 + $0x1e1] sm:$0xff]
    %v165 = vld [vmem:[%s0 + $0x1e9] sm:$0xff]
    %v166 = vld [vmem:[%s0 + $0x1f9] sm:$0xff]
    %v167 = vld [vmem:[%s0 + $0x201] sm:$0xff]
    %v168 = vld [vmem:[%s0 + $0x211] sm:$0xff]
    %v169 = vld [vmem:[%s0 + $0x219] sm:$0xff]
    %v170 = vld [vmem:[%s0 + $0x229] sm:$0xff]
    %v171 = vld [vmem:[%s0 + $0x231] sm:$0xff]
    %v172 = vld [vmem:[%s0 + $0x241] sm:$0xff]
    %v173 = vld [vmem:[%s0 + $0x249] sm:$0xff]
    %v174 = vld [vmem:[%s0 + $0x259] sm:$0xff]
    %v175 = vld [vmem:[%s0 + $0x261] sm:$0xff]
    %v176 = vld [vmem:[%s0 + $0x271] sm:$0xff]
    %v177 = vld [vmem:[%s0 + $0x279] sm:$0xff]
    %v178 = vld [vmem:[%s0 + $0x289] sm:$0xff]
    %v179 = vld [vmem:[%s0 + $0x291] sm:$0xff]
    %v180 = vld [vmem:[%s0 + $0x2a1] sm:$0xff]
    %v181 = vld [vmem:[%s0 + $0x2a9] sm:$0xff]
    %v182 = vld [vmem:[%s0 + $0x2b9] sm:$0xff]
    %v183 = vld [vmem:[%s0 + $0x2c1] sm:$0xff]
    %v184 = vld [vmem:[%s0 + $0x2d1] sm:$0xff]
    %v185 = vld [vmem:[%s0 + $0x2d9] sm:$0xff]
    %v186 = vld [vmem:[%s0 + $0x2e9] sm:$0xff]
    %v187 = vld [vmem:[%s0 + $0x2f1] sm:$0xff]
    %v188 = vld [vmem:[%s0 + $0x301] sm:$0xff]
    %v189 = vld [vmem:[%s0 + $0x309] sm:$0xff]
    %v190 = vld [vmem:[%s0 + $0x319] sm:$0xff]
    %v191 = vld [vmem:[%s0 + $0x321] sm:$0xff]
    %v192 = vpack.c.bf16 %v129, %v128
    %v193 = vpack.c.bf16 %v131, %v130
    %v194 = vpack.c.bf16 %v133, %v132
    %v195 = vpack.c.bf16 %v135, %v134
    %v196 = vpack.c.bf16 %v137, %v136
    %v197 = vpack.c.bf16 %v139, %v138
    %v198 = vpack.c.bf16 %v141, %v140
    %v199 = vpack.c.bf16 %v143, %v142
    %v200 = vpack.c.bf16 %v145, %v144
    %v201 = vpack.c.bf16 %v147, %v146
    %v202 = vpack.c.bf16 %v149, %v148
    %v203 = vpack.c.bf16 %v151, %v150
    %v204 = vpack.c.bf16 %v153, %v152
    %v205 = vpack.c.bf16 %v155, %v154
    %v206 = vpack.c.bf16 %v157, %v156
    %v207 = vpack.c.bf16 %v159, %v158
    %v208 = vpack.c.bf16 %v161, %v160
    %v209 = vpack.c.bf16 %v163, %v162
    %v210 = vpack.c.bf16 %v165, %v164
    %v211 = vpack.c.bf16 %v167, %v166
    %v212 = vpack.c.bf16 %v169, %v168
    %v213 = vpack.c.bf16 %v171, %v170
    %v214 = vpack.c.bf16 %v173, %v172
    %v215 = vpack.c.bf16 %v175, %v174
    %v216 = vpack.c.bf16 %v177, %v176
    %v217 = vpack.c.bf16 %v179, %v178
    %v218 = vpack.c.bf16 %v181, %v180
    %v219 = vpack.c.bf16 %v183, %v182
    %v220 = vpack.c.bf16 %v185, %v184
    %v221 = vpack.c.bf16 %v187, %v186
    %v222 = vpack.c.bf16 %v189, %v188
    %v223 = vpack.c.bf16 %v191, %v190
    %s224 = scalar_lea.vmem %s1, 16
    %v225 = vld [vmem:[%s224] sm:$0xf]
    %v226 = vld [vmem:[%s224 + $0x4] sm:$0xf]
    %v227 = vld [vmem:[%s224 + $0x8] sm:$0xf]
    %v228 = vld [vmem:[%s224 + $0xc] sm:$0xf]
    %v233 = vunpack.c.l.b16 %v225
    %v234 = vunpack.c.l.b16 %v226
    %v235 = vunpack.c.l.b16 %v227
    %v236 = vunpack.c.l.b16 %v228
    %v237 = vpack.c.b16 %v234, %v233
    %v238 = vpack.c.b16 %v236, %v235
    %vm241 = vcmask 261120
    %v243 = vsel %vm241, %v192, 0
    %v246 = vsel %vm241, %v193, 0
    %v249 = vsel %vm241, %v194, 0
    %v252 = vsel %vm241, %v195, 0
    %v255 = vsel %vm241, %v196, 0
    %v258 = vsel %vm241, %v197, 0
    %v261 = vsel %vm241, %v198, 0
    %v264 = vsel %vm241, %v199, 0
    %v267 = vsel %vm241, %v200, 0
    %v270 = vsel %vm241, %v201, 0
    %v273 = vsel %vm241, %v202, 0
    %v276 = vsel %vm241, %v203, 0
    %v279 = vsel %vm241, %v204, 0
    %v282 = vsel %vm241, %v205, 0
    %v285 = vsel %vm241, %v206, 0
    %v288 = vsel %vm241, %v207, 0
    %v291 = vsel %vm241, %v208, 0
    %v294 = vsel %vm241, %v209, 0
    %v297 = vsel %vm241, %v210, 0
    %v300 = vsel %vm241, %v211, 0
    %v303 = vsel %vm241, %v212, 0
    %v306 = vsel %vm241, %v213, 0
    %v309 = vsel %vm241, %v214, 0
    %v312 = vsel %vm241, %v215, 0
    %v315 = vsel %vm241, %v216, 0
    %v318 = vsel %vm241, %v217, 0
    %v321 = vsel %vm241, %v218, 0
    %v324 = vsel %vm241, %v219, 0
    %v327 = vsel %vm241, %v220, 0
    %v330 = vsel %vm241, %v221, 0
    %v333 = vsel %vm241, %v222, 0
    %v336 = vsel %vm241, %v223, 0
    %338 = vmatprep.subr.bf16.mxu0 0
    %339 = vmatpush1.bf16.msra.mxu0 0
    %340 = vmatprep.subr.bf16.mxu0 0
    %341 = vmatpush1.bf16.msra.mxu0 0
    %342 = vmatprep.subr.bf16.mxu0 0
    %343 = vmatpush1.bf16.msra.mxu0 0
    %344 = vmatprep.subr.bf16.mxu0 0
    %345 = vmatpush1.bf16.msra.mxu0 0
    %346 = vmatprep.subr.bf16.mxu0 0
    %347 = vmatpush1.bf16.msra.mxu0 0
    %348 = vmatprep.subr.bf16.mxu0 0
    %349 = vmatpush1.bf16.msra.mxu0 0
    %350 = vmatprep.subr.bf16.mxu0 0
    %351 = vmatpush1.bf16.msra.mxu0 %v238
    %352 = vmatprep.subr.bf16.mxu0 0
    %353 = vmatpush1.bf16.msra.mxu0 %v237
    %354 = vmatprep.subr.bf16.mxu0 0
    %355 = vmatpush2.bf16.msra.mxu0 0
    %356 = vmatprep.subr.bf16.mxu0 0
    %357 = vmatpush2.bf16.msra.mxu0 0
    %358 = vmatprep.subr.bf16.mxu0 0
    %359 = vmatpush2.bf16.msra.mxu0 0
    %360 = vmatprep.subr.bf16.mxu0 0
    %361 = vmatpush2.bf16.msra.mxu0 0
    %362 = vmatprep.subr.bf16.mxu0 0
    %363 = vmatpush2.bf16.msra.mxu0 0
    %364 = vmatprep.subr.bf16.mxu0 0
    %365 = vmatpush2.bf16.msra.mxu0 0
    %366 = vmatprep.subr.bf16.mxu0 0
    %367 = vmatpush2.bf16.msra.mxu0 0
    %368 = vmatprep.subr.bf16.mxu0 0
    %369 = vmatpush2.bf16.msra.mxu0 0
    %370 = vmatprep.mubr.bf16.mxu0 0
    %371 = vmatmul.mubr.bf16.gmra.mxu0 %v243
    %v372 = vpop.f32.mrf.mxu0
    %v373 = vadd.f32 0.0, %v372
    %v374 = vpop.f32.mrf.mxu0
    %v375 = vpop.f32.mrf.mxu0
    %v376 = vadd.f32 0.0, %v375
    %v377 = vpop.f32.mrf.mxu0
    %378 = vmatprep.mubr.bf16.mxu0 0
    %379 = vmatmul.mubr.bf16.gmra.mxu0 %v246
    %v380 = vpop.f32.mrf.mxu0
    %v381 = vadd.f32 0.0, %v380
    %v382 = vpop.f32.mrf.mxu0
    %v383 = vpop.f32.mrf.mxu0
    %v384 = vadd.f32 0.0, %v383
    %v385 = vpop.f32.mrf.mxu0
    %386 = vmatprep.mubr.bf16.mxu0 0
    %387 = vmatmul.mubr.bf16.gmra.mxu0 %v249
    %v388 = vpop.f32.mrf.mxu0
    %v389 = vadd.f32 0.0, %v388
    %v390 = vpop.f32.mrf.mxu0
    %v391 = vpop.f32.mrf.mxu0
    %v392 = vadd.f32 0.0, %v391
    %v393 = vpop.f32.mrf.mxu0
    %394 = vmatprep.mubr.bf16.mxu0 0
    %395 = vmatmul.mubr.bf16.gmra.mxu0 %v252
    %v396 = vpop.f32.mrf.mxu0
    %v397 = vadd.f32 0.0, %v396
    %v398 = vpop.f32.mrf.mxu0
    %v399 = vpop.f32.mrf.mxu0
    %v400 = vadd.f32 0.0, %v399
    %v401 = vpop.f32.mrf.mxu0
    %402 = vmatprep.mubr.bf16.mxu0 0
    %403 = vmatmul.mubr.bf16.gmra.mxu0 %v255
    %v404 = vpop.f32.mrf.mxu0
    %v405 = vadd.f32 0.0, %v404
    %v406 = vpop.f32.mrf.mxu0
    %v407 = vpop.f32.mrf.mxu0
    %v408 = vadd.f32 0.0, %v407
    %v409 = vpop.f32.mrf.mxu0
    %410 = vmatprep.mubr.bf16.mxu0 0
    %411 = vmatmul.mubr.bf16.gmra.mxu0 %v258
    %v412 = vpop.f32.mrf.mxu0
    %v413 = vadd.f32 0.0, %v412
    %v414 = vpop.f32.mrf.mxu0
    %v415 = vpop.f32.mrf.mxu0
    %v416 = vadd.f32 0.0, %v415
    %v417 = vpop.f32.mrf.mxu0
    %418 = vmatprep.mubr.bf16.mxu0 0
    %419 = vmatmul.mubr.bf16.gmra.mxu0 %v261
    %v420 = vpop.f32.mrf.mxu0
    %v421 = vadd.f32 0.0, %v420
    %v422 = vpop.f32.mrf.mxu0
    %v423 = vpop.f32.mrf.mxu0
    %v424 = vadd.f32 0.0, %v423
    %v425 = vpop.f32.mrf.mxu0
    %426 = vmatprep.mubr.bf16.mxu0 0
    %427 = vmatmul.mubr.bf16.gmra.mxu0 %v264
    %v428 = vpop.f32.mrf.mxu0
    %v429 = vadd.f32 0.0, %v428
    %v430 = vpop.f32.mrf.mxu0
    %v431 = vpop.f32.mrf.mxu0
    %v432 = vadd.f32 0.0, %v431
    %v433 = vpop.f32.mrf.mxu0
    %434 = vmatprep.mubr.bf16.mxu0 0
    %435 = vmatmul.mubr.bf16.gmra.mxu0 %v267
    %v436 = vpop.f32.mrf.mxu0
    %v437 = vadd.f32 0.0, %v436
    %v438 = vpop.f32.mrf.mxu0
    %v439 = vpop.f32.mrf.mxu0
    %v440 = vadd.f32 0.0, %v439
    %v441 = vpop.f32.mrf.mxu0
    %442 = vmatprep.mubr.bf16.mxu0 0
    %443 = vmatmul.mubr.bf16.gmra.mxu0 %v270
    %v444 = vpop.f32.mrf.mxu0
    %v445 = vadd.f32 0.0, %v444
    %v446 = vpop.f32.mrf.mxu0
    %v447 = vpop.f32.mrf.mxu0
    %v448 = vadd.f32 0.0, %v447
    %v449 = vpop.f32.mrf.mxu0
    %450 = vmatprep.mubr.bf16.mxu0 0
    %451 = vmatmul.mubr.bf16.gmra.mxu0 %v273
    %v452 = vpop.f32.mrf.mxu0
    %v453 = vadd.f32 0.0, %v452
    %v454 = vpop.f32.mrf.mxu0
    %v455 = vpop.f32.mrf.mxu0
    %v456 = vadd.f32 0.0, %v455
    %v457 = vpop.f32.mrf.mxu0
    %458 = vmatprep.mubr.bf16.mxu0 0
    %459 = vmatmul.mubr.bf16.gmra.mxu0 %v276
    %v460 = vpop.f32.mrf.mxu0
    %v461 = vadd.f32 0.0, %v460
    %v462 = vpop.f32.mrf.mxu0
    %v463 = vpop.f32.mrf.mxu0
    %v464 = vadd.f32 0.0, %v463
    %v465 = vpop.f32.mrf.mxu0
    %466 = vmatprep.mubr.bf16.mxu0 0
    %467 = vmatmul.mubr.bf16.gmra.mxu0 %v279
    %v468 = vpop.f32.mrf.mxu0
    %v469 = vadd.f32 0.0, %v468
    %v470 = vpop.f32.mrf.mxu0
    %v471 = vpop.f32.mrf.mxu0
    %v472 = vadd.f32 0.0, %v471
    %v473 = vpop.f32.mrf.mxu0
    %474 = vmatprep.mubr.bf16.mxu0 0
    %475 = vmatmul.mubr.bf16.gmra.mxu0 %v282
    %v476 = vpop.f32.mrf.mxu0
    %v477 = vadd.f32 0.0, %v476
    %v478 = vpop.f32.mrf.mxu0
    %v479 = vpop.f32.mrf.mxu0
    %v480 = vadd.f32 0.0, %v479
    %v481 = vpop.f32.mrf.mxu0
    %482 = vmatprep.mubr.bf16.mxu0 0
    %483 = vmatmul.mubr.bf16.gmra.mxu0 %v285
    %v484 = vpop.f32.mrf.mxu0
    %v485 = vadd.f32 0.0, %v484
    %v486 = vpop.f32.mrf.mxu0
    %v487 = vpop.f32.mrf.mxu0
    %v488 = vadd.f32 0.0, %v487
    %v489 = vpop.f32.mrf.mxu0
    %490 = vmatprep.mubr.bf16.mxu0 0
    %491 = vmatmul.mubr.bf16.gmra.mxu0 %v288
    %v492 = vpop.f32.mrf.mxu0
    %v493 = vadd.f32 0.0, %v492
    %v494 = vpop.f32.mrf.mxu0
    %v495 = vpop.f32.mrf.mxu0
    %v496 = vadd.f32 0.0, %v495
    %v497 = vpop.f32.mrf.mxu0
    %498 = vmatprep.mubr.bf16.mxu0 0
    %499 = vmatmul.mubr.bf16.gmra.mxu0 %v291
    %v500 = vpop.f32.mrf.mxu0
    %v501 = vadd.f32 0.0, %v500
    %v502 = vpop.f32.mrf.mxu0
    %v503 = vpop.f32.mrf.mxu0
    %v504 = vadd.f32 0.0, %v503
    %v505 = vpop.f32.mrf.mxu0
    %506 = vmatprep.mubr.bf16.mxu0 0
    %507 = vmatmul.mubr.bf16.gmra.mxu0 %v294
    %v508 = vpop.f32.mrf.mxu0
    %v509 = vadd.f32 0.0, %v508
    %v510 = vpop.f32.mrf.mxu0
    %v511 = vpop.f32.mrf.mxu0
    %v512 = vadd.f32 0.0, %v511
    %v513 = vpop.f32.mrf.mxu0
    %514 = vmatprep.mubr.bf16.mxu0 0
    %515 = vmatmul.mubr.bf16.gmra.mxu0 %v297
    %v516 = vpop.f32.mrf.mxu0
    %v517 = vadd.f32 0.0, %v516
    %v518 = vpop.f32.mrf.mxu0
    %v519 = vpop.f32.mrf.mxu0
    %v520 = vadd.f32 0.0, %v519
    %v521 = vpop.f32.mrf.mxu0
    %522 = vmatprep.mubr.bf16.mxu0 0
    %523 = vmatmul.mubr.bf16.gmra.mxu0 %v300
    %v524 = vpop.f32.mrf.mxu0
    %v525 = vadd.f32 0.0, %v524
    %v526 = vpop.f32.mrf.mxu0
    %v527 = vpop.f32.mrf.mxu0
    %v528 = vadd.f32 0.0, %v527
    %v529 = vpop.f32.mrf.mxu0
    %530 = vmatprep.mubr.bf16.mxu0 0
    %531 = vmatmul.mubr.bf16.gmra.mxu0 %v303
    %v532 = vpop.f32.mrf.mxu0
    %v533 = vadd.f32 0.0, %v532
    %v534 = vpop.f32.mrf.mxu0
    %v535 = vpop.f32.mrf.mxu0
    %v536 = vadd.f32 0.0, %v535
    %v537 = vpop.f32.mrf.mxu0
    %538 = vmatprep.mubr.bf16.mxu0 0
    %539 = vmatmul.mubr.bf16.gmra.mxu0 %v306
    %v540 = vpop.f32.mrf.mxu0
    %v541 = vadd.f32 0.0, %v540
    %v542 = vpop.f32.mrf.mxu0
    %v543 = vpop.f32.mrf.mxu0
    %v544 = vadd.f32 0.0, %v543
    %v545 = vpop.f32.mrf.mxu0
    %546 = vmatprep.mubr.bf16.mxu0 0
    %547 = vmatmul.mubr.bf16.gmra.mxu0 %v309
    %v548 = vpop.f32.mrf.mxu0
    %v549 = vadd.f32 0.0, %v548
    %v550 = vpop.f32.mrf.mxu0
    %v551 = vpop.f32.mrf.mxu0
    %v552 = vadd.f32 0.0, %v551
    %v553 = vpop.f32.mrf.mxu0
    %554 = vmatprep.mubr.bf16.mxu0 0
    %555 = vmatmul.mubr.bf16.gmra.mxu0 %v312
    %v556 = vpop.f32.mrf.mxu0
    %v557 = vadd.f32 0.0, %v556
    %v558 = vpop.f32.mrf.mxu0
    %v559 = vpop.f32.mrf.mxu0
    %v560 = vadd.f32 0.0, %v559
    %v561 = vpop.f32.mrf.mxu0
    %562 = vmatprep.mubr.bf16.mxu0 0
    %563 = vmatmul.mubr.bf16.gmra.mxu0 %v315
    %v564 = vpop.f32.mrf.mxu0
    %v565 = vadd.f32 0.0, %v564
    %v566 = vpop.f32.mrf.mxu0
    %v567 = vpop.f32.mrf.mxu0
    %v568 = vadd.f32 0.0, %v567
    %v569 = vpop.f32.mrf.mxu0
    %570 = vmatprep.mubr.bf16.mxu0 0
    %571 = vmatmul.mubr.bf16.gmra.mxu0 %v318
    %v572 = vpop.f32.mrf.mxu0
    %v573 = vadd.f32 0.0, %v572
    %v574 = vpop.f32.mrf.mxu0
    %v575 = vpop.f32.mrf.mxu0
    %v576 = vadd.f32 0.0, %v575
    %v577 = vpop.f32.mrf.mxu0
    %578 = vmatprep.mubr.bf16.mxu0 0
    %579 = vmatmul.mubr.bf16.gmra.mxu0 %v321
    %v580 = vpop.f32.mrf.mxu0
    %v581 = vadd.f32 0.0, %v580
    %v582 = vpop.f32.mrf.mxu0
    %v583 = vpop.f32.mrf.mxu0
    %v584 = vadd.f32 0.0, %v583
    %v585 = vpop.f32.mrf.mxu0
    %586 = vmatprep.mubr.bf16.mxu0 0
    %587 = vmatmul.mubr.bf16.gmra.mxu0 %v324
    %v588 = vpop.f32.mrf.mxu0
    %v589 = vadd.f32 0.0, %v588
    %v590 = vpop.f32.mrf.mxu0
    %v591 = vpop.f32.mrf.mxu0
    %v592 = vadd.f32 0.0, %v591
    %v593 = vpop.f32.mrf.mxu0
    %594 = vmatprep.mubr.bf16.mxu0 0
    %595 = vmatmul.mubr.bf16.gmra.mxu0 %v327
    %v596 = vpop.f32.mrf.mxu0
    %v597 = vadd.f32 0.0, %v596
    %v598 = vpop.f32.mrf.mxu0
    %v599 = vpop.f32.mrf.mxu0
    %v600 = vadd.f32 0.0, %v599
    %v601 = vpop.f32.mrf.mxu0
    %602 = vmatprep.mubr.bf16.mxu0 0
    %603 = vmatmul.mubr.bf16.gmra.mxu0 %v330
    %v604 = vpop.f32.mrf.mxu0
    %v605 = vadd.f32 0.0, %v604
    %v606 = vpop.f32.mrf.mxu0
    %v607 = vpop.f32.mrf.mxu0
    %v608 = vadd.f32 0.0, %v607
    %v609 = vpop.f32.mrf.mxu0
    %610 = vmatprep.mubr.bf16.mxu0 0
    %611 = vmatmul.mubr.bf16.gmra.mxu0 %v333
    %v612 = vpop.f32.mrf.mxu0
    %v613 = vadd.f32 0.0, %v612
    %v614 = vpop.f32.mrf.mxu0
    %v615 = vpop.f32.mrf.mxu0
    %v616 = vadd.f32 0.0, %v615
    %v617 = vpop.f32.mrf.mxu0
    %618 = vmatprep.mubr.bf16.mxu0 0
    %619 = vmatmul.mubr.bf16.gmra.mxu0 %v336
    %v620 = vpop.f32.mrf.mxu0
    %v621 = vadd.f32 0.0, %v620
    %v622 = vpop.f32.mrf.mxu0
    %v623 = vpop.f32.mrf.mxu0
    %v624 = vadd.f32 0.0, %v623
    %v625 = vpop.f32.mrf.mxu0
    %626 = vdwg.mxu0
    %v631 = vunpack.c.l.b16 %v124
    %v632 = vunpack.c.l.b16 %v125
    %v633 = vunpack.c.l.b16 %v126
    %v634 = vunpack.c.l.b16 %v127
    %v635 = vpack.c.b16 %v632, %v631
    %v636 = vpack.c.b16 %v634, %v633
    %v640 = vsel %vm241, %v92, 0
    %v643 = vsel %vm241, %v93, 0
    %v646 = vsel %vm241, %v94, 0
    %v649 = vsel %vm241, %v95, 0
    %v652 = vsel %vm241, %v96, 0
    %v655 = vsel %vm241, %v97, 0
    %v658 = vsel %vm241, %v98, 0
    %v661 = vsel %vm241, %v99, 0
    %v664 = vsel %vm241, %v100, 0
    %v667 = vsel %vm241, %v101, 0
    %v670 = vsel %vm241, %v102, 0
    %v673 = vsel %vm241, %v103, 0
    %v676 = vsel %vm241, %v104, 0
    %v679 = vsel %vm241, %v105, 0
    %v682 = vsel %vm241, %v106, 0
    %v685 = vsel %vm241, %v107, 0
    %v688 = vsel %vm241, %v108, 0
    %v691 = vsel %vm241, %v109, 0
    %v694 = vsel %vm241, %v110, 0
    %v697 = vsel %vm241, %v111, 0
    %v700 = vsel %vm241, %v112, 0
    %v703 = vsel %vm241, %v113, 0
    %v706 = vsel %vm241, %v114, 0
    %v709 = vsel %vm241, %v115, 0
    %v712 = vsel %vm241, %v116, 0
    %v715 = vsel %vm241, %v117, 0
    %v718 = vsel %vm241, %v118, 0
    %v721 = vsel %vm241, %v119, 0
    %v724 = vsel %vm241, %v120, 0
    %v727 = vsel %vm241, %v121, 0
    %v730 = vsel %vm241, %v122, 0
    %v733 = vsel %vm241, %v123, 0
    %735 = vmatprep.subr.bf16.mxu0 0
    %736 = vmatpush1.bf16.msra.mxu0 0
    %737 = vmatprep.subr.bf16.mxu0 0
    %738 = vmatpush1.bf16.msra.mxu0 0
    %739 = vmatprep.subr.bf16.mxu0 0
    %740 = vmatpush1.bf16.msra.mxu0 0
    %741 = vmatprep.subr.bf16.mxu0 0
    %742 = vmatpush1.bf16.msra.mxu0 0
    %743 = vmatprep.subr.bf16.mxu0 0
    %744 = vmatpush1.bf16.msra.mxu0 0
    %745 = vmatprep.subr.bf16.mxu0 0
    %746 = vmatpush1.bf16.msra.mxu0 0
    %747 = vmatprep.subr.bf16.mxu0 0
    %748 = vmatpush1.bf16.msra.mxu0 %v636
    %749 = vmatprep.subr.bf16.mxu0 0
    %750 = vmatpush1.bf16.msra.mxu0 %v635
    %751 = vmatprep.subr.bf16.mxu0 0
    %752 = vmatpush2.bf16.msra.mxu0 0
    %753 = vmatprep.subr.bf16.mxu0 0
    %754 = vmatpush2.bf16.msra.mxu0 0
    %755 = vmatprep.subr.bf16.mxu0 0
    %756 = vmatpush2.bf16.msra.mxu0 0
    %757 = vmatprep.subr.bf16.mxu0 0
    %758 = vmatpush2.bf16.msra.mxu0 0
    %759 = vmatprep.subr.bf16.mxu0 0
    %760 = vmatpush2.bf16.msra.mxu0 0
    %761 = vmatprep.subr.bf16.mxu0 0
    %762 = vmatpush2.bf16.msra.mxu0 0
    %763 = vmatprep.subr.bf16.mxu0 0
    %764 = vmatpush2.bf16.msra.mxu0 0
    %765 = vmatprep.subr.bf16.mxu0 0
    %766 = vmatpush2.bf16.msra.mxu0 0
    %767 = vmatprep.mubr.bf16.mxu0 0
    %768 = vmatmul.mubr.bf16.gmra.mxu0 %v640
    %v769 = vpop.f32.mrf.mxu0
    %v770 = vadd.f32 %v373, %v769
    %v771 = vpop.f32.mrf.mxu0
    %v772 = vpop.f32.mrf.mxu0
    %v773 = vadd.f32 %v376, %v772
    %v774 = vpop.f32.mrf.mxu0
    %775 = vmatprep.mubr.bf16.mxu0 0
    %776 = vmatmul.mubr.bf16.gmra.mxu0 %v643
    %v777 = vpop.f32.mrf.mxu0
    %v778 = vadd.f32 %v381, %v777
    %v779 = vpop.f32.mrf.mxu0
    %v780 = vpop.f32.mrf.mxu0
    %v781 = vadd.f32 %v384, %v780
    %v782 = vpop.f32.mrf.mxu0
    %783 = vmatprep.mubr.bf16.mxu0 0
    %784 = vmatmul.mubr.bf16.gmra.mxu0 %v646
    %v785 = vpop.f32.mrf.mxu0
    %v786 = vadd.f32 %v389, %v785
    %v787 = vpop.f32.mrf.mxu0
    %v788 = vpop.f32.mrf.mxu0
    %v789 = vadd.f32 %v392, %v788
    %v790 = vpop.f32.mrf.mxu0
    %791 = vmatprep.mubr.bf16.mxu0 0
    %792 = vmatmul.mubr.bf16.gmra.mxu0 %v649
    %v793 = vpop.f32.mrf.mxu0
    %v794 = vadd.f32 %v397, %v793
    %v795 = vpop.f32.mrf.mxu0
    %v796 = vpop.f32.mrf.mxu0
    %v797 = vadd.f32 %v400, %v796
    %v798 = vpop.f32.mrf.mxu0
    %799 = vmatprep.mubr.bf16.mxu0 0
    %800 = vmatmul.mubr.bf16.gmra.mxu0 %v652
    %v801 = vpop.f32.mrf.mxu0
    %v802 = vadd.f32 %v405, %v801
    %v803 = vpop.f32.mrf.mxu0
    %v804 = vpop.f32.mrf.mxu0
    %v805 = vadd.f32 %v408, %v804
    %v806 = vpop.f32.mrf.mxu0
    %807 = vmatprep.mubr.bf16.mxu0 0
    %808 = vmatmul.mubr.bf16.gmra.mxu0 %v655
    %v809 = vpop.f32.mrf.mxu0
    %v810 = vadd.f32 %v413, %v809
    %v811 = vpop.f32.mrf.mxu0
    %v812 = vpop.f32.mrf.mxu0
    %v813 = vadd.f32 %v416, %v812
    %v814 = vpop.f32.mrf.mxu0
    %815 = vmatprep.mubr.bf16.mxu0 0
    %816 = vmatmul.mubr.bf16.gmra.mxu0 %v658
    %v817 = vpop.f32.mrf.mxu0
    %v818 = vadd.f32 %v421, %v817
    %v819 = vpop.f32.mrf.mxu0
    %v820 = vpop.f32.mrf.mxu0
    %v821 = vadd.f32 %v424, %v820
    %v822 = vpop.f32.mrf.mxu0
    %823 = vmatprep.mubr.bf16.mxu0 0
    %824 = vmatmul.mubr.bf16.gmra.mxu0 %v661
    %v825 = vpop.f32.mrf.mxu0
    %v826 = vadd.f32 %v429, %v825
    %v827 = vpop.f32.mrf.mxu0
    %v828 = vpop.f32.mrf.mxu0
    %v829 = vadd.f32 %v432, %v828
    %v830 = vpop.f32.mrf.mxu0
    %831 = vmatprep.mubr.bf16.mxu0 0
    %832 = vmatmul.mubr.bf16.gmra.mxu0 %v664
    %v833 = vpop.f32.mrf.mxu0
    %v834 = vadd.f32 %v437, %v833
    %v835 = vpop.f32.mrf.mxu0
    %v836 = vpop.f32.mrf.mxu0
    %v837 = vadd.f32 %v440, %v836
    %v838 = vpop.f32.mrf.mxu0
    %839 = vmatprep.mubr.bf16.mxu0 0
    %840 = vmatmul.mubr.bf16.gmra.mxu0 %v667
    %v841 = vpop.f32.mrf.mxu0
    %v842 = vadd.f32 %v445, %v841
    %v843 = vpop.f32.mrf.mxu0
    %v844 = vpop.f32.mrf.mxu0
    %v845 = vadd.f32 %v448, %v844
    %v846 = vpop.f32.mrf.mxu0
    %847 = vmatprep.mubr.bf16.mxu0 0
    %848 = vmatmul.mubr.bf16.gmra.mxu0 %v670
    %v849 = vpop.f32.mrf.mxu0
    %v850 = vadd.f32 %v453, %v849
    %v851 = vpop.f32.mrf.mxu0
    %v852 = vpop.f32.mrf.mxu0
    %v853 = vadd.f32 %v456, %v852
    %v854 = vpop.f32.mrf.mxu0
    %855 = vmatprep.mubr.bf16.mxu0 0
    %856 = vmatmul.mubr.bf16.gmra.mxu0 %v673
    %v857 = vpop.f32.mrf.mxu0
    %v858 = vadd.f32 %v461, %v857
    %v859 = vpop.f32.mrf.mxu0
    %v860 = vpop.f32.mrf.mxu0
    %v861 = vadd.f32 %v464, %v860
    %v862 = vpop.f32.mrf.mxu0
    %863 = vmatprep.mubr.bf16.mxu0 0
    %864 = vmatmul.mubr.bf16.gmra.mxu0 %v676
    %v865 = vpop.f32.mrf.mxu0
    %v866 = vadd.f32 %v469, %v865
    %v867 = vpop.f32.mrf.mxu0
    %v868 = vpop.f32.mrf.mxu0
    %v869 = vadd.f32 %v472, %v868
    %v870 = vpop.f32.mrf.mxu0
    %871 = vmatprep.mubr.bf16.mxu0 0
    %872 = vmatmul.mubr.bf16.gmra.mxu0 %v679
    %v873 = vpop.f32.mrf.mxu0
    %v874 = vadd.f32 %v477, %v873
    %v875 = vpop.f32.mrf.mxu0
    %v876 = vpop.f32.mrf.mxu0
    %v877 = vadd.f32 %v480, %v876
    %v878 = vpop.f32.mrf.mxu0
    %879 = vmatprep.mubr.bf16.mxu0 0
    %880 = vmatmul.mubr.bf16.gmra.mxu0 %v682
    %v881 = vpop.f32.mrf.mxu0
    %v882 = vadd.f32 %v485, %v881
    %v883 = vpop.f32.mrf.mxu0
    %v884 = vpop.f32.mrf.mxu0
    %v885 = vadd.f32 %v488, %v884
    %v886 = vpop.f32.mrf.mxu0
    %887 = vmatprep.mubr.bf16.mxu0 0
    %888 = vmatmul.mubr.bf16.gmra.mxu0 %v685
    %v889 = vpop.f32.mrf.mxu0
    %v890 = vadd.f32 %v493, %v889
    %v891 = vpop.f32.mrf.mxu0
    %v892 = vpop.f32.mrf.mxu0
    %v893 = vadd.f32 %v496, %v892
    %v894 = vpop.f32.mrf.mxu0
    %895 = vmatprep.mubr.bf16.mxu0 0
    %896 = vmatmul.mubr.bf16.gmra.mxu0 %v688
    %v897 = vpop.f32.mrf.mxu0
    %v898 = vadd.f32 %v501, %v897
    %v899 = vpop.f32.mrf.mxu0
    %v900 = vpop.f32.mrf.mxu0
    %v901 = vadd.f32 %v504, %v900
    %v902 = vpop.f32.mrf.mxu0
    %903 = vmatprep.mubr.bf16.mxu0 0
    %904 = vmatmul.mubr.bf16.gmra.mxu0 %v691
    %v905 = vpop.f32.mrf.mxu0
    %v906 = vadd.f32 %v509, %v905
    %v907 = vpop.f32.mrf.mxu0
    %v908 = vpop.f32.mrf.mxu0
    %v909 = vadd.f32 %v512, %v908
    %v910 = vpop.f32.mrf.mxu0
    %911 = vmatprep.mubr.bf16.mxu0 0
    %912 = vmatmul.mubr.bf16.gmra.mxu0 %v694
    %v913 = vpop.f32.mrf.mxu0
    %v914 = vadd.f32 %v517, %v913
    %v915 = vpop.f32.mrf.mxu0
    %v916 = vpop.f32.mrf.mxu0
    %v917 = vadd.f32 %v520, %v916
    %v918 = vpop.f32.mrf.mxu0
    %919 = vmatprep.mubr.bf16.mxu0 0
    %920 = vmatmul.mubr.bf16.gmra.mxu0 %v697
    %v921 = vpop.f32.mrf.mxu0
    %v922 = vadd.f32 %v525, %v921
    %v923 = vpop.f32.mrf.mxu0
    %v924 = vpop.f32.mrf.mxu0
    %v925 = vadd.f32 %v528, %v924
    %v926 = vpop.f32.mrf.mxu0
    %927 = vmatprep.mubr.bf16.mxu0 0
    %928 = vmatmul.mubr.bf16.gmra.mxu0 %v700
    %v929 = vpop.f32.mrf.mxu0
    %v930 = vadd.f32 %v533, %v929
    %v931 = vpop.f32.mrf.mxu0
    %v932 = vpop.f32.mrf.mxu0
    %v933 = vadd.f32 %v536, %v932
    %v934 = vpop.f32.mrf.mxu0
    %935 = vmatprep.mubr.bf16.mxu0 0
    %936 = vmatmul.mubr.bf16.gmra.mxu0 %v703
    %v937 = vpop.f32.mrf.mxu0
    %v938 = vadd.f32 %v541, %v937
    %v939 = vpop.f32.mrf.mxu0
    %v940 = vpop.f32.mrf.mxu0
    %v941 = vadd.f32 %v544, %v940
    %v942 = vpop.f32.mrf.mxu0
    %943 = vmatprep.mubr.bf16.mxu0 0
    %944 = vmatmul.mubr.bf16.gmra.mxu0 %v706
    %v945 = vpop.f32.mrf.mxu0
    %v946 = vadd.f32 %v549, %v945
    %v947 = vpop.f32.mrf.mxu0
    %v948 = vpop.f32.mrf.mxu0
    %v949 = vadd.f32 %v552, %v948
    %v950 = vpop.f32.mrf.mxu0
    %951 = vmatprep.mubr.bf16.mxu0 0
    %952 = vmatmul.mubr.bf16.gmra.mxu0 %v709
    %v953 = vpop.f32.mrf.mxu0
    %v954 = vadd.f32 %v557, %v953
    %v955 = vpop.f32.mrf.mxu0
    %v956 = vpop.f32.mrf.mxu0
    %v957 = vadd.f32 %v560, %v956
    %v958 = vpop.f32.mrf.mxu0
    %959 = vmatprep.mubr.bf16.mxu0 0
    %960 = vmatmul.mubr.bf16.gmra.mxu0 %v712
    %v961 = vpop.f32.mrf.mxu0
    %v962 = vadd.f32 %v565, %v961
    %v963 = vpop.f32.mrf.mxu0
    %v964 = vpop.f32.mrf.mxu0
    %v965 = vadd.f32 %v568, %v964
    %v966 = vpop.f32.mrf.mxu0
    %967 = vmatprep.mubr.bf16.mxu0 0
    %968 = vmatmul.mubr.bf16.gmra.mxu0 %v715
    %v969 = vpop.f32.mrf.mxu0
    %v970 = vadd.f32 %v573, %v969
    %v971 = vpop.f32.mrf.mxu0
    %v972 = vpop.f32.mrf.mxu0
    %v973 = vadd.f32 %v576, %v972
    %v974 = vpop.f32.mrf.mxu0
    %975 = vmatprep.mubr.bf16.mxu0 0
    %976 = vmatmul.mubr.bf16.gmra.mxu0 %v718
    %v977 = vpop.f32.mrf.mxu0
    %v978 = vadd.f32 %v581, %v977
    %v979 = vpop.f32.mrf.mxu0
    %v980 = vpop.f32.mrf.mxu0
    %v981 = vadd.f32 %v584, %v980
    %v982 = vpop.f32.mrf.mxu0
    %983 = vmatprep.mubr.bf16.mxu0 0
    %984 = vmatmul.mubr.bf16.gmra.mxu0 %v721
    %v985 = vpop.f32.mrf.mxu0
    %v986 = vadd.f32 %v589, %v985
    %v987 = vpop.f32.mrf.mxu0
    %v988 = vpop.f32.mrf.mxu0
    %v989 = vadd.f32 %v592, %v988
    %v990 = vpop.f32.mrf.mxu0
    %991 = vmatprep.mubr.bf16.mxu0 0
    %992 = vmatmul.mubr.bf16.gmra.mxu0 %v724
    %v993 = vpop.f32.mrf.mxu0
    %v994 = vadd.f32 %v597, %v993
    %v995 = vpop.f32.mrf.mxu0
    %v996 = vpop.f32.mrf.mxu0
    %v997 = vadd.f32 %v600, %v996
    %v998 = vpop.f32.mrf.mxu0
    %999 = vmatprep.mubr.bf16.mxu0 0
    %1000 = vmatmul.mubr.bf16.gmra.mxu0 %v727
    %v1001 = vpop.f32.mrf.mxu0
    %v1002 = vadd.f32 %v605, %v1001
    %v1003 = vpop.f32.mrf.mxu0
    %v1004 = vpop.f32.mrf.mxu0
    %v1005 = vadd.f32 %v608, %v1004
    %v1006 = vpop.f32.mrf.mxu0
    %1007 = vmatprep.mubr.bf16.mxu0 0
    %1008 = vmatmul.mubr.bf16.gmra.mxu0 %v730
    %v1009 = vpop.f32.mrf.mxu0
    %v1010 = vadd.f32 %v613, %v1009
    %v1011 = vpop.f32.mrf.mxu0
    %v1012 = vpop.f32.mrf.mxu0
    %v1013 = vadd.f32 %v616, %v1012
    %v1014 = vpop.f32.mrf.mxu0
    %1015 = vmatprep.mubr.bf16.mxu0 0
    %1016 = vmatmul.mubr.bf16.gmra.mxu0 %v733
    %v1017 = vpop.f32.mrf.mxu0
    %v1018 = vadd.f32 %v621, %v1017
    %v1019 = vpop.f32.mrf.mxu0
    %v1020 = vpop.f32.mrf.mxu0
    %v1021 = vadd.f32 %v624, %v1020
    %v1022 = vpop.f32.mrf.mxu0
    %1023 = vdwg.mxu0
    %v1024 = vld [vmem:[%s0 + $0x2] sm:$0xff]
    %v1025 = vld [vmem:[%s0 + $0xa] sm:$0xff]
    %v1026 = vld [vmem:[%s0 + $0x1a] sm:$0xff]
    %v1027 = vld [vmem:[%s0 + $0x22] sm:$0xff]
    %v1028 = vld [vmem:[%s0 + $0x32] sm:$0xff]
    %v1029 = vld [vmem:[%s0 + $0x3a] sm:$0xff]
    %v1030 = vld [vmem:[%s0 + $0x4a] sm:$0xff]
    %v1031 = vld [vmem:[%s0 + $0x52] sm:$0xff]
    %v1032 = vld [vmem:[%s0 + $0x62] sm:$0xff]
    %v1033 = vld [vmem:[%s0 + $0x6a] sm:$0xff]
    %v1034 = vld [vmem:[%s0 + $0x7a] sm:$0xff]
    %v1035 = vld [vmem:[%s0 + $0x82] sm:$0xff]
    %v1036 = vld [vmem:[%s0 + $0x92] sm:$0xff]
    %v1037 = vld [vmem:[%s0 + $0x9a] sm:$0xff]
    %v1038 = vld [vmem:[%s0 + $0xaa] sm:$0xff]
    %v1039 = vld [vmem:[%s0 + $0xb2] sm:$0xff]
    %v1040 = vld [vmem:[%s0 + $0xc2] sm:$0xff]
    %v1041 = vld [vmem:[%s0 + $0xca] sm:$0xff]
    %v1042 = vld [vmem:[%s0 + $0xda] sm:$0xff]
    %v1043 = vld [vmem:[%s0 + $0xe2] sm:$0xff]
    %v1044 = vld [vmem:[%s0 + $0xf2] sm:$0xff]
    %v1045 = vld [vmem:[%s0 + $0xfa] sm:$0xff]
    %v1046 = vld [vmem:[%s0 + $0x10a] sm:$0xff]
    %v1047 = vld [vmem:[%s0 + $0x112] sm:$0xff]
    %v1048 = vld [vmem:[%s0 + $0x122] sm:$0xff]
    %v1049 = vld [vmem:[%s0 + $0x12a] sm:$0xff]
    %v1050 = vld [vmem:[%s0 + $0x13a] sm:$0xff]
    %v1051 = vld [vmem:[%s0 + $0x142] sm:$0xff]
    %v1052 = vld [vmem:[%s0 + $0x152] sm:$0xff]
    %v1053 = vld [vmem:[%s0 + $0x15a] sm:$0xff]
    %v1054 = vld [vmem:[%s0 + $0x16a] sm:$0xff]
    %v1055 = vld [vmem:[%s0 + $0x172] sm:$0xff]
    %v1056 = vld [vmem:[%s0 + $0x1b2] sm:$0xff]
    %v1057 = vld [vmem:[%s0 + $0x1ba] sm:$0xff]
    %v1058 = vld [vmem:[%s0 + $0x1ca] sm:$0xff]
    %v1059 = vld [vmem:[%s0 + $0x1d2] sm:$0xff]
    %v1060 = vld [vmem:[%s0 + $0x1e2] sm:$0xff]
    %v1061 = vld [vmem:[%s0 + $0x1ea] sm:$0xff]
    %v1062 = vld [vmem:[%s0 + $0x1fa] sm:$0xff]
    %v1063 = vld [vmem:[%s0 + $0x202] sm:$0xff]
    %v1064 = vld [vmem:[%s0 + $0x212] sm:$0xff]
    %v1065 = vld [vmem:[%s0 + $0x21a] sm:$0xff]
    %v1066 = vld [vmem:[%s0 + $0x22a] sm:$0xff]
    %v1067 = vld [vmem:[%s0 + $0x232] sm:$0xff]
    %v1068 = vld [vmem:[%s0 + $0x242] sm:$0xff]
    %v1069 = vld [vmem:[%s0 + $0x24a] sm:$0xff]
    %v1070 = vld [vmem:[%s0 + $0x25a] sm:$0xff]
    %v1071 = vld [vmem:[%s0 + $0x262] sm:$0xff]
    %v1072 = vld [vmem:[%s0 + $0x272] sm:$0xff]
    %v1073 = vld [vmem:[%s0 + $0x27a] sm:$0xff]
    %v1074 = vld [vmem:[%s0 + $0x28a] sm:$0xff]
    %v1075 = vld [vmem:[%s0 + $0x292] sm:$0xff]
    %v1076 = vld [vmem:[%s0 + $0x2a2] sm:$0xff]
    %v1077 = vld [vmem:[%s0 + $0x2aa] sm:$0xff]
    %v1078 = vld [vmem:[%s0 + $0x2ba] sm:$0xff]
    %v1079 = vld [vmem:[%s0 + $0x2c2] sm:$0xff]
    %v1080 = vld [vmem:[%s0 + $0x2d2] sm:$0xff]
    %v1081 = vld [vmem:[%s0 + $0x2da] sm:$0xff]
    %v1082 = vld [vmem:[%s0 + $0x2ea] sm:$0xff]
    %v1083 = vld [vmem:[%s0 + $0x2f2] sm:$0xff]
    %v1084 = vld [vmem:[%s0 + $0x302] sm:$0xff]
    %v1085 = vld [vmem:[%s0 + $0x30a] sm:$0xff]
    %v1086 = vld [vmem:[%s0 + $0x31a] sm:$0xff]
    %v1087 = vld [vmem:[%s0 + $0x322] sm:$0xff]
    %v1088 = vpack.c.bf16 %v1025, %v1024
    %v1089 = vpack.c.bf16 %v1027, %v1026
    %v1090 = vpack.c.bf16 %v1029, %v1028
    %v1091 = vpack.c.bf16 %v1031, %v1030
    %v1092 = vpack.c.bf16 %v1033, %v1032
    %v1093 = vpack.c.bf16 %v1035, %v1034
    %v1094 = vpack.c.bf16 %v1037, %v1036
    %v1095 = vpack.c.bf16 %v1039, %v1038
    %v1096 = vpack.c.bf16 %v1041, %v1040
    %v1097 = vpack.c.bf16 %v1043, %v1042
    %v1098 = vpack.c.bf16 %v1045, %v1044
    %v1099 = vpack.c.bf16 %v1047, %v1046
    %v1100 = vpack.c.bf16 %v1049, %v1048
    %v1101 = vpack.c.bf16 %v1051, %v1050
    %v1102 = vpack.c.bf16 %v1053, %v1052
    %v1103 = vpack.c.bf16 %v1055, %v1054
    %v1104 = vpack.c.bf16 %v1057, %v1056
    %v1105 = vpack.c.bf16 %v1059, %v1058
    %v1106 = vpack.c.bf16 %v1061, %v1060
    %v1107 = vpack.c.bf16 %v1063, %v1062
    %v1108 = vpack.c.bf16 %v1065, %v1064
    %v1109 = vpack.c.bf16 %v1067, %v1066
    %v1110 = vpack.c.bf16 %v1069, %v1068
    %v1111 = vpack.c.bf16 %v1071, %v1070
    %v1112 = vpack.c.bf16 %v1073, %v1072
    %v1113 = vpack.c.bf16 %v1075, %v1074
    %v1114 = vpack.c.bf16 %v1077, %v1076
    %v1115 = vpack.c.bf16 %v1079, %v1078
    %v1116 = vpack.c.bf16 %v1081, %v1080
    %v1117 = vpack.c.bf16 %v1083, %v1082
    %v1118 = vpack.c.bf16 %v1085, %v1084
    %v1119 = vpack.c.bf16 %v1087, %v1086
    %s1120 = scalar_lea.vmem %s1, 32
    %v1121 = vld [vmem:[%s1120] sm:$0xf]
    %v1122 = vld [vmem:[%s1120 + $0x4] sm:$0xf]
    %v1123 = vld [vmem:[%s1120 + $0x8] sm:$0xf]
    %v1124 = vld [vmem:[%s1120 + $0xc] sm:$0xf]
    %v1129 = vunpack.c.l.b16 %v1121
    %v1130 = vunpack.c.l.b16 %v1122
    %v1131 = vunpack.c.l.b16 %v1123
    %v1132 = vunpack.c.l.b16 %v1124
    %v1133 = vpack.c.b16 %v1130, %v1129
    %v1134 = vpack.c.b16 %v1132, %v1131
    %v1138 = vsel %vm241, %v1088, 0
    %v1141 = vsel %vm241, %v1089, 0
    %v1144 = vsel %vm241, %v1090, 0
    %v1147 = vsel %vm241, %v1091, 0
    %v1150 = vsel %vm241, %v1092, 0
    %v1153 = vsel %vm241, %v1093, 0
    %v1156 = vsel %vm241, %v1094, 0
    %v1159 = vsel %vm241, %v1095, 0
    %v1162 = vsel %vm241, %v1096, 0
    %v1165 = vsel %vm241, %v1097, 0
    %v1168 = vsel %vm241, %v1098, 0
    %v1171 = vsel %vm241, %v1099, 0
    %v1174 = vsel %vm241, %v1100, 0
    %v1177 = vsel %vm241, %v1101, 0
    %v1180 = vsel %vm241, %v1102, 0
    %v1183 = vsel %vm241, %v1103, 0
    %v1186 = vsel %vm241, %v1104, 0
    %v1189 = vsel %vm241, %v1105, 0
    %v1192 = vsel %vm241, %v1106, 0
    %v1195 = vsel %vm241, %v1107, 0
    %v1198 = vsel %vm241, %v1108, 0
    %v1201 = vsel %vm241, %v1109, 0
    %v1204 = vsel %vm241, %v1110, 0
    %v1207 = vsel %vm241, %v1111, 0
    %v1210 = vsel %vm241, %v1112, 0
    %v1213 = vsel %vm241, %v1113, 0
    %v1216 = vsel %vm241, %v1114, 0
    %v1219 = vsel %vm241, %v1115, 0
    %v1222 = vsel %vm241, %v1116, 0
    %v1225 = vsel %vm241, %v1117, 0
    %v1228 = vsel %vm241, %v1118, 0
    %v1231 = vsel %vm241, %v1119, 0
    %1233 = vmatprep.subr.bf16.mxu0 0
    %1234 = vmatpush1.bf16.msra.mxu0 0
    %1235 = vmatprep.subr.bf16.mxu0 0
    %1236 = vmatpush1.bf16.msra.mxu0 0
    %1237 = vmatprep.subr.bf16.mxu0 0
    %1238 = vmatpush1.bf16.msra.mxu0 0
    %1239 = vmatprep.subr.bf16.mxu0 0
    %1240 = vmatpush1.bf16.msra.mxu0 0
    %1241 = vmatprep.subr.bf16.mxu0 0
    %1242 = vmatpush1.bf16.msra.mxu0 0
    %1243 = vmatprep.subr.bf16.mxu0 0
    %1244 = vmatpush1.bf16.msra.mxu0 0
    %1245 = vmatprep.subr.bf16.mxu0 0
    %1246 = vmatpush1.bf16.msra.mxu0 %v1134
    %1247 = vmatprep.subr.bf16.mxu0 0
    %1248 = vmatpush1.bf16.msra.mxu0 %v1133
    %1249 = vmatprep.subr.bf16.mxu0 0
    %1250 = vmatpush2.bf16.msra.mxu0 0
    %1251 = vmatprep.subr.bf16.mxu0 0
    %1252 = vmatpush2.bf16.msra.mxu0 0
    %1253 = vmatprep.subr.bf16.mxu0 0
    %1254 = vmatpush2.bf16.msra.mxu0 0
    %1255 = vmatprep.subr.bf16.mxu0 0
    %1256 = vmatpush2.bf16.msra.mxu0 0
    %1257 = vmatprep.subr.bf16.mxu0 0
    %1258 = vmatpush2.bf16.msra.mxu0 0
    %1259 = vmatprep.subr.bf16.mxu0 0
    %1260 = vmatpush2.bf16.msra.mxu0 0
    %1261 = vmatprep.subr.bf16.mxu0 0
    %1262 = vmatpush2.bf16.msra.mxu0 0
    %1263 = vmatprep.subr.bf16.mxu0 0
    %1264 = vmatpush2.bf16.msra.mxu0 0
    %1265 = vmatprep.mubr.bf16.mxu0 0
    %1266 = vmatmul.mubr.bf16.gmra.mxu0 %v1138
    %v1267 = vpop.f32.mrf.mxu0
    %v1268 = vadd.f32 0.0, %v1267
    %v1269 = vpop.f32.mrf.mxu0
    %v1270 = vpop.f32.mrf.mxu0
    %v1271 = vadd.f32 0.0, %v1270
    %v1272 = vpop.f32.mrf.mxu0
    %1273 = vmatprep.mubr.bf16.mxu0 0
    %1274 = vmatmul.mubr.bf16.gmra.mxu0 %v1141
    %v1275 = vpop.f32.mrf.mxu0
    %v1276 = vadd.f32 0.0, %v1275
    %v1277 = vpop.f32.mrf.mxu0
    %v1278 = vpop.f32.mrf.mxu0
    %v1279 = vadd.f32 0.0, %v1278
    %v1280 = vpop.f32.mrf.mxu0
    %1281 = vmatprep.mubr.bf16.mxu0 0
    %1282 = vmatmul.mubr.bf16.gmra.mxu0 %v1144
    %v1283 = vpop.f32.mrf.mxu0
    %v1284 = vadd.f32 0.0, %v1283
    %v1285 = vpop.f32.mrf.mxu0
    %v1286 = vpop.f32.mrf.mxu0
    %v1287 = vadd.f32 0.0, %v1286
    %v1288 = vpop.f32.mrf.mxu0
    %1289 = vmatprep.mubr.bf16.mxu0 0
    %1290 = vmatmul.mubr.bf16.gmra.mxu0 %v1147
    %v1291 = vpop.f32.mrf.mxu0
    %v1292 = vadd.f32 0.0, %v1291
    %v1293 = vpop.f32.mrf.mxu0
    %v1294 = vpop.f32.mrf.mxu0
    %v1295 = vadd.f32 0.0, %v1294
    %v1296 = vpop.f32.mrf.mxu0
    %1297 = vmatprep.mubr.bf16.mxu0 0
    %1298 = vmatmul.mubr.bf16.gmra.mxu0 %v1150
    %v1299 = vpop.f32.mrf.mxu0
    %v1300 = vadd.f32 0.0, %v1299
    %v1301 = vpop.f32.mrf.mxu0
    %v1302 = vpop.f32.mrf.mxu0
    %v1303 = vadd.f32 0.0, %v1302
    %v1304 = vpop.f32.mrf.mxu0
    %1305 = vmatprep.mubr.bf16.mxu0 0
    %1306 = vmatmul.mubr.bf16.gmra.mxu0 %v1153
    %v1307 = vpop.f32.mrf.mxu0
    %v1308 = vadd.f32 0.0, %v1307
    %v1309 = vpop.f32.mrf.mxu0
    %v1310 = vpop.f32.mrf.mxu0
    %v1311 = vadd.f32 0.0, %v1310
    %v1312 = vpop.f32.mrf.mxu0
    %1313 = vmatprep.mubr.bf16.mxu0 0
    %1314 = vmatmul.mubr.bf16.gmra.mxu0 %v1156
    %v1315 = vpop.f32.mrf.mxu0
    %v1316 = vadd.f32 0.0, %v1315
    %v1317 = vpop.f32.mrf.mxu0
    %v1318 = vpop.f32.mrf.mxu0
    %v1319 = vadd.f32 0.0, %v1318
    %v1320 = vpop.f32.mrf.mxu0
    %1321 = vmatprep.mubr.bf16.mxu0 0
    %1322 = vmatmul.mubr.bf16.gmra.mxu0 %v1159
    %v1323 = vpop.f32.mrf.mxu0
    %v1324 = vadd.f32 0.0, %v1323
    %v1325 = vpop.f32.mrf.mxu0
    %v1326 = vpop.f32.mrf.mxu0
    %v1327 = vadd.f32 0.0, %v1326
    %v1328 = vpop.f32.mrf.mxu0
    %1329 = vmatprep.mubr.bf16.mxu0 0
    %1330 = vmatmul.mubr.bf16.gmra.mxu0 %v1162
    %v1331 = vpop.f32.mrf.mxu0
    %v1332 = vadd.f32 0.0, %v1331
    %v1333 = vpop.f32.mrf.mxu0
    %v1334 = vpop.f32.mrf.mxu0
    %v1335 = vadd.f32 0.0, %v1334
    %v1336 = vpop.f32.mrf.mxu0
    %1337 = vmatprep.mubr.bf16.mxu0 0
    %1338 = vmatmul.mubr.bf16.gmra.mxu0 %v1165
    %v1339 = vpop.f32.mrf.mxu0
    %v1340 = vadd.f32 0.0, %v1339
    %v1341 = vpop.f32.mrf.mxu0
    %v1342 = vpop.f32.mrf.mxu0
    %v1343 = vadd.f32 0.0, %v1342
    %v1344 = vpop.f32.mrf.mxu0
    %1345 = vmatprep.mubr.bf16.mxu0 0
    %1346 = vmatmul.mubr.bf16.gmra.mxu0 %v1168
    %v1347 = vpop.f32.mrf.mxu0
    %v1348 = vadd.f32 0.0, %v1347
    %v1349 = vpop.f32.mrf.mxu0
    %v1350 = vpop.f32.mrf.mxu0
    %v1351 = vadd.f32 0.0, %v1350
    %v1352 = vpop.f32.mrf.mxu0
    %1353 = vmatprep.mubr.bf16.mxu0 0
    %1354 = vmatmul.mubr.bf16.gmra.mxu0 %v1171
    %v1355 = vpop.f32.mrf.mxu0
    %v1356 = vadd.f32 0.0, %v1355
    %v1357 = vpop.f32.mrf.mxu0
    %v1358 = vpop.f32.mrf.mxu0
    %v1359 = vadd.f32 0.0, %v1358
    %v1360 = vpop.f32.mrf.mxu0
    %1361 = vmatprep.mubr.bf16.mxu0 0
    %1362 = vmatmul.mubr.bf16.gmra.mxu0 %v1174
    %v1363 = vpop.f32.mrf.mxu0
    %v1364 = vadd.f32 0.0, %v1363
    %v1365 = vpop.f32.mrf.mxu0
    %v1366 = vpop.f32.mrf.mxu0
    %v1367 = vadd.f32 0.0, %v1366
    %v1368 = vpop.f32.mrf.mxu0
    %1369 = vmatprep.mubr.bf16.mxu0 0
    %1370 = vmatmul.mubr.bf16.gmra.mxu0 %v1177
    %v1371 = vpop.f32.mrf.mxu0
    %v1372 = vadd.f32 0.0, %v1371
    %v1373 = vpop.f32.mrf.mxu0
    %v1374 = vpop.f32.mrf.mxu0
    %v1375 = vadd.f32 0.0, %v1374
    %v1376 = vpop.f32.mrf.mxu0
    %1377 = vmatprep.mubr.bf16.mxu0 0
    %1378 = vmatmul.mubr.bf16.gmra.mxu0 %v1180
    %v1379 = vpop.f32.mrf.mxu0
    %v1380 = vadd.f32 0.0, %v1379
    %v1381 = vpop.f32.mrf.mxu0
    %v1382 = vpop.f32.mrf.mxu0
    %v1383 = vadd.f32 0.0, %v1382
    %v1384 = vpop.f32.mrf.mxu0
    %1385 = vmatprep.mubr.bf16.mxu0 0
    %1386 = vmatmul.mubr.bf16.gmra.mxu0 %v1183
    %v1387 = vpop.f32.mrf.mxu0
    %v1388 = vadd.f32 0.0, %v1387
    %v1389 = vpop.f32.mrf.mxu0
    %v1390 = vpop.f32.mrf.mxu0
    %v1391 = vadd.f32 0.0, %v1390
    %v1392 = vpop.f32.mrf.mxu0
    %1393 = vmatprep.mubr.bf16.mxu0 0
    %1394 = vmatmul.mubr.bf16.gmra.mxu0 %v1186
    %v1395 = vpop.f32.mrf.mxu0
    %v1396 = vadd.f32 0.0, %v1395
    %v1397 = vpop.f32.mrf.mxu0
    %v1398 = vpop.f32.mrf.mxu0
    %v1399 = vadd.f32 0.0, %v1398
    %v1400 = vpop.f32.mrf.mxu0
    %1401 = vmatprep.mubr.bf16.mxu0 0
    %1402 = vmatmul.mubr.bf16.gmra.mxu0 %v1189
    %v1403 = vpop.f32.mrf.mxu0
    %v1404 = vadd.f32 0.0, %v1403
    %v1405 = vpop.f32.mrf.mxu0
    %v1406 = vpop.f32.mrf.mxu0
    %v1407 = vadd.f32 0.0, %v1406
    %v1408 = vpop.f32.mrf.mxu0
    %1409 = vmatprep.mubr.bf16.mxu0 0
    %1410 = vmatmul.mubr.bf16.gmra.mxu0 %v1192
    %v1411 = vpop.f32.mrf.mxu0
    %v1412 = vadd.f32 0.0, %v1411
    %v1413 = vpop.f32.mrf.mxu0
    %v1414 = vpop.f32.mrf.mxu0
    %v1415 = vadd.f32 0.0, %v1414
    %v1416 = vpop.f32.mrf.mxu0
    %1417 = vmatprep.mubr.bf16.mxu0 0
    %1418 = vmatmul.mubr.bf16.gmra.mxu0 %v1195
    %v1419 = vpop.f32.mrf.mxu0
    %v1420 = vadd.f32 0.0, %v1419
    %v1421 = vpop.f32.mrf.mxu0
    %v1422 = vpop.f32.mrf.mxu0
    %v1423 = vadd.f32 0.0, %v1422
    %v1424 = vpop.f32.mrf.mxu0
    %1425 = vmatprep.mubr.bf16.mxu0 0
    %1426 = vmatmul.mubr.bf16.gmra.mxu0 %v1198
    %v1427 = vpop.f32.mrf.mxu0
    %v1428 = vadd.f32 0.0, %v1427
    %v1429 = vpop.f32.mrf.mxu0
    %v1430 = vpop.f32.mrf.mxu0
    %v1431 = vadd.f32 0.0, %v1430
    %v1432 = vpop.f32.mrf.mxu0
    %1433 = vmatprep.mubr.bf16.mxu0 0
    %1434 = vmatmul.mubr.bf16.gmra.mxu0 %v1201
    %v1435 = vpop.f32.mrf.mxu0
    %v1436 = vadd.f32 0.0, %v1435
    %v1437 = vpop.f32.mrf.mxu0
    %v1438 = vpop.f32.mrf.mxu0
    %v1439 = vadd.f32 0.0, %v1438
    %v1440 = vpop.f32.mrf.mxu0
    %1441 = vmatprep.mubr.bf16.mxu0 0
    %1442 = vmatmul.mubr.bf16.gmra.mxu0 %v1204
    %v1443 = vpop.f32.mrf.mxu0
    %v1444 = vadd.f32 0.0, %v1443
    %v1445 = vpop.f32.mrf.mxu0
    %v1446 = vpop.f32.mrf.mxu0
    %v1447 = vadd.f32 0.0, %v1446
    %v1448 = vpop.f32.mrf.mxu0
    %1449 = vmatprep.mubr.bf16.mxu0 0
    %1450 = vmatmul.mubr.bf16.gmra.mxu0 %v1207
    %v1451 = vpop.f32.mrf.mxu0
    %v1452 = vadd.f32 0.0, %v1451
    %v1453 = vpop.f32.mrf.mxu0
    %v1454 = vpop.f32.mrf.mxu0
    %v1455 = vadd.f32 0.0, %v1454
    %v1456 = vpop.f32.mrf.mxu0
    %1457 = vmatprep.mubr.bf16.mxu0 0
    %1458 = vmatmul.mubr.bf16.gmra.mxu0 %v1210
    %v1459 = vpop.f32.mrf.mxu0
    %v1460 = vadd.f32 0.0, %v1459
    %v1461 = vpop.f32.mrf.mxu0
    %v1462 = vpop.f32.mrf.mxu0
    %v1463 = vadd.f32 0.0, %v1462
    %v1464 = vpop.f32.mrf.mxu0
    %1465 = vmatprep.mubr.bf16.mxu0 0
    %1466 = vmatmul.mubr.bf16.gmra.mxu0 %v1213
    %v1467 = vpop.f32.mrf.mxu0
    %v1468 = vadd.f32 0.0, %v1467
    %v1469 = vpop.f32.mrf.mxu0
    %v1470 = vpop.f32.mrf.mxu0
    %v1471 = vadd.f32 0.0, %v1470
    %v1472 = vpop.f32.mrf.mxu0
    %1473 = vmatprep.mubr.bf16.mxu0 0
    %1474 = vmatmul.mubr.bf16.gmra.mxu0 %v1216
    %v1475 = vpop.f32.mrf.mxu0
    %v1476 = vadd.f32 0.0, %v1475
    %v1477 = vpop.f32.mrf.mxu0
    %v1478 = vpop.f32.mrf.mxu0
    %v1479 = vadd.f32 0.0, %v1478
    %v1480 = vpop.f32.mrf.mxu0
    %1481 = vmatprep.mubr.bf16.mxu0 0
    %1482 = vmatmul.mubr.bf16.gmra.mxu0 %v1219
    %v1483 = vpop.f32.mrf.mxu0
    %v1484 = vadd.f32 0.0, %v1483
    %v1485 = vpop.f32.mrf.mxu0
    %v1486 = vpop.f32.mrf.mxu0
    %v1487 = vadd.f32 0.0, %v1486
    %v1488 = vpop.f32.mrf.mxu0
    %1489 = vmatprep.mubr.bf16.mxu0 0
    %1490 = vmatmul.mubr.bf16.gmra.mxu0 %v1222
    %v1491 = vpop.f32.mrf.mxu0
    %v1492 = vadd.f32 0.0, %v1491
    %v1493 = vpop.f32.mrf.mxu0
    %v1494 = vpop.f32.mrf.mxu0
    %v1495 = vadd.f32 0.0, %v1494
    %v1496 = vpop.f32.mrf.mxu0
    %1497 = vmatprep.mubr.bf16.mxu0 0
    %1498 = vmatmul.mubr.bf16.gmra.mxu0 %v1225
    %v1499 = vpop.f32.mrf.mxu0
    %v1500 = vadd.f32 0.0, %v1499
    %v1501 = vpop.f32.mrf.mxu0
    %v1502 = vpop.f32.mrf.mxu0
    %v1503 = vadd.f32 0.0, %v1502
    %v1504 = vpop.f32.mrf.mxu0
    %1505 = vmatprep.mubr.bf16.mxu0 0
    %1506 = vmatmul.mubr.bf16.gmra.mxu0 %v1228
    %v1507 = vpop.f32.mrf.mxu0
    %v1508 = vadd.f32 0.0, %v1507
    %v1509 = vpop.f32.mrf.mxu0
    %v1510 = vpop.f32.mrf.mxu0
    %v1511 = vadd.f32 0.0, %v1510
    %v1512 = vpop.f32.mrf.mxu0
    %1513 = vmatprep.mubr.bf16.mxu0 0
    %1514 = vmatmul.mubr.bf16.gmra.mxu0 %v1231
    %v1515 = vpop.f32.mrf.mxu0
    %v1516 = vadd.f32 0.0, %v1515
    %v1517 = vpop.f32.mrf.mxu0
    %v1518 = vpop.f32.mrf.mxu0
    %v1519 = vadd.f32 0.0, %v1518
    %v1520 = vpop.f32.mrf.mxu0
    %1521 = vdwg.mxu0
    %v1522 = vadd.f32 %v770, %v1268
    %v1523 = vadd.f32 %v773, %v1271
    %v1524 = vadd.f32 %v778, %v1276
    %v1525 = vadd.f32 %v781, %v1279
    %v1526 = vadd.f32 %v786, %v1284
    %v1527 = vadd.f32 %v789, %v1287
    %v1528 = vadd.f32 %v794, %v1292
    %v1529 = vadd.f32 %v797, %v1295
    %v1530 = vadd.f32 %v802, %v1300
    %v1531 = vadd.f32 %v805, %v1303
    %v1532 = vadd.f32 %v810, %v1308
    %v1533 = vadd.f32 %v813, %v1311
    %v1534 = vadd.f32 %v818, %v1316
    %v1535 = vadd.f32 %v821, %v1319
    %v1536 = vadd.f32 %v826, %v1324
    %v1537 = vadd.f32 %v829, %v1327
    %v1538 = vadd.f32 %v834, %v1332
    %v1539 = vadd.f32 %v837, %v1335
    %v1540 = vadd.f32 %v842, %v1340
    %v1541 = vadd.f32 %v845, %v1343
    %v1542 = vadd.f32 %v850, %v1348
    %v1543 = vadd.f32 %v853, %v1351
    %v1544 = vadd.f32 %v858, %v1356
    %v1545 = vadd.f32 %v861, %v1359
    %v1546 = vadd.f32 %v866, %v1364
    %v1547 = vadd.f32 %v869, %v1367
    %v1548 = vadd.f32 %v874, %v1372
    %v1549 = vadd.f32 %v877, %v1375
    %v1550 = vadd.f32 %v882, %v1380
    %v1551 = vadd.f32 %v885, %v1383
    %v1552 = vadd.f32 %v890, %v1388
    %v1553 = vadd.f32 %v893, %v1391
    %v1554 = vadd.f32 %v898, %v1396
    %v1555 = vadd.f32 %v901, %v1399
    %v1556 = vadd.f32 %v906, %v1404
    %v1557 = vadd.f32 %v909, %v1407
    %v1558 = vadd.f32 %v914, %v1412
    %v1559 = vadd.f32 %v917, %v1415
    %v1560 = vadd.f32 %v922, %v1420
    %v1561 = vadd.f32 %v925, %v1423
    %v1562 = vadd.f32 %v930, %v1428
    %v1563 = vadd.f32 %v933, %v1431
    %v1564 = vadd.f32 %v938, %v1436
    %v1565 = vadd.f32 %v941, %v1439
    %v1566 = vadd.f32 %v946, %v1444
    %v1567 = vadd.f32 %v949, %v1447
    %v1568 = vadd.f32 %v954, %v1452
    %v1569 = vadd.f32 %v957, %v1455
    %v1570 = vadd.f32 %v962, %v1460
    %v1571 = vadd.f32 %v965, %v1463
    %v1572 = vadd.f32 %v970, %v1468
    %v1573 = vadd.f32 %v973, %v1471
    %v1574 = vadd.f32 %v978, %v1476
    %v1575 = vadd.f32 %v981, %v1479
    %v1576 = vadd.f32 %v986, %v1484
    %v1577 = vadd.f32 %v989, %v1487
    %v1578 = vadd.f32 %v994, %v1492
    %v1579 = vadd.f32 %v997, %v1495
    %v1580 = vadd.f32 %v1002, %v1500
    %v1581 = vadd.f32 %v1005, %v1503
    %v1582 = vadd.f32 %v1010, %v1508
    %v1583 = vadd.f32 %v1013, %v1511
    %v1584 = vadd.f32 %v1018, %v1516
    %v1585 = vadd.f32 %v1021, %v1519
    %s1586 = scalar_lea.vmem %s0, 24
    %v1587 = vld [vmem:[%s1586] sm:$0xff]
    %v1588 = vld [vmem:[%s1586 + $0x8] sm:$0xff]
    %v1589 = vld [vmem:[%s1586 + $0x18] sm:$0xff]
    %v1590 = vld [vmem:[%s1586 + $0x20] sm:$0xff]
    %v1591 = vld [vmem:[%s1586 + $0x30] sm:$0xff]
    %v1592 = vld [vmem:[%s1586 + $0x38] sm:$0xff]
    %v1593 = vld [vmem:[%s1586 + $0x48] sm:$0xff]
    %v1594 = vld [vmem:[%s1586 + $0x50] sm:$0xff]
    %v1595 = vld [vmem:[%s1586 + $0x60] sm:$0xff]
    %v1596 = vld [vmem:[%s1586 + $0x68] sm:$0xff]
    %v1597 = vld [vmem:[%s1586 + $0x78] sm:$0xff]
    %v1598 = vld [vmem:[%s1586 + $0x80] sm:$0xff]
    %v1599 = vld [vmem:[%s1586 + $0x90] sm:$0xff]
    %v1600 = vld [vmem:[%s1586 + $0x98] sm:$0xff]
    %v1601 = vld [vmem:[%s1586 + $0xa8] sm:$0xff]
    %v1602 = vld [vmem:[%s1586 + $0xb0] sm:$0xff]
    %v1603 = vld [vmem:[%s1586 + $0xc0] sm:$0xff]
    %v1604 = vld [vmem:[%s1586 + $0xc8] sm:$0xff]
    %v1605 = vld [vmem:[%s1586 + $0xd8] sm:$0xff]
    %v1606 = vld [vmem:[%s1586 + $0xe0] sm:$0xff]
    %v1607 = vld [vmem:[%s1586 + $0xf0] sm:$0xff]
    %v1608 = vld [vmem:[%s1586 + $0xf8] sm:$0xff]
    %v1609 = vld [vmem:[%s1586 + $0x108] sm:$0xff]
    %v1610 = vld [vmem:[%s1586 + $0x110] sm:$0xff]
    %v1611 = vld [vmem:[%s1586 + $0x120] sm:$0xff]
    %v1612 = vld [vmem:[%s1586 + $0x128] sm:$0xff]
    %v1613 = vld [vmem:[%s1586 + $0x138] sm:$0xff]
    %v1614 = vld [vmem:[%s1586 + $0x140] sm:$0xff]
    %v1615 = vld [vmem:[%s1586 + $0x150] sm:$0xff]
    %v1616 = vld [vmem:[%s1586 + $0x158] sm:$0xff]
    %v1617 = vld [vmem:[%s1586 + $0x168] sm:$0xff]
    %v1618 = vld [vmem:[%s1586 + $0x170] sm:$0xff]
    %v1619 = vld [vmem:[%s1586 + $0x1b0] sm:$0xff]
    %v1620 = vld [vmem:[%s1586 + $0x1b8] sm:$0xff]
    %v1621 = vld [vmem:[%s1586 + $0x1c8] sm:$0xff]
    %v1622 = vld [vmem:[%s1586 + $0x1d0] sm:$0xff]
    %v1623 = vld [vmem:[%s1586 + $0x1e0] sm:$0xff]
    %v1624 = vld [vmem:[%s1586 + $0x1e8] sm:$0xff]
    %v1625 = vld [vmem:[%s1586 + $0x1f8] sm:$0xff]
    %v1626 = vld [vmem:[%s1586 + $0x200] sm:$0xff]
    %v1627 = vld [vmem:[%s1586 + $0x210] sm:$0xff]
    %v1628 = vld [vmem:[%s1586 + $0x218] sm:$0xff]
    %v1629 = vld [vmem:[%s1586 + $0x228] sm:$0xff]
    %v1630 = vld [vmem:[%s1586 + $0x230] sm:$0xff]
    %v1631 = vld [vmem:[%s1586 + $0x240] sm:$0xff]
    %v1632 = vld [vmem:[%s1586 + $0x248] sm:$0xff]
    %v1633 = vld [vmem:[%s1586 + $0x258] sm:$0xff]
    %v1634 = vld [vmem:[%s1586 + $0x260] sm:$0xff]
    %v1635 = vld [vmem:[%s1586 + $0x270] sm:$0xff]
    %v1636 = vld [vmem:[%s1586 + $0x278] sm:$0xff]
    %v1637 = vld [vmem:[%s1586 + $0x288] sm:$0xff]
    %v1638 = vld [vmem:[%s1586 + $0x290] sm:$0xff]
    %v1639 = vld [vmem:[%s1586 + $0x2a0] sm:$0xff]
    %v1640 = vld [vmem:[%s1586 + $0x2a8] sm:$0xff]
    %v1641 = vld [vmem:[%s1586 + $0x2b8] sm:$0xff]
    %v1642 = vld [vmem:[%s1586 + $0x2c0] sm:$0xff]
    %v1643 = vld [vmem:[%s1586 + $0x2d0] sm:$0xff]
    %v1644 = vld [vmem:[%s1586 + $0x2d8] sm:$0xff]
    %v1645 = vld [vmem:[%s1586 + $0x2e8] sm:$0xff]
    %v1646 = vld [vmem:[%s1586 + $0x2f0] sm:$0xff]
    %v1647 = vld [vmem:[%s1586 + $0x300] sm:$0xff]
    %v1648 = vld [vmem:[%s1586 + $0x308] sm:$0xff]
    %v1649 = vld [vmem:[%s1586 + $0x318] sm:$0xff]
    %v1650 = vld [vmem:[%s1586 + $0x320] sm:$0xff]
    %v1651 = vpack.c.bf16 %v1588, %v1587
    %v1652 = vpack.c.bf16 %v1590, %v1589
    %v1653 = vpack.c.bf16 %v1592, %v1591
    %v1654 = vpack.c.bf16 %v1594, %v1593
    %v1655 = vpack.c.bf16 %v1596, %v1595
    %v1656 = vpack.c.bf16 %v1598, %v1597
    %v1657 = vpack.c.bf16 %v1600, %v1599
    %v1658 = vpack.c.bf16 %v1602, %v1601
    %v1659 = vpack.c.bf16 %v1604, %v1603
    %v1660 = vpack.c.bf16 %v1606, %v1605
    %v1661 = vpack.c.bf16 %v1608, %v1607
    %v1662 = vpack.c.bf16 %v1610, %v1609
    %v1663 = vpack.c.bf16 %v1612, %v1611
    %v1664 = vpack.c.bf16 %v1614, %v1613
    %v1665 = vpack.c.bf16 %v1616, %v1615
    %v1666 = vpack.c.bf16 %v1618, %v1617
    %v1667 = vpack.c.bf16 %v1620, %v1619
    %v1668 = vpack.c.bf16 %v1622, %v1621
    %v1669 = vpack.c.bf16 %v1624, %v1623
    %v1670 = vpack.c.bf16 %v1626, %v1625
    %v1671 = vpack.c.bf16 %v1628, %v1627
    %v1672 = vpack.c.bf16 %v1630, %v1629
    %v1673 = vpack.c.bf16 %v1632, %v1631
    %v1674 = vpack.c.bf16 %v1634, %v1633
    %v1675 = vpack.c.bf16 %v1636, %v1635
    %v1676 = vpack.c.bf16 %v1638, %v1637
    %v1677 = vpack.c.bf16 %v1640, %v1639
    %v1678 = vpack.c.bf16 %v1642, %v1641
    %v1679 = vpack.c.bf16 %v1644, %v1643
    %v1680 = vpack.c.bf16 %v1646, %v1645
    %v1681 = vpack.c.bf16 %v1648, %v1647
    %v1682 = vpack.c.bf16 %v1650, %v1649
    %s1683 = scalar_lea.vmem %s1, 48
    %v1684 = vld [vmem:[%s1683] sm:$0xf]
    %v1685 = vld [vmem:[%s1683 + $0x4] sm:$0xf]
    %v1686 = vld [vmem:[%s1683 + $0x8] sm:$0xf]
    %v1687 = vld [vmem:[%s1683 + $0xc] sm:$0xf]
    %v1692 = vunpack.c.l.b16 %v1684
    %v1693 = vunpack.c.l.b16 %v1685
    %v1694 = vunpack.c.l.b16 %v1686
    %v1695 = vunpack.c.l.b16 %v1687
    %v1696 = vpack.c.b16 %v1693, %v1692
    %v1697 = vpack.c.b16 %v1695, %v1694
    %v1701 = vsel %vm241, %v1651, 0
    %v1704 = vsel %vm241, %v1652, 0
    %v1707 = vsel %vm241, %v1653, 0
    %v1710 = vsel %vm241, %v1654, 0
    %v1713 = vsel %vm241, %v1655, 0
    %v1716 = vsel %vm241, %v1656, 0
    %v1719 = vsel %vm241, %v1657, 0
    %v1722 = vsel %vm241, %v1658, 0
    %v1725 = vsel %vm241, %v1659, 0
    %v1728 = vsel %vm241, %v1660, 0
    %v1731 = vsel %vm241, %v1661, 0
    %v1734 = vsel %vm241, %v1662, 0
    %v1737 = vsel %vm241, %v1663, 0
    %v1740 = vsel %vm241, %v1664, 0
    %v1743 = vsel %vm241, %v1665, 0
    %v1746 = vsel %vm241, %v1666, 0
    %v1749 = vsel %vm241, %v1667, 0
    %v1752 = vsel %vm241, %v1668, 0
    %v1755 = vsel %vm241, %v1669, 0
    %v1758 = vsel %vm241, %v1670, 0
    %v1761 = vsel %vm241, %v1671, 0
    %v1764 = vsel %vm241, %v1672, 0
    %v1767 = vsel %vm241, %v1673, 0
    %v1770 = vsel %vm241, %v1674, 0
    %v1773 = vsel %vm241, %v1675, 0
    %v1776 = vsel %vm241, %v1676, 0
    %v1779 = vsel %vm241, %v1677, 0
    %v1782 = vsel %vm241, %v1678, 0
    %v1785 = vsel %vm241, %v1679, 0
    %v1788 = vsel %vm241, %v1680, 0
    %v1791 = vsel %vm241, %v1681, 0
    %v1794 = vsel %vm241, %v1682, 0
    %1796 = vmatprep.subr.bf16.mxu0 0
    %1797 = vmatpush1.bf16.msra.mxu0 0
    %1798 = vmatprep.subr.bf16.mxu0 0
    %1799 = vmatpush1.bf16.msra.mxu0 0
    %1800 = vmatprep.subr.bf16.mxu0 0
    %1801 = vmatpush1.bf16.msra.mxu0 0
    %1802 = vmatprep.subr.bf16.mxu0 0
    %1803 = vmatpush1.bf16.msra.mxu0 0
    %1804 = vmatprep.subr.bf16.mxu0 0
    %1805 = vmatpush1.bf16.msra.mxu0 0
    %1806 = vmatprep.subr.bf16.mxu0 0
    %1807 = vmatpush1.bf16.msra.mxu0 0
    %1808 = vmatprep.subr.bf16.mxu0 0
    %1809 = vmatpush1.bf16.msra.mxu0 %v1697
    %1810 = vmatprep.subr.bf16.mxu0 0
    %1811 = vmatpush1.bf16.msra.mxu0 %v1696
    %1812 = vmatprep.subr.bf16.mxu0 0
    %1813 = vmatpush2.bf16.msra.mxu0 0
    %1814 = vmatprep.subr.bf16.mxu0 0
    %1815 = vmatpush2.bf16.msra.mxu0 0
    %1816 = vmatprep.subr.bf16.mxu0 0
    %1817 = vmatpush2.bf16.msra.mxu0 0
    %1818 = vmatprep.subr.bf16.mxu0 0
    %1819 = vmatpush2.bf16.msra.mxu0 0
    %1820 = vmatprep.subr.bf16.mxu0 0
    %1821 = vmatpush2.bf16.msra.mxu0 0
    %1822 = vmatprep.subr.bf16.mxu0 0
    %1823 = vmatpush2.bf16.msra.mxu0 0
    %1824 = vmatprep.subr.bf16.mxu0 0
    %1825 = vmatpush2.bf16.msra.mxu0 0
    %1826 = vmatprep.subr.bf16.mxu0 0
    %1827 = vmatpush2.bf16.msra.mxu0 0
    %1828 = vmatprep.mubr.bf16.mxu0 0
    %1829 = vmatmul.mubr.bf16.gmra.mxu0 %v1701
    %v1830 = vpop.f32.mrf.mxu0
    %v1831 = vadd.f32 0.0, %v1830
    %v1832 = vpop.f32.mrf.mxu0
    %v1833 = vpop.f32.mrf.mxu0
    %v1834 = vadd.f32 0.0, %v1833
    %v1835 = vpop.f32.mrf.mxu0
    %1836 = vmatprep.mubr.bf16.mxu0 0
    %1837 = vmatmul.mubr.bf16.gmra.mxu0 %v1704
    %v1838 = vpop.f32.mrf.mxu0
    %v1839 = vadd.f32 0.0, %v1838
    %v1840 = vpop.f32.mrf.mxu0
    %v1841 = vpop.f32.mrf.mxu0
    %v1842 = vadd.f32 0.0, %v1841
    %v1843 = vpop.f32.mrf.mxu0
    %1844 = vmatprep.mubr.bf16.mxu0 0
    %1845 = vmatmul.mubr.bf16.gmra.mxu0 %v1707
    %v1846 = vpop.f32.mrf.mxu0
    %v1847 = vadd.f32 0.0, %v1846
    %v1848 = vpop.f32.mrf.mxu0
    %v1849 = vpop.f32.mrf.mxu0
    %v1850 = vadd.f32 0.0, %v1849
    %v1851 = vpop.f32.mrf.mxu0
    %1852 = vmatprep.mubr.bf16.mxu0 0
    %1853 = vmatmul.mubr.bf16.gmra.mxu0 %v1710
    %v1854 = vpop.f32.mrf.mxu0
    %v1855 = vadd.f32 0.0, %v1854
    %v1856 = vpop.f32.mrf.mxu0
    %v1857 = vpop.f32.mrf.mxu0
    %v1858 = vadd.f32 0.0, %v1857
    %v1859 = vpop.f32.mrf.mxu0
    %1860 = vmatprep.mubr.bf16.mxu0 0
    %1861 = vmatmul.mubr.bf16.gmra.mxu0 %v1713
    %v1862 = vpop.f32.mrf.mxu0
    %v1863 = vadd.f32 0.0, %v1862
    %v1864 = vpop.f32.mrf.mxu0
    %v1865 = vpop.f32.mrf.mxu0
    %v1866 = vadd.f32 0.0, %v1865
    %v1867 = vpop.f32.mrf.mxu0
    %1868 = vmatprep.mubr.bf16.mxu0 0
    %1869 = vmatmul.mubr.bf16.gmra.mxu0 %v1716
    %v1870 = vpop.f32.mrf.mxu0
    %v1871 = vadd.f32 0.0, %v1870
    %v1872 = vpop.f32.mrf.mxu0
    %v1873 = vpop.f32.mrf.mxu0
    %v1874 = vadd.f32 0.0, %v1873
    %v1875 = vpop.f32.mrf.mxu0
    %1876 = vmatprep.mubr.bf16.mxu0 0
    %1877 = vmatmul.mubr.bf16.gmra.mxu0 %v1719
    %v1878 = vpop.f32.mrf.mxu0
    %v1879 = vadd.f32 0.0, %v1878
    %v1880 = vpop.f32.mrf.mxu0
    %v1881 = vpop.f32.mrf.mxu0
    %v1882 = vadd.f32 0.0, %v1881
    %v1883 = vpop.f32.mrf.mxu0
    %1884 = vmatprep.mubr.bf16.mxu0 0
    %1885 = vmatmul.mubr.bf16.gmra.mxu0 %v1722
    %v1886 = vpop.f32.mrf.mxu0
    %v1887 = vadd.f32 0.0, %v1886
    %v1888 = vpop.f32.mrf.mxu0
    %v1889 = vpop.f32.mrf.mxu0
    %v1890 = vadd.f32 0.0, %v1889
    %v1891 = vpop.f32.mrf.mxu0
    %1892 = vmatprep.mubr.bf16.mxu0 0
    %1893 = vmatmul.mubr.bf16.gmra.mxu0 %v1725
    %v1894 = vpop.f32.mrf.mxu0
    %v1895 = vadd.f32 0.0, %v1894
    %v1896 = vpop.f32.mrf.mxu0
    %v1897 = vpop.f32.mrf.mxu0
    %v1898 = vadd.f32 0.0, %v1897
    %v1899 = vpop.f32.mrf.mxu0
    %1900 = vmatprep.mubr.bf16.mxu0 0
    %1901 = vmatmul.mubr.bf16.gmra.mxu0 %v1728
    %v1902 = vpop.f32.mrf.mxu0
    %v1903 = vadd.f32 0.0, %v1902
    %v1904 = vpop.f32.mrf.mxu0
    %v1905 = vpop.f32.mrf.mxu0
    %v1906 = vadd.f32 0.0, %v1905
    %v1907 = vpop.f32.mrf.mxu0
    %1908 = vmatprep.mubr.bf16.mxu0 0
    %1909 = vmatmul.mubr.bf16.gmra.mxu0 %v1731
    %v1910 = vpop.f32.mrf.mxu0
    %v1911 = vadd.f32 0.0, %v1910
    %v1912 = vpop.f32.mrf.mxu0
    %v1913 = vpop.f32.mrf.mxu0
    %v1914 = vadd.f32 0.0, %v1913
    %v1915 = vpop.f32.mrf.mxu0
    %1916 = vmatprep.mubr.bf16.mxu0 0
    %1917 = vmatmul.mubr.bf16.gmra.mxu0 %v1734
    %v1918 = vpop.f32.mrf.mxu0
    %v1919 = vadd.f32 0.0, %v1918
    %v1920 = vpop.f32.mrf.mxu0
    %v1921 = vpop.f32.mrf.mxu0
    %v1922 = vadd.f32 0.0, %v1921
    %v1923 = vpop.f32.mrf.mxu0
    %1924 = vmatprep.mubr.bf16.mxu0 0
    %1925 = vmatmul.mubr.bf16.gmra.mxu0 %v1737
    %v1926 = vpop.f32.mrf.mxu0
    %v1927 = vadd.f32 0.0, %v1926
    %v1928 = vpop.f32.mrf.mxu0
    %v1929 = vpop.f32.mrf.mxu0
    %v1930 = vadd.f32 0.0, %v1929
    %v1931 = vpop.f32.mrf.mxu0
    %1932 = vmatprep.mubr.bf16.mxu0 0
    %1933 = vmatmul.mubr.bf16.gmra.mxu0 %v1740
    %v1934 = vpop.f32.mrf.mxu0
    %v1935 = vadd.f32 0.0, %v1934
    %v1936 = vpop.f32.mrf.mxu0
    %v1937 = vpop.f32.mrf.mxu0
    %v1938 = vadd.f32 0.0, %v1937
    %v1939 = vpop.f32.mrf.mxu0
    %1940 = vmatprep.mubr.bf16.mxu0 0
    %1941 = vmatmul.mubr.bf16.gmra.mxu0 %v1743
    %v1942 = vpop.f32.mrf.mxu0
    %v1943 = vadd.f32 0.0, %v1942
    %v1944 = vpop.f32.mrf.mxu0
    %v1945 = vpop.f32.mrf.mxu0
    %v1946 = vadd.f32 0.0, %v1945
    %v1947 = vpop.f32.mrf.mxu0
    %1948 = vmatprep.mubr.bf16.mxu0 0
    %1949 = vmatmul.mubr.bf16.gmra.mxu0 %v1746
    %v1950 = vpop.f32.mrf.mxu0
    %v1951 = vadd.f32 0.0, %v1950
    %v1952 = vpop.f32.mrf.mxu0
    %v1953 = vpop.f32.mrf.mxu0
    %v1954 = vadd.f32 0.0, %v1953
    %v1955 = vpop.f32.mrf.mxu0
    %1956 = vmatprep.mubr.bf16.mxu0 0
    %1957 = vmatmul.mubr.bf16.gmra.mxu0 %v1749
    %v1958 = vpop.f32.mrf.mxu0
    %v1959 = vadd.f32 0.0, %v1958
    %v1960 = vpop.f32.mrf.mxu0
    %v1961 = vpop.f32.mrf.mxu0
    %v1962 = vadd.f32 0.0, %v1961
    %v1963 = vpop.f32.mrf.mxu0
    %1964 = vmatprep.mubr.bf16.mxu0 0
    %1965 = vmatmul.mubr.bf16.gmra.mxu0 %v1752
    %v1966 = vpop.f32.mrf.mxu0
    %v1967 = vadd.f32 0.0, %v1966
    %v1968 = vpop.f32.mrf.mxu0
    %v1969 = vpop.f32.mrf.mxu0
    %v1970 = vadd.f32 0.0, %v1969
    %v1971 = vpop.f32.mrf.mxu0
    %1972 = vmatprep.mubr.bf16.mxu0 0
    %1973 = vmatmul.mubr.bf16.gmra.mxu0 %v1755
    %v1974 = vpop.f32.mrf.mxu0
    %v1975 = vadd.f32 0.0, %v1974
    %v1976 = vpop.f32.mrf.mxu0
    %v1977 = vpop.f32.mrf.mxu0
    %v1978 = vadd.f32 0.0, %v1977
    %v1979 = vpop.f32.mrf.mxu0
    %1980 = vmatprep.mubr.bf16.mxu0 0
    %1981 = vmatmul.mubr.bf16.gmra.mxu0 %v1758
    %v1982 = vpop.f32.mrf.mxu0
    %v1983 = vadd.f32 0.0, %v1982
    %v1984 = vpop.f32.mrf.mxu0
    %v1985 = vpop.f32.mrf.mxu0
    %v1986 = vadd.f32 0.0, %v1985
    %v1987 = vpop.f32.mrf.mxu0
    %1988 = vmatprep.mubr.bf16.mxu0 0
    %1989 = vmatmul.mubr.bf16.gmra.mxu0 %v1761
    %v1990 = vpop.f32.mrf.mxu0
    %v1991 = vadd.f32 0.0, %v1990
    %v1992 = vpop.f32.mrf.mxu0
    %v1993 = vpop.f32.mrf.mxu0
    %v1994 = vadd.f32 0.0, %v1993
    %v1995 = vpop.f32.mrf.mxu0
    %1996 = vmatprep.mubr.bf16.mxu0 0
    %1997 = vmatmul.mubr.bf16.gmra.mxu0 %v1764
    %v1998 = vpop.f32.mrf.mxu0
    %v1999 = vadd.f32 0.0, %v1998
    %v2000 = vpop.f32.mrf.mxu0
    %v2001 = vpop.f32.mrf.mxu0
    %v2002 = vadd.f32 0.0, %v2001
    %v2003 = vpop.f32.mrf.mxu0
    %2004 = vmatprep.mubr.bf16.mxu0 0
    %2005 = vmatmul.mubr.bf16.gmra.mxu0 %v1767
    %v2006 = vpop.f32.mrf.mxu0
    %v2007 = vadd.f32 0.0, %v2006
    %v2008 = vpop.f32.mrf.mxu0
    %v2009 = vpop.f32.mrf.mxu0
    %v2010 = vadd.f32 0.0, %v2009
    %v2011 = vpop.f32.mrf.mxu0
    %2012 = vmatprep.mubr.bf16.mxu0 0
    %2013 = vmatmul.mubr.bf16.gmra.mxu0 %v1770
    %v2014 = vpop.f32.mrf.mxu0
    %v2015 = vadd.f32 0.0, %v2014
    %v2016 = vpop.f32.mrf.mxu0
    %v2017 = vpop.f32.mrf.mxu0
    %v2018 = vadd.f32 0.0, %v2017
    %v2019 = vpop.f32.mrf.mxu0
    %2020 = vmatprep.mubr.bf16.mxu0 0
    %2021 = vmatmul.mubr.bf16.gmra.mxu0 %v1773
    %v2022 = vpop.f32.mrf.mxu0
    %v2023 = vadd.f32 0.0, %v2022
    %v2024 = vpop.f32.mrf.mxu0
    %v2025 = vpop.f32.mrf.mxu0
    %v2026 = vadd.f32 0.0, %v2025
    %v2027 = vpop.f32.mrf.mxu0
    %2028 = vmatprep.mubr.bf16.mxu0 0
    %2029 = vmatmul.mubr.bf16.gmra.mxu0 %v1776
    %v2030 = vpop.f32.mrf.mxu0
    %v2031 = vadd.f32 0.0, %v2030
    %v2032 = vpop.f32.mrf.mxu0
    %v2033 = vpop.f32.mrf.mxu0
    %v2034 = vadd.f32 0.0, %v2033
    %v2035 = vpop.f32.mrf.mxu0
    %2036 = vmatprep.mubr.bf16.mxu0 0
    %2037 = vmatmul.mubr.bf16.gmra.mxu0 %v1779
    %v2038 = vpop.f32.mrf.mxu0
    %v2039 = vadd.f32 0.0, %v2038
    %v2040 = vpop.f32.mrf.mxu0
    %v2041 = vpop.f32.mrf.mxu0
    %v2042 = vadd.f32 0.0, %v2041
    %v2043 = vpop.f32.mrf.mxu0
    %2044 = vmatprep.mubr.bf16.mxu0 0
    %2045 = vmatmul.mubr.bf16.gmra.mxu0 %v1782
    %v2046 = vpop.f32.mrf.mxu0
    %v2047 = vadd.f32 0.0, %v2046
    %v2048 = vpop.f32.mrf.mxu0
    %v2049 = vpop.f32.mrf.mxu0
    %v2050 = vadd.f32 0.0, %v2049
    %v2051 = vpop.f32.mrf.mxu0
    %2052 = vmatprep.mubr.bf16.mxu0 0
    %2053 = vmatmul.mubr.bf16.gmra.mxu0 %v1785
    %v2054 = vpop.f32.mrf.mxu0
    %v2055 = vadd.f32 0.0, %v2054
    %v2056 = vpop.f32.mrf.mxu0
    %v2057 = vpop.f32.mrf.mxu0
    %v2058 = vadd.f32 0.0, %v2057
    %v2059 = vpop.f32.mrf.mxu0
    %2060 = vmatprep.mubr.bf16.mxu0 0
    %2061 = vmatmul.mubr.bf16.gmra.mxu0 %v1788
    %v2062 = vpop.f32.mrf.mxu0
    %v2063 = vadd.f32 0.0, %v2062
    %v2064 = vpop.f32.mrf.mxu0
    %v2065 = vpop.f32.mrf.mxu0
    %v2066 = vadd.f32 0.0, %v2065
    %v2067 = vpop.f32.mrf.mxu0
    %2068 = vmatprep.mubr.bf16.mxu0 0
    %2069 = vmatmul.mubr.bf16.gmra.mxu0 %v1791
    %v2070 = vpop.f32.mrf.mxu0
    %v2071 = vadd.f32 0.0, %v2070
    %v2072 = vpop.f32.mrf.mxu0
    %v2073 = vpop.f32.mrf.mxu0
    %v2074 = vadd.f32 0.0, %v2073
    %v2075 = vpop.f32.mrf.mxu0
    %2076 = vmatprep.mubr.bf16.mxu0 0
    %2077 = vmatmul.mubr.bf16.gmra.mxu0 %v1794
    %v2078 = vpop.f32.mrf.mxu0
    %v2079 = vadd.f32 0.0, %v2078
    %v2080 = vpop.f32.mrf.mxu0
    %v2081 = vpop.f32.mrf.mxu0
    %v2082 = vadd.f32 0.0, %v2081
    %v2083 = vpop.f32.mrf.mxu0
    %2084 = vdwg.mxu0
    %v2085 = vadd.f32 %v1522, %v1831
    %v2086 = vadd.f32 %v1523, %v1834
    %v2087 = vadd.f32 %v1524, %v1839
    %v2088 = vadd.f32 %v1525, %v1842
    %v2089 = vadd.f32 %v1526, %v1847
    %v2090 = vadd.f32 %v1527, %v1850
    %v2091 = vadd.f32 %v1528, %v1855
    %v2092 = vadd.f32 %v1529, %v1858
    %v2093 = vadd.f32 %v1530, %v1863
    %v2094 = vadd.f32 %v1531, %v1866
    %v2095 = vadd.f32 %v1532, %v1871
    %v2096 = vadd.f32 %v1533, %v1874
    %v2097 = vadd.f32 %v1534, %v1879
    %v2098 = vadd.f32 %v1535, %v1882
    %v2099 = vadd.f32 %v1536, %v1887
    %v2100 = vadd.f32 %v1537, %v1890
    %v2101 = vadd.f32 %v1538, %v1895
    %v2102 = vadd.f32 %v1539, %v1898
    %v2103 = vadd.f32 %v1540, %v1903
    %v2104 = vadd.f32 %v1541, %v1906
    %v2105 = vadd.f32 %v1542, %v1911
    %v2106 = vadd.f32 %v1543, %v1914
    %v2107 = vadd.f32 %v1544, %v1919
    %v2108 = vadd.f32 %v1545, %v1922
    %v2109 = vadd.f32 %v1546, %v1927
    %v2110 = vadd.f32 %v1547, %v1930
    %v2111 = vadd.f32 %v1548, %v1935
    %v2112 = vadd.f32 %v1549, %v1938
    %v2113 = vadd.f32 %v1550, %v1943
    %v2114 = vadd.f32 %v1551, %v1946
    %v2115 = vadd.f32 %v1552, %v1951
    %v2116 = vadd.f32 %v1553, %v1954
    %v2117 = vadd.f32 %v1554, %v1959
    %v2118 = vadd.f32 %v1555, %v1962
    %v2119 = vadd.f32 %v1556, %v1967
    %v2120 = vadd.f32 %v1557, %v1970
    %v2121 = vadd.f32 %v1558, %v1975
    %v2122 = vadd.f32 %v1559, %v1978
    %v2123 = vadd.f32 %v1560, %v1983
    %v2124 = vadd.f32 %v1561, %v1986
    %v2125 = vadd.f32 %v1562, %v1991
    %v2126 = vadd.f32 %v1563, %v1994
    %v2127 = vadd.f32 %v1564, %v1999
    %v2128 = vadd.f32 %v1565, %v2002
    %v2129 = vadd.f32 %v1566, %v2007
    %v2130 = vadd.f32 %v1567, %v2010
    %v2131 = vadd.f32 %v1568, %v2015
    %v2132 = vadd.f32 %v1569, %v2018
    %v2133 = vadd.f32 %v1570, %v2023
    %v2134 = vadd.f32 %v1571, %v2026
    %v2135 = vadd.f32 %v1572, %v2031
    %v2136 = vadd.f32 %v1573, %v2034
    %v2137 = vadd.f32 %v1574, %v2039
    %v2138 = vadd.f32 %v1575, %v2042
    %v2139 = vadd.f32 %v1576, %v2047
    %v2140 = vadd.f32 %v1577, %v2050
    %v2141 = vadd.f32 %v1578, %v2055
    %v2142 = vadd.f32 %v1579, %v2058
    %v2143 = vadd.f32 %v1580, %v2063
    %v2144 = vadd.f32 %v1581, %v2066
    %v2145 = vadd.f32 %v1582, %v2071
    %v2146 = vadd.f32 %v1583, %v2074
    %v2147 = vadd.f32 %v1584, %v2079
    %v2148 = vadd.f32 %v1585, %v2082
    %v2149 = vld [vmem:[%s1586 + $0x1] sm:$0xff]
    %v2150 = vld [vmem:[%s1586 + $0x9] sm:$0xff]
    %v2151 = vld [vmem:[%s1586 + $0x19] sm:$0xff]
    %v2152 = vld [vmem:[%s1586 + $0x21] sm:$0xff]
    %v2153 = vld [vmem:[%s1586 + $0x31] sm:$0xff]
    %v2154 = vld [vmem:[%s1586 + $0x39] sm:$0xff]
    %v2155 = vld [vmem:[%s1586 + $0x49] sm:$0xff]
    %v2156 = vld [vmem:[%s1586 + $0x51] sm:$0xff]
    %v2157 = vld [vmem:[%s1586 + $0x61] sm:$0xff]
    %v2158 = vld [vmem:[%s1586 + $0x69] sm:$0xff]
    %v2159 = vld [vmem:[%s1586 + $0x79] sm:$0xff]
    %v2160 = vld [vmem:[%s1586 + $0x81] sm:$0xff]
    %v2161 = vld [vmem:[%s1586 + $0x91] sm:$0xff]
    %v2162 = vld [vmem:[%s1586 + $0x99] sm:$0xff]
    %v2163 = vld [vmem:[%s1586 + $0xa9] sm:$0xff]
    %v2164 = vld [vmem:[%s1586 + $0xb1] sm:$0xff]
    %v2165 = vld [vmem:[%s1586 + $0xc1] sm:$0xff]
    %v2166 = vld [vmem:[%s1586 + $0xc9] sm:$0xff]
    %v2167 = vld [vmem:[%s1586 + $0xd9] sm:$0xff]
    %v2168 = vld [vmem:[%s1586 + $0xe1] sm:$0xff]
    %v2169 = vld [vmem:[%s1586 + $0xf1] sm:$0xff]
    %v2170 = vld [vmem:[%s1586 + $0xf9] sm:$0xff]
    %v2171 = vld [vmem:[%s1586 + $0x109] sm:$0xff]
    %v2172 = vld [vmem:[%s1586 + $0x111] sm:$0xff]
    %v2173 = vld [vmem:[%s1586 + $0x121] sm:$0xff]
    %v2174 = vld [vmem:[%s1586 + $0x129] sm:$0xff]
    %v2175 = vld [vmem:[%s1586 + $0x139] sm:$0xff]
    %v2176 = vld [vmem:[%s1586 + $0x141] sm:$0xff]
    %v2177 = vld [vmem:[%s1586 + $0x151] sm:$0xff]
    %v2178 = vld [vmem:[%s1586 + $0x159] sm:$0xff]
    %v2179 = vld [vmem:[%s1586 + $0x169] sm:$0xff]
    %v2180 = vld [vmem:[%s1586 + $0x171] sm:$0xff]
    %v2181 = vld [vmem:[%s1586 + $0x1b1] sm:$0xff]
    %v2182 = vld [vmem:[%s1586 + $0x1b9] sm:$0xff]
    %v2183 = vld [vmem:[%s1586 + $0x1c9] sm:$0xff]
    %v2184 = vld [vmem:[%s1586 + $0x1d1] sm:$0xff]
    %v2185 = vld [vmem:[%s1586 + $0x1e1] sm:$0xff]
    %v2186 = vld [vmem:[%s1586 + $0x1e9] sm:$0xff]
    %v2187 = vld [vmem:[%s1586 + $0x1f9] sm:$0xff]
    %v2188 = vld [vmem:[%s1586 + $0x201] sm:$0xff]
    %v2189 = vld [vmem:[%s1586 + $0x211] sm:$0xff]
    %v2190 = vld [vmem:[%s1586 + $0x219] sm:$0xff]
    %v2191 = vld [vmem:[%s1586 + $0x229] sm:$0xff]
    %v2192 = vld [vmem:[%s1586 + $0x231] sm:$0xff]
    %v2193 = vld [vmem:[%s1586 + $0x241] sm:$0xff]
    %v2194 = vld [vmem:[%s1586 + $0x249] sm:$0xff]
    %v2195 = vld [vmem:[%s1586 + $0x259] sm:$0xff]
    %v2196 = vld [vmem:[%s1586 + $0x261] sm:$0xff]
    %v2197 = vld [vmem:[%s1586 + $0x271] sm:$0xff]
    %v2198 = vld [vmem:[%s1586 + $0x279] sm:$0xff]
    %v2199 = vld [vmem:[%s1586 + $0x289] sm:$0xff]
    %v2200 = vld [vmem:[%s1586 + $0x291] sm:$0xff]
    %v2201 = vld [vmem:[%s1586 + $0x2a1] sm:$0xff]
    %v2202 = vld [vmem:[%s1586 + $0x2a9] sm:$0xff]
    %v2203 = vld [vmem:[%s1586 + $0x2b9] sm:$0xff]
    %v2204 = vld [vmem:[%s1586 + $0x2c1] sm:$0xff]
    %v2205 = vld [vmem:[%s1586 + $0x2d1] sm:$0xff]
    %v2206 = vld [vmem:[%s1586 + $0x2d9] sm:$0xff]
    %v2207 = vld [vmem:[%s1586 + $0x2e9] sm:$0xff]
    %v2208 = vld [vmem:[%s1586 + $0x2f1] sm:$0xff]
    %v2209 = vld [vmem:[%s1586 + $0x301] sm:$0xff]
    %v2210 = vld [vmem:[%s1586 + $0x309] sm:$0xff]
    %v2211 = vld [vmem:[%s1586 + $0x319] sm:$0xff]
    %v2212 = vld [vmem:[%s1586 + $0x321] sm:$0xff]
    %v2213 = vpack.c.bf16 %v2150, %v2149
    %v2214 = vpack.c.bf16 %v2152, %v2151
    %v2215 = vpack.c.bf16 %v2154, %v2153
    %v2216 = vpack.c.bf16 %v2156, %v2155
    %v2217 = vpack.c.bf16 %v2158, %v2157
    %v2218 = vpack.c.bf16 %v2160, %v2159
    %v2219 = vpack.c.bf16 %v2162, %v2161
    %v2220 = vpack.c.bf16 %v2164, %v2163
    %v2221 = vpack.c.bf16 %v2166, %v2165
    %v2222 = vpack.c.bf16 %v2168, %v2167
    %v2223 = vpack.c.bf16 %v2170, %v2169
    %v2224 = vpack.c.bf16 %v2172, %v2171
    %v2225 = vpack.c.bf16 %v2174, %v2173
    %v2226 = vpack.c.bf16 %v2176, %v2175
    %v2227 = vpack.c.bf16 %v2178, %v2177
    %v2228 = vpack.c.bf16 %v2180, %v2179
    %v2229 = vpack.c.bf16 %v2182, %v2181
    %v2230 = vpack.c.bf16 %v2184, %v2183
    %v2231 = vpack.c.bf16 %v2186, %v2185
    %v2232 = vpack.c.bf16 %v2188, %v2187
    %v2233 = vpack.c.bf16 %v2190, %v2189
    %v2234 = vpack.c.bf16 %v2192, %v2191
    %v2235 = vpack.c.bf16 %v2194, %v2193
    %v2236 = vpack.c.bf16 %v2196, %v2195
    %v2237 = vpack.c.bf16 %v2198, %v2197
    %v2238 = vpack.c.bf16 %v2200, %v2199
    %v2239 = vpack.c.bf16 %v2202, %v2201
    %v2240 = vpack.c.bf16 %v2204, %v2203
    %v2241 = vpack.c.bf16 %v2206, %v2205
    %v2242 = vpack.c.bf16 %v2208, %v2207
    %v2243 = vpack.c.bf16 %v2210, %v2209
    %v2244 = vpack.c.bf16 %v2212, %v2211
    %s2245 = scalar_lea.vmem %s1, 64
    %v2246 = vld [vmem:[%s2245] sm:$0xf]
    %v2247 = vld [vmem:[%s2245 + $0x4] sm:$0xf]
    %v2248 = vld [vmem:[%s2245 + $0x8] sm:$0xf]
    %v2249 = vld [vmem:[%s2245 + $0xc] sm:$0xf]
    %v2254 = vunpack.c.l.b16 %v2246
    %v2255 = vunpack.c.l.b16 %v2247
    %v2256 = vunpack.c.l.b16 %v2248
    %v2257 = vunpack.c.l.b16 %v2249
    %v2258 = vpack.c.b16 %v2255, %v2254
    %v2259 = vpack.c.b16 %v2257, %v2256
    %v2263 = vsel %vm241, %v2213, 0
    %v2266 = vsel %vm241, %v2214, 0
    %v2269 = vsel %vm241, %v2215, 0
    %v2272 = vsel %vm241, %v2216, 0
    %v2275 = vsel %vm241, %v2217, 0
    %v2278 = vsel %vm241, %v2218, 0
    %v2281 = vsel %vm241, %v2219, 0
    %v2284 = vsel %vm241, %v2220, 0
    %v2287 = vsel %vm241, %v2221, 0
    %v2290 = vsel %vm241, %v2222, 0
    %v2293 = vsel %vm241, %v2223, 0
    %v2296 = vsel %vm241, %v2224, 0
    %v2299 = vsel %vm241, %v2225, 0
    %v2302 = vsel %vm241, %v2226, 0
    %v2305 = vsel %vm241, %v2227, 0
    %v2308 = vsel %vm241, %v2228, 0
    %v2311 = vsel %vm241, %v2229, 0
    %v2314 = vsel %vm241, %v2230, 0
    %v2317 = vsel %vm241, %v2231, 0
    %v2320 = vsel %vm241, %v2232, 0
    %v2323 = vsel %vm241, %v2233, 0
    %v2326 = vsel %vm241, %v2234, 0
    %v2329 = vsel %vm241, %v2235, 0
    %v2332 = vsel %vm241, %v2236, 0
    %v2335 = vsel %vm241, %v2237, 0
    %v2338 = vsel %vm241, %v2238, 0
    %v2341 = vsel %vm241, %v2239, 0
    %v2344 = vsel %vm241, %v2240, 0
    %v2347 = vsel %vm241, %v2241, 0
    %v2350 = vsel %vm241, %v2242, 0
    %v2353 = vsel %vm241, %v2243, 0
    %v2356 = vsel %vm241, %v2244, 0
    %2358 = vmatprep.subr.bf16.mxu0 0
    %2359 = vmatpush1.bf16.msra.mxu0 0
    %2360 = vmatprep.subr.bf16.mxu0 0
    %2361 = vmatpush1.bf16.msra.mxu0 0
    %2362 = vmatprep.subr.bf16.mxu0 0
    %2363 = vmatpush1.bf16.msra.mxu0 0
    %2364 = vmatprep.subr.bf16.mxu0 0
    %2365 = vmatpush1.bf16.msra.mxu0 0
    %2366 = vmatprep.subr.bf16.mxu0 0
    %2367 = vmatpush1.bf16.msra.mxu0 0
    %2368 = vmatprep.subr.bf16.mxu0 0
    %2369 = vmatpush1.bf16.msra.mxu0 0
    %2370 = vmatprep.subr.bf16.mxu0 0
    %2371 = vmatpush1.bf16.msra.mxu0 %v2259
    %2372 = vmatprep.subr.bf16.mxu0 0
    %2373 = vmatpush1.bf16.msra.mxu0 %v2258
    %2374 = vmatprep.subr.bf16.mxu0 0
    %2375 = vmatpush2.bf16.msra.mxu0 0
    %2376 = vmatprep.subr.bf16.mxu0 0
    %2377 = vmatpush2.bf16.msra.mxu0 0
    %2378 = vmatprep.subr.bf16.mxu0 0
    %2379 = vmatpush2.bf16.msra.mxu0 0
    %2380 = vmatprep.subr.bf16.mxu0 0
    %2381 = vmatpush2.bf16.msra.mxu0 0
    %2382 = vmatprep.subr.bf16.mxu0 0
    %2383 = vmatpush2.bf16.msra.mxu0 0
    %2384 = vmatprep.subr.bf16.mxu0 0
    %2385 = vmatpush2.bf16.msra.mxu0 0
    %2386 = vmatprep.subr.bf16.mxu0 0
    %2387 = vmatpush2.bf16.msra.mxu0 0
    %2388 = vmatprep.subr.bf16.mxu0 0
    %2389 = vmatpush2.bf16.msra.mxu0 0
    %2390 = vmatprep.mubr.bf16.mxu0 0
    %2391 = vmatmul.mubr.bf16.gmra.mxu0 %v2263
    %v2392 = vpop.f32.mrf.mxu0
    %v2393 = vadd.f32 0.0, %v2392
    %v2394 = vpop.f32.mrf.mxu0
    %v2395 = vpop.f32.mrf.mxu0
    %v2396 = vadd.f32 0.0, %v2395
    %v2397 = vpop.f32.mrf.mxu0
    %2398 = vmatprep.mubr.bf16.mxu0 0
    %2399 = vmatmul.mubr.bf16.gmra.mxu0 %v2266
    %v2400 = vpop.f32.mrf.mxu0
    %v2401 = vadd.f32 0.0, %v2400
    %v2402 = vpop.f32.mrf.mxu0
    %v2403 = vpop.f32.mrf.mxu0
    %v2404 = vadd.f32 0.0, %v2403
    %v2405 = vpop.f32.mrf.mxu0
    %2406 = vmatprep.mubr.bf16.mxu0 0
    %2407 = vmatmul.mubr.bf16.gmra.mxu0 %v2269
    %v2408 = vpop.f32.mrf.mxu0
    %v2409 = vadd.f32 0.0, %v2408
    %v2410 = vpop.f32.mrf.mxu0
    %v2411 = vpop.f32.mrf.mxu0
    %v2412 = vadd.f32 0.0, %v2411
    %v2413 = vpop.f32.mrf.mxu0
    %2414 = vmatprep.mubr.bf16.mxu0 0
    %2415 = vmatmul.mubr.bf16.gmra.mxu0 %v2272
    %v2416 = vpop.f32.mrf.mxu0
    %v2417 = vadd.f32 0.0, %v2416
    %v2418 = vpop.f32.mrf.mxu0
    %v2419 = vpop.f32.mrf.mxu0
    %v2420 = vadd.f32 0.0, %v2419
    %v2421 = vpop.f32.mrf.mxu0
    %2422 = vmatprep.mubr.bf16.mxu0 0
    %2423 = vmatmul.mubr.bf16.gmra.mxu0 %v2275
    %v2424 = vpop.f32.mrf.mxu0
    %v2425 = vadd.f32 0.0, %v2424
    %v2426 = vpop.f32.mrf.mxu0
    %v2427 = vpop.f32.mrf.mxu0
    %v2428 = vadd.f32 0.0, %v2427
    %v2429 = vpop.f32.mrf.mxu0
    %2430 = vmatprep.mubr.bf16.mxu0 0
    %2431 = vmatmul.mubr.bf16.gmra.mxu0 %v2278
    %v2432 = vpop.f32.mrf.mxu0
    %v2433 = vadd.f32 0.0, %v2432
    %v2434 = vpop.f32.mrf.mxu0
    %v2435 = vpop.f32.mrf.mxu0
    %v2436 = vadd.f32 0.0, %v2435
    %v2437 = vpop.f32.mrf.mxu0
    %2438 = vmatprep.mubr.bf16.mxu0 0
    %2439 = vmatmul.mubr.bf16.gmra.mxu0 %v2281
    %v2440 = vpop.f32.mrf.mxu0
    %v2441 = vadd.f32 0.0, %v2440
    %v2442 = vpop.f32.mrf.mxu0
    %v2443 = vpop.f32.mrf.mxu0
    %v2444 = vadd.f32 0.0, %v2443
    %v2445 = vpop.f32.mrf.mxu0
    %2446 = vmatprep.mubr.bf16.mxu0 0
    %2447 = vmatmul.mubr.bf16.gmra.mxu0 %v2284
    %v2448 = vpop.f32.mrf.mxu0
    %v2449 = vadd.f32 0.0, %v2448
    %v2450 = vpop.f32.mrf.mxu0
    %v2451 = vpop.f32.mrf.mxu0
    %v2452 = vadd.f32 0.0, %v2451
    %v2453 = vpop.f32.mrf.mxu0
    %2454 = vmatprep.mubr.bf16.mxu0 0
    %2455 = vmatmul.mubr.bf16.gmra.mxu0 %v2287
    %v2456 = vpop.f32.mrf.mxu0
    %v2457 = vadd.f32 0.0, %v2456
    %v2458 = vpop.f32.mrf.mxu0
    %v2459 = vpop.f32.mrf.mxu0
    %v2460 = vadd.f32 0.0, %v2459
    %v2461 = vpop.f32.mrf.mxu0
    %2462 = vmatprep.mubr.bf16.mxu0 0
    %2463 = vmatmul.mubr.bf16.gmra.mxu0 %v2290
    %v2464 = vpop.f32.mrf.mxu0
    %v2465 = vadd.f32 0.0, %v2464
    %v2466 = vpop.f32.mrf.mxu0
    %v2467 = vpop.f32.mrf.mxu0
    %v2468 = vadd.f32 0.0, %v2467
    %v2469 = vpop.f32.mrf.mxu0
    %2470 = vmatprep.mubr.bf16.mxu0 0
    %2471 = vmatmul.mubr.bf16.gmra.mxu0 %v2293
    %v2472 = vpop.f32.mrf.mxu0
    %v2473 = vadd.f32 0.0, %v2472
    %v2474 = vpop.f32.mrf.mxu0
    %v2475 = vpop.f32.mrf.mxu0
    %v2476 = vadd.f32 0.0, %v2475
    %v2477 = vpop.f32.mrf.mxu0
    %2478 = vmatprep.mubr.bf16.mxu0 0
    %2479 = vmatmul.mubr.bf16.gmra.mxu0 %v2296
    %v2480 = vpop.f32.mrf.mxu0
    %v2481 = vadd.f32 0.0, %v2480
    %v2482 = vpop.f32.mrf.mxu0
    %v2483 = vpop.f32.mrf.mxu0
    %v2484 = vadd.f32 0.0, %v2483
    %v2485 = vpop.f32.mrf.mxu0
    %2486 = vmatprep.mubr.bf16.mxu0 0
    %2487 = vmatmul.mubr.bf16.gmra.mxu0 %v2299
    %v2488 = vpop.f32.mrf.mxu0
    %v2489 = vadd.f32 0.0, %v2488
    %v2490 = vpop.f32.mrf.mxu0
    %v2491 = vpop.f32.mrf.mxu0
    %v2492 = vadd.f32 0.0, %v2491
    %v2493 = vpop.f32.mrf.mxu0
    %2494 = vmatprep.mubr.bf16.mxu0 0
    %2495 = vmatmul.mubr.bf16.gmra.mxu0 %v2302
    %v2496 = vpop.f32.mrf.mxu0
    %v2497 = vadd.f32 0.0, %v2496
    %v2498 = vpop.f32.mrf.mxu0
    %v2499 = vpop.f32.mrf.mxu0
    %v2500 = vadd.f32 0.0, %v2499
    %v2501 = vpop.f32.mrf.mxu0
    %2502 = vmatprep.mubr.bf16.mxu0 0
    %2503 = vmatmul.mubr.bf16.gmra.mxu0 %v2305
    %v2504 = vpop.f32.mrf.mxu0
    %v2505 = vadd.f32 0.0, %v2504
    %v2506 = vpop.f32.mrf.mxu0
    %v2507 = vpop.f32.mrf.mxu0
    %v2508 = vadd.f32 0.0, %v2507
    %v2509 = vpop.f32.mrf.mxu0
    %2510 = vmatprep.mubr.bf16.mxu0 0
    %2511 = vmatmul.mubr.bf16.gmra.mxu0 %v2308
    %v2512 = vpop.f32.mrf.mxu0
    %v2513 = vadd.f32 0.0, %v2512
    %v2514 = vpop.f32.mrf.mxu0
    %v2515 = vpop.f32.mrf.mxu0
    %v2516 = vadd.f32 0.0, %v2515
    %v2517 = vpop.f32.mrf.mxu0
    %2518 = vmatprep.mubr.bf16.mxu0 0
    %2519 = vmatmul.mubr.bf16.gmra.mxu0 %v2311
    %v2520 = vpop.f32.mrf.mxu0
    %v2521 = vadd.f32 0.0, %v2520
    %v2522 = vpop.f32.mrf.mxu0
    %v2523 = vpop.f32.mrf.mxu0
    %v2524 = vadd.f32 0.0, %v2523
    %v2525 = vpop.f32.mrf.mxu0
    %2526 = vmatprep.mubr.bf16.mxu0 0
    %2527 = vmatmul.mubr.bf16.gmra.mxu0 %v2314
    %v2528 = vpop.f32.mrf.mxu0
    %v2529 = vadd.f32 0.0, %v2528
    %v2530 = vpop.f32.mrf.mxu0
    %v2531 = vpop.f32.mrf.mxu0
    %v2532 = vadd.f32 0.0, %v2531
    %v2533 = vpop.f32.mrf.mxu0
    %2534 = vmatprep.mubr.bf16.mxu0 0
    %2535 = vmatmul.mubr.bf16.gmra.mxu0 %v2317
    %v2536 = vpop.f32.mrf.mxu0
    %v2537 = vadd.f32 0.0, %v2536
    %v2538 = vpop.f32.mrf.mxu0
    %v2539 = vpop.f32.mrf.mxu0
    %v2540 = vadd.f32 0.0, %v2539
    %v2541 = vpop.f32.mrf.mxu0
    %2542 = vmatprep.mubr.bf16.mxu0 0
    %2543 = vmatmul.mubr.bf16.gmra.mxu0 %v2320
    %v2544 = vpop.f32.mrf.mxu0
    %v2545 = vadd.f32 0.0, %v2544
    %v2546 = vpop.f32.mrf.mxu0
    %v2547 = vpop.f32.mrf.mxu0
    %v2548 = vadd.f32 0.0, %v2547
    %v2549 = vpop.f32.mrf.mxu0
    %2550 = vmatprep.mubr.bf16.mxu0 0
    %2551 = vmatmul.mubr.bf16.gmra.mxu0 %v2323
    %v2552 = vpop.f32.mrf.mxu0
    %v2553 = vadd.f32 0.0, %v2552
    %v2554 = vpop.f32.mrf.mxu0
    %v2555 = vpop.f32.mrf.mxu0
    %v2556 = vadd.f32 0.0, %v2555
    %v2557 = vpop.f32.mrf.mxu0
    %2558 = vmatprep.mubr.bf16.mxu0 0
    %2559 = vmatmul.mubr.bf16.gmra.mxu0 %v2326
    %v2560 = vpop.f32.mrf.mxu0
    %v2561 = vadd.f32 0.0, %v2560
    %v2562 = vpop.f32.mrf.mxu0
    %v2563 = vpop.f32.mrf.mxu0
    %v2564 = vadd.f32 0.0, %v2563
    %v2565 = vpop.f32.mrf.mxu0
    %2566 = vmatprep.mubr.bf16.mxu0 0
    %2567 = vmatmul.mubr.bf16.gmra.mxu0 %v2329
    %v2568 = vpop.f32.mrf.mxu0
    %v2569 = vadd.f32 0.0, %v2568
    %v2570 = vpop.f32.mrf.mxu0
    %v2571 = vpop.f32.mrf.mxu0
    %v2572 = vadd.f32 0.0, %v2571
    %v2573 = vpop.f32.mrf.mxu0
    %2574 = vmatprep.mubr.bf16.mxu0 0
    %2575 = vmatmul.mubr.bf16.gmra.mxu0 %v2332
    %v2576 = vpop.f32.mrf.mxu0
    %v2577 = vadd.f32 0.0, %v2576
    %v2578 = vpop.f32.mrf.mxu0
    %v2579 = vpop.f32.mrf.mxu0
    %v2580 = vadd.f32 0.0, %v2579
    %v2581 = vpop.f32.mrf.mxu0
    %2582 = vmatprep.mubr.bf16.mxu0 0
    %2583 = vmatmul.mubr.bf16.gmra.mxu0 %v2335
    %v2584 = vpop.f32.mrf.mxu0
    %v2585 = vadd.f32 0.0, %v2584
    %v2586 = vpop.f32.mrf.mxu0
    %v2587 = vpop.f32.mrf.mxu0
    %v2588 = vadd.f32 0.0, %v2587
    %v2589 = vpop.f32.mrf.mxu0
    %2590 = vmatprep.mubr.bf16.mxu0 0
    %2591 = vmatmul.mubr.bf16.gmra.mxu0 %v2338
    %v2592 = vpop.f32.mrf.mxu0
    %v2593 = vadd.f32 0.0, %v2592
    %v2594 = vpop.f32.mrf.mxu0
    %v2595 = vpop.f32.mrf.mxu0
    %v2596 = vadd.f32 0.0, %v2595
    %v2597 = vpop.f32.mrf.mxu0
    %2598 = vmatprep.mubr.bf16.mxu0 0
    %2599 = vmatmul.mubr.bf16.gmra.mxu0 %v2341
    %v2600 = vpop.f32.mrf.mxu0
    %v2601 = vadd.f32 0.0, %v2600
    %v2602 = vpop.f32.mrf.mxu0
    %v2603 = vpop.f32.mrf.mxu0
    %v2604 = vadd.f32 0.0, %v2603
    %v2605 = vpop.f32.mrf.mxu0
    %2606 = vmatprep.mubr.bf16.mxu0 0
    %2607 = vmatmul.mubr.bf16.gmra.mxu0 %v2344
    %v2608 = vpop.f32.mrf.mxu0
    %v2609 = vadd.f32 0.0, %v2608
    %v2610 = vpop.f32.mrf.mxu0
    %v2611 = vpop.f32.mrf.mxu0
    %v2612 = vadd.f32 0.0, %v2611
    %v2613 = vpop.f32.mrf.mxu0
    %2614 = vmatprep.mubr.bf16.mxu0 0
    %2615 = vmatmul.mubr.bf16.gmra.mxu0 %v2347
    %v2616 = vpop.f32.mrf.mxu0
    %v2617 = vadd.f32 0.0, %v2616
    %v2618 = vpop.f32.mrf.mxu0
    %v2619 = vpop.f32.mrf.mxu0
    %v2620 = vadd.f32 0.0, %v2619
    %v2621 = vpop.f32.mrf.mxu0
    %2622 = vmatprep.mubr.bf16.mxu0 0
    %2623 = vmatmul.mubr.bf16.gmra.mxu0 %v2350
    %v2624 = vpop.f32.mrf.mxu0
    %v2625 = vadd.f32 0.0, %v2624
    %v2626 = vpop.f32.mrf.mxu0
    %v2627 = vpop.f32.mrf.mxu0
    %v2628 = vadd.f32 0.0, %v2627
    %v2629 = vpop.f32.mrf.mxu0
    %2630 = vmatprep.mubr.bf16.mxu0 0
    %2631 = vmatmul.mubr.bf16.gmra.mxu0 %v2353
    %v2632 = vpop.f32.mrf.mxu0
    %v2633 = vadd.f32 0.0, %v2632
    %v2634 = vpop.f32.mrf.mxu0
    %v2635 = vpop.f32.mrf.mxu0
    %v2636 = vadd.f32 0.0, %v2635
    %v2637 = vpop.f32.mrf.mxu0
    %2638 = vmatprep.mubr.bf16.mxu0 0
    %2639 = vmatmul.mubr.bf16.gmra.mxu0 %v2356
    %v2640 = vpop.f32.mrf.mxu0
    %v2641 = vadd.f32 0.0, %v2640
    %v2642 = vpop.f32.mrf.mxu0
    %v2643 = vpop.f32.mrf.mxu0
    %v2644 = vadd.f32 0.0, %v2643
    %v2645 = vpop.f32.mrf.mxu0
    %2646 = vdwg.mxu0
    %v2647 = vadd.f32 %v2085, %v2393
    %v2648 = vadd.f32 %v2086, %v2396
    %v2649 = vadd.f32 %v2087, %v2401
    %v2650 = vadd.f32 %v2088, %v2404
    %v2651 = vadd.f32 %v2089, %v2409
    %v2652 = vadd.f32 %v2090, %v2412
    %v2653 = vadd.f32 %v2091, %v2417
    %v2654 = vadd.f32 %v2092, %v2420
    %v2655 = vadd.f32 %v2093, %v2425
    %v2656 = vadd.f32 %v2094, %v2428
    %v2657 = vadd.f32 %v2095, %v2433
    %v2658 = vadd.f32 %v2096, %v2436
    %v2659 = vadd.f32 %v2097, %v2441
    %v2660 = vadd.f32 %v2098, %v2444
    %v2661 = vadd.f32 %v2099, %v2449
    %v2662 = vadd.f32 %v2100, %v2452
    %v2663 = vadd.f32 %v2101, %v2457
    %v2664 = vadd.f32 %v2102, %v2460
    %v2665 = vadd.f32 %v2103, %v2465
    %v2666 = vadd.f32 %v2104, %v2468
    %v2667 = vadd.f32 %v2105, %v2473
    %v2668 = vadd.f32 %v2106, %v2476
    %v2669 = vadd.f32 %v2107, %v2481
    %v2670 = vadd.f32 %v2108, %v2484
    %v2671 = vadd.f32 %v2109, %v2489
    %v2672 = vadd.f32 %v2110, %v2492
    %v2673 = vadd.f32 %v2111, %v2497
    %v2674 = vadd.f32 %v2112, %v2500
    %v2675 = vadd.f32 %v2113, %v2505
    %v2676 = vadd.f32 %v2114, %v2508
    %v2677 = vadd.f32 %v2115, %v2513
    %v2678 = vadd.f32 %v2116, %v2516
    %v2679 = vadd.f32 %v2117, %v2521
    %v2680 = vadd.f32 %v2118, %v2524
    %v2681 = vadd.f32 %v2119, %v2529
    %v2682 = vadd.f32 %v2120, %v2532
    %v2683 = vadd.f32 %v2121, %v2537
    %v2684 = vadd.f32 %v2122, %v2540
    %v2685 = vadd.f32 %v2123, %v2545
    %v2686 = vadd.f32 %v2124, %v2548
    %v2687 = vadd.f32 %v2125, %v2553
    %v2688 = vadd.f32 %v2126, %v2556
    %v2689 = vadd.f32 %v2127, %v2561
    %v2690 = vadd.f32 %v2128, %v2564
    %v2691 = vadd.f32 %v2129, %v2569
    %v2692 = vadd.f32 %v2130, %v2572
    %v2693 = vadd.f32 %v2131, %v2577
    %v2694 = vadd.f32 %v2132, %v2580
    %v2695 = vadd.f32 %v2133, %v2585
    %v2696 = vadd.f32 %v2134, %v2588
    %v2697 = vadd.f32 %v2135, %v2593
    %v2698 = vadd.f32 %v2136, %v2596
    %v2699 = vadd.f32 %v2137, %v2601
    %v2700 = vadd.f32 %v2138, %v2604
    %v2701 = vadd.f32 %v2139, %v2609
    %v2702 = vadd.f32 %v2140, %v2612
    %v2703 = vadd.f32 %v2141, %v2617
    %v2704 = vadd.f32 %v2142, %v2620
    %v2705 = vadd.f32 %v2143, %v2625
    %v2706 = vadd.f32 %v2144, %v2628
    %v2707 = vadd.f32 %v2145, %v2633
    %v2708 = vadd.f32 %v2146, %v2636
    %v2709 = vadd.f32 %v2147, %v2641
    %v2710 = vadd.f32 %v2148, %v2644
    %v2711 = vld [vmem:[%s1586 + $0x2] sm:$0xff]
    %v2712 = vld [vmem:[%s1586 + $0xa] sm:$0xff]
    %v2713 = vld [vmem:[%s1586 + $0x1a] sm:$0xff]
    %v2714 = vld [vmem:[%s1586 + $0x22] sm:$0xff]
    %v2715 = vld [vmem:[%s1586 + $0x32] sm:$0xff]
    %v2716 = vld [vmem:[%s1586 + $0x3a] sm:$0xff]
    %v2717 = vld [vmem:[%s1586 + $0x4a] sm:$0xff]
    %v2718 = vld [vmem:[%s1586 + $0x52] sm:$0xff]
    %v2719 = vld [vmem:[%s1586 + $0x62] sm:$0xff]
    %v2720 = vld [vmem:[%s1586 + $0x6a] sm:$0xff]
    %v2721 = vld [vmem:[%s1586 + $0x7a] sm:$0xff]
    %v2722 = vld [vmem:[%s1586 + $0x82] sm:$0xff]
    %v2723 = vld [vmem:[%s1586 + $0x92] sm:$0xff]
    %v2724 = vld [vmem:[%s1586 + $0x9a] sm:$0xff]
    %v2725 = vld [vmem:[%s1586 + $0xaa] sm:$0xff]
    %v2726 = vld [vmem:[%s1586 + $0xb2] sm:$0xff]
    %v2727 = vld [vmem:[%s1586 + $0xc2] sm:$0xff]
    %v2728 = vld [vmem:[%s1586 + $0xca] sm:$0xff]
    %v2729 = vld [vmem:[%s1586 + $0xda] sm:$0xff]
    %v2730 = vld [vmem:[%s1586 + $0xe2] sm:$0xff]
    %v2731 = vld [vmem:[%s1586 + $0xf2] sm:$0xff]
    %v2732 = vld [vmem:[%s1586 + $0xfa] sm:$0xff]
    %v2733 = vld [vmem:[%s1586 + $0x10a] sm:$0xff]
    %v2734 = vld [vmem:[%s1586 + $0x112] sm:$0xff]
    %v2735 = vld [vmem:[%s1586 + $0x122] sm:$0xff]
    %v2736 = vld [vmem:[%s1586 + $0x12a] sm:$0xff]
    %v2737 = vld [vmem:[%s1586 + $0x13a] sm:$0xff]
    %v2738 = vld [vmem:[%s1586 + $0x142] sm:$0xff]
    %v2739 = vld [vmem:[%s1586 + $0x152] sm:$0xff]
    %v2740 = vld [vmem:[%s1586 + $0x15a] sm:$0xff]
    %v2741 = vld [vmem:[%s1586 + $0x16a] sm:$0xff]
    %v2742 = vld [vmem:[%s1586 + $0x172] sm:$0xff]
    %v2743 = vld [vmem:[%s1586 + $0x1b2] sm:$0xff]
    %v2744 = vld [vmem:[%s1586 + $0x1ba] sm:$0xff]
    %v2745 = vld [vmem:[%s1586 + $0x1ca] sm:$0xff]
    %v2746 = vld [vmem:[%s1586 + $0x1d2] sm:$0xff]
    %v2747 = vld [vmem:[%s1586 + $0x1e2] sm:$0xff]
    %v2748 = vld [vmem:[%s1586 + $0x1ea] sm:$0xff]
    %v2749 = vld [vmem:[%s1586 + $0x1fa] sm:$0xff]
    %v2750 = vld [vmem:[%s1586 + $0x202] sm:$0xff]
    %v2751 = vld [vmem:[%s1586 + $0x212] sm:$0xff]
    %v2752 = vld [vmem:[%s1586 + $0x21a] sm:$0xff]
    %v2753 = vld [vmem:[%s1586 + $0x22a] sm:$0xff]
    %v2754 = vld [vmem:[%s1586 + $0x232] sm:$0xff]
    %v2755 = vld [vmem:[%s1586 + $0x242] sm:$0xff]
    %v2756 = vld [vmem:[%s1586 + $0x24a] sm:$0xff]
    %v2757 = vld [vmem:[%s1586 + $0x25a] sm:$0xff]
    %v2758 = vld [vmem:[%s1586 + $0x262] sm:$0xff]
    %v2759 = vld [vmem:[%s1586 + $0x272] sm:$0xff]
    %v2760 = vld [vmem:[%s1586 + $0x27a] sm:$0xff]
    %v2761 = vld [vmem:[%s1586 + $0x28a] sm:$0xff]
    %v2762 = vld [vmem:[%s1586 + $0x292] sm:$0xff]
    %v2763 = vld [vmem:[%s1586 + $0x2a2] sm:$0xff]
    %v2764 = vld [vmem:[%s1586 + $0x2aa] sm:$0xff]
    %v2765 = vld [vmem:[%s1586 + $0x2ba] sm:$0xff]
    %v2766 = vld [vmem:[%s1586 + $0x2c2] sm:$0xff]
    %v2767 = vld [vmem:[%s1586 + $0x2d2] sm:$0xff]
    %v2768 = vld [vmem:[%s1586 + $0x2da] sm:$0xff]
    %v2769 = vld [vmem:[%s1586 + $0x2ea] sm:$0xff]
    %v2770 = vld [vmem:[%s1586 + $0x2f2] sm:$0xff]
    %v2771 = vld [vmem:[%s1586 + $0x302] sm:$0xff]
    %v2772 = vld [vmem:[%s1586 + $0x30a] sm:$0xff]
    %v2773 = vld [vmem:[%s1586 + $0x31a] sm:$0xff]
    %v2774 = vld [vmem:[%s1586 + $0x322] sm:$0xff]
    %v2775 = vpack.c.bf16 %v2712, %v2711
    %v2776 = vpack.c.bf16 %v2714, %v2713
    %v2777 = vpack.c.bf16 %v2716, %v2715
    %v2778 = vpack.c.bf16 %v2718, %v2717
    %v2779 = vpack.c.bf16 %v2720, %v2719
    %v2780 = vpack.c.bf16 %v2722, %v2721
    %v2781 = vpack.c.bf16 %v2724, %v2723
    %v2782 = vpack.c.bf16 %v2726, %v2725
    %v2783 = vpack.c.bf16 %v2728, %v2727
    %v2784 = vpack.c.bf16 %v2730, %v2729
    %v2785 = vpack.c.bf16 %v2732, %v2731
    %v2786 = vpack.c.bf16 %v2734, %v2733
    %v2787 = vpack.c.bf16 %v2736, %v2735
    %v2788 = vpack.c.bf16 %v2738, %v2737
    %v2789 = vpack.c.bf16 %v2740, %v2739
    %v2790 = vpack.c.bf16 %v2742, %v2741
    %v2791 = vpack.c.bf16 %v2744, %v2743
    %v2792 = vpack.c.bf16 %v2746, %v2745
    %v2793 = vpack.c.bf16 %v2748, %v2747
    %v2794 = vpack.c.bf16 %v2750, %v2749
    %v2795 = vpack.c.bf16 %v2752, %v2751
    %v2796 = vpack.c.bf16 %v2754, %v2753
    %v2797 = vpack.c.bf16 %v2756, %v2755
    %v2798 = vpack.c.bf16 %v2758, %v2757
    %v2799 = vpack.c.bf16 %v2760, %v2759
    %v2800 = vpack.c.bf16 %v2762, %v2761
    %v2801 = vpack.c.bf16 %v2764, %v2763
    %v2802 = vpack.c.bf16 %v2766, %v2765
    %v2803 = vpack.c.bf16 %v2768, %v2767
    %v2804 = vpack.c.bf16 %v2770, %v2769
    %v2805 = vpack.c.bf16 %v2772, %v2771
    %v2806 = vpack.c.bf16 %v2774, %v2773
    %s2807 = scalar_lea.vmem %s1, 80
    %v2808 = vld [vmem:[%s2807] sm:$0xf]
    %v2809 = vld [vmem:[%s2807 + $0x4] sm:$0xf]
    %v2810 = vld [vmem:[%s2807 + $0x8] sm:$0xf]
    %v2811 = vld [vmem:[%s2807 + $0xc] sm:$0xf]
    %v2816 = vunpack.c.l.b16 %v2808
    %v2817 = vunpack.c.l.b16 %v2809
    %v2818 = vunpack.c.l.b16 %v2810
    %v2819 = vunpack.c.l.b16 %v2811
    %v2820 = vpack.c.b16 %v2817, %v2816
    %v2821 = vpack.c.b16 %v2819, %v2818
    %v2825 = vsel %vm241, %v2775, 0
    %v2828 = vsel %vm241, %v2776, 0
    %v2831 = vsel %vm241, %v2777, 0
    %v2834 = vsel %vm241, %v2778, 0
    %v2837 = vsel %vm241, %v2779, 0
    %v2840 = vsel %vm241, %v2780, 0
    %v2843 = vsel %vm241, %v2781, 0
    %v2846 = vsel %vm241, %v2782, 0
    %v2849 = vsel %vm241, %v2783, 0
    %v2852 = vsel %vm241, %v2784, 0
    %v2855 = vsel %vm241, %v2785, 0
    %v2858 = vsel %vm241, %v2786, 0
    %v2861 = vsel %vm241, %v2787, 0
    %v2864 = vsel %vm241, %v2788, 0
    %v2867 = vsel %vm241, %v2789, 0
    %v2870 = vsel %vm241, %v2790, 0
    %v2873 = vsel %vm241, %v2791, 0
    %v2876 = vsel %vm241, %v2792, 0
    %v2879 = vsel %vm241, %v2793, 0
    %v2882 = vsel %vm241, %v2794, 0
    %v2885 = vsel %vm241, %v2795, 0
    %v2888 = vsel %vm241, %v2796, 0
    %v2891 = vsel %vm241, %v2797, 0
    %v2894 = vsel %vm241, %v2798, 0
    %v2897 = vsel %vm241, %v2799, 0
    %v2900 = vsel %vm241, %v2800, 0
    %v2903 = vsel %vm241, %v2801, 0
    %v2906 = vsel %vm241, %v2802, 0
    %v2909 = vsel %vm241, %v2803, 0
    %v2912 = vsel %vm241, %v2804, 0
    %v2915 = vsel %vm241, %v2805, 0
    %v2918 = vsel %vm241, %v2806, 0
    %2920 = vmatprep.subr.bf16.mxu0 0
    %2921 = vmatpush1.bf16.msra.mxu0 0
    %2922 = vmatprep.subr.bf16.mxu0 0
    %2923 = vmatpush1.bf16.msra.mxu0 0
    %2924 = vmatprep.subr.bf16.mxu0 0
    %2925 = vmatpush1.bf16.msra.mxu0 0
    %2926 = vmatprep.subr.bf16.mxu0 0
    %2927 = vmatpush1.bf16.msra.mxu0 0
    %2928 = vmatprep.subr.bf16.mxu0 0
    %2929 = vmatpush1.bf16.msra.mxu0 0
    %2930 = vmatprep.subr.bf16.mxu0 0
    %2931 = vmatpush1.bf16.msra.mxu0 0
    %2932 = vmatprep.subr.bf16.mxu0 0
    %2933 = vmatpush1.bf16.msra.mxu0 %v2821
    %2934 = vmatprep.subr.bf16.mxu0 0
    %2935 = vmatpush1.bf16.msra.mxu0 %v2820
    %2936 = vmatprep.subr.bf16.mxu0 0
    %2937 = vmatpush2.bf16.msra.mxu0 0
    %2938 = vmatprep.subr.bf16.mxu0 0
    %2939 = vmatpush2.bf16.msra.mxu0 0
    %2940 = vmatprep.subr.bf16.mxu0 0
    %2941 = vmatpush2.bf16.msra.mxu0 0
    %2942 = vmatprep.subr.bf16.mxu0 0
    %2943 = vmatpush2.bf16.msra.mxu0 0
    %2944 = vmatprep.subr.bf16.mxu0 0
    %2945 = vmatpush2.bf16.msra.mxu0 0
    %2946 = vmatprep.subr.bf16.mxu0 0
    %2947 = vmatpush2.bf16.msra.mxu0 0
    %2948 = vmatprep.subr.bf16.mxu0 0
    %2949 = vmatpush2.bf16.msra.mxu0 0
    %2950 = vmatprep.subr.bf16.mxu0 0
    %2951 = vmatpush2.bf16.msra.mxu0 0
    %2952 = vmatprep.mubr.bf16.mxu0 0
    %2953 = vmatmul.mubr.bf16.gmra.mxu0 %v2825
    %v2954 = vpop.f32.mrf.mxu0
    %v2955 = vadd.f32 0.0, %v2954
    %v2956 = vpop.f32.mrf.mxu0
    %v2957 = vpop.f32.mrf.mxu0
    %v2958 = vadd.f32 0.0, %v2957
    %v2959 = vpop.f32.mrf.mxu0
    %2960 = vmatprep.mubr.bf16.mxu0 0
    %2961 = vmatmul.mubr.bf16.gmra.mxu0 %v2828
    %v2962 = vpop.f32.mrf.mxu0
    %v2963 = vadd.f32 0.0, %v2962
    %v2964 = vpop.f32.mrf.mxu0
    %v2965 = vpop.f32.mrf.mxu0
    %v2966 = vadd.f32 0.0, %v2965
    %v2967 = vpop.f32.mrf.mxu0
    %2968 = vmatprep.mubr.bf16.mxu0 0
    %2969 = vmatmul.mubr.bf16.gmra.mxu0 %v2831
    %v2970 = vpop.f32.mrf.mxu0
    %v2971 = vadd.f32 0.0, %v2970
    %v2972 = vpop.f32.mrf.mxu0
    %v2973 = vpop.f32.mrf.mxu0
    %v2974 = vadd.f32 0.0, %v2973
    %v2975 = vpop.f32.mrf.mxu0
    %2976 = vmatprep.mubr.bf16.mxu0 0
    %2977 = vmatmul.mubr.bf16.gmra.mxu0 %v2834
    %v2978 = vpop.f32.mrf.mxu0
    %v2979 = vadd.f32 0.0, %v2978
    %v2980 = vpop.f32.mrf.mxu0
    %v2981 = vpop.f32.mrf.mxu0
    %v2982 = vadd.f32 0.0, %v2981
    %v2983 = vpop.f32.mrf.mxu0
    %2984 = vmatprep.mubr.bf16.mxu0 0
    %2985 = vmatmul.mubr.bf16.gmra.mxu0 %v2837
    %v2986 = vpop.f32.mrf.mxu0
    %v2987 = vadd.f32 0.0, %v2986
    %v2988 = vpop.f32.mrf.mxu0
    %v2989 = vpop.f32.mrf.mxu0
    %v2990 = vadd.f32 0.0, %v2989
    %v2991 = vpop.f32.mrf.mxu0
    %2992 = vmatprep.mubr.bf16.mxu0 0
    %2993 = vmatmul.mubr.bf16.gmra.mxu0 %v2840
    %v2994 = vpop.f32.mrf.mxu0
    %v2995 = vadd.f32 0.0, %v2994
    %v2996 = vpop.f32.mrf.mxu0
    %v2997 = vpop.f32.mrf.mxu0
    %v2998 = vadd.f32 0.0, %v2997
    %v2999 = vpop.f32.mrf.mxu0
    %3000 = vmatprep.mubr.bf16.mxu0 0
    %3001 = vmatmul.mubr.bf16.gmra.mxu0 %v2843
    %v3002 = vpop.f32.mrf.mxu0
    %v3003 = vadd.f32 0.0, %v3002
    %v3004 = vpop.f32.mrf.mxu0
    %v3005 = vpop.f32.mrf.mxu0
    %v3006 = vadd.f32 0.0, %v3005
    %v3007 = vpop.f32.mrf.mxu0
    %3008 = vmatprep.mubr.bf16.mxu0 0
    %3009 = vmatmul.mubr.bf16.gmra.mxu0 %v2846
    %v3010 = vpop.f32.mrf.mxu0
    %v3011 = vadd.f32 0.0, %v3010
    %v3012 = vpop.f32.mrf.mxu0
    %v3013 = vpop.f32.mrf.mxu0
    %v3014 = vadd.f32 0.0, %v3013
    %v3015 = vpop.f32.mrf.mxu0
    %3016 = vmatprep.mubr.bf16.mxu0 0
    %3017 = vmatmul.mubr.bf16.gmra.mxu0 %v2849
    %v3018 = vpop.f32.mrf.mxu0
    %v3019 = vadd.f32 0.0, %v3018
    %v3020 = vpop.f32.mrf.mxu0
    %v3021 = vpop.f32.mrf.mxu0
    %v3022 = vadd.f32 0.0, %v3021
    %v3023 = vpop.f32.mrf.mxu0
    %3024 = vmatprep.mubr.bf16.mxu0 0
    %3025 = vmatmul.mubr.bf16.gmra.mxu0 %v2852
    %v3026 = vpop.f32.mrf.mxu0
    %v3027 = vadd.f32 0.0, %v3026
    %v3028 = vpop.f32.mrf.mxu0
    %v3029 = vpop.f32.mrf.mxu0
    %v3030 = vadd.f32 0.0, %v3029
    %v3031 = vpop.f32.mrf.mxu0
    %3032 = vmatprep.mubr.bf16.mxu0 0
    %3033 = vmatmul.mubr.bf16.gmra.mxu0 %v2855
    %v3034 = vpop.f32.mrf.mxu0
    %v3035 = vadd.f32 0.0, %v3034
    %v3036 = vpop.f32.mrf.mxu0
    %v3037 = vpop.f32.mrf.mxu0
    %v3038 = vadd.f32 0.0, %v3037
    %v3039 = vpop.f32.mrf.mxu0
    %3040 = vmatprep.mubr.bf16.mxu0 0
    %3041 = vmatmul.mubr.bf16.gmra.mxu0 %v2858
    %v3042 = vpop.f32.mrf.mxu0
    %v3043 = vadd.f32 0.0, %v3042
    %v3044 = vpop.f32.mrf.mxu0
    %v3045 = vpop.f32.mrf.mxu0
    %v3046 = vadd.f32 0.0, %v3045
    %v3047 = vpop.f32.mrf.mxu0
    %3048 = vmatprep.mubr.bf16.mxu0 0
    %3049 = vmatmul.mubr.bf16.gmra.mxu0 %v2861
    %v3050 = vpop.f32.mrf.mxu0
    %v3051 = vadd.f32 0.0, %v3050
    %v3052 = vpop.f32.mrf.mxu0
    %v3053 = vpop.f32.mrf.mxu0
    %v3054 = vadd.f32 0.0, %v3053
    %v3055 = vpop.f32.mrf.mxu0
    %3056 = vmatprep.mubr.bf16.mxu0 0
    %3057 = vmatmul.mubr.bf16.gmra.mxu0 %v2864
    %v3058 = vpop.f32.mrf.mxu0
    %v3059 = vadd.f32 0.0, %v3058
    %v3060 = vpop.f32.mrf.mxu0
    %v3061 = vpop.f32.mrf.mxu0
    %v3062 = vadd.f32 0.0, %v3061
    %v3063 = vpop.f32.mrf.mxu0
    %3064 = vmatprep.mubr.bf16.mxu0 0
    %3065 = vmatmul.mubr.bf16.gmra.mxu0 %v2867
    %v3066 = vpop.f32.mrf.mxu0
    %v3067 = vadd.f32 0.0, %v3066
    %v3068 = vpop.f32.mrf.mxu0
    %v3069 = vpop.f32.mrf.mxu0
    %v3070 = vadd.f32 0.0, %v3069
    %v3071 = vpop.f32.mrf.mxu0
    %3072 = vmatprep.mubr.bf16.mxu0 0
    %3073 = vmatmul.mubr.bf16.gmra.mxu0 %v2870
    %v3074 = vpop.f32.mrf.mxu0
    %v3075 = vadd.f32 0.0, %v3074
    %v3076 = vpop.f32.mrf.mxu0
    %v3077 = vpop.f32.mrf.mxu0
    %v3078 = vadd.f32 0.0, %v3077
    %v3079 = vpop.f32.mrf.mxu0
    %3080 = vmatprep.mubr.bf16.mxu0 0
    %3081 = vmatmul.mubr.bf16.gmra.mxu0 %v2873
    %v3082 = vpop.f32.mrf.mxu0
    %v3083 = vadd.f32 0.0, %v3082
    %v3084 = vpop.f32.mrf.mxu0
    %v3085 = vpop.f32.mrf.mxu0
    %v3086 = vadd.f32 0.0, %v3085
    %v3087 = vpop.f32.mrf.mxu0
    %3088 = vmatprep.mubr.bf16.mxu0 0
    %3089 = vmatmul.mubr.bf16.gmra.mxu0 %v2876
    %v3090 = vpop.f32.mrf.mxu0
    %v3091 = vadd.f32 0.0, %v3090
    %v3092 = vpop.f32.mrf.mxu0
    %v3093 = vpop.f32.mrf.mxu0
    %v3094 = vadd.f32 0.0, %v3093
    %v3095 = vpop.f32.mrf.mxu0
    %3096 = vmatprep.mubr.bf16.mxu0 0
    %3097 = vmatmul.mubr.bf16.gmra.mxu0 %v2879
    %v3098 = vpop.f32.mrf.mxu0
    %v3099 = vadd.f32 0.0, %v3098
    %v3100 = vpop.f32.mrf.mxu0
    %v3101 = vpop.f32.mrf.mxu0
    %v3102 = vadd.f32 0.0, %v3101
    %v3103 = vpop.f32.mrf.mxu0
    %3104 = vmatprep.mubr.bf16.mxu0 0
    %3105 = vmatmul.mubr.bf16.gmra.mxu0 %v2882
    %v3106 = vpop.f32.mrf.mxu0
    %v3107 = vadd.f32 0.0, %v3106
    %v3108 = vpop.f32.mrf.mxu0
    %v3109 = vpop.f32.mrf.mxu0
    %v3110 = vadd.f32 0.0, %v3109
    %v3111 = vpop.f32.mrf.mxu0
    %3112 = vmatprep.mubr.bf16.mxu0 0
    %3113 = vmatmul.mubr.bf16.gmra.mxu0 %v2885
    %v3114 = vpop.f32.mrf.mxu0
    %v3115 = vadd.f32 0.0, %v3114
    %v3116 = vpop.f32.mrf.mxu0
    %v3117 = vpop.f32.mrf.mxu0
    %v3118 = vadd.f32 0.0, %v3117
    %v3119 = vpop.f32.mrf.mxu0
    %3120 = vmatprep.mubr.bf16.mxu0 0
    %3121 = vmatmul.mubr.bf16.gmra.mxu0 %v2888
    %v3122 = vpop.f32.mrf.mxu0
    %v3123 = vadd.f32 0.0, %v3122
    %v3124 = vpop.f32.mrf.mxu0
    %v3125 = vpop.f32.mrf.mxu0
    %v3126 = vadd.f32 0.0, %v3125
    %v3127 = vpop.f32.mrf.mxu0
    %3128 = vmatprep.mubr.bf16.mxu0 0
    %3129 = vmatmul.mubr.bf16.gmra.mxu0 %v2891
    %v3130 = vpop.f32.mrf.mxu0
    %v3131 = vadd.f32 0.0, %v3130
    %v3132 = vpop.f32.mrf.mxu0
    %v3133 = vpop.f32.mrf.mxu0
    %v3134 = vadd.f32 0.0, %v3133
    %v3135 = vpop.f32.mrf.mxu0
    %3136 = vmatprep.mubr.bf16.mxu0 0
    %3137 = vmatmul.mubr.bf16.gmra.mxu0 %v2894
    %v3138 = vpop.f32.mrf.mxu0
    %v3139 = vadd.f32 0.0, %v3138
    %v3140 = vpop.f32.mrf.mxu0
    %v3141 = vpop.f32.mrf.mxu0
    %v3142 = vadd.f32 0.0, %v3141
    %v3143 = vpop.f32.mrf.mxu0
    %3144 = vmatprep.mubr.bf16.mxu0 0
    %3145 = vmatmul.mubr.bf16.gmra.mxu0 %v2897
    %v3146 = vpop.f32.mrf.mxu0
    %v3147 = vadd.f32 0.0, %v3146
    %v3148 = vpop.f32.mrf.mxu0
    %v3149 = vpop.f32.mrf.mxu0
    %v3150 = vadd.f32 0.0, %v3149
    %v3151 = vpop.f32.mrf.mxu0
    %3152 = vmatprep.mubr.bf16.mxu0 0
    %3153 = vmatmul.mubr.bf16.gmra.mxu0 %v2900
    %v3154 = vpop.f32.mrf.mxu0
    %v3155 = vadd.f32 0.0, %v3154
    %v3156 = vpop.f32.mrf.mxu0
    %v3157 = vpop.f32.mrf.mxu0
    %v3158 = vadd.f32 0.0, %v3157
    %v3159 = vpop.f32.mrf.mxu0
    %3160 = vmatprep.mubr.bf16.mxu0 0
    %3161 = vmatmul.mubr.bf16.gmra.mxu0 %v2903
    %v3162 = vpop.f32.mrf.mxu0
    %v3163 = vadd.f32 0.0, %v3162
    %v3164 = vpop.f32.mrf.mxu0
    %v3165 = vpop.f32.mrf.mxu0
    %v3166 = vadd.f32 0.0, %v3165
    %v3167 = vpop.f32.mrf.mxu0
    %3168 = vmatprep.mubr.bf16.mxu0 0
    %3169 = vmatmul.mubr.bf16.gmra.mxu0 %v2906
    %v3170 = vpop.f32.mrf.mxu0
    %v3171 = vadd.f32 0.0, %v3170
    %v3172 = vpop.f32.mrf.mxu0
    %v3173 = vpop.f32.mrf.mxu0
    %v3174 = vadd.f32 0.0, %v3173
    %v3175 = vpop.f32.mrf.mxu0
    %3176 = vmatprep.mubr.bf16.mxu0 0
    %3177 = vmatmul.mubr.bf16.gmra.mxu0 %v2909
    %v3178 = vpop.f32.mrf.mxu0
    %v3179 = vadd.f32 0.0, %v3178
    %v3180 = vpop.f32.mrf.mxu0
    %v3181 = vpop.f32.mrf.mxu0
    %v3182 = vadd.f32 0.0, %v3181
    %v3183 = vpop.f32.mrf.mxu0
    %3184 = vmatprep.mubr.bf16.mxu0 0
    %3185 = vmatmul.mubr.bf16.gmra.mxu0 %v2912
    %v3186 = vpop.f32.mrf.mxu0
    %v3187 = vadd.f32 0.0, %v3186
    %v3188 = vpop.f32.mrf.mxu0
    %v3189 = vpop.f32.mrf.mxu0
    %v3190 = vadd.f32 0.0, %v3189
    %v3191 = vpop.f32.mrf.mxu0
    %3192 = vmatprep.mubr.bf16.mxu0 0
    %3193 = vmatmul.mubr.bf16.gmra.mxu0 %v2915
    %v3194 = vpop.f32.mrf.mxu0
    %v3195 = vadd.f32 0.0, %v3194
    %v3196 = vpop.f32.mrf.mxu0
    %v3197 = vpop.f32.mrf.mxu0
    %v3198 = vadd.f32 0.0, %v3197
    %v3199 = vpop.f32.mrf.mxu0
    %3200 = vmatprep.mubr.bf16.mxu0 0
    %3201 = vmatmul.mubr.bf16.gmra.mxu0 %v2918
    %v3202 = vpop.f32.mrf.mxu0
    %v3203 = vadd.f32 0.0, %v3202
    %v3204 = vpop.f32.mrf.mxu0
    %v3205 = vpop.f32.mrf.mxu0
    %v3206 = vadd.f32 0.0, %v3205
    %v3207 = vpop.f32.mrf.mxu0
    %3208 = vdwg.mxu0
    %v3209 = vadd.f32 %v2647, %v2955
    %v3210 = vadd.f32 %v2648, %v2958
    %v3211 = vadd.f32 %v2649, %v2963
    %v3212 = vadd.f32 %v2650, %v2966
    %v3213 = vadd.f32 %v2651, %v2971
    %v3214 = vadd.f32 %v2652, %v2974
    %v3215 = vadd.f32 %v2653, %v2979
    %v3216 = vadd.f32 %v2654, %v2982
    %v3217 = vadd.f32 %v2655, %v2987
    %v3218 = vadd.f32 %v2656, %v2990
    %v3219 = vadd.f32 %v2657, %v2995
    %v3220 = vadd.f32 %v2658, %v2998
    %v3221 = vadd.f32 %v2659, %v3003
    %v3222 = vadd.f32 %v2660, %v3006
    %v3223 = vadd.f32 %v2661, %v3011
    %v3224 = vadd.f32 %v2662, %v3014
    %v3225 = vadd.f32 %v2663, %v3019
    %v3226 = vadd.f32 %v2664, %v3022
    %v3227 = vadd.f32 %v2665, %v3027
    %v3228 = vadd.f32 %v2666, %v3030
    %v3229 = vadd.f32 %v2667, %v3035
    %v3230 = vadd.f32 %v2668, %v3038
    %v3231 = vadd.f32 %v2669, %v3043
    %v3232 = vadd.f32 %v2670, %v3046
    %v3233 = vadd.f32 %v2671, %v3051
    %v3234 = vadd.f32 %v2672, %v3054
    %v3235 = vadd.f32 %v2673, %v3059
    %v3236 = vadd.f32 %v2674, %v3062
    %v3237 = vadd.f32 %v2675, %v3067
    %v3238 = vadd.f32 %v2676, %v3070
    %v3239 = vadd.f32 %v2677, %v3075
    %v3240 = vadd.f32 %v2678, %v3078
    %v3241 = vadd.f32 %v2679, %v3083
    %v3242 = vadd.f32 %v2680, %v3086
    %v3243 = vadd.f32 %v2681, %v3091
    %v3244 = vadd.f32 %v2682, %v3094
    %v3245 = vadd.f32 %v2683, %v3099
    %v3246 = vadd.f32 %v2684, %v3102
    %v3247 = vadd.f32 %v2685, %v3107
    %v3248 = vadd.f32 %v2686, %v3110
    %v3249 = vadd.f32 %v2687, %v3115
    %v3250 = vadd.f32 %v2688, %v3118
    %v3251 = vadd.f32 %v2689, %v3123
    %v3252 = vadd.f32 %v2690, %v3126
    %v3253 = vadd.f32 %v2691, %v3131
    %v3254 = vadd.f32 %v2692, %v3134
    %v3255 = vadd.f32 %v2693, %v3139
    %v3256 = vadd.f32 %v2694, %v3142
    %v3257 = vadd.f32 %v2695, %v3147
    %v3258 = vadd.f32 %v2696, %v3150
    %v3259 = vadd.f32 %v2697, %v3155
    %v3260 = vadd.f32 %v2698, %v3158
    %v3261 = vadd.f32 %v2699, %v3163
    %v3262 = vadd.f32 %v2700, %v3166
    %v3263 = vadd.f32 %v2701, %v3171
    %v3264 = vadd.f32 %v2702, %v3174
    %v3265 = vadd.f32 %v2703, %v3179
    %v3266 = vadd.f32 %v2704, %v3182
    %v3267 = vadd.f32 %v2705, %v3187
    %v3268 = vadd.f32 %v2706, %v3190
    %v3269 = vadd.f32 %v2707, %v3195
    %v3270 = vadd.f32 %v2708, %v3198
    %v3271 = vadd.f32 %v2709, %v3203
    %v3272 = vadd.f32 %v2710, %v3206
    %s3273 = scalar_lea.vmem %s0, 48
    %v3274 = vld [vmem:[%s3273] sm:$0xff]
    %v3275 = vld [vmem:[%s3273 + $0x8] sm:$0xff]
    %v3276 = vld [vmem:[%s3273 + $0x18] sm:$0xff]
    %v3277 = vld [vmem:[%s3273 + $0x20] sm:$0xff]
    %v3278 = vld [vmem:[%s3273 + $0x30] sm:$0xff]
    %v3279 = vld [vmem:[%s3273 + $0x38] sm:$0xff]
    %v3280 = vld [vmem:[%s3273 + $0x48] sm:$0xff]
    %v3281 = vld [vmem:[%s3273 + $0x50] sm:$0xff]
    %v3282 = vld [vmem:[%s3273 + $0x60] sm:$0xff]
    %v3283 = vld [vmem:[%s3273 + $0x68] sm:$0xff]
    %v3284 = vld [vmem:[%s3273 + $0x78] sm:$0xff]
    %v3285 = vld [vmem:[%s3273 + $0x80] sm:$0xff]
    %v3286 = vld [vmem:[%s3273 + $0x90] sm:$0xff]
    %v3287 = vld [vmem:[%s3273 + $0x98] sm:$0xff]
    %v3288 = vld [vmem:[%s3273 + $0xa8] sm:$0xff]
    %v3289 = vld [vmem:[%s3273 + $0xb0] sm:$0xff]
    %v3290 = vld [vmem:[%s3273 + $0xc0] sm:$0xff]
    %v3291 = vld [vmem:[%s3273 + $0xc8] sm:$0xff]
    %v3292 = vld [vmem:[%s3273 + $0xd8] sm:$0xff]
    %v3293 = vld [vmem:[%s3273 + $0xe0] sm:$0xff]
    %v3294 = vld [vmem:[%s3273 + $0xf0] sm:$0xff]
    %v3295 = vld [vmem:[%s3273 + $0xf8] sm:$0xff]
    %v3296 = vld [vmem:[%s3273 + $0x108] sm:$0xff]
    %v3297 = vld [vmem:[%s3273 + $0x110] sm:$0xff]
    %v3298 = vld [vmem:[%s3273 + $0x120] sm:$0xff]
    %v3299 = vld [vmem:[%s3273 + $0x128] sm:$0xff]
    %v3300 = vld [vmem:[%s3273 + $0x138] sm:$0xff]
    %v3301 = vld [vmem:[%s3273 + $0x140] sm:$0xff]
    %v3302 = vld [vmem:[%s3273 + $0x150] sm:$0xff]
    %v3303 = vld [vmem:[%s3273 + $0x158] sm:$0xff]
    %v3304 = vld [vmem:[%s3273 + $0x168] sm:$0xff]
    %v3305 = vld [vmem:[%s3273 + $0x170] sm:$0xff]
    %v3306 = vld [vmem:[%s3273 + $0x1b0] sm:$0xff]
    %v3307 = vld [vmem:[%s3273 + $0x1b8] sm:$0xff]
    %v3308 = vld [vmem:[%s3273 + $0x1c8] sm:$0xff]
    %v3309 = vld [vmem:[%s3273 + $0x1d0] sm:$0xff]
    %v3310 = vld [vmem:[%s3273 + $0x1e0] sm:$0xff]
    %v3311 = vld [vmem:[%s3273 + $0x1e8] sm:$0xff]
    %v3312 = vld [vmem:[%s3273 + $0x1f8] sm:$0xff]
    %v3313 = vld [vmem:[%s3273 + $0x200] sm:$0xff]
    %v3314 = vld [vmem:[%s3273 + $0x210] sm:$0xff]
    %v3315 = vld [vmem:[%s3273 + $0x218] sm:$0xff]
    %v3316 = vld [vmem:[%s3273 + $0x228] sm:$0xff]
    %v3317 = vld [vmem:[%s3273 + $0x230] sm:$0xff]
    %v3318 = vld [vmem:[%s3273 + $0x240] sm:$0xff]
    %v3319 = vld [vmem:[%s3273 + $0x248] sm:$0xff]
    %v3320 = vld [vmem:[%s3273 + $0x258] sm:$0xff]
    %v3321 = vld [vmem:[%s3273 + $0x260] sm:$0xff]
    %v3322 = vld [vmem:[%s3273 + $0x270] sm:$0xff]
    %v3323 = vld [vmem:[%s3273 + $0x278] sm:$0xff]
    %v3324 = vld [vmem:[%s3273 + $0x288] sm:$0xff]
    %v3325 = vld [vmem:[%s3273 + $0x290] sm:$0xff]
    %v3326 = vld [vmem:[%s3273 + $0x2a0] sm:$0xff]
    %v3327 = vld [vmem:[%s3273 + $0x2a8] sm:$0xff]
    %v3328 = vld [vmem:[%s3273 + $0x2b8] sm:$0xff]
    %v3329 = vld [vmem:[%s3273 + $0x2c0] sm:$0xff]
    %v3330 = vld [vmem:[%s3273 + $0x2d0] sm:$0xff]
    %v3331 = vld [vmem:[%s3273 + $0x2d8] sm:$0xff]
    %v3332 = vld [vmem:[%s3273 + $0x2e8] sm:$0xff]
    %v3333 = vld [vmem:[%s3273 + $0x2f0] sm:$0xff]
    %v3334 = vld [vmem:[%s3273 + $0x300] sm:$0xff]
    %v3335 = vld [vmem:[%s3273 + $0x308] sm:$0xff]
    %v3336 = vld [vmem:[%s3273 + $0x318] sm:$0xff]
    %v3337 = vld [vmem:[%s3273 + $0x320] sm:$0xff]
    %v3338 = vpack.c.bf16 %v3275, %v3274
    %v3339 = vpack.c.bf16 %v3277, %v3276
    %v3340 = vpack.c.bf16 %v3279, %v3278
    %v3341 = vpack.c.bf16 %v3281, %v3280
    %v3342 = vpack.c.bf16 %v3283, %v3282
    %v3343 = vpack.c.bf16 %v3285, %v3284
    %v3344 = vpack.c.bf16 %v3287, %v3286
    %v3345 = vpack.c.bf16 %v3289, %v3288
    %v3346 = vpack.c.bf16 %v3291, %v3290
    %v3347 = vpack.c.bf16 %v3293, %v3292
    %v3348 = vpack.c.bf16 %v3295, %v3294
    %v3349 = vpack.c.bf16 %v3297, %v3296
    %v3350 = vpack.c.bf16 %v3299, %v3298
    %v3351 = vpack.c.bf16 %v3301, %v3300
    %v3352 = vpack.c.bf16 %v3303, %v3302
    %v3353 = vpack.c.bf16 %v3305, %v3304
    %v3354 = vpack.c.bf16 %v3307, %v3306
    %v3355 = vpack.c.bf16 %v3309, %v3308
    %v3356 = vpack.c.bf16 %v3311, %v3310
    %v3357 = vpack.c.bf16 %v3313, %v3312
    %v3358 = vpack.c.bf16 %v3315, %v3314
    %v3359 = vpack.c.bf16 %v3317, %v3316
    %v3360 = vpack.c.bf16 %v3319, %v3318
    %v3361 = vpack.c.bf16 %v3321, %v3320
    %v3362 = vpack.c.bf16 %v3323, %v3322
    %v3363 = vpack.c.bf16 %v3325, %v3324
    %v3364 = vpack.c.bf16 %v3327, %v3326
    %v3365 = vpack.c.bf16 %v3329, %v3328
    %v3366 = vpack.c.bf16 %v3331, %v3330
    %v3367 = vpack.c.bf16 %v3333, %v3332
    %v3368 = vpack.c.bf16 %v3335, %v3334
    %v3369 = vpack.c.bf16 %v3337, %v3336
    %s3370 = scalar_lea.vmem %s1, 96
    %v3371 = vld [vmem:[%s3370] sm:$0xf]
    %v3372 = vld [vmem:[%s3370 + $0x4] sm:$0xf]
    %v3373 = vld [vmem:[%s3370 + $0x8] sm:$0xf]
    %v3374 = vld [vmem:[%s3370 + $0xc] sm:$0xf]
    %v3379 = vunpack.c.l.b16 %v3371
    %v3380 = vunpack.c.l.b16 %v3372
    %v3381 = vunpack.c.l.b16 %v3373
    %v3382 = vunpack.c.l.b16 %v3374
    %v3383 = vpack.c.b16 %v3380, %v3379
    %v3384 = vpack.c.b16 %v3382, %v3381
    %v3388 = vsel %vm241, %v3338, 0
    %v3391 = vsel %vm241, %v3339, 0
    %v3394 = vsel %vm241, %v3340, 0
    %v3397 = vsel %vm241, %v3341, 0
    %v3400 = vsel %vm241, %v3342, 0
    %v3403 = vsel %vm241, %v3343, 0
    %v3406 = vsel %vm241, %v3344, 0
    %v3409 = vsel %vm241, %v3345, 0
    %v3412 = vsel %vm241, %v3346, 0
    %v3415 = vsel %vm241, %v3347, 0
    %v3418 = vsel %vm241, %v3348, 0
    %v3421 = vsel %vm241, %v3349, 0
    %v3424 = vsel %vm241, %v3350, 0
    %v3427 = vsel %vm241, %v3351, 0
    %v3430 = vsel %vm241, %v3352, 0
    %v3433 = vsel %vm241, %v3353, 0
    %v3436 = vsel %vm241, %v3354, 0
    %v3439 = vsel %vm241, %v3355, 0
    %v3442 = vsel %vm241, %v3356, 0
    %v3445 = vsel %vm241, %v3357, 0
    %v3448 = vsel %vm241, %v3358, 0
    %v3451 = vsel %vm241, %v3359, 0
    %v3454 = vsel %vm241, %v3360, 0
    %v3457 = vsel %vm241, %v3361, 0
    %v3460 = vsel %vm241, %v3362, 0
    %v3463 = vsel %vm241, %v3363, 0
    %v3466 = vsel %vm241, %v3364, 0
    %v3469 = vsel %vm241, %v3365, 0
    %v3472 = vsel %vm241, %v3366, 0
    %v3475 = vsel %vm241, %v3367, 0
    %v3478 = vsel %vm241, %v3368, 0
    %v3481 = vsel %vm241, %v3369, 0
    %3483 = vmatprep.subr.bf16.mxu0 0
    %3484 = vmatpush1.bf16.msra.mxu0 0
    %3485 = vmatprep.subr.bf16.mxu0 0
    %3486 = vmatpush1.bf16.msra.mxu0 0
    %3487 = vmatprep.subr.bf16.mxu0 0
    %3488 = vmatpush1.bf16.msra.mxu0 0
    %3489 = vmatprep.subr.bf16.mxu0 0
    %3490 = vmatpush1.bf16.msra.mxu0 0
    %3491 = vmatprep.subr.bf16.mxu0 0
    %3492 = vmatpush1.bf16.msra.mxu0 0
    %3493 = vmatprep.subr.bf16.mxu0 0
    %3494 = vmatpush1.bf16.msra.mxu0 0
    %3495 = vmatprep.subr.bf16.mxu0 0
    %3496 = vmatpush1.bf16.msra.mxu0 %v3384
    %3497 = vmatprep.subr.bf16.mxu0 0
    %3498 = vmatpush1.bf16.msra.mxu0 %v3383
    %3499 = vmatprep.subr.bf16.mxu0 0
    %3500 = vmatpush2.bf16.msra.mxu0 0
    %3501 = vmatprep.subr.bf16.mxu0 0
    %3502 = vmatpush2.bf16.msra.mxu0 0
    %3503 = vmatprep.subr.bf16.mxu0 0
    %3504 = vmatpush2.bf16.msra.mxu0 0
    %3505 = vmatprep.subr.bf16.mxu0 0
    %3506 = vmatpush2.bf16.msra.mxu0 0
    %3507 = vmatprep.subr.bf16.mxu0 0
    %3508 = vmatpush2.bf16.msra.mxu0 0
    %3509 = vmatprep.subr.bf16.mxu0 0
    %3510 = vmatpush2.bf16.msra.mxu0 0
    %3511 = vmatprep.subr.bf16.mxu0 0
    %3512 = vmatpush2.bf16.msra.mxu0 0
    %3513 = vmatprep.subr.bf16.mxu0 0
    %3514 = vmatpush2.bf16.msra.mxu0 0
    %3515 = vmatprep.mubr.bf16.mxu0 0
    %3516 = vmatmul.mubr.bf16.gmra.mxu0 %v3388
    %v3517 = vpop.f32.mrf.mxu0
    %v3518 = vadd.f32 0.0, %v3517
    %v3519 = vpop.f32.mrf.mxu0
    %v3520 = vpop.f32.mrf.mxu0
    %v3521 = vadd.f32 0.0, %v3520
    %v3522 = vpop.f32.mrf.mxu0
    %3523 = vmatprep.mubr.bf16.mxu0 0
    %3524 = vmatmul.mubr.bf16.gmra.mxu0 %v3391
    %v3525 = vpop.f32.mrf.mxu0
    %v3526 = vadd.f32 0.0, %v3525
    %v3527 = vpop.f32.mrf.mxu0
    %v3528 = vpop.f32.mrf.mxu0
    %v3529 = vadd.f32 0.0, %v3528
    %v3530 = vpop.f32.mrf.mxu0
    %3531 = vmatprep.mubr.bf16.mxu0 0
    %3532 = vmatmul.mubr.bf16.gmra.mxu0 %v3394
    %v3533 = vpop.f32.mrf.mxu0
    %v3534 = vadd.f32 0.0, %v3533
    %v3535 = vpop.f32.mrf.mxu0
    %v3536 = vpop.f32.mrf.mxu0
    %v3537 = vadd.f32 0.0, %v3536
    %v3538 = vpop.f32.mrf.mxu0
    %3539 = vmatprep.mubr.bf16.mxu0 0
    %3540 = vmatmul.mubr.bf16.gmra.mxu0 %v3397
    %v3541 = vpop.f32.mrf.mxu0
    %v3542 = vadd.f32 0.0, %v3541
    %v3543 = vpop.f32.mrf.mxu0
    %v3544 = vpop.f32.mrf.mxu0
    %v3545 = vadd.f32 0.0, %v3544
    %v3546 = vpop.f32.mrf.mxu0
    %3547 = vmatprep.mubr.bf16.mxu0 0
    %3548 = vmatmul.mubr.bf16.gmra.mxu0 %v3400
    %v3549 = vpop.f32.mrf.mxu0
    %v3550 = vadd.f32 0.0, %v3549
    %v3551 = vpop.f32.mrf.mxu0
    %v3552 = vpop.f32.mrf.mxu0
    %v3553 = vadd.f32 0.0, %v3552
    %v3554 = vpop.f32.mrf.mxu0
    %3555 = vmatprep.mubr.bf16.mxu0 0
    %3556 = vmatmul.mubr.bf16.gmra.mxu0 %v3403
    %v3557 = vpop.f32.mrf.mxu0
    %v3558 = vadd.f32 0.0, %v3557
    %v3559 = vpop.f32.mrf.mxu0
    %v3560 = vpop.f32.mrf.mxu0
    %v3561 = vadd.f32 0.0, %v3560
    %v3562 = vpop.f32.mrf.mxu0
    %3563 = vmatprep.mubr.bf16.mxu0 0
    %3564 = vmatmul.mubr.bf16.gmra.mxu0 %v3406
    %v3565 = vpop.f32.mrf.mxu0
    %v3566 = vadd.f32 0.0, %v3565
    %v3567 = vpop.f32.mrf.mxu0
    %v3568 = vpop.f32.mrf.mxu0
    %v3569 = vadd.f32 0.0, %v3568
    %v3570 = vpop.f32.mrf.mxu0
    %3571 = vmatprep.mubr.bf16.mxu0 0
    %3572 = vmatmul.mubr.bf16.gmra.mxu0 %v3409
    %v3573 = vpop.f32.mrf.mxu0
    %v3574 = vadd.f32 0.0, %v3573
    %v3575 = vpop.f32.mrf.mxu0
    %v3576 = vpop.f32.mrf.mxu0
    %v3577 = vadd.f32 0.0, %v3576
    %v3578 = vpop.f32.mrf.mxu0
    %3579 = vmatprep.mubr.bf16.mxu0 0
    %3580 = vmatmul.mubr.bf16.gmra.mxu0 %v3412
    %v3581 = vpop.f32.mrf.mxu0
    %v3582 = vadd.f32 0.0, %v3581
    %v3583 = vpop.f32.mrf.mxu0
    %v3584 = vpop.f32.mrf.mxu0
    %v3585 = vadd.f32 0.0, %v3584
    %v3586 = vpop.f32.mrf.mxu0
    %3587 = vmatprep.mubr.bf16.mxu0 0
    %3588 = vmatmul.mubr.bf16.gmra.mxu0 %v3415
    %v3589 = vpop.f32.mrf.mxu0
    %v3590 = vadd.f32 0.0, %v3589
    %v3591 = vpop.f32.mrf.mxu0
    %v3592 = vpop.f32.mrf.mxu0
    %v3593 = vadd.f32 0.0, %v3592
    %v3594 = vpop.f32.mrf.mxu0
    %3595 = vmatprep.mubr.bf16.mxu0 0
    %3596 = vmatmul.mubr.bf16.gmra.mxu0 %v3418
    %v3597 = vpop.f32.mrf.mxu0
    %v3598 = vadd.f32 0.0, %v3597
    %v3599 = vpop.f32.mrf.mxu0
    %v3600 = vpop.f32.mrf.mxu0
    %v3601 = vadd.f32 0.0, %v3600
    %v3602 = vpop.f32.mrf.mxu0
    %3603 = vmatprep.mubr.bf16.mxu0 0
    %3604 = vmatmul.mubr.bf16.gmra.mxu0 %v3421
    %v3605 = vpop.f32.mrf.mxu0
    %v3606 = vadd.f32 0.0, %v3605
    %v3607 = vpop.f32.mrf.mxu0
    %v3608 = vpop.f32.mrf.mxu0
    %v3609 = vadd.f32 0.0, %v3608
    %v3610 = vpop.f32.mrf.mxu0
    %3611 = vmatprep.mubr.bf16.mxu0 0
    %3612 = vmatmul.mubr.bf16.gmra.mxu0 %v3424
    %v3613 = vpop.f32.mrf.mxu0
    %v3614 = vadd.f32 0.0, %v3613
    %v3615 = vpop.f32.mrf.mxu0
    %v3616 = vpop.f32.mrf.mxu0
    %v3617 = vadd.f32 0.0, %v3616
    %v3618 = vpop.f32.mrf.mxu0
    %3619 = vmatprep.mubr.bf16.mxu0 0
    %3620 = vmatmul.mubr.bf16.gmra.mxu0 %v3427
    %v3621 = vpop.f32.mrf.mxu0
    %v3622 = vadd.f32 0.0, %v3621
    %v3623 = vpop.f32.mrf.mxu0
    %v3624 = vpop.f32.mrf.mxu0
    %v3625 = vadd.f32 0.0, %v3624
    %v3626 = vpop.f32.mrf.mxu0
    %3627 = vmatprep.mubr.bf16.mxu0 0
    %3628 = vmatmul.mubr.bf16.gmra.mxu0 %v3430
    %v3629 = vpop.f32.mrf.mxu0
    %v3630 = vadd.f32 0.0, %v3629
    %v3631 = vpop.f32.mrf.mxu0
    %v3632 = vpop.f32.mrf.mxu0
    %v3633 = vadd.f32 0.0, %v3632
    %v3634 = vpop.f32.mrf.mxu0
    %3635 = vmatprep.mubr.bf16.mxu0 0
    %3636 = vmatmul.mubr.bf16.gmra.mxu0 %v3433
    %v3637 = vpop.f32.mrf.mxu0
    %v3638 = vadd.f32 0.0, %v3637
    %v3639 = vpop.f32.mrf.mxu0
    %v3640 = vpop.f32.mrf.mxu0
    %v3641 = vadd.f32 0.0, %v3640
    %v3642 = vpop.f32.mrf.mxu0
    %3643 = vmatprep.mubr.bf16.mxu0 0
    %3644 = vmatmul.mubr.bf16.gmra.mxu0 %v3436
    %v3645 = vpop.f32.mrf.mxu0
    %v3646 = vadd.f32 0.0, %v3645
    %v3647 = vpop.f32.mrf.mxu0
    %v3648 = vpop.f32.mrf.mxu0
    %v3649 = vadd.f32 0.0, %v3648
    %v3650 = vpop.f32.mrf.mxu0
    %3651 = vmatprep.mubr.bf16.mxu0 0
    %3652 = vmatmul.mubr.bf16.gmra.mxu0 %v3439
    %v3653 = vpop.f32.mrf.mxu0
    %v3654 = vadd.f32 0.0, %v3653
    %v3655 = vpop.f32.mrf.mxu0
    %v3656 = vpop.f32.mrf.mxu0
    %v3657 = vadd.f32 0.0, %v3656
    %v3658 = vpop.f32.mrf.mxu0
    %3659 = vmatprep.mubr.bf16.mxu0 0
    %3660 = vmatmul.mubr.bf16.gmra.mxu0 %v3442
    %v3661 = vpop.f32.mrf.mxu0
    %v3662 = vadd.f32 0.0, %v3661
    %v3663 = vpop.f32.mrf.mxu0
    %v3664 = vpop.f32.mrf.mxu0
    %v3665 = vadd.f32 0.0, %v3664
    %v3666 = vpop.f32.mrf.mxu0
    %3667 = vmatprep.mubr.bf16.mxu0 0
    %3668 = vmatmul.mubr.bf16.gmra.mxu0 %v3445
    %v3669 = vpop.f32.mrf.mxu0
    %v3670 = vadd.f32 0.0, %v3669
    %v3671 = vpop.f32.mrf.mxu0
    %v3672 = vpop.f32.mrf.mxu0
    %v3673 = vadd.f32 0.0, %v3672
    %v3674 = vpop.f32.mrf.mxu0
    %3675 = vmatprep.mubr.bf16.mxu0 0
    %3676 = vmatmul.mubr.bf16.gmra.mxu0 %v3448
    %v3677 = vpop.f32.mrf.mxu0
    %v3678 = vadd.f32 0.0, %v3677
    %v3679 = vpop.f32.mrf.mxu0
    %v3680 = vpop.f32.mrf.mxu0
    %v3681 = vadd.f32 0.0, %v3680
    %v3682 = vpop.f32.mrf.mxu0
    %3683 = vmatprep.mubr.bf16.mxu0 0
    %3684 = vmatmul.mubr.bf16.gmra.mxu0 %v3451
    %v3685 = vpop.f32.mrf.mxu0
    %v3686 = vadd.f32 0.0, %v3685
    %v3687 = vpop.f32.mrf.mxu0
    %v3688 = vpop.f32.mrf.mxu0
    %v3689 = vadd.f32 0.0, %v3688
    %v3690 = vpop.f32.mrf.mxu0
    %3691 = vmatprep.mubr.bf16.mxu0 0
    %3692 = vmatmul.mubr.bf16.gmra.mxu0 %v3454
    %v3693 = vpop.f32.mrf.mxu0
    %v3694 = vadd.f32 0.0, %v3693
    %v3695 = vpop.f32.mrf.mxu0
    %v3696 = vpop.f32.mrf.mxu0
    %v3697 = vadd.f32 0.0, %v3696
    %v3698 = vpop.f32.mrf.mxu0
    %3699 = vmatprep.mubr.bf16.mxu0 0
    %3700 = vmatmul.mubr.bf16.gmra.mxu0 %v3457
    %v3701 = vpop.f32.mrf.mxu0
    %v3702 = vadd.f32 0.0, %v3701
    %v3703 = vpop.f32.mrf.mxu0
    %v3704 = vpop.f32.mrf.mxu0
    %v3705 = vadd.f32 0.0, %v3704
    %v3706 = vpop.f32.mrf.mxu0
    %3707 = vmatprep.mubr.bf16.mxu0 0
    %3708 = vmatmul.mubr.bf16.gmra.mxu0 %v3460
    %v3709 = vpop.f32.mrf.mxu0
    %v3710 = vadd.f32 0.0, %v3709
    %v3711 = vpop.f32.mrf.mxu0
    %v3712 = vpop.f32.mrf.mxu0
    %v3713 = vadd.f32 0.0, %v3712
    %v3714 = vpop.f32.mrf.mxu0
    %3715 = vmatprep.mubr.bf16.mxu0 0
    %3716 = vmatmul.mubr.bf16.gmra.mxu0 %v3463
    %v3717 = vpop.f32.mrf.mxu0
    %v3718 = vadd.f32 0.0, %v3717
    %v3719 = vpop.f32.mrf.mxu0
    %v3720 = vpop.f32.mrf.mxu0
    %v3721 = vadd.f32 0.0, %v3720
    %v3722 = vpop.f32.mrf.mxu0
    %3723 = vmatprep.mubr.bf16.mxu0 0
    %3724 = vmatmul.mubr.bf16.gmra.mxu0 %v3466
    %v3725 = vpop.f32.mrf.mxu0
    %v3726 = vadd.f32 0.0, %v3725
    %v3727 = vpop.f32.mrf.mxu0
    %v3728 = vpop.f32.mrf.mxu0
    %v3729 = vadd.f32 0.0, %v3728
    %v3730 = vpop.f32.mrf.mxu0
    %3731 = vmatprep.mubr.bf16.mxu0 0
    %3732 = vmatmul.mubr.bf16.gmra.mxu0 %v3469
    %v3733 = vpop.f32.mrf.mxu0
    %v3734 = vadd.f32 0.0, %v3733
    %v3735 = vpop.f32.mrf.mxu0
    %v3736 = vpop.f32.mrf.mxu0
    %v3737 = vadd.f32 0.0, %v3736
    %v3738 = vpop.f32.mrf.mxu0
    %3739 = vmatprep.mubr.bf16.mxu0 0
    %3740 = vmatmul.mubr.bf16.gmra.mxu0 %v3472
    %v3741 = vpop.f32.mrf.mxu0
    %v3742 = vadd.f32 0.0, %v3741
    %v3743 = vpop.f32.mrf.mxu0
    %v3744 = vpop.f32.mrf.mxu0
    %v3745 = vadd.f32 0.0, %v3744
    %v3746 = vpop.f32.mrf.mxu0
    %3747 = vmatprep.mubr.bf16.mxu0 0
    %3748 = vmatmul.mubr.bf16.gmra.mxu0 %v3475
    %v3749 = vpop.f32.mrf.mxu0
    %v3750 = vadd.f32 0.0, %v3749
    %v3751 = vpop.f32.mrf.mxu0
    %v3752 = vpop.f32.mrf.mxu0
    %v3753 = vadd.f32 0.0, %v3752
    %v3754 = vpop.f32.mrf.mxu0
    %3755 = vmatprep.mubr.bf16.mxu0 0
    %3756 = vmatmul.mubr.bf16.gmra.mxu0 %v3478
    %v3757 = vpop.f32.mrf.mxu0
    %v3758 = vadd.f32 0.0, %v3757
    %v3759 = vpop.f32.mrf.mxu0
    %v3760 = vpop.f32.mrf.mxu0
    %v3761 = vadd.f32 0.0, %v3760
    %v3762 = vpop.f32.mrf.mxu0
    %3763 = vmatprep.mubr.bf16.mxu0 0
    %3764 = vmatmul.mubr.bf16.gmra.mxu0 %v3481
    %v3765 = vpop.f32.mrf.mxu0
    %v3766 = vadd.f32 0.0, %v3765
    %v3767 = vpop.f32.mrf.mxu0
    %v3768 = vpop.f32.mrf.mxu0
    %v3769 = vadd.f32 0.0, %v3768
    %v3770 = vpop.f32.mrf.mxu0
    %3771 = vdwg.mxu0
    %v3772 = vadd.f32 %v3209, %v3518
    %v3773 = vadd.f32 %v3210, %v3521
    %v3774 = vadd.f32 %v3211, %v3526
    %v3775 = vadd.f32 %v3212, %v3529
    %v3776 = vadd.f32 %v3213, %v3534
    %v3777 = vadd.f32 %v3214, %v3537
    %v3778 = vadd.f32 %v3215, %v3542
    %v3779 = vadd.f32 %v3216, %v3545
    %v3780 = vadd.f32 %v3217, %v3550
    %v3781 = vadd.f32 %v3218, %v3553
    %v3782 = vadd.f32 %v3219, %v3558
    %v3783 = vadd.f32 %v3220, %v3561
    %v3784 = vadd.f32 %v3221, %v3566
    %v3785 = vadd.f32 %v3222, %v3569
    %v3786 = vadd.f32 %v3223, %v3574
    %v3787 = vadd.f32 %v3224, %v3577
    %v3788 = vadd.f32 %v3225, %v3582
    %v3789 = vadd.f32 %v3226, %v3585
    %v3790 = vadd.f32 %v3227, %v3590
    %v3791 = vadd.f32 %v3228, %v3593
    %v3792 = vadd.f32 %v3229, %v3598
    %v3793 = vadd.f32 %v3230, %v3601
    %v3794 = vadd.f32 %v3231, %v3606
    %v3795 = vadd.f32 %v3232, %v3609
    %v3796 = vadd.f32 %v3233, %v3614
    %v3797 = vadd.f32 %v3234, %v3617
    %v3798 = vadd.f32 %v3235, %v3622
    %v3799 = vadd.f32 %v3236, %v3625
    %v3800 = vadd.f32 %v3237, %v3630
    %v3801 = vadd.f32 %v3238, %v3633
    %v3802 = vadd.f32 %v3239, %v3638
    %v3803 = vadd.f32 %v3240, %v3641
    %v3804 = vadd.f32 %v3241, %v3646
    %v3805 = vadd.f32 %v3242, %v3649
    %v3806 = vadd.f32 %v3243, %v3654
    %v3807 = vadd.f32 %v3244, %v3657
    %v3808 = vadd.f32 %v3245, %v3662
    %v3809 = vadd.f32 %v3246, %v3665
    %v3810 = vadd.f32 %v3247, %v3670
    %v3811 = vadd.f32 %v3248, %v3673
    %v3812 = vadd.f32 %v3249, %v3678
    %v3813 = vadd.f32 %v3250, %v3681
    %v3814 = vadd.f32 %v3251, %v3686
    %v3815 = vadd.f32 %v3252, %v3689
    %v3816 = vadd.f32 %v3253, %v3694
    %v3817 = vadd.f32 %v3254, %v3697
    %v3818 = vadd.f32 %v3255, %v3702
    %v3819 = vadd.f32 %v3256, %v3705
    %v3820 = vadd.f32 %v3257, %v3710
    %v3821 = vadd.f32 %v3258, %v3713
    %v3822 = vadd.f32 %v3259, %v3718
    %v3823 = vadd.f32 %v3260, %v3721
    %v3824 = vadd.f32 %v3261, %v3726
    %v3825 = vadd.f32 %v3262, %v3729
    %v3826 = vadd.f32 %v3263, %v3734
    %v3827 = vadd.f32 %v3264, %v3737
    %v3828 = vadd.f32 %v3265, %v3742
    %v3829 = vadd.f32 %v3266, %v3745
    %v3830 = vadd.f32 %v3267, %v3750
    %v3831 = vadd.f32 %v3268, %v3753
    %v3832 = vadd.f32 %v3269, %v3758
    %v3833 = vadd.f32 %v3270, %v3761
    %v3834 = vadd.f32 %v3271, %v3766
    %v3835 = vadd.f32 %v3272, %v3769
    %v3836 = vld [vmem:[%s3273 + $0x1] sm:$0xff]
    %v3837 = vld [vmem:[%s3273 + $0x9] sm:$0xff]
    %v3838 = vld [vmem:[%s3273 + $0x19] sm:$0xff]
    %v3839 = vld [vmem:[%s3273 + $0x21] sm:$0xff]
    %v3840 = vld [vmem:[%s3273 + $0x31] sm:$0xff]
    %v3841 = vld [vmem:[%s3273 + $0x39] sm:$0xff]
    %v3842 = vld [vmem:[%s3273 + $0x49] sm:$0xff]
    %v3843 = vld [vmem:[%s3273 + $0x51] sm:$0xff]
    %v3844 = vld [vmem:[%s3273 + $0x61] sm:$0xff]
    %v3845 = vld [vmem:[%s3273 + $0x69] sm:$0xff]
    %v3846 = vld [vmem:[%s3273 + $0x79] sm:$0xff]
    %v3847 = vld [vmem:[%s3273 + $0x81] sm:$0xff]
    %v3848 = vld [vmem:[%s3273 + $0x91] sm:$0xff]
    %v3849 = vld [vmem:[%s3273 + $0x99] sm:$0xff]
    %v3850 = vld [vmem:[%s3273 + $0xa9] sm:$0xff]
    %v3851 = vld [vmem:[%s3273 + $0xb1] sm:$0xff]
    %v3852 = vld [vmem:[%s3273 + $0xc1] sm:$0xff]
    %v3853 = vld [vmem:[%s3273 + $0xc9] sm:$0xff]
    %v3854 = vld [vmem:[%s3273 + $0xd9] sm:$0xff]
    %v3855 = vld [vmem:[%s3273 + $0xe1] sm:$0xff]
    %v3856 = vld [vmem:[%s3273 + $0xf1] sm:$0xff]
    %v3857 = vld [vmem:[%s3273 + $0xf9] sm:$0xff]
    %v3858 = vld [vmem:[%s3273 + $0x109] sm:$0xff]
    %v3859 = vld [vmem:[%s3273 + $0x111] sm:$0xff]
    %v3860 = vld [vmem:[%s3273 + $0x121] sm:$0xff]
    %v3861 = vld [vmem:[%s3273 + $0x129] sm:$0xff]
    %v3862 = vld [vmem:[%s3273 + $0x139] sm:$0xff]
    %v3863 = vld [vmem:[%s3273 + $0x141] sm:$0xff]
    %v3864 = vld [vmem:[%s3273 + $0x151] sm:$0xff]
    %v3865 = vld [vmem:[%s3273 + $0x159] sm:$0xff]
    %v3866 = vld [vmem:[%s3273 + $0x169] sm:$0xff]
    %v3867 = vld [vmem:[%s3273 + $0x171] sm:$0xff]
    %v3868 = vld [vmem:[%s3273 + $0x1b1] sm:$0xff]
    %v3869 = vld [vmem:[%s3273 + $0x1b9] sm:$0xff]
    %v3870 = vld [vmem:[%s3273 + $0x1c9] sm:$0xff]
    %v3871 = vld [vmem:[%s3273 + $0x1d1] sm:$0xff]
    %v3872 = vld [vmem:[%s3273 + $0x1e1] sm:$0xff]
    %v3873 = vld [vmem:[%s3273 + $0x1e9] sm:$0xff]
    %v3874 = vld [vmem:[%s3273 + $0x1f9] sm:$0xff]
    %v3875 = vld [vmem:[%s3273 + $0x201] sm:$0xff]
    %v3876 = vld [vmem:[%s3273 + $0x211] sm:$0xff]
    %v3877 = vld [vmem:[%s3273 + $0x219] sm:$0xff]
    %v3878 = vld [vmem:[%s3273 + $0x229] sm:$0xff]
    %v3879 = vld [vmem:[%s3273 + $0x231] sm:$0xff]
    %v3880 = vld [vmem:[%s3273 + $0x241] sm:$0xff]
    %v3881 = vld [vmem:[%s3273 + $0x249] sm:$0xff]
    %v3882 = vld [vmem:[%s3273 + $0x259] sm:$0xff]
    %v3883 = vld [vmem:[%s3273 + $0x261] sm:$0xff]
    %v3884 = vld [vmem:[%s3273 + $0x271] sm:$0xff]
    %v3885 = vld [vmem:[%s3273 + $0x279] sm:$0xff]
    %v3886 = vld [vmem:[%s3273 + $0x289] sm:$0xff]
    %v3887 = vld [vmem:[%s3273 + $0x291] sm:$0xff]
    %v3888 = vld [vmem:[%s3273 + $0x2a1] sm:$0xff]
    %v3889 = vld [vmem:[%s3273 + $0x2a9] sm:$0xff]
    %v3890 = vld [vmem:[%s3273 + $0x2b9] sm:$0xff]
    %v3891 = vld [vmem:[%s3273 + $0x2c1] sm:$0xff]
    %v3892 = vld [vmem:[%s3273 + $0x2d1] sm:$0xff]
    %v3893 = vld [vmem:[%s3273 + $0x2d9] sm:$0xff]
    %v3894 = vld [vmem:[%s3273 + $0x2e9] sm:$0xff]
    %v3895 = vld [vmem:[%s3273 + $0x2f1] sm:$0xff]
    %v3896 = vld [vmem:[%s3273 + $0x301] sm:$0xff]
    %v3897 = vld [vmem:[%s3273 + $0x309] sm:$0xff]
    %v3898 = vld [vmem:[%s3273 + $0x319] sm:$0xff]
    %v3899 = vld [vmem:[%s3273 + $0x321] sm:$0xff]
    %v3900 = vpack.c.bf16 %v3837, %v3836
    %v3901 = vpack.c.bf16 %v3839, %v3838
    %v3902 = vpack.c.bf16 %v3841, %v3840
    %v3903 = vpack.c.bf16 %v3843, %v3842
    %v3904 = vpack.c.bf16 %v3845, %v3844
    %v3905 = vpack.c.bf16 %v3847, %v3846
    %v3906 = vpack.c.bf16 %v3849, %v3848
    %v3907 = vpack.c.bf16 %v3851, %v3850
    %v3908 = vpack.c.bf16 %v3853, %v3852
    %v3909 = vpack.c.bf16 %v3855, %v3854
    %v3910 = vpack.c.bf16 %v3857, %v3856
    %v3911 = vpack.c.bf16 %v3859, %v3858
    %v3912 = vpack.c.bf16 %v3861, %v3860
    %v3913 = vpack.c.bf16 %v3863, %v3862
    %v3914 = vpack.c.bf16 %v3865, %v3864
    %v3915 = vpack.c.bf16 %v3867, %v3866
    %v3916 = vpack.c.bf16 %v3869, %v3868
    %v3917 = vpack.c.bf16 %v3871, %v3870
    %v3918 = vpack.c.bf16 %v3873, %v3872
    %v3919 = vpack.c.bf16 %v3875, %v3874
    %v3920 = vpack.c.bf16 %v3877, %v3876
    %v3921 = vpack.c.bf16 %v3879, %v3878
    %v3922 = vpack.c.bf16 %v3881, %v3880
    %v3923 = vpack.c.bf16 %v3883, %v3882
    %v3924 = vpack.c.bf16 %v3885, %v3884
    %v3925 = vpack.c.bf16 %v3887, %v3886
    %v3926 = vpack.c.bf16 %v3889, %v3888
    %v3927 = vpack.c.bf16 %v3891, %v3890
    %v3928 = vpack.c.bf16 %v3893, %v3892
    %v3929 = vpack.c.bf16 %v3895, %v3894
    %v3930 = vpack.c.bf16 %v3897, %v3896
    %v3931 = vpack.c.bf16 %v3899, %v3898
    %s3932 = scalar_lea.vmem %s1, 112
    %v3933 = vld [vmem:[%s3932] sm:$0xf]
    %v3934 = vld [vmem:[%s3932 + $0x4] sm:$0xf]
    %v3935 = vld [vmem:[%s3932 + $0x8] sm:$0xf]
    %v3936 = vld [vmem:[%s3932 + $0xc] sm:$0xf]
    %v3941 = vunpack.c.l.b16 %v3933
    %v3942 = vunpack.c.l.b16 %v3934
    %v3943 = vunpack.c.l.b16 %v3935
    %v3944 = vunpack.c.l.b16 %v3936
    %v3945 = vpack.c.b16 %v3942, %v3941
    %v3946 = vpack.c.b16 %v3944, %v3943
    %v3950 = vsel %vm241, %v3900, 0
    %v3953 = vsel %vm241, %v3901, 0
    %v3956 = vsel %vm241, %v3902, 0
    %v3959 = vsel %vm241, %v3903, 0
    %v3962 = vsel %vm241, %v3904, 0
    %v3965 = vsel %vm241, %v3905, 0
    %v3968 = vsel %vm241, %v3906, 0
    %v3971 = vsel %vm241, %v3907, 0
    %v3974 = vsel %vm241, %v3908, 0
    %v3977 = vsel %vm241, %v3909, 0
    %v3980 = vsel %vm241, %v3910, 0
    %v3983 = vsel %vm241, %v3911, 0
    %v3986 = vsel %vm241, %v3912, 0
    %v3989 = vsel %vm241, %v3913, 0
    %v3992 = vsel %vm241, %v3914, 0
    %v3995 = vsel %vm241, %v3915, 0
    %v3998 = vsel %vm241, %v3916, 0
    %v4001 = vsel %vm241, %v3917, 0
    %v4004 = vsel %vm241, %v3918, 0
    %v4007 = vsel %vm241, %v3919, 0
    %v4010 = vsel %vm241, %v3920, 0
    %v4013 = vsel %vm241, %v3921, 0
    %v4016 = vsel %vm241, %v3922, 0
    %v4019 = vsel %vm241, %v3923, 0
    %v4022 = vsel %vm241, %v3924, 0
    %v4025 = vsel %vm241, %v3925, 0
    %v4028 = vsel %vm241, %v3926, 0
    %v4031 = vsel %vm241, %v3927, 0
    %v4034 = vsel %vm241, %v3928, 0
    %v4037 = vsel %vm241, %v3929, 0
    %v4040 = vsel %vm241, %v3930, 0
    %v4043 = vsel %vm241, %v3931, 0
    %4045 = vmatprep.subr.bf16.mxu0 0
    %4046 = vmatpush1.bf16.msra.mxu0 0
    %4047 = vmatprep.subr.bf16.mxu0 0
    %4048 = vmatpush1.bf16.msra.mxu0 0
    %4049 = vmatprep.subr.bf16.mxu0 0
    %4050 = vmatpush1.bf16.msra.mxu0 0
    %4051 = vmatprep.subr.bf16.mxu0 0
    %4052 = vmatpush1.bf16.msra.mxu0 0
    %4053 = vmatprep.subr.bf16.mxu0 0
    %4054 = vmatpush1.bf16.msra.mxu0 0
    %4055 = vmatprep.subr.bf16.mxu0 0
    %4056 = vmatpush1.bf16.msra.mxu0 0
    %4057 = vmatprep.subr.bf16.mxu0 0
    %4058 = vmatpush1.bf16.msra.mxu0 %v3946
    %4059 = vmatprep.subr.bf16.mxu0 0
    %4060 = vmatpush1.bf16.msra.mxu0 %v3945
    %4061 = vmatprep.subr.bf16.mxu0 0
    %4062 = vmatpush2.bf16.msra.mxu0 0
    %4063 = vmatprep.subr.bf16.mxu0 0
    %4064 = vmatpush2.bf16.msra.mxu0 0
    %4065 = vmatprep.subr.bf16.mxu0 0
    %4066 = vmatpush2.bf16.msra.mxu0 0
    %4067 = vmatprep.subr.bf16.mxu0 0
    %4068 = vmatpush2.bf16.msra.mxu0 0
    %4069 = vmatprep.subr.bf16.mxu0 0
    %4070 = vmatpush2.bf16.msra.mxu0 0
    %4071 = vmatprep.subr.bf16.mxu0 0
    %4072 = vmatpush2.bf16.msra.mxu0 0
    %4073 = vmatprep.subr.bf16.mxu0 0
    %4074 = vmatpush2.bf16.msra.mxu0 0
    %4075 = vmatprep.subr.bf16.mxu0 0
    %4076 = vmatpush2.bf16.msra.mxu0 0
    %4077 = vmatprep.mubr.bf16.mxu0 0
    %4078 = vmatmul.mubr.bf16.gmra.mxu0 %v3950
    %v4079 = vpop.f32.mrf.mxu0
    %v4080 = vadd.f32 0.0, %v4079
    %v4081 = vpop.f32.mrf.mxu0
    %v4082 = vpop.f32.mrf.mxu0
    %v4083 = vadd.f32 0.0, %v4082
    %v4084 = vpop.f32.mrf.mxu0
    %4085 = vmatprep.mubr.bf16.mxu0 0
    %4086 = vmatmul.mubr.bf16.gmra.mxu0 %v3953
    %v4087 = vpop.f32.mrf.mxu0
    %v4088 = vadd.f32 0.0, %v4087
    %v4089 = vpop.f32.mrf.mxu0
    %v4090 = vpop.f32.mrf.mxu0
    %v4091 = vadd.f32 0.0, %v4090
    %v4092 = vpop.f32.mrf.mxu0
    %4093 = vmatprep.mubr.bf16.mxu0 0
    %4094 = vmatmul.mubr.bf16.gmra.mxu0 %v3956
    %v4095 = vpop.f32.mrf.mxu0
    %v4096 = vadd.f32 0.0, %v4095
    %v4097 = vpop.f32.mrf.mxu0
    %v4098 = vpop.f32.mrf.mxu0
    %v4099 = vadd.f32 0.0, %v4098
    %v4100 = vpop.f32.mrf.mxu0
    %4101 = vmatprep.mubr.bf16.mxu0 0
    %4102 = vmatmul.mubr.bf16.gmra.mxu0 %v3959
    %v4103 = vpop.f32.mrf.mxu0
    %v4104 = vadd.f32 0.0, %v4103
    %v4105 = vpop.f32.mrf.mxu0
    %v4106 = vpop.f32.mrf.mxu0
    %v4107 = vadd.f32 0.0, %v4106
    %v4108 = vpop.f32.mrf.mxu0
    %4109 = vmatprep.mubr.bf16.mxu0 0
    %4110 = vmatmul.mubr.bf16.gmra.mxu0 %v3962
    %v4111 = vpop.f32.mrf.mxu0
    %v4112 = vadd.f32 0.0, %v4111
    %v4113 = vpop.f32.mrf.mxu0
    %v4114 = vpop.f32.mrf.mxu0
    %v4115 = vadd.f32 0.0, %v4114
    %v4116 = vpop.f32.mrf.mxu0
    %4117 = vmatprep.mubr.bf16.mxu0 0
    %4118 = vmatmul.mubr.bf16.gmra.mxu0 %v3965
    %v4119 = vpop.f32.mrf.mxu0
    %v4120 = vadd.f32 0.0, %v4119
    %v4121 = vpop.f32.mrf.mxu0
    %v4122 = vpop.f32.mrf.mxu0
    %v4123 = vadd.f32 0.0, %v4122
    %v4124 = vpop.f32.mrf.mxu0
    %4125 = vmatprep.mubr.bf16.mxu0 0
    %4126 = vmatmul.mubr.bf16.gmra.mxu0 %v3968
    %v4127 = vpop.f32.mrf.mxu0
    %v4128 = vadd.f32 0.0, %v4127
    %v4129 = vpop.f32.mrf.mxu0
    %v4130 = vpop.f32.mrf.mxu0
    %v4131 = vadd.f32 0.0, %v4130
    %v4132 = vpop.f32.mrf.mxu0
    %4133 = vmatprep.mubr.bf16.mxu0 0
    %4134 = vmatmul.mubr.bf16.gmra.mxu0 %v3971
    %v4135 = vpop.f32.mrf.mxu0
    %v4136 = vadd.f32 0.0, %v4135
    %v4137 = vpop.f32.mrf.mxu0
    %v4138 = vpop.f32.mrf.mxu0
    %v4139 = vadd.f32 0.0, %v4138
    %v4140 = vpop.f32.mrf.mxu0
    %4141 = vmatprep.mubr.bf16.mxu0 0
    %4142 = vmatmul.mubr.bf16.gmra.mxu0 %v3974
    %v4143 = vpop.f32.mrf.mxu0
    %v4144 = vadd.f32 0.0, %v4143
    %v4145 = vpop.f32.mrf.mxu0
    %v4146 = vpop.f32.mrf.mxu0
    %v4147 = vadd.f32 0.0, %v4146
    %v4148 = vpop.f32.mrf.mxu0
    %4149 = vmatprep.mubr.bf16.mxu0 0
    %4150 = vmatmul.mubr.bf16.gmra.mxu0 %v3977
    %v4151 = vpop.f32.mrf.mxu0
    %v4152 = vadd.f32 0.0, %v4151
    %v4153 = vpop.f32.mrf.mxu0
    %v4154 = vpop.f32.mrf.mxu0
    %v4155 = vadd.f32 0.0, %v4154
    %v4156 = vpop.f32.mrf.mxu0
    %4157 = vmatprep.mubr.bf16.mxu0 0
    %4158 = vmatmul.mubr.bf16.gmra.mxu0 %v3980
    %v4159 = vpop.f32.mrf.mxu0
    %v4160 = vadd.f32 0.0, %v4159
    %v4161 = vpop.f32.mrf.mxu0
    %v4162 = vpop.f32.mrf.mxu0
    %v4163 = vadd.f32 0.0, %v4162
    %v4164 = vpop.f32.mrf.mxu0
    %4165 = vmatprep.mubr.bf16.mxu0 0
    %4166 = vmatmul.mubr.bf16.gmra.mxu0 %v3983
    %v4167 = vpop.f32.mrf.mxu0
    %v4168 = vadd.f32 0.0, %v4167
    %v4169 = vpop.f32.mrf.mxu0
    %v4170 = vpop.f32.mrf.mxu0
    %v4171 = vadd.f32 0.0, %v4170
    %v4172 = vpop.f32.mrf.mxu0
    %4173 = vmatprep.mubr.bf16.mxu0 0
    %4174 = vmatmul.mubr.bf16.gmra.mxu0 %v3986
    %v4175 = vpop.f32.mrf.mxu0
    %v4176 = vadd.f32 0.0, %v4175
    %v4177 = vpop.f32.mrf.mxu0
    %v4178 = vpop.f32.mrf.mxu0
    %v4179 = vadd.f32 0.0, %v4178
    %v4180 = vpop.f32.mrf.mxu0
    %4181 = vmatprep.mubr.bf16.mxu0 0
    %4182 = vmatmul.mubr.bf16.gmra.mxu0 %v3989
    %v4183 = vpop.f32.mrf.mxu0
    %v4184 = vadd.f32 0.0, %v4183
    %v4185 = vpop.f32.mrf.mxu0
    %v4186 = vpop.f32.mrf.mxu0
    %v4187 = vadd.f32 0.0, %v4186
    %v4188 = vpop.f32.mrf.mxu0
    %4189 = vmatprep.mubr.bf16.mxu0 0
    %4190 = vmatmul.mubr.bf16.gmra.mxu0 %v3992
    %v4191 = vpop.f32.mrf.mxu0
    %v4192 = vadd.f32 0.0, %v4191
    %v4193 = vpop.f32.mrf.mxu0
    %v4194 = vpop.f32.mrf.mxu0
    %v4195 = vadd.f32 0.0, %v4194
    %v4196 = vpop.f32.mrf.mxu0
    %4197 = vmatprep.mubr.bf16.mxu0 0
    %4198 = vmatmul.mubr.bf16.gmra.mxu0 %v3995
    %v4199 = vpop.f32.mrf.mxu0
    %v4200 = vadd.f32 0.0, %v4199
    %v4201 = vpop.f32.mrf.mxu0
    %v4202 = vpop.f32.mrf.mxu0
    %v4203 = vadd.f32 0.0, %v4202
    %v4204 = vpop.f32.mrf.mxu0
    %4205 = vmatprep.mubr.bf16.mxu0 0
    %4206 = vmatmul.mubr.bf16.gmra.mxu0 %v3998
    %v4207 = vpop.f32.mrf.mxu0
    %v4208 = vadd.f32 0.0, %v4207
    %v4209 = vpop.f32.mrf.mxu0
    %v4210 = vpop.f32.mrf.mxu0
    %v4211 = vadd.f32 0.0, %v4210
    %v4212 = vpop.f32.mrf.mxu0
    %4213 = vmatprep.mubr.bf16.mxu0 0
    %4214 = vmatmul.mubr.bf16.gmra.mxu0 %v4001
    %v4215 = vpop.f32.mrf.mxu0
    %v4216 = vadd.f32 0.0, %v4215
    %v4217 = vpop.f32.mrf.mxu0
    %v4218 = vpop.f32.mrf.mxu0
    %v4219 = vadd.f32 0.0, %v4218
    %v4220 = vpop.f32.mrf.mxu0
    %4221 = vmatprep.mubr.bf16.mxu0 0
    %4222 = vmatmul.mubr.bf16.gmra.mxu0 %v4004
    %v4223 = vpop.f32.mrf.mxu0
    %v4224 = vadd.f32 0.0, %v4223
    %v4225 = vpop.f32.mrf.mxu0
    %v4226 = vpop.f32.mrf.mxu0
    %v4227 = vadd.f32 0.0, %v4226
    %v4228 = vpop.f32.mrf.mxu0
    %4229 = vmatprep.mubr.bf16.mxu0 0
    %4230 = vmatmul.mubr.bf16.gmra.mxu0 %v4007
    %v4231 = vpop.f32.mrf.mxu0
    %v4232 = vadd.f32 0.0, %v4231
    %v4233 = vpop.f32.mrf.mxu0
    %v4234 = vpop.f32.mrf.mxu0
    %v4235 = vadd.f32 0.0, %v4234
    %v4236 = vpop.f32.mrf.mxu0
    %4237 = vmatprep.mubr.bf16.mxu0 0
    %4238 = vmatmul.mubr.bf16.gmra.mxu0 %v4010
    %v4239 = vpop.f32.mrf.mxu0
    %v4240 = vadd.f32 0.0, %v4239
    %v4241 = vpop.f32.mrf.mxu0
    %v4242 = vpop.f32.mrf.mxu0
    %v4243 = vadd.f32 0.0, %v4242
    %v4244 = vpop.f32.mrf.mxu0
    %4245 = vmatprep.mubr.bf16.mxu0 0
    %4246 = vmatmul.mubr.bf16.gmra.mxu0 %v4013
    %v4247 = vpop.f32.mrf.mxu0
    %v4248 = vadd.f32 0.0, %v4247
    %v4249 = vpop.f32.mrf.mxu0
    %v4250 = vpop.f32.mrf.mxu0
    %v4251 = vadd.f32 0.0, %v4250
    %v4252 = vpop.f32.mrf.mxu0
    %4253 = vmatprep.mubr.bf16.mxu0 0
    %4254 = vmatmul.mubr.bf16.gmra.mxu0 %v4016
    %v4255 = vpop.f32.mrf.mxu0
    %v4256 = vadd.f32 0.0, %v4255
    %v4257 = vpop.f32.mrf.mxu0
    %v4258 = vpop.f32.mrf.mxu0
    %v4259 = vadd.f32 0.0, %v4258
    %v4260 = vpop.f32.mrf.mxu0
    %4261 = vmatprep.mubr.bf16.mxu0 0
    %4262 = vmatmul.mubr.bf16.gmra.mxu0 %v4019
    %v4263 = vpop.f32.mrf.mxu0
    %v4264 = vadd.f32 0.0, %v4263
    %v4265 = vpop.f32.mrf.mxu0
    %v4266 = vpop.f32.mrf.mxu0
    %v4267 = vadd.f32 0.0, %v4266
    %v4268 = vpop.f32.mrf.mxu0
    %4269 = vmatprep.mubr.bf16.mxu0 0
    %4270 = vmatmul.mubr.bf16.gmra.mxu0 %v4022
    %v4271 = vpop.f32.mrf.mxu0
    %v4272 = vadd.f32 0.0, %v4271
    %v4273 = vpop.f32.mrf.mxu0
    %v4274 = vpop.f32.mrf.mxu0
    %v4275 = vadd.f32 0.0, %v4274
    %v4276 = vpop.f32.mrf.mxu0
    %4277 = vmatprep.mubr.bf16.mxu0 0
    %4278 = vmatmul.mubr.bf16.gmra.mxu0 %v4025
    %v4279 = vpop.f32.mrf.mxu0
    %v4280 = vadd.f32 0.0, %v4279
    %v4281 = vpop.f32.mrf.mxu0
    %v4282 = vpop.f32.mrf.mxu0
    %v4283 = vadd.f32 0.0, %v4282
    %v4284 = vpop.f32.mrf.mxu0
    %4285 = vmatprep.mubr.bf16.mxu0 0
    %4286 = vmatmul.mubr.bf16.gmra.mxu0 %v4028
    %v4287 = vpop.f32.mrf.mxu0
    %v4288 = vadd.f32 0.0, %v4287
    %v4289 = vpop.f32.mrf.mxu0
    %v4290 = vpop.f32.mrf.mxu0
    %v4291 = vadd.f32 0.0, %v4290
    %v4292 = vpop.f32.mrf.mxu0
    %4293 = vmatprep.mubr.bf16.mxu0 0
    %4294 = vmatmul.mubr.bf16.gmra.mxu0 %v4031
    %v4295 = vpop.f32.mrf.mxu0
    %v4296 = vadd.f32 0.0, %v4295
    %v4297 = vpop.f32.mrf.mxu0
    %v4298 = vpop.f32.mrf.mxu0
    %v4299 = vadd.f32 0.0, %v4298
    %v4300 = vpop.f32.mrf.mxu0
    %4301 = vmatprep.mubr.bf16.mxu0 0
    %4302 = vmatmul.mubr.bf16.gmra.mxu0 %v4034
    %v4303 = vpop.f32.mrf.mxu0
    %v4304 = vadd.f32 0.0, %v4303
    %v4305 = vpop.f32.mrf.mxu0
    %v4306 = vpop.f32.mrf.mxu0
    %v4307 = vadd.f32 0.0, %v4306
    %v4308 = vpop.f32.mrf.mxu0
    %4309 = vmatprep.mubr.bf16.mxu0 0
    %4310 = vmatmul.mubr.bf16.gmra.mxu0 %v4037
    %v4311 = vpop.f32.mrf.mxu0
    %v4312 = vadd.f32 0.0, %v4311
    %v4313 = vpop.f32.mrf.mxu0
    %v4314 = vpop.f32.mrf.mxu0
    %v4315 = vadd.f32 0.0, %v4314
    %v4316 = vpop.f32.mrf.mxu0
    %4317 = vmatprep.mubr.bf16.mxu0 0
    %4318 = vmatmul.mubr.bf16.gmra.mxu0 %v4040
    %v4319 = vpop.f32.mrf.mxu0
    %v4320 = vadd.f32 0.0, %v4319
    %v4321 = vpop.f32.mrf.mxu0
    %v4322 = vpop.f32.mrf.mxu0
    %v4323 = vadd.f32 0.0, %v4322
    %v4324 = vpop.f32.mrf.mxu0
    %4325 = vmatprep.mubr.bf16.mxu0 0
    %4326 = vmatmul.mubr.bf16.gmra.mxu0 %v4043
    %v4327 = vpop.f32.mrf.mxu0
    %v4328 = vadd.f32 0.0, %v4327
    %v4329 = vpop.f32.mrf.mxu0
    %v4330 = vpop.f32.mrf.mxu0
    %v4331 = vadd.f32 0.0, %v4330
    %v4332 = vpop.f32.mrf.mxu0
    %4333 = vdwg.mxu0
    %v4334 = vadd.f32 %v3772, %v4080
    %v4335 = vadd.f32 %v3773, %v4083
    %v4336 = vadd.f32 %v3774, %v4088
    %v4337 = vadd.f32 %v3775, %v4091
    %v4338 = vadd.f32 %v3776, %v4096
    %v4339 = vadd.f32 %v3777, %v4099
    %v4340 = vadd.f32 %v3778, %v4104
    %v4341 = vadd.f32 %v3779, %v4107
    %v4342 = vadd.f32 %v3780, %v4112
    %v4343 = vadd.f32 %v3781, %v4115
    %v4344 = vadd.f32 %v3782, %v4120
    %v4345 = vadd.f32 %v3783, %v4123
    %v4346 = vadd.f32 %v3784, %v4128
    %v4347 = vadd.f32 %v3785, %v4131
    %v4348 = vadd.f32 %v3786, %v4136
    %v4349 = vadd.f32 %v3787, %v4139
    %v4350 = vadd.f32 %v3788, %v4144
    %v4351 = vadd.f32 %v3789, %v4147
    %v4352 = vadd.f32 %v3790, %v4152
    %v4353 = vadd.f32 %v3791, %v4155
    %v4354 = vadd.f32 %v3792, %v4160
    %v4355 = vadd.f32 %v3793, %v4163
    %v4356 = vadd.f32 %v3794, %v4168
    %v4357 = vadd.f32 %v3795, %v4171
    %v4358 = vadd.f32 %v3796, %v4176
    %v4359 = vadd.f32 %v3797, %v4179
    %v4360 = vadd.f32 %v3798, %v4184
    %v4361 = vadd.f32 %v3799, %v4187
    %v4362 = vadd.f32 %v3800, %v4192
    %v4363 = vadd.f32 %v3801, %v4195
    %v4364 = vadd.f32 %v3802, %v4200
    %v4365 = vadd.f32 %v3803, %v4203
    %v4366 = vadd.f32 %v3804, %v4208
    %v4367 = vadd.f32 %v3805, %v4211
    %v4368 = vadd.f32 %v3806, %v4216
    %v4369 = vadd.f32 %v3807, %v4219
    %v4370 = vadd.f32 %v3808, %v4224
    %v4371 = vadd.f32 %v3809, %v4227
    %v4372 = vadd.f32 %v3810, %v4232
    %v4373 = vadd.f32 %v3811, %v4235
    %v4374 = vadd.f32 %v3812, %v4240
    %v4375 = vadd.f32 %v3813, %v4243
    %v4376 = vadd.f32 %v3814, %v4248
    %v4377 = vadd.f32 %v3815, %v4251
    %v4378 = vadd.f32 %v3816, %v4256
    %v4379 = vadd.f32 %v3817, %v4259
    %v4380 = vadd.f32 %v3818, %v4264
    %v4381 = vadd.f32 %v3819, %v4267
    %v4382 = vadd.f32 %v3820, %v4272
    %v4383 = vadd.f32 %v3821, %v4275
    %v4384 = vadd.f32 %v3822, %v4280
    %v4385 = vadd.f32 %v3823, %v4283
    %v4386 = vadd.f32 %v3824, %v4288
    %v4387 = vadd.f32 %v3825, %v4291
    %v4388 = vadd.f32 %v3826, %v4296
    %v4389 = vadd.f32 %v3827, %v4299
    %v4390 = vadd.f32 %v3828, %v4304
    %v4391 = vadd.f32 %v3829, %v4307
    %v4392 = vadd.f32 %v3830, %v4312
    %v4393 = vadd.f32 %v3831, %v4315
    %v4394 = vadd.f32 %v3832, %v4320
    %v4395 = vadd.f32 %v3833, %v4323
    %v4396 = vadd.f32 %v3834, %v4328
    %v4397 = vadd.f32 %v3835, %v4331
    %v4398 = vld [vmem:[%s3273 + $0x2] sm:$0xff]
    %v4399 = vld [vmem:[%s3273 + $0xa] sm:$0xff]
    %v4400 = vld [vmem:[%s3273 + $0x1a] sm:$0xff]
    %v4401 = vld [vmem:[%s3273 + $0x22] sm:$0xff]
    %v4402 = vld [vmem:[%s3273 + $0x32] sm:$0xff]
    %v4403 = vld [vmem:[%s3273 + $0x3a] sm:$0xff]
    %v4404 = vld [vmem:[%s3273 + $0x4a] sm:$0xff]
    %v4405 = vld [vmem:[%s3273 + $0x52] sm:$0xff]
    %v4406 = vld [vmem:[%s3273 + $0x62] sm:$0xff]
    %v4407 = vld [vmem:[%s3273 + $0x6a] sm:$0xff]
    %v4408 = vld [vmem:[%s3273 + $0x7a] sm:$0xff]
    %v4409 = vld [vmem:[%s3273 + $0x82] sm:$0xff]
    %v4410 = vld [vmem:[%s3273 + $0x92] sm:$0xff]
    %v4411 = vld [vmem:[%s3273 + $0x9a] sm:$0xff]
    %v4412 = vld [vmem:[%s3273 + $0xaa] sm:$0xff]
    %v4413 = vld [vmem:[%s3273 + $0xb2] sm:$0xff]
    %v4414 = vld [vmem:[%s3273 + $0xc2] sm:$0xff]
    %v4415 = vld [vmem:[%s3273 + $0xca] sm:$0xff]
    %v4416 = vld [vmem:[%s3273 + $0xda] sm:$0xff]
    %v4417 = vld [vmem:[%s3273 + $0xe2] sm:$0xff]
    %v4418 = vld [vmem:[%s3273 + $0xf2] sm:$0xff]
    %v4419 = vld [vmem:[%s3273 + $0xfa] sm:$0xff]
    %v4420 = vld [vmem:[%s3273 + $0x10a] sm:$0xff]
    %v4421 = vld [vmem:[%s3273 + $0x112] sm:$0xff]
    %v4422 = vld [vmem:[%s3273 + $0x122] sm:$0xff]
    %v4423 = vld [vmem:[%s3273 + $0x12a] sm:$0xff]
    %v4424 = vld [vmem:[%s3273 + $0x13a] sm:$0xff]
    %v4425 = vld [vmem:[%s3273 + $0x142] sm:$0xff]
    %v4426 = vld [vmem:[%s3273 + $0x152] sm:$0xff]
    %v4427 = vld [vmem:[%s3273 + $0x15a] sm:$0xff]
    %v4428 = vld [vmem:[%s3273 + $0x16a] sm:$0xff]
    %v4429 = vld [vmem:[%s3273 + $0x172] sm:$0xff]
    %v4430 = vld [vmem:[%s3273 + $0x1b2] sm:$0xff]
    %v4431 = vld [vmem:[%s3273 + $0x1ba] sm:$0xff]
    %v4432 = vld [vmem:[%s3273 + $0x1ca] sm:$0xff]
    %v4433 = vld [vmem:[%s3273 + $0x1d2] sm:$0xff]
    %v4434 = vld [vmem:[%s3273 + $0x1e2] sm:$0xff]
    %v4435 = vld [vmem:[%s3273 + $0x1ea] sm:$0xff]
    %v4436 = vld [vmem:[%s3273 + $0x1fa] sm:$0xff]
    %v4437 = vld [vmem:[%s3273 + $0x202] sm:$0xff]
    %v4438 = vld [vmem:[%s3273 + $0x212] sm:$0xff]
    %v4439 = vld [vmem:[%s3273 + $0x21a] sm:$0xff]
    %v4440 = vld [vmem:[%s3273 + $0x22a] sm:$0xff]
    %v4441 = vld [vmem:[%s3273 + $0x232] sm:$0xff]
    %v4442 = vld [vmem:[%s3273 + $0x242] sm:$0xff]
    %v4443 = vld [vmem:[%s3273 + $0x24a] sm:$0xff]
    %v4444 = vld [vmem:[%s3273 + $0x25a] sm:$0xff]
    %v4445 = vld [vmem:[%s3273 + $0x262] sm:$0xff]
    %v4446 = vld [vmem:[%s3273 + $0x272] sm:$0xff]
    %v4447 = vld [vmem:[%s3273 + $0x27a] sm:$0xff]
    %v4448 = vld [vmem:[%s3273 + $0x28a] sm:$0xff]
    %v4449 = vld [vmem:[%s3273 + $0x292] sm:$0xff]
    %v4450 = vld [vmem:[%s3273 + $0x2a2] sm:$0xff]
    %v4451 = vld [vmem:[%s3273 + $0x2aa] sm:$0xff]
    %v4452 = vld [vmem:[%s3273 + $0x2ba] sm:$0xff]
    %v4453 = vld [vmem:[%s3273 + $0x2c2] sm:$0xff]
    %v4454 = vld [vmem:[%s3273 + $0x2d2] sm:$0xff]
    %v4455 = vld [vmem:[%s3273 + $0x2da] sm:$0xff]
    %v4456 = vld [vmem:[%s3273 + $0x2ea] sm:$0xff]
    %v4457 = vld [vmem:[%s3273 + $0x2f2] sm:$0xff]
    %v4458 = vld [vmem:[%s3273 + $0x302] sm:$0xff]
    %v4459 = vld [vmem:[%s3273 + $0x30a] sm:$0xff]
    %v4460 = vld [vmem:[%s3273 + $0x31a] sm:$0xff]
    %v4461 = vld [vmem:[%s3273 + $0x322] sm:$0xff]
    %v4462 = vpack.c.bf16 %v4399, %v4398
    %v4463 = vpack.c.bf16 %v4401, %v4400
    %v4464 = vpack.c.bf16 %v4403, %v4402
    %v4465 = vpack.c.bf16 %v4405, %v4404
    %v4466 = vpack.c.bf16 %v4407, %v4406
    %v4467 = vpack.c.bf16 %v4409, %v4408
    %v4468 = vpack.c.bf16 %v4411, %v4410
    %v4469 = vpack.c.bf16 %v4413, %v4412
    %v4470 = vpack.c.bf16 %v4415, %v4414
    %v4471 = vpack.c.bf16 %v4417, %v4416
    %v4472 = vpack.c.bf16 %v4419, %v4418
    %v4473 = vpack.c.bf16 %v4421, %v4420
    %v4474 = vpack.c.bf16 %v4423, %v4422
    %v4475 = vpack.c.bf16 %v4425, %v4424
    %v4476 = vpack.c.bf16 %v4427, %v4426
    %v4477 = vpack.c.bf16 %v4429, %v4428
    %v4478 = vpack.c.bf16 %v4431, %v4430
    %v4479 = vpack.c.bf16 %v4433, %v4432
    %v4480 = vpack.c.bf16 %v4435, %v4434
    %v4481 = vpack.c.bf16 %v4437, %v4436
    %v4482 = vpack.c.bf16 %v4439, %v4438
    %v4483 = vpack.c.bf16 %v4441, %v4440
    %v4484 = vpack.c.bf16 %v4443, %v4442
    %v4485 = vpack.c.bf16 %v4445, %v4444
    %v4486 = vpack.c.bf16 %v4447, %v4446
    %v4487 = vpack.c.bf16 %v4449, %v4448
    %v4488 = vpack.c.bf16 %v4451, %v4450
    %v4489 = vpack.c.bf16 %v4453, %v4452
    %v4490 = vpack.c.bf16 %v4455, %v4454
    %v4491 = vpack.c.bf16 %v4457, %v4456
    %v4492 = vpack.c.bf16 %v4459, %v4458
    %v4493 = vpack.c.bf16 %v4461, %v4460
    %s4494 = scalar_lea.vmem %s1, 128
    %v4495 = vld [vmem:[%s4494] sm:$0xf]
    %v4496 = vld [vmem:[%s4494 + $0x4] sm:$0xf]
    %v4497 = vld [vmem:[%s4494 + $0x8] sm:$0xf]
    %v4498 = vld [vmem:[%s4494 + $0xc] sm:$0xf]
    %v4503 = vunpack.c.l.b16 %v4495
    %v4504 = vunpack.c.l.b16 %v4496
    %v4505 = vunpack.c.l.b16 %v4497
    %v4506 = vunpack.c.l.b16 %v4498
    %v4507 = vpack.c.b16 %v4504, %v4503
    %v4508 = vpack.c.b16 %v4506, %v4505
    %v4512 = vsel %vm241, %v4462, 0
    %v4515 = vsel %vm241, %v4463, 0
    %v4518 = vsel %vm241, %v4464, 0
    %v4521 = vsel %vm241, %v4465, 0
    %v4524 = vsel %vm241, %v4466, 0
    %v4527 = vsel %vm241, %v4467, 0
    %v4530 = vsel %vm241, %v4468, 0
    %v4533 = vsel %vm241, %v4469, 0
    %v4536 = vsel %vm241, %v4470, 0
    %v4539 = vsel %vm241, %v4471, 0
    %v4542 = vsel %vm241, %v4472, 0
    %v4545 = vsel %vm241, %v4473, 0
    %v4548 = vsel %vm241, %v4474, 0
    %v4551 = vsel %vm241, %v4475, 0
    %v4554 = vsel %vm241, %v4476, 0
    %v4557 = vsel %vm241, %v4477, 0
    %v4560 = vsel %vm241, %v4478, 0
    %v4563 = vsel %vm241, %v4479, 0
    %v4566 = vsel %vm241, %v4480, 0
    %v4569 = vsel %vm241, %v4481, 0
    %v4572 = vsel %vm241, %v4482, 0
    %v4575 = vsel %vm241, %v4483, 0
    %v4578 = vsel %vm241, %v4484, 0
    %v4581 = vsel %vm241, %v4485, 0
    %v4584 = vsel %vm241, %v4486, 0
    %v4587 = vsel %vm241, %v4487, 0
    %v4590 = vsel %vm241, %v4488, 0
    %v4593 = vsel %vm241, %v4489, 0
    %v4596 = vsel %vm241, %v4490, 0
    %v4599 = vsel %vm241, %v4491, 0
    %v4602 = vsel %vm241, %v4492, 0
    %v4605 = vsel %vm241, %v4493, 0
    %4607 = vmatprep.subr.bf16.mxu0 0
    %4608 = vmatpush1.bf16.msra.mxu0 0
    %4609 = vmatprep.subr.bf16.mxu0 0
    %4610 = vmatpush1.bf16.msra.mxu0 0
    %4611 = vmatprep.subr.bf16.mxu0 0
    %4612 = vmatpush1.bf16.msra.mxu0 0
    %4613 = vmatprep.subr.bf16.mxu0 0
    %4614 = vmatpush1.bf16.msra.mxu0 0
    %4615 = vmatprep.subr.bf16.mxu0 0
    %4616 = vmatpush1.bf16.msra.mxu0 0
    %4617 = vmatprep.subr.bf16.mxu0 0
    %4618 = vmatpush1.bf16.msra.mxu0 0
    %4619 = vmatprep.subr.bf16.mxu0 0
    %4620 = vmatpush1.bf16.msra.mxu0 %v4508
    %4621 = vmatprep.subr.bf16.mxu0 0
    %4622 = vmatpush1.bf16.msra.mxu0 %v4507
    %4623 = vmatprep.subr.bf16.mxu0 0
    %4624 = vmatpush2.bf16.msra.mxu0 0
    %4625 = vmatprep.subr.bf16.mxu0 0
    %4626 = vmatpush2.bf16.msra.mxu0 0
    %4627 = vmatprep.subr.bf16.mxu0 0
    %4628 = vmatpush2.bf16.msra.mxu0 0
    %4629 = vmatprep.subr.bf16.mxu0 0
    %4630 = vmatpush2.bf16.msra.mxu0 0
    %4631 = vmatprep.subr.bf16.mxu0 0
    %4632 = vmatpush2.bf16.msra.mxu0 0
    %4633 = vmatprep.subr.bf16.mxu0 0
    %4634 = vmatpush2.bf16.msra.mxu0 0
    %4635 = vmatprep.subr.bf16.mxu0 0
    %4636 = vmatpush2.bf16.msra.mxu0 0
    %4637 = vmatprep.subr.bf16.mxu0 0
    %4638 = vmatpush2.bf16.msra.mxu0 0
    %4639 = vmatprep.mubr.bf16.mxu0 0
    %4640 = vmatmul.mubr.bf16.gmra.mxu0 %v4512
    %v4641 = vpop.f32.mrf.mxu0
    %v4642 = vadd.f32 0.0, %v4641
    %v4643 = vpop.f32.mrf.mxu0
    %v4644 = vpop.f32.mrf.mxu0
    %v4645 = vadd.f32 0.0, %v4644
    %v4646 = vpop.f32.mrf.mxu0
    %4647 = vmatprep.mubr.bf16.mxu0 0
    %4648 = vmatmul.mubr.bf16.gmra.mxu0 %v4515
    %v4649 = vpop.f32.mrf.mxu0
    %v4650 = vadd.f32 0.0, %v4649
    %v4651 = vpop.f32.mrf.mxu0
    %v4652 = vpop.f32.mrf.mxu0
    %v4653 = vadd.f32 0.0, %v4652
    %v4654 = vpop.f32.mrf.mxu0
    %4655 = vmatprep.mubr.bf16.mxu0 0
    %4656 = vmatmul.mubr.bf16.gmra.mxu0 %v4518
    %v4657 = vpop.f32.mrf.mxu0
    %v4658 = vadd.f32 0.0, %v4657
    %v4659 = vpop.f32.mrf.mxu0
    %v4660 = vpop.f32.mrf.mxu0
    %v4661 = vadd.f32 0.0, %v4660
    %v4662 = vpop.f32.mrf.mxu0
    %4663 = vmatprep.mubr.bf16.mxu0 0
    %4664 = vmatmul.mubr.bf16.gmra.mxu0 %v4521
    %v4665 = vpop.f32.mrf.mxu0
    %v4666 = vadd.f32 0.0, %v4665
    %v4667 = vpop.f32.mrf.mxu0
    %v4668 = vpop.f32.mrf.mxu0
    %v4669 = vadd.f32 0.0, %v4668
    %v4670 = vpop.f32.mrf.mxu0
    %4671 = vmatprep.mubr.bf16.mxu0 0
    %4672 = vmatmul.mubr.bf16.gmra.mxu0 %v4524
    %v4673 = vpop.f32.mrf.mxu0
    %v4674 = vadd.f32 0.0, %v4673
    %v4675 = vpop.f32.mrf.mxu0
    %v4676 = vpop.f32.mrf.mxu0
    %v4677 = vadd.f32 0.0, %v4676
    %v4678 = vpop.f32.mrf.mxu0
    %4679 = vmatprep.mubr.bf16.mxu0 0
    %4680 = vmatmul.mubr.bf16.gmra.mxu0 %v4527
    %v4681 = vpop.f32.mrf.mxu0
    %v4682 = vadd.f32 0.0, %v4681
    %v4683 = vpop.f32.mrf.mxu0
    %v4684 = vpop.f32.mrf.mxu0
    %v4685 = vadd.f32 0.0, %v4684
    %v4686 = vpop.f32.mrf.mxu0
    %4687 = vmatprep.mubr.bf16.mxu0 0
    %4688 = vmatmul.mubr.bf16.gmra.mxu0 %v4530
    %v4689 = vpop.f32.mrf.mxu0
    %v4690 = vadd.f32 0.0, %v4689
    %v4691 = vpop.f32.mrf.mxu0
    %v4692 = vpop.f32.mrf.mxu0
    %v4693 = vadd.f32 0.0, %v4692
    %v4694 = vpop.f32.mrf.mxu0
    %4695 = vmatprep.mubr.bf16.mxu0 0
    %4696 = vmatmul.mubr.bf16.gmra.mxu0 %v4533
    %v4697 = vpop.f32.mrf.mxu0
    %v4698 = vadd.f32 0.0, %v4697
    %v4699 = vpop.f32.mrf.mxu0
    %v4700 = vpop.f32.mrf.mxu0
    %v4701 = vadd.f32 0.0, %v4700
    %v4702 = vpop.f32.mrf.mxu0
    %4703 = vmatprep.mubr.bf16.mxu0 0
    %4704 = vmatmul.mubr.bf16.gmra.mxu0 %v4536
    %v4705 = vpop.f32.mrf.mxu0
    %v4706 = vadd.f32 0.0, %v4705
    %v4707 = vpop.f32.mrf.mxu0
    %v4708 = vpop.f32.mrf.mxu0
    %v4709 = vadd.f32 0.0, %v4708
    %v4710 = vpop.f32.mrf.mxu0
    %4711 = vmatprep.mubr.bf16.mxu0 0
    %4712 = vmatmul.mubr.bf16.gmra.mxu0 %v4539
    %v4713 = vpop.f32.mrf.mxu0
    %v4714 = vadd.f32 0.0, %v4713
    %v4715 = vpop.f32.mrf.mxu0
    %v4716 = vpop.f32.mrf.mxu0
    %v4717 = vadd.f32 0.0, %v4716
    %v4718 = vpop.f32.mrf.mxu0
    %4719 = vmatprep.mubr.bf16.mxu0 0
    %4720 = vmatmul.mubr.bf16.gmra.mxu0 %v4542
    %v4721 = vpop.f32.mrf.mxu0
    %v4722 = vadd.f32 0.0, %v4721
    %v4723 = vpop.f32.mrf.mxu0
    %v4724 = vpop.f32.mrf.mxu0
    %v4725 = vadd.f32 0.0, %v4724
    %v4726 = vpop.f32.mrf.mxu0
    %4727 = vmatprep.mubr.bf16.mxu0 0
    %4728 = vmatmul.mubr.bf16.gmra.mxu0 %v4545
    %v4729 = vpop.f32.mrf.mxu0
    %v4730 = vadd.f32 0.0, %v4729
    %v4731 = vpop.f32.mrf.mxu0
    %v4732 = vpop.f32.mrf.mxu0
    %v4733 = vadd.f32 0.0, %v4732
    %v4734 = vpop.f32.mrf.mxu0
    %4735 = vmatprep.mubr.bf16.mxu0 0
    %4736 = vmatmul.mubr.bf16.gmra.mxu0 %v4548
    %v4737 = vpop.f32.mrf.mxu0
    %v4738 = vadd.f32 0.0, %v4737
    %v4739 = vpop.f32.mrf.mxu0
    %v4740 = vpop.f32.mrf.mxu0
    %v4741 = vadd.f32 0.0, %v4740
    %v4742 = vpop.f32.mrf.mxu0
    %4743 = vmatprep.mubr.bf16.mxu0 0
    %4744 = vmatmul.mubr.bf16.gmra.mxu0 %v4551
    %v4745 = vpop.f32.mrf.mxu0
    %v4746 = vadd.f32 0.0, %v4745
    %v4747 = vpop.f32.mrf.mxu0
    %v4748 = vpop.f32.mrf.mxu0
    %v4749 = vadd.f32 0.0, %v4748
    %v4750 = vpop.f32.mrf.mxu0
    %4751 = vmatprep.mubr.bf16.mxu0 0
    %4752 = vmatmul.mubr.bf16.gmra.mxu0 %v4554
    %v4753 = vpop.f32.mrf.mxu0
    %v4754 = vadd.f32 0.0, %v4753
    %v4755 = vpop.f32.mrf.mxu0
    %v4756 = vpop.f32.mrf.mxu0
    %v4757 = vadd.f32 0.0, %v4756
    %v4758 = vpop.f32.mrf.mxu0
    %4759 = vmatprep.mubr.bf16.mxu0 0
    %4760 = vmatmul.mubr.bf16.gmra.mxu0 %v4557
    %v4761 = vpop.f32.mrf.mxu0
    %v4762 = vadd.f32 0.0, %v4761
    %v4763 = vpop.f32.mrf.mxu0
    %v4764 = vpop.f32.mrf.mxu0
    %v4765 = vadd.f32 0.0, %v4764
    %v4766 = vpop.f32.mrf.mxu0
    %4767 = vmatprep.mubr.bf16.mxu0 0
    %4768 = vmatmul.mubr.bf16.gmra.mxu0 %v4560
    %v4769 = vpop.f32.mrf.mxu0
    %v4770 = vadd.f32 0.0, %v4769
    %v4771 = vpop.f32.mrf.mxu0
    %v4772 = vpop.f32.mrf.mxu0
    %v4773 = vadd.f32 0.0, %v4772
    %v4774 = vpop.f32.mrf.mxu0
    %4775 = vmatprep.mubr.bf16.mxu0 0
    %4776 = vmatmul.mubr.bf16.gmra.mxu0 %v4563
    %v4777 = vpop.f32.mrf.mxu0
    %v4778 = vadd.f32 0.0, %v4777
    %v4779 = vpop.f32.mrf.mxu0
    %v4780 = vpop.f32.mrf.mxu0
    %v4781 = vadd.f32 0.0, %v4780
    %v4782 = vpop.f32.mrf.mxu0
    %4783 = vmatprep.mubr.bf16.mxu0 0
    %4784 = vmatmul.mubr.bf16.gmra.mxu0 %v4566
    %v4785 = vpop.f32.mrf.mxu0
    %v4786 = vadd.f32 0.0, %v4785
    %v4787 = vpop.f32.mrf.mxu0
    %v4788 = vpop.f32.mrf.mxu0
    %v4789 = vadd.f32 0.0, %v4788
    %v4790 = vpop.f32.mrf.mxu0
    %4791 = vmatprep.mubr.bf16.mxu0 0
    %4792 = vmatmul.mubr.bf16.gmra.mxu0 %v4569
    %v4793 = vpop.f32.mrf.mxu0
    %v4794 = vadd.f32 0.0, %v4793
    %v4795 = vpop.f32.mrf.mxu0
    %v4796 = vpop.f32.mrf.mxu0
    %v4797 = vadd.f32 0.0, %v4796
    %v4798 = vpop.f32.mrf.mxu0
    %4799 = vmatprep.mubr.bf16.mxu0 0
    %4800 = vmatmul.mubr.bf16.gmra.mxu0 %v4572
    %v4801 = vpop.f32.mrf.mxu0
    %v4802 = vadd.f32 0.0, %v4801
    %v4803 = vpop.f32.mrf.mxu0
    %v4804 = vpop.f32.mrf.mxu0
    %v4805 = vadd.f32 0.0, %v4804
    %v4806 = vpop.f32.mrf.mxu0
    %4807 = vmatprep.mubr.bf16.mxu0 0
    %4808 = vmatmul.mubr.bf16.gmra.mxu0 %v4575
    %v4809 = vpop.f32.mrf.mxu0
    %v4810 = vadd.f32 0.0, %v4809
    %v4811 = vpop.f32.mrf.mxu0
    %v4812 = vpop.f32.mrf.mxu0
    %v4813 = vadd.f32 0.0, %v4812
    %v4814 = vpop.f32.mrf.mxu0
    %4815 = vmatprep.mubr.bf16.mxu0 0
    %4816 = vmatmul.mubr.bf16.gmra.mxu0 %v4578
    %v4817 = vpop.f32.mrf.mxu0
    %v4818 = vadd.f32 0.0, %v4817
    %v4819 = vpop.f32.mrf.mxu0
    %v4820 = vpop.f32.mrf.mxu0
    %v4821 = vadd.f32 0.0, %v4820
    %v4822 = vpop.f32.mrf.mxu0
    %4823 = vmatprep.mubr.bf16.mxu0 0
    %4824 = vmatmul.mubr.bf16.gmra.mxu0 %v4581
    %v4825 = vpop.f32.mrf.mxu0
    %v4826 = vadd.f32 0.0, %v4825
    %v4827 = vpop.f32.mrf.mxu0
    %v4828 = vpop.f32.mrf.mxu0
    %v4829 = vadd.f32 0.0, %v4828
    %v4830 = vpop.f32.mrf.mxu0
    %4831 = vmatprep.mubr.bf16.mxu0 0
    %4832 = vmatmul.mubr.bf16.gmra.mxu0 %v4584
    %v4833 = vpop.f32.mrf.mxu0
    %v4834 = vadd.f32 0.0, %v4833
    %v4835 = vpop.f32.mrf.mxu0
    %v4836 = vpop.f32.mrf.mxu0
    %v4837 = vadd.f32 0.0, %v4836
    %v4838 = vpop.f32.mrf.mxu0
    %4839 = vmatprep.mubr.bf16.mxu0 0
    %4840 = vmatmul.mubr.bf16.gmra.mxu0 %v4587
    %v4841 = vpop.f32.mrf.mxu0
    %v4842 = vadd.f32 0.0, %v4841
    %v4843 = vpop.f32.mrf.mxu0
    %v4844 = vpop.f32.mrf.mxu0
    %v4845 = vadd.f32 0.0, %v4844
    %v4846 = vpop.f32.mrf.mxu0
    %4847 = vmatprep.mubr.bf16.mxu0 0
    %4848 = vmatmul.mubr.bf16.gmra.mxu0 %v4590
    %v4849 = vpop.f32.mrf.mxu0
    %v4850 = vadd.f32 0.0, %v4849
    %v4851 = vpop.f32.mrf.mxu0
    %v4852 = vpop.f32.mrf.mxu0
    %v4853 = vadd.f32 0.0, %v4852
    %v4854 = vpop.f32.mrf.mxu0
    %4855 = vmatprep.mubr.bf16.mxu0 0
    %4856 = vmatmul.mubr.bf16.gmra.mxu0 %v4593
    %v4857 = vpop.f32.mrf.mxu0
    %v4858 = vadd.f32 0.0, %v4857
    %v4859 = vpop.f32.mrf.mxu0
    %v4860 = vpop.f32.mrf.mxu0
    %v4861 = vadd.f32 0.0, %v4860
    %v4862 = vpop.f32.mrf.mxu0
    %4863 = vmatprep.mubr.bf16.mxu0 0
    %4864 = vmatmul.mubr.bf16.gmra.mxu0 %v4596
    %v4865 = vpop.f32.mrf.mxu0
    %v4866 = vadd.f32 0.0, %v4865
    %v4867 = vpop.f32.mrf.mxu0
    %v4868 = vpop.f32.mrf.mxu0
    %v4869 = vadd.f32 0.0, %v4868
    %v4870 = vpop.f32.mrf.mxu0
    %4871 = vmatprep.mubr.bf16.mxu0 0
    %4872 = vmatmul.mubr.bf16.gmra.mxu0 %v4599
    %v4873 = vpop.f32.mrf.mxu0
    %v4874 = vadd.f32 0.0, %v4873
    %v4875 = vpop.f32.mrf.mxu0
    %v4876 = vpop.f32.mrf.mxu0
    %v4877 = vadd.f32 0.0, %v4876
    %v4878 = vpop.f32.mrf.mxu0
    %4879 = vmatprep.mubr.bf16.mxu0 0
    %4880 = vmatmul.mubr.bf16.gmra.mxu0 %v4602
    %v4881 = vpop.f32.mrf.mxu0
    %v4882 = vadd.f32 0.0, %v4881
    %v4883 = vpop.f32.mrf.mxu0
    %v4884 = vpop.f32.mrf.mxu0
    %v4885 = vadd.f32 0.0, %v4884
    %v4886 = vpop.f32.mrf.mxu0
    %4887 = vmatprep.mubr.bf16.mxu0 0
    %4888 = vmatmul.mubr.bf16.gmra.mxu0 %v4605
    %v4889 = vpop.f32.mrf.mxu0
    %v4890 = vadd.f32 0.0, %v4889
    %v4891 = vpop.f32.mrf.mxu0
    %v4892 = vpop.f32.mrf.mxu0
    %v4893 = vadd.f32 0.0, %v4892
    %v4894 = vpop.f32.mrf.mxu0
    %4895 = vdwg.mxu0
    %v4896 = vadd.f32 %v4334, %v4642
    %v4897 = vadd.f32 %v4335, %v4645
    %v4898 = vadd.f32 %v4336, %v4650
    %v4899 = vadd.f32 %v4337, %v4653
    %v4900 = vadd.f32 %v4338, %v4658
    %v4901 = vadd.f32 %v4339, %v4661
    %v4902 = vadd.f32 %v4340, %v4666
    %v4903 = vadd.f32 %v4341, %v4669
    %v4904 = vadd.f32 %v4342, %v4674
    %v4905 = vadd.f32 %v4343, %v4677
    %v4906 = vadd.f32 %v4344, %v4682
    %v4907 = vadd.f32 %v4345, %v4685
    %v4908 = vadd.f32 %v4346, %v4690
    %v4909 = vadd.f32 %v4347, %v4693
    %v4910 = vadd.f32 %v4348, %v4698
    %v4911 = vadd.f32 %v4349, %v4701
    %v4912 = vadd.f32 %v4350, %v4706
    %v4913 = vadd.f32 %v4351, %v4709
    %v4914 = vadd.f32 %v4352, %v4714
    %v4915 = vadd.f32 %v4353, %v4717
    %v4916 = vadd.f32 %v4354, %v4722
    %v4917 = vadd.f32 %v4355, %v4725
    %v4918 = vadd.f32 %v4356, %v4730
    %v4919 = vadd.f32 %v4357, %v4733
    %v4920 = vadd.f32 %v4358, %v4738
    %v4921 = vadd.f32 %v4359, %v4741
    %v4922 = vadd.f32 %v4360, %v4746
    %v4923 = vadd.f32 %v4361, %v4749
    %v4924 = vadd.f32 %v4362, %v4754
    %v4925 = vadd.f32 %v4363, %v4757
    %v4926 = vadd.f32 %v4364, %v4762
    %v4927 = vadd.f32 %v4365, %v4765
    %v4928 = vadd.f32 %v4366, %v4770
    %v4929 = vadd.f32 %v4367, %v4773
    %v4930 = vadd.f32 %v4368, %v4778
    %v4931 = vadd.f32 %v4369, %v4781
    %v4932 = vadd.f32 %v4370, %v4786
    %v4933 = vadd.f32 %v4371, %v4789
    %v4934 = vadd.f32 %v4372, %v4794
    %v4935 = vadd.f32 %v4373, %v4797
    %v4936 = vadd.f32 %v4374, %v4802
    %v4937 = vadd.f32 %v4375, %v4805
    %v4938 = vadd.f32 %v4376, %v4810
    %v4939 = vadd.f32 %v4377, %v4813
    %v4940 = vadd.f32 %v4378, %v4818
    %v4941 = vadd.f32 %v4379, %v4821
    %v4942 = vadd.f32 %v4380, %v4826
    %v4943 = vadd.f32 %v4381, %v4829
    %v4944 = vadd.f32 %v4382, %v4834
    %v4945 = vadd.f32 %v4383, %v4837
    %v4946 = vadd.f32 %v4384, %v4842
    %v4947 = vadd.f32 %v4385, %v4845
    %v4948 = vadd.f32 %v4386, %v4850
    %v4949 = vadd.f32 %v4387, %v4853
    %v4950 = vadd.f32 %v4388, %v4858
    %v4951 = vadd.f32 %v4389, %v4861
    %v4952 = vadd.f32 %v4390, %v4866
    %v4953 = vadd.f32 %v4391, %v4869
    %v4954 = vadd.f32 %v4392, %v4874
    %v4955 = vadd.f32 %v4393, %v4877
    %v4956 = vadd.f32 %v4394, %v4882
    %v4957 = vadd.f32 %v4395, %v4885
    %v4958 = vadd.f32 %v4396, %v4890
    %v4959 = vadd.f32 %v4397, %v4893
    %v4960 = vld [vmem:[%s2] sm:$0x1]
    %v4962 = vlaneseq
    %v4963 = vshrl.u32 %v4962, 7
    %v4964 = vsub.s32 0, %v4963
    %v4965 = vrot.slane %v4960, %v4964
    %v4967 = vadd.f32 %v4896, %v4965
    %v4968 = vadd.f32 %v4897, %v4965
    %v4969 = vadd.f32 %v4898, %v4965
    %v4970 = vadd.f32 %v4899, %v4965
    %v4971 = vadd.f32 %v4900, %v4965
    %v4972 = vadd.f32 %v4901, %v4965
    %v4973 = vadd.f32 %v4902, %v4965
    %v4974 = vadd.f32 %v4903, %v4965
    %v4975 = vadd.f32 %v4904, %v4965
    %v4976 = vadd.f32 %v4905, %v4965
    %v4977 = vadd.f32 %v4906, %v4965
    %v4978 = vadd.f32 %v4907, %v4965
    %v4979 = vadd.f32 %v4908, %v4965
    %v4980 = vadd.f32 %v4909, %v4965
    %v4981 = vadd.f32 %v4910, %v4965
    %v4982 = vadd.f32 %v4911, %v4965
    %v4983 = vadd.f32 %v4912, %v4965
    %v4984 = vadd.f32 %v4913, %v4965
    %v4985 = vadd.f32 %v4914, %v4965
    %v4986 = vadd.f32 %v4915, %v4965
    %v4987 = vadd.f32 %v4916, %v4965
    %v4988 = vadd.f32 %v4917, %v4965
    %v4989 = vadd.f32 %v4918, %v4965
    %v4990 = vadd.f32 %v4919, %v4965
    %v4991 = vadd.f32 %v4920, %v4965
    %v4992 = vadd.f32 %v4921, %v4965
    %v4993 = vadd.f32 %v4922, %v4965
    %v4994 = vadd.f32 %v4923, %v4965
    %v4995 = vadd.f32 %v4924, %v4965
    %v4996 = vadd.f32 %v4925, %v4965
    %v4997 = vadd.f32 %v4926, %v4965
    %v4998 = vadd.f32 %v4927, %v4965
    %v4999 = vadd.f32 %v4928, %v4965
    %v5000 = vadd.f32 %v4929, %v4965
    %v5001 = vadd.f32 %v4930, %v4965
    %v5002 = vadd.f32 %v4931, %v4965
    %v5003 = vadd.f32 %v4932, %v4965
    %v5004 = vadd.f32 %v4933, %v4965
    %v5005 = vadd.f32 %v4934, %v4965
    %v5006 = vadd.f32 %v4935, %v4965
    %v5007 = vadd.f32 %v4936, %v4965
    %v5008 = vadd.f32 %v4937, %v4965
    %v5009 = vadd.f32 %v4938, %v4965
    %v5010 = vadd.f32 %v4939, %v4965
    %v5011 = vadd.f32 %v4940, %v4965
    %v5012 = vadd.f32 %v4941, %v4965
    %v5013 = vadd.f32 %v4942, %v4965
    %v5014 = vadd.f32 %v4943, %v4965
    %v5015 = vadd.f32 %v4944, %v4965
    %v5016 = vadd.f32 %v4945, %v4965
    %v5017 = vadd.f32 %v4946, %v4965
    %v5018 = vadd.f32 %v4947, %v4965
    %v5019 = vadd.f32 %v4948, %v4965
    %v5020 = vadd.f32 %v4949, %v4965
    %v5021 = vadd.f32 %v4950, %v4965
    %v5022 = vadd.f32 %v4951, %v4965
    %v5023 = vadd.f32 %v4952, %v4965
    %v5024 = vadd.f32 %v4953, %v4965
    %v5025 = vadd.f32 %v4954, %v4965
    %v5026 = vadd.f32 %v4955, %v4965
    %v5027 = vadd.f32 %v4956, %v4965
    %v5028 = vadd.f32 %v4957, %v4965
    %v5029 = vadd.f32 %v4958, %v4965
    %v5030 = vadd.f32 %v4959, %v4965
    %v5031 = vmax.f32 %v4967, %v4969
    %v5032 = vmax.f32 %v4968, %v4970
    %v5033 = vmax.f32 %v4971, %v4973
    %v5034 = vmax.f32 %v4972, %v4974
    %v5035 = vmax.f32 %v4975, %v4977
    %v5036 = vmax.f32 %v4976, %v4978
    %v5037 = vmax.f32 %v4979, %v4981
    %v5038 = vmax.f32 %v4980, %v4982
    %v5039 = vmax.f32 %v4983, %v4985
    %v5040 = vmax.f32 %v4984, %v4986
    %v5041 = vmax.f32 %v4987, %v4989
    %v5042 = vmax.f32 %v4988, %v4990
    %v5043 = vmax.f32 %v4991, %v4993
    %v5044 = vmax.f32 %v4992, %v4994
    %v5045 = vmax.f32 %v4995, %v4997
    %v5046 = vmax.f32 %v4996, %v4998
    %v5047 = vmax.f32 %v4999, %v5001
    %v5048 = vmax.f32 %v5000, %v5002
    %v5049 = vmax.f32 %v5003, %v5005
    %v5050 = vmax.f32 %v5004, %v5006
    %v5051 = vmax.f32 %v5007, %v5009
    %v5052 = vmax.f32 %v5008, %v5010
    %v5053 = vmax.f32 %v5011, %v5013
    %v5054 = vmax.f32 %v5012, %v5014
    %v5055 = vmax.f32 %v5015, %v5017
    %v5056 = vmax.f32 %v5016, %v5018
    %v5057 = vmax.f32 %v5019, %v5021
    %v5058 = vmax.f32 %v5020, %v5022
    %v5059 = vmax.f32 %v5023, %v5025
    %v5060 = vmax.f32 %v5024, %v5026
    %v5061 = vmax.f32 %v5027, %v5029
    %v5062 = vmax.f32 %v5028, %v5030
    %5063 = vst.msk [vmem:[#allocation2] sm:$0xff] %vm241, %v5031
    %5064 = vst.msk [vmem:[#allocation2 + $0x8] sm:$0xff] %vm241, %v5032
    %5065 = vst.msk [vmem:[#allocation2 + $0x10] sm:$0xff] %vm241, %v5033
    %5066 = vst.msk [vmem:[#allocation2 + $0x18] sm:$0xff] %vm241, %v5034
    %5067 = vst.msk [vmem:[#allocation2 + $0x20] sm:$0xff] %vm241, %v5035
    %5068 = vst.msk [vmem:[#allocation2 + $0x28] sm:$0xff] %vm241, %v5036
    %5069 = vst.msk [vmem:[#allocation2 + $0x30] sm:$0xff] %vm241, %v5037
    %5070 = vst.msk [vmem:[#allocation2 + $0x38] sm:$0xff] %vm241, %v5038
    %5071 = vst.msk [vmem:[#allocation2 + $0x40] sm:$0xff] %vm241, %v5039
    %5072 = vst.msk [vmem:[#allocation2 + $0x48] sm:$0xff] %vm241, %v5040
    %5073 = vst.msk [vmem:[#allocation2 + $0x50] sm:$0xff] %vm241, %v5041
    %5074 = vst.msk [vmem:[#allocation2 + $0x58] sm:$0xff] %vm241, %v5042
    %5075 = vst.msk [vmem:[#allocation2 + $0x60] sm:$0xff] %vm241, %v5043
    %5076 = vst.msk [vmem:[#allocation2 + $0x68] sm:$0xff] %vm241, %v5044
    %5077 = vst.msk [vmem:[#allocation2 + $0x70] sm:$0xff] %vm241, %v5045
    %5078 = vst.msk [vmem:[#allocation2 + $0x78] sm:$0xff] %vm241, %v5046
    %5079 = vst.msk [vmem:[#allocation2 + $0x80] sm:$0xff] %vm241, %v5047
    %5080 = vst.msk [vmem:[#allocation2 + $0x88] sm:$0xff] %vm241, %v5048
    %5081 = vst.msk [vmem:[#allocation2 + $0x90] sm:$0xff] %vm241, %v5049
    %5082 = vst.msk [vmem:[#allocation2 + $0x98] sm:$0xff] %vm241, %v5050
    %5083 = vst.msk [vmem:[#allocation2 + $0xa0] sm:$0xff] %vm241, %v5051
    %5084 = vst.msk [vmem:[#allocation2 + $0xa8] sm:$0xff] %vm241, %v5052
    %5085 = vst.msk [vmem:[#allocation2 + $0xb0] sm:$0xff] %vm241, %v5053
    %5086 = vst.msk [vmem:[#allocation2 + $0xb8] sm:$0xff] %vm241, %v5054
    %5087 = vst.msk [vmem:[#allocation2 + $0xc0] sm:$0xff] %vm241, %v5055
    %5088 = vst.msk [vmem:[#allocation2 + $0xc8] sm:$0xff] %vm241, %v5056
    %5089 = vst.msk [vmem:[#allocation2 + $0xd0] sm:$0xff] %vm241, %v5057
    %5090 = vst.msk [vmem:[#allocation2 + $0xd8] sm:$0xff] %vm241, %v5058
    %5091 = vst.msk [vmem:[#allocation2 + $0xe0] sm:$0xff] %vm241, %v5059
    %5092 = vst.msk [vmem:[#allocation2 + $0xe8] sm:$0xff] %vm241, %v5060
    %5093 = vst.msk [vmem:[#allocation2 + $0xf0] sm:$0xff] %vm241, %v5061
    %5094 = vst.msk [vmem:[#allocation2 + $0xf8] sm:$0xff] %vm241, %v5062
    %v5095 = vld [vmem:[#allocation2] ss:$2 sm:$0xff]
    %s5096 = scalar_lea.vmem [#allocation2], 16
    %v5097 = vld [vmem:[%s5096] ss:$2 sm:$0xff]
    %s5098 = scalar_lea.vmem [#allocation2], 32
    %v5099 = vld [vmem:[%s5098] ss:$2 sm:$0xff]
    %s5100 = scalar_lea.vmem [#allocation2], 48
    %v5101 = vld [vmem:[%s5100] ss:$2 sm:$0xff]
    %s5102 = scalar_lea.vmem [#allocation2], 64
    %v5103 = vld [vmem:[%s5102] ss:$2 sm:$0xff]
    %s5104 = scalar_lea.vmem [#allocation2], 80
    %v5105 = vld [vmem:[%s5104] ss:$2 sm:$0xff]
    %s5106 = scalar_lea.vmem [#allocation2], 96
    %v5107 = vld [vmem:[%s5106] ss:$2 sm:$0xff]
    %s5108 = scalar_lea.vmem [#allocation2], 112
    %v5109 = vld [vmem:[%s5108] ss:$2 sm:$0xff]
    %s5110 = scalar_lea.vmem [#allocation2], 128
    %v5111 = vld [vmem:[%s5110] ss:$2 sm:$0xff]
    %s5112 = scalar_lea.vmem [#allocation2], 144
    %v5113 = vld [vmem:[%s5112] ss:$2 sm:$0xff]
    %s5114 = scalar_lea.vmem [#allocation2], 160
    %v5115 = vld [vmem:[%s5114] ss:$2 sm:$0xff]
    %s5116 = scalar_lea.vmem [#allocation2], 176
    %v5117 = vld [vmem:[%s5116] ss:$2 sm:$0xff]
    %s5118 = scalar_lea.vmem [#allocation2], 192
    %v5119 = vld [vmem:[%s5118] ss:$2 sm:$0xff]
    %s5120 = scalar_lea.vmem [#allocation2], 208
    %v5121 = vld [vmem:[%s5120] ss:$2 sm:$0xff]
    %s5122 = scalar_lea.vmem [#allocation2], 224
    %v5123 = vld [vmem:[%s5122] ss:$2 sm:$0xff]
    %s5124 = scalar_lea.vmem [#allocation2], 240
    %v5125 = vld [vmem:[%s5124] ss:$2 sm:$0xff]
    %s5126 = scalar_lea.vmem [#allocation2], 1
    %v5127 = vld [vmem:[%s5126] ss:$2 sm:$0xff]
    %s5128 = scalar_lea.vmem [#allocation2], 17
    %v5129 = vld [vmem:[%s5128] ss:$2 sm:$0xff]
    %s5130 = scalar_lea.vmem [#allocation2], 33
    %v5131 = vld [vmem:[%s5130] ss:$2 sm:$0xff]
    %s5132 = scalar_lea.vmem [#allocation2], 49
    %v5133 = vld [vmem:[%s5132] ss:$2 sm:$0xff]
    %s5134 = scalar_lea.vmem [#allocation2], 65
    %v5135 = vld [vmem:[%s5134] ss:$2 sm:$0xff]
    %s5136 = scalar_lea.vmem [#allocation2], 81
    %v5137 = vld [vmem:[%s5136] ss:$2 sm:$0xff]
    %s5138 = scalar_lea.vmem [#allocation2], 97
    %v5139 = vld [vmem:[%s5138] ss:$2 sm:$0xff]
    %s5140 = scalar_lea.vmem [#allocation2], 113
    %v5141 = vld [vmem:[%s5140] ss:$2 sm:$0xff]
    %s5142 = scalar_lea.vmem [#allocation2], 129
    %v5143 = vld [vmem:[%s5142] ss:$2 sm:$0xff]
    %s5144 = scalar_lea.vmem [#allocation2], 145
    %v5145 = vld [vmem:[%s5144] ss:$2 sm:$0xff]
    %s5146 = scalar_lea.vmem [#allocation2], 161
    %v5147 = vld [vmem:[%s5146] ss:$2 sm:$0xff]
    %s5148 = scalar_lea.vmem [#allocation2], 177
    %v5149 = vld [vmem:[%s5148] ss:$2 sm:$0xff]
    %s5150 = scalar_lea.vmem [#allocation2], 193
    %v5151 = vld [vmem:[%s5150] ss:$2 sm:$0xff]
    %s5152 = scalar_lea.vmem [#allocation2], 209
    %v5153 = vld [vmem:[%s5152] ss:$2 sm:$0xff]
    %s5154 = scalar_lea.vmem [#allocation2], 225
    %v5155 = vld [vmem:[%s5154] ss:$2 sm:$0xff]
    %s5156 = scalar_lea.vmem [#allocation2], 241
    %v5157 = vld [vmem:[%s5156] ss:$2 sm:$0xff]
    %v5158 = vmax.f32 %v5095, %v5127
    %v5159 = vmax.f32 %v5097, %v5129
    %v5160 = vmax.f32 %v5099, %v5131
    %v5161 = vmax.f32 %v5101, %v5133
    %v5162 = vmax.f32 %v5103, %v5135
    %v5163 = vmax.f32 %v5105, %v5137
    %v5164 = vmax.f32 %v5107, %v5139
    %v5165 = vmax.f32 %v5109, %v5141
    %v5166 = vmax.f32 %v5111, %v5143
    %v5167 = vmax.f32 %v5113, %v5145
    %v5168 = vmax.f32 %v5115, %v5147
    %v5169 = vmax.f32 %v5117, %v5149
    %v5170 = vmax.f32 %v5119, %v5151
    %v5171 = vmax.f32 %v5121, %v5153
    %v5172 = vmax.f32 %v5123, %v5155
    %v5173 = vmax.f32 %v5125, %v5157
    %v5174 = vmax.f32 %v5158, 0.0
    %v5175 = vmax.f32 %v5159, 0.0
    %v5176 = vmax.f32 %v5160, 0.0
    %v5177 = vmax.f32 %v5161, 0.0
    %v5178 = vmax.f32 %v5162, 0.0
    %v5179 = vmax.f32 %v5163, 0.0
    %v5180 = vmax.f32 %v5164, 0.0
    %v5181 = vmax.f32 %v5165, 0.0
    %v5182 = vmax.f32 %v5166, 0.0
    %v5183 = vmax.f32 %v5167, 0.0
    %v5184 = vmax.f32 %v5168, 0.0
    %v5185 = vmax.f32 %v5169, 0.0
    %v5186 = vmax.f32 %v5170, 0.0
    %v5187 = vmax.f32 %v5171, 0.0
    %v5188 = vmax.f32 %v5172, 0.0
    %v5189 = vmax.f32 %v5173, 0.0
    %5190 = vst.msk [vmem:[#allocation3] sm:$0xff] %vm241, 0.0
    %5191 = vst.msk [vmem:[#allocation3 + $0x8] sm:$0xff] %vm241, 0.0
    %vm5192 = vcmask 253952
    %5193 = vst.msk [vmem:[#allocation3 + $0x10] sm:$0x1] %vm5192, 0.0
    %5194 = vst.msk [vmem:[#allocation3 + $0x18] sm:$0xff] %vm241, 0.0
    %5195 = vst.msk [vmem:[#allocation3 + $0x20] sm:$0xff] %vm241, 0.0
    %5196 = vst.msk [vmem:[#allocation3 + $0x28] sm:$0x1] %vm5192, 0.0
    %5197 = vst.msk [vmem:[#allocation3 + $0x30] sm:$0xff] %vm241, 0.0
    %5198 = vst.msk [vmem:[#allocation3 + $0x38] sm:$0xff] %vm241, 0.0
    %5199 = vst.msk [vmem:[#allocation3 + $0x40] sm:$0x1] %vm5192, 0.0
    %5200 = vst.msk [vmem:[#allocation3 + $0x48] sm:$0xff] %vm241, 0.0
    %5201 = vst.msk [vmem:[#allocation3 + $0x50] sm:$0xff] %vm241, 0.0
    %5202 = vst.msk [vmem:[#allocation3 + $0x58] sm:$0x1] %vm5192, 0.0
    %5203 = vst.msk [vmem:[#allocation3 + $0x60] sm:$0xff] %vm241, 0.0
    %5204 = vst.msk [vmem:[#allocation3 + $0x68] sm:$0xff] %vm241, 0.0
    %5205 = vst.msk [vmem:[#allocation3 + $0x70] sm:$0x1] %vm5192, 0.0
    %5206 = vst.msk [vmem:[#allocation3 + $0x78] sm:$0xff] %vm241, 0.0
    %5207 = vst.msk [vmem:[#allocation3 + $0x80] sm:$0xff] %vm241, 0.0
    %5208 = vst.msk [vmem:[#allocation3 + $0x88] sm:$0x1] %vm5192, 0.0
    %5209 = vst.msk [vmem:[#allocation3 + $0x90] sm:$0xff] %vm241, 0.0
    %5210 = vst.msk [vmem:[#allocation3 + $0x98] sm:$0xff] %vm241, 0.0
    %5211 = vst.msk [vmem:[#allocation3 + $0xa0] sm:$0x1] %vm5192, 0.0
    %5212 = vst.msk [vmem:[#allocation3 + $0xa8] sm:$0xff] %vm241, 0.0
    %5213 = vst.msk [vmem:[#allocation3 + $0xb0] sm:$0xff] %vm241, 0.0
    %5214 = vst.msk [vmem:[#allocation3 + $0xb8] sm:$0x1] %vm5192, 0.0
    %5215 = vst.msk [vmem:[#allocation3 + $0xc0] sm:$0xff] %vm241, 0.0
    %5216 = vst.msk [vmem:[#allocation3 + $0xc8] sm:$0xff] %vm241, 0.0
    %5217 = vst.msk [vmem:[#allocation3 + $0xd0] sm:$0x1] %vm5192, 0.0
    %5218 = vst.msk [vmem:[#allocation3 + $0xd8] sm:$0xff] %vm241, 0.0
    %5219 = vst.msk [vmem:[#allocation3 + $0xe0] sm:$0xff] %vm241, 0.0
    %5220 = vst.msk [vmem:[#allocation3 + $0xe8] sm:$0x1] %vm5192, 0.0
    %5221 = vst.msk [vmem:[#allocation3 + $0xf0] sm:$0xff] %vm241, 0.0
    %5222 = vst.msk [vmem:[#allocation3 + $0xf8] sm:$0xff] %vm241, 0.0
    %5223 = vst.msk [vmem:[#allocation3 + $0x100] sm:$0x1] %vm5192, 0.0
    %5224 = vst.msk [vmem:[#allocation3 + $0x108] sm:$0xff] %vm241, 0.0
    %5225 = vst.msk [vmem:[#allocation3 + $0x110] sm:$0xff] %vm241, 0.0
    %5226 = vst.msk [vmem:[#allocation3 + $0x118] sm:$0x1] %vm5192, 0.0
    %5227 = vst.msk [vmem:[#allocation3 + $0x120] sm:$0xff] %vm241, 0.0
    %5228 = vst.msk [vmem:[#allocation3 + $0x128] sm:$0xff] %vm241, 0.0
    %5229 = vst.msk [vmem:[#allocation3 + $0x130] sm:$0x1] %vm5192, 0.0
    %5230 = vst.msk [vmem:[#allocation3 + $0x138] sm:$0xff] %vm241, 0.0
    %5231 = vst.msk [vmem:[#allocation3 + $0x140] sm:$0xff] %vm241, 0.0
    %5232 = vst.msk [vmem:[#allocation3 + $0x148] sm:$0x1] %vm5192, 0.0
    %5233 = vst.msk [vmem:[#allocation3 + $0x150] sm:$0xff] %vm241, 0.0
    %5234 = vst.msk [vmem:[#allocation3 + $0x158] sm:$0xff] %vm241, 0.0
    %5235 = vst.msk [vmem:[#allocation3 + $0x160] sm:$0x1] %vm5192, 0.0
    %5236 = vst.msk [vmem:[#allocation3 + $0x168] sm:$0xff] %vm241, 0.0
    %5237 = vst.msk [vmem:[#allocation3 + $0x170] sm:$0xff] %vm241, 0.0
    %5238 = vst.msk [vmem:[#allocation3 + $0x178] sm:$0x1] %vm5192, 0.0
    %5239 = vst.msk [vmem:[#allocation3 + $0x180] sm:$0xff] %vm241, 0.0
    %5240 = vst.msk [vmem:[#allocation3 + $0x188] sm:$0xff] %vm241, 0.0
    %5241 = vst.msk [vmem:[#allocation3 + $0x190] sm:$0x1] %vm5192, 0.0
    %5242 = vst.msk [vmem:[#allocation3 + $0x198] sm:$0xff] %vm241, 0.0
    %5243 = vst.msk [vmem:[#allocation3 + $0x1a0] sm:$0xff] %vm241, 0.0
    %5244 = vst.msk [vmem:[#allocation3 + $0x1a8] sm:$0x1] %vm5192, 0.0
    %5245 = vst.msk [vmem:[#allocation3 + $0x1b0] sm:$0xff] %vm241, 0.0
    %5246 = vst.msk [vmem:[#allocation3 + $0x1b8] sm:$0xff] %vm241, 0.0
    %5247 = vst.msk [vmem:[#allocation3 + $0x1c0] sm:$0x1] %vm5192, 0.0
    %5248 = vst.msk [vmem:[#allocation3 + $0x1c8] sm:$0xff] %vm241, 0.0
    %5249 = vst.msk [vmem:[#allocation3 + $0x1d0] sm:$0xff] %vm241, 0.0
    %5250 = vst.msk [vmem:[#allocation3 + $0x1d8] sm:$0x1] %vm5192, 0.0
    %s5251 = scalar_lea.vmem [#allocation3], 24
    %5252 = vst.msk [vmem:[%s5251 + $0x8] sm:$0xff] %vm241, %v5174
    %5253 = vst.msk [vmem:[%s5251 + $0x20] sm:$0xff] %vm241, %v5175
    %5254 = vst.msk [vmem:[%s5251 + $0x38] sm:$0xff] %vm241, %v5176
    %5255 = vst.msk [vmem:[%s5251 + $0x50] sm:$0xff] %vm241, %v5177
    %5256 = vst.msk [vmem:[%s5251 + $0x68] sm:$0xff] %vm241, %v5178
    %5257 = vst.msk [vmem:[%s5251 + $0x80] sm:$0xff] %vm241, %v5179
    %5258 = vst.msk [vmem:[%s5251 + $0x98] sm:$0xff] %vm241, %v5180
    %5259 = vst.msk [vmem:[%s5251 + $0xb0] sm:$0xff] %vm241, %v5181
    %5260 = vst.msk [vmem:[%s5251 + $0xf8] sm:$0xff] %vm241, %v5182
    %5261 = vst.msk [vmem:[%s5251 + $0x110] sm:$0xff] %vm241, %v5183
    %5262 = vst.msk [vmem:[%s5251 + $0x128] sm:$0xff] %vm241, %v5184
    %5263 = vst.msk [vmem:[%s5251 + $0x140] sm:$0xff] %vm241, %v5185
    %5264 = vst.msk [vmem:[%s5251 + $0x158] sm:$0xff] %vm241, %v5186
    %5265 = vst.msk [vmem:[%s5251 + $0x170] sm:$0xff] %vm241, %v5187
    %5266 = vst.msk [vmem:[%s5251 + $0x188] sm:$0xff] %vm241, %v5188
    %5267 = vst.msk [vmem:[%s5251 + $0x1a0] sm:$0xff] %vm241, %v5189
    %v5268 = vld [vmem:[#allocation3 + $0x7] sm:$0xff]
    %v5269 = vld [vmem:[#allocation3 + $0x1f] sm:$0xff]
    %v5270 = vld [vmem:[#allocation3 + $0x37] sm:$0xff]
    %v5271 = vld [vmem:[#allocation3 + $0x4f] sm:$0xff]
    %v5272 = vld [vmem:[#allocation3 + $0x67] sm:$0xff]
    %v5273 = vld [vmem:[#allocation3 + $0x7f] sm:$0xff]
    %v5274 = vld [vmem:[#allocation3 + $0x97] sm:$0xff]
    %v5275 = vld [vmem:[#allocation3 + $0xaf] sm:$0xff]
    %v5276 = vld [vmem:[#allocation3 + $0xf7] sm:$0xff]
    %v5277 = vld [vmem:[#allocation3 + $0x10f] sm:$0xff]
    %v5278 = vld [vmem:[#allocation3 + $0x127] sm:$0xff]
    %v5279 = vld [vmem:[#allocation3 + $0x13f] sm:$0xff]
    %v5280 = vld [vmem:[#allocation3 + $0x157] sm:$0xff]
    %v5281 = vld [vmem:[#allocation3 + $0x16f] sm:$0xff]
    %v5282 = vld [vmem:[#allocation3 + $0x187] sm:$0xff]
    %v5283 = vld [vmem:[#allocation3 + $0x19f] sm:$0xff]
    %v5284 = vpack.c.bf16 %v5269, %v5268
    %v5285 = vpack.c.bf16 %v5271, %v5270
    %v5286 = vpack.c.bf16 %v5273, %v5272
    %v5287 = vpack.c.bf16 %v5275, %v5274
    %v5288 = vpack.c.bf16 %v5277, %v5276
    %v5289 = vpack.c.bf16 %v5279, %v5278
    %v5290 = vpack.c.bf16 %v5281, %v5280
    %v5291 = vpack.c.bf16 %v5283, %v5282
    %v5292 = vld [vmem:[%s3] sm:$0xf]
    %v5293 = vld [vmem:[%s3 + $0x4] sm:$0xf]
    %v5294 = vld [vmem:[%s3 + $0x8] sm:$0xf]
    %v5295 = vld [vmem:[%s3 + $0xc] sm:$0xf]
    %v5296 = vld [vmem:[#allocation3 + $0x8] sm:$0xff]
    %v5297 = vld [vmem:[#allocation3 + $0x20] sm:$0xff]
    %v5298 = vld [vmem:[#allocation3 + $0x38] sm:$0xff]
    %v5299 = vld [vmem:[#allocation3 + $0x50] sm:$0xff]
    %v5300 = vld [vmem:[#allocation3 + $0x68] sm:$0xff]
    %v5301 = vld [vmem:[#allocation3 + $0x80] sm:$0xff]
    %v5302 = vld [vmem:[#allocation3 + $0x98] sm:$0xff]
    %v5303 = vld [vmem:[#allocation3 + $0xb0] sm:$0xff]
    %v5304 = vld [vmem:[#allocation3 + $0xf8] sm:$0xff]
    %v5305 = vld [vmem:[#allocation3 + $0x110] sm:$0xff]
    %v5306 = vld [vmem:[#allocation3 + $0x128] sm:$0xff]
    %v5307 = vld [vmem:[#allocation3 + $0x140] sm:$0xff]
    %v5308 = vld [vmem:[#allocation3 + $0x158] sm:$0xff]
    %v5309 = vld [vmem:[#allocation3 + $0x170] sm:$0xff]
    %v5310 = vld [vmem:[#allocation3 + $0x188] sm:$0xff]
    %v5311 = vld [vmem:[#allocation3 + $0x1a0] sm:$0xff]
    %v5312 = vpack.c.bf16 %v5297, %v5296
    %v5313 = vpack.c.bf16 %v5299, %v5298
    %v5314 = vpack.c.bf16 %v5301, %v5300
    %v5315 = vpack.c.bf16 %v5303, %v5302
    %v5316 = vpack.c.bf16 %v5305, %v5304
    %v5317 = vpack.c.bf16 %v5307, %v5306
    %v5318 = vpack.c.bf16 %v5309, %v5308
    %v5319 = vpack.c.bf16 %v5311, %v5310
    %s5320 = scalar_lea.vmem %s3, 16
    %v5321 = vld [vmem:[%s5320] sm:$0xf]
    %v5322 = vld [vmem:[%s5320 + $0x4] sm:$0xf]
    %v5323 = vld [vmem:[%s5320 + $0x8] sm:$0xf]
    %v5324 = vld [vmem:[%s5320 + $0xc] sm:$0xf]
    %v5329 = vunpack.c.l.b16 %v5321
    %v5330 = vunpack.c.l.b16 %v5322
    %v5331 = vunpack.c.l.b16 %v5323
    %v5332 = vunpack.c.l.b16 %v5324
    %v5333 = vpack.c.b16 %v5330, %v5329
    %v5334 = vpack.c.b16 %v5332, %v5331
    %v5338 = vsel %vm241, %v5312, 0
    %v5341 = vsel %vm241, %v5313, 0
    %v5344 = vsel %vm241, %v5314, 0
    %v5347 = vsel %vm241, %v5315, 0
    %v5350 = vsel %vm241, %v5316, 0
    %v5353 = vsel %vm241, %v5317, 0
    %v5356 = vsel %vm241, %v5318, 0
    %v5359 = vsel %vm241, %v5319, 0
    %5361 = vmatprep.subr.bf16.mxu0 0
    %5362 = vmatpush1.bf16.msra.mxu0 0
    %5363 = vmatprep.subr.bf16.mxu0 0
    %5364 = vmatpush1.bf16.msra.mxu0 0
    %5365 = vmatprep.subr.bf16.mxu0 0
    %5366 = vmatpush1.bf16.msra.mxu0 0
    %5367 = vmatprep.subr.bf16.mxu0 0
    %5368 = vmatpush1.bf16.msra.mxu0 0
    %5369 = vmatprep.subr.bf16.mxu0 0
    %5370 = vmatpush1.bf16.msra.mxu0 0
    %5371 = vmatprep.subr.bf16.mxu0 0
    %5372 = vmatpush1.bf16.msra.mxu0 0
    %5373 = vmatprep.subr.bf16.mxu0 0
    %5374 = vmatpush1.bf16.msra.mxu0 %v5334
    %5375 = vmatprep.subr.bf16.mxu0 0
    %5376 = vmatpush1.bf16.msra.mxu0 %v5333
    %5377 = vmatprep.subr.bf16.mxu0 0
    %5378 = vmatpush2.bf16.msra.mxu0 0
    %5379 = vmatprep.subr.bf16.mxu0 0
    %5380 = vmatpush2.bf16.msra.mxu0 0
    %5381 = vmatprep.subr.bf16.mxu0 0
    %5382 = vmatpush2.bf16.msra.mxu0 0
    %5383 = vmatprep.subr.bf16.mxu0 0
    %5384 = vmatpush2.bf16.msra.mxu0 0
    %5385 = vmatprep.subr.bf16.mxu0 0
    %5386 = vmatpush2.bf16.msra.mxu0 0
    %5387 = vmatprep.subr.bf16.mxu0 0
    %5388 = vmatpush2.bf16.msra.mxu0 0
    %5389 = vmatprep.subr.bf16.mxu0 0
    %5390 = vmatpush2.bf16.msra.mxu0 0
    %5391 = vmatprep.subr.bf16.mxu0 0
    %5392 = vmatpush2.bf16.msra.mxu0 0
    %5393 = vmatprep.mubr.bf16.mxu0 0
    %5394 = vmatmul.mubr.bf16.gmra.mxu0 %v5338
    %v5395 = vpop.f32.mrf.mxu0
    %v5396 = vadd.f32 0.0, %v5395
    %v5397 = vpop.f32.mrf.mxu0
    %v5398 = vpop.f32.mrf.mxu0
    %v5399 = vadd.f32 0.0, %v5398
    %v5400 = vpop.f32.mrf.mxu0
    %5401 = vmatprep.mubr.bf16.mxu0 0
    %5402 = vmatmul.mubr.bf16.gmra.mxu0 %v5341
    %v5403 = vpop.f32.mrf.mxu0
    %v5404 = vadd.f32 0.0, %v5403
    %v5405 = vpop.f32.mrf.mxu0
    %v5406 = vpop.f32.mrf.mxu0
    %v5407 = vadd.f32 0.0, %v5406
    %v5408 = vpop.f32.mrf.mxu0
    %5409 = vmatprep.mubr.bf16.mxu0 0
    %5410 = vmatmul.mubr.bf16.gmra.mxu0 %v5344
    %v5411 = vpop.f32.mrf.mxu0
    %v5412 = vadd.f32 0.0, %v5411
    %v5413 = vpop.f32.mrf.mxu0
    %v5414 = vpop.f32.mrf.mxu0
    %v5415 = vadd.f32 0.0, %v5414
    %v5416 = vpop.f32.mrf.mxu0
    %5417 = vmatprep.mubr.bf16.mxu0 0
    %5418 = vmatmul.mubr.bf16.gmra.mxu0 %v5347
    %v5419 = vpop.f32.mrf.mxu0
    %v5420 = vadd.f32 0.0, %v5419
    %v5421 = vpop.f32.mrf.mxu0
    %v5422 = vpop.f32.mrf.mxu0
    %v5423 = vadd.f32 0.0, %v5422
    %v5424 = vpop.f32.mrf.mxu0
    %5425 = vmatprep.mubr.bf16.mxu0 0
    %5426 = vmatmul.mubr.bf16.gmra.mxu0 %v5350
    %v5427 = vpop.f32.mrf.mxu0
    %v5428 = vadd.f32 0.0, %v5427
    %v5429 = vpop.f32.mrf.mxu0
    %v5430 = vpop.f32.mrf.mxu0
    %v5431 = vadd.f32 0.0, %v5430
    %v5432 = vpop.f32.mrf.mxu0
    %5433 = vmatprep.mubr.bf16.mxu0 0
    %5434 = vmatmul.mubr.bf16.gmra.mxu0 %v5353
    %v5435 = vpop.f32.mrf.mxu0
    %v5436 = vadd.f32 0.0, %v5435
    %v5437 = vpop.f32.mrf.mxu0
    %v5438 = vpop.f32.mrf.mxu0
    %v5439 = vadd.f32 0.0, %v5438
    %v5440 = vpop.f32.mrf.mxu0
    %5441 = vmatprep.mubr.bf16.mxu0 0
    %5442 = vmatmul.mubr.bf16.gmra.mxu0 %v5356
    %v5443 = vpop.f32.mrf.mxu0
    %v5444 = vadd.f32 0.0, %v5443
    %v5445 = vpop.f32.mrf.mxu0
    %v5446 = vpop.f32.mrf.mxu0
    %v5447 = vadd.f32 0.0, %v5446
    %v5448 = vpop.f32.mrf.mxu0
    %5449 = vmatprep.mubr.bf16.mxu0 0
    %5450 = vmatmul.mubr.bf16.gmra.mxu0 %v5359
    %v5451 = vpop.f32.mrf.mxu0
    %v5452 = vadd.f32 0.0, %v5451
    %v5453 = vpop.f32.mrf.mxu0
    %v5454 = vpop.f32.mrf.mxu0
    %v5455 = vadd.f32 0.0, %v5454
    %v5456 = vpop.f32.mrf.mxu0
    %5457 = vdwg.mxu0
    %v5462 = vunpack.c.l.b16 %v5292
    %v5463 = vunpack.c.l.b16 %v5293
    %v5464 = vunpack.c.l.b16 %v5294
    %v5465 = vunpack.c.l.b16 %v5295
    %v5466 = vpack.c.b16 %v5463, %v5462
    %v5467 = vpack.c.b16 %v5465, %v5464
    %v5471 = vsel %vm241, %v5284, 0
    %v5474 = vsel %vm241, %v5285, 0
    %v5477 = vsel %vm241, %v5286, 0
    %v5480 = vsel %vm241, %v5287, 0
    %v5483 = vsel %vm241, %v5288, 0
    %v5486 = vsel %vm241, %v5289, 0
    %v5489 = vsel %vm241, %v5290, 0
    %v5492 = vsel %vm241, %v5291, 0
    %5494 = vmatprep.subr.bf16.mxu0 0
    %5495 = vmatpush1.bf16.msra.mxu0 0
    %5496 = vmatprep.subr.bf16.mxu0 0
    %5497 = vmatpush1.bf16.msra.mxu0 0
    %5498 = vmatprep.subr.bf16.mxu0 0
    %5499 = vmatpush1.bf16.msra.mxu0 0
    %5500 = vmatprep.subr.bf16.mxu0 0
    %5501 = vmatpush1.bf16.msra.mxu0 0
    %5502 = vmatprep.subr.bf16.mxu0 0
    %5503 = vmatpush1.bf16.msra.mxu0 0
    %5504 = vmatprep.subr.bf16.mxu0 0
    %5505 = vmatpush1.bf16.msra.mxu0 0
    %5506 = vmatprep.subr.bf16.mxu0 0
    %5507 = vmatpush1.bf16.msra.mxu0 %v5467
    %5508 = vmatprep.subr.bf16.mxu0 0
    %5509 = vmatpush1.bf16.msra.mxu0 %v5466
    %5510 = vmatprep.subr.bf16.mxu0 0
    %5511 = vmatpush2.bf16.msra.mxu0 0
    %5512 = vmatprep.subr.bf16.mxu0 0
    %5513 = vmatpush2.bf16.msra.mxu0 0
    %5514 = vmatprep.subr.bf16.mxu0 0
    %5515 = vmatpush2.bf16.msra.mxu0 0
    %5516 = vmatprep.subr.bf16.mxu0 0
    %5517 = vmatpush2.bf16.msra.mxu0 0
    %5518 = vmatprep.subr.bf16.mxu0 0
    %5519 = vmatpush2.bf16.msra.mxu0 0
    %5520 = vmatprep.subr.bf16.mxu0 0
    %5521 = vmatpush2.bf16.msra.mxu0 0
    %5522 = vmatprep.subr.bf16.mxu0 0
    %5523 = vmatpush2.bf16.msra.mxu0 0
    %5524 = vmatprep.subr.bf16.mxu0 0
    %5525 = vmatpush2.bf16.msra.mxu0 0
    %5526 = vmatprep.mubr.bf16.mxu0 0
    %5527 = vmatmul.mubr.bf16.gmra.mxu0 %v5471
    %v5528 = vpop.f32.mrf.mxu0
    %v5529 = vadd.f32 %v5396, %v5528
    %v5530 = vpop.f32.mrf.mxu0
    %v5531 = vpop.f32.mrf.mxu0
    %v5532 = vadd.f32 %v5399, %v5531
    %v5533 = vpop.f32.mrf.mxu0
    %5534 = vmatprep.mubr.bf16.mxu0 0
    %5535 = vmatmul.mubr.bf16.gmra.mxu0 %v5474
    %v5536 = vpop.f32.mrf.mxu0
    %v5537 = vadd.f32 %v5404, %v5536
    %v5538 = vpop.f32.mrf.mxu0
    %v5539 = vpop.f32.mrf.mxu0
    %v5540 = vadd.f32 %v5407, %v5539
    %v5541 = vpop.f32.mrf.mxu0
    %5542 = vmatprep.mubr.bf16.mxu0 0
    %5543 = vmatmul.mubr.bf16.gmra.mxu0 %v5477
    %v5544 = vpop.f32.mrf.mxu0
    %v5545 = vadd.f32 %v5412, %v5544
    %v5546 = vpop.f32.mrf.mxu0
    %v5547 = vpop.f32.mrf.mxu0
    %v5548 = vadd.f32 %v5415, %v5547
    %v5549 = vpop.f32.mrf.mxu0
    %5550 = vmatprep.mubr.bf16.mxu0 0
    %5551 = vmatmul.mubr.bf16.gmra.mxu0 %v5480
    %v5552 = vpop.f32.mrf.mxu0
    %v5553 = vadd.f32 %v5420, %v5552
    %v5554 = vpop.f32.mrf.mxu0
    %v5555 = vpop.f32.mrf.mxu0
    %v5556 = vadd.f32 %v5423, %v5555
    %v5557 = vpop.f32.mrf.mxu0
    %5558 = vmatprep.mubr.bf16.mxu0 0
    %5559 = vmatmul.mubr.bf16.gmra.mxu0 %v5483
    %v5560 = vpop.f32.mrf.mxu0
    %v5561 = vadd.f32 %v5428, %v5560
    %v5562 = vpop.f32.mrf.mxu0
    %v5563 = vpop.f32.mrf.mxu0
    %v5564 = vadd.f32 %v5431, %v5563
    %v5565 = vpop.f32.mrf.mxu0
    %5566 = vmatprep.mubr.bf16.mxu0 0
    %5567 = vmatmul.mubr.bf16.gmra.mxu0 %v5486
    %v5568 = vpop.f32.mrf.mxu0
    %v5569 = vadd.f32 %v5436, %v5568
    %v5570 = vpop.f32.mrf.mxu0
    %v5571 = vpop.f32.mrf.mxu0
    %v5572 = vadd.f32 %v5439, %v5571
    %v5573 = vpop.f32.mrf.mxu0
    %5574 = vmatprep.mubr.bf16.mxu0 0
    %5575 = vmatmul.mubr.bf16.gmra.mxu0 %v5489
    %v5576 = vpop.f32.mrf.mxu0
    %v5577 = vadd.f32 %v5444, %v5576
    %v5578 = vpop.f32.mrf.mxu0
    %v5579 = vpop.f32.mrf.mxu0
    %v5580 = vadd.f32 %v5447, %v5579
    %v5581 = vpop.f32.mrf.mxu0
    %5582 = vmatprep.mubr.bf16.mxu0 0
    %5583 = vmatmul.mubr.bf16.gmra.mxu0 %v5492
    %v5584 = vpop.f32.mrf.mxu0
    %v5585 = vadd.f32 %v5452, %v5584
    %v5586 = vpop.f32.mrf.mxu0
    %v5587 = vpop.f32.mrf.mxu0
    %v5588 = vadd.f32 %v5455, %v5587
    %v5589 = vpop.f32.mrf.mxu0
    %5590 = vdwg.mxu0
    %v5591 = vld [vmem:[#allocation3 + $0x9] sm:$0xff]
    %v5592 = vld [vmem:[#allocation3 + $0x21] sm:$0xff]
    %v5593 = vld [vmem:[#allocation3 + $0x39] sm:$0xff]
    %v5594 = vld [vmem:[#allocation3 + $0x51] sm:$0xff]
    %v5595 = vld [vmem:[#allocation3 + $0x69] sm:$0xff]
    %v5596 = vld [vmem:[#allocation3 + $0x81] sm:$0xff]
    %v5597 = vld [vmem:[#allocation3 + $0x99] sm:$0xff]
    %v5598 = vld [vmem:[#allocation3 + $0xb1] sm:$0xff]
    %v5599 = vld [vmem:[#allocation3 + $0xf9] sm:$0xff]
    %v5600 = vld [vmem:[#allocation3 + $0x111] sm:$0xff]
    %v5601 = vld [vmem:[#allocation3 + $0x129] sm:$0xff]
    %v5602 = vld [vmem:[#allocation3 + $0x141] sm:$0xff]
    %v5603 = vld [vmem:[#allocation3 + $0x159] sm:$0xff]
    %v5604 = vld [vmem:[#allocation3 + $0x171] sm:$0xff]
    %v5605 = vld [vmem:[#allocation3 + $0x189] sm:$0xff]
    %v5606 = vld [vmem:[#allocation3 + $0x1a1] sm:$0xff]
    %v5607 = vpack.c.bf16 %v5592, %v5591
    %v5608 = vpack.c.bf16 %v5594, %v5593
    %v5609 = vpack.c.bf16 %v5596, %v5595
    %v5610 = vpack.c.bf16 %v5598, %v5597
    %v5611 = vpack.c.bf16 %v5600, %v5599
    %v5612 = vpack.c.bf16 %v5602, %v5601
    %v5613 = vpack.c.bf16 %v5604, %v5603
    %v5614 = vpack.c.bf16 %v5606, %v5605
    %s5615 = scalar_lea.vmem %s3, 32
    %v5616 = vld [vmem:[%s5615] sm:$0xf]
    %v5617 = vld [vmem:[%s5615 + $0x4] sm:$0xf]
    %v5618 = vld [vmem:[%s5615 + $0x8] sm:$0xf]
    %v5619 = vld [vmem:[%s5615 + $0xc] sm:$0xf]
    %v5624 = vunpack.c.l.b16 %v5616
    %v5625 = vunpack.c.l.b16 %v5617
    %v5626 = vunpack.c.l.b16 %v5618
    %v5627 = vunpack.c.l.b16 %v5619
    %v5628 = vpack.c.b16 %v5625, %v5624
    %v5629 = vpack.c.b16 %v5627, %v5626
    %v5633 = vsel %vm241, %v5607, 0
    %v5636 = vsel %vm241, %v5608, 0
    %v5639 = vsel %vm241, %v5609, 0
    %v5642 = vsel %vm241, %v5610, 0
    %v5645 = vsel %vm241, %v5611, 0
    %v5648 = vsel %vm241, %v5612, 0
    %v5651 = vsel %vm241, %v5613, 0
    %v5654 = vsel %vm241, %v5614, 0
    %5656 = vmatprep.subr.bf16.mxu0 0
    %5657 = vmatpush1.bf16.msra.mxu0 0
    %5658 = vmatprep.subr.bf16.mxu0 0
    %5659 = vmatpush1.bf16.msra.mxu0 0
    %5660 = vmatprep.subr.bf16.mxu0 0
    %5661 = vmatpush1.bf16.msra.mxu0 0
    %5662 = vmatprep.subr.bf16.mxu0 0
    %5663 = vmatpush1.bf16.msra.mxu0 0
    %5664 = vmatprep.subr.bf16.mxu0 0
    %5665 = vmatpush1.bf16.msra.mxu0 0
    %5666 = vmatprep.subr.bf16.mxu0 0
    %5667 = vmatpush1.bf16.msra.mxu0 0
    %5668 = vmatprep.subr.bf16.mxu0 0
    %5669 = vmatpush1.bf16.msra.mxu0 %v5629
    %5670 = vmatprep.subr.bf16.mxu0 0
    %5671 = vmatpush1.bf16.msra.mxu0 %v5628
    %5672 = vmatprep.subr.bf16.mxu0 0
    %5673 = vmatpush2.bf16.msra.mxu0 0
    %5674 = vmatprep.subr.bf16.mxu0 0
    %5675 = vmatpush2.bf16.msra.mxu0 0
    %5676 = vmatprep.subr.bf16.mxu0 0
    %5677 = vmatpush2.bf16.msra.mxu0 0
    %5678 = vmatprep.subr.bf16.mxu0 0
    %5679 = vmatpush2.bf16.msra.mxu0 0
    %5680 = vmatprep.subr.bf16.mxu0 0
    %5681 = vmatpush2.bf16.msra.mxu0 0
    %5682 = vmatprep.subr.bf16.mxu0 0
    %5683 = vmatpush2.bf16.msra.mxu0 0
    %5684 = vmatprep.subr.bf16.mxu0 0
    %5685 = vmatpush2.bf16.msra.mxu0 0
    %5686 = vmatprep.subr.bf16.mxu0 0
    %5687 = vmatpush2.bf16.msra.mxu0 0
    %5688 = vmatprep.mubr.bf16.mxu0 0
    %5689 = vmatmul.mubr.bf16.gmra.mxu0 %v5633
    %v5690 = vpop.f32.mrf.mxu0
    %v5691 = vadd.f32 0.0, %v5690
    %v5692 = vpop.f32.mrf.mxu0
    %v5693 = vpop.f32.mrf.mxu0
    %v5694 = vadd.f32 0.0, %v5693
    %v5695 = vpop.f32.mrf.mxu0
    %5696 = vmatprep.mubr.bf16.mxu0 0
    %5697 = vmatmul.mubr.bf16.gmra.mxu0 %v5636
    %v5698 = vpop.f32.mrf.mxu0
    %v5699 = vadd.f32 0.0, %v5698
    %v5700 = vpop.f32.mrf.mxu0
    %v5701 = vpop.f32.mrf.mxu0
    %v5702 = vadd.f32 0.0, %v5701
    %v5703 = vpop.f32.mrf.mxu0
    %5704 = vmatprep.mubr.bf16.mxu0 0
    %5705 = vmatmul.mubr.bf16.gmra.mxu0 %v5639
    %v5706 = vpop.f32.mrf.mxu0
    %v5707 = vadd.f32 0.0, %v5706
    %v5708 = vpop.f32.mrf.mxu0
    %v5709 = vpop.f32.mrf.mxu0
    %v5710 = vadd.f32 0.0, %v5709
    %v5711 = vpop.f32.mrf.mxu0
    %5712 = vmatprep.mubr.bf16.mxu0 0
    %5713 = vmatmul.mubr.bf16.gmra.mxu0 %v5642
    %v5714 = vpop.f32.mrf.mxu0
    %v5715 = vadd.f32 0.0, %v5714
    %v5716 = vpop.f32.mrf.mxu0
    %v5717 = vpop.f32.mrf.mxu0
    %v5718 = vadd.f32 0.0, %v5717
    %v5719 = vpop.f32.mrf.mxu0
    %5720 = vmatprep.mubr.bf16.mxu0 0
    %5721 = vmatmul.mubr.bf16.gmra.mxu0 %v5645
    %v5722 = vpop.f32.mrf.mxu0
    %v5723 = vadd.f32 0.0, %v5722
    %v5724 = vpop.f32.mrf.mxu0
    %v5725 = vpop.f32.mrf.mxu0
    %v5726 = vadd.f32 0.0, %v5725
    %v5727 = vpop.f32.mrf.mxu0
    %5728 = vmatprep.mubr.bf16.mxu0 0
    %5729 = vmatmul.mubr.bf16.gmra.mxu0 %v5648
    %v5730 = vpop.f32.mrf.mxu0
    %v5731 = vadd.f32 0.0, %v5730
    %v5732 = vpop.f32.mrf.mxu0
    %v5733 = vpop.f32.mrf.mxu0
    %v5734 = vadd.f32 0.0, %v5733
    %v5735 = vpop.f32.mrf.mxu0
    %5736 = vmatprep.mubr.bf16.mxu0 0
    %5737 = vmatmul.mubr.bf16.gmra.mxu0 %v5651
    %v5738 = vpop.f32.mrf.mxu0
    %v5739 = vadd.f32 0.0, %v5738
    %v5740 = vpop.f32.mrf.mxu0
    %v5741 = vpop.f32.mrf.mxu0
    %v5742 = vadd.f32 0.0, %v5741
    %v5743 = vpop.f32.mrf.mxu0
    %5744 = vmatprep.mubr.bf16.mxu0 0
    %5745 = vmatmul.mubr.bf16.gmra.mxu0 %v5654
    %v5746 = vpop.f32.mrf.mxu0
    %v5747 = vadd.f32 0.0, %v5746
    %v5748 = vpop.f32.mrf.mxu0
    %v5749 = vpop.f32.mrf.mxu0
    %v5750 = vadd.f32 0.0, %v5749
    %v5751 = vpop.f32.mrf.mxu0
    %5752 = vdwg.mxu0
    %v5753 = vadd.f32 %v5529, %v5691
    %v5754 = vadd.f32 %v5532, %v5694
    %v5755 = vadd.f32 %v5537, %v5699
    %v5756 = vadd.f32 %v5540, %v5702
    %v5757 = vadd.f32 %v5545, %v5707
    %v5758 = vadd.f32 %v5548, %v5710
    %v5759 = vadd.f32 %v5553, %v5715
    %v5760 = vadd.f32 %v5556, %v5718
    %v5761 = vadd.f32 %v5561, %v5723
    %v5762 = vadd.f32 %v5564, %v5726
    %v5763 = vadd.f32 %v5569, %v5731
    %v5764 = vadd.f32 %v5572, %v5734
    %v5765 = vadd.f32 %v5577, %v5739
    %v5766 = vadd.f32 %v5580, %v5742
    %v5767 = vadd.f32 %v5585, %v5747
    %v5768 = vadd.f32 %v5588, %v5750
    %v5769 = vld [vmem:[%s5251 + $0x7] sm:$0xff]
    %v5770 = vld [vmem:[%s5251 + $0x1f] sm:$0xff]
    %v5771 = vld [vmem:[%s5251 + $0x37] sm:$0xff]
    %v5772 = vld [vmem:[%s5251 + $0x4f] sm:$0xff]
    %v5773 = vld [vmem:[%s5251 + $0x67] sm:$0xff]
    %v5774 = vld [vmem:[%s5251 + $0x7f] sm:$0xff]
    %v5775 = vld [vmem:[%s5251 + $0x97] sm:$0xff]
    %v5776 = vld [vmem:[%s5251 + $0xaf] sm:$0xff]
    %v5777 = vld [vmem:[%s5251 + $0xf7] sm:$0xff]
    %v5778 = vld [vmem:[%s5251 + $0x10f] sm:$0xff]
    %v5779 = vld [vmem:[%s5251 + $0x127] sm:$0xff]
    %v5780 = vld [vmem:[%s5251 + $0x13f] sm:$0xff]
    %v5781 = vld [vmem:[%s5251 + $0x157] sm:$0xff]
    %v5782 = vld [vmem:[%s5251 + $0x16f] sm:$0xff]
    %v5783 = vld [vmem:[%s5251 + $0x187] sm:$0xff]
    %v5784 = vld [vmem:[%s5251 + $0x19f] sm:$0xff]
    %v5785 = vpack.c.bf16 %v5770, %v5769
    %v5786 = vpack.c.bf16 %v5772, %v5771
    %v5787 = vpack.c.bf16 %v5774, %v5773
    %v5788 = vpack.c.bf16 %v5776, %v5775
    %v5789 = vpack.c.bf16 %v5778, %v5777
    %v5790 = vpack.c.bf16 %v5780, %v5779
    %v5791 = vpack.c.bf16 %v5782, %v5781
    %v5792 = vpack.c.bf16 %v5784, %v5783
    %s5793 = scalar_lea.vmem %s3, 48
    %v5794 = vld [vmem:[%s5793] sm:$0xf]
    %v5795 = vld [vmem:[%s5793 + $0x4] sm:$0xf]
    %v5796 = vld [vmem:[%s5793 + $0x8] sm:$0xf]
    %v5797 = vld [vmem:[%s5793 + $0xc] sm:$0xf]
    %v5802 = vunpack.c.l.b16 %v5794
    %v5803 = vunpack.c.l.b16 %v5795
    %v5804 = vunpack.c.l.b16 %v5796
    %v5805 = vunpack.c.l.b16 %v5797
    %v5806 = vpack.c.b16 %v5803, %v5802
    %v5807 = vpack.c.b16 %v5805, %v5804
    %v5811 = vsel %vm241, %v5785, 0
    %v5814 = vsel %vm241, %v5786, 0
    %v5817 = vsel %vm241, %v5787, 0
    %v5820 = vsel %vm241, %v5788, 0
    %v5823 = vsel %vm241, %v5789, 0
    %v5826 = vsel %vm241, %v5790, 0
    %v5829 = vsel %vm241, %v5791, 0
    %v5832 = vsel %vm241, %v5792, 0
    %5834 = vmatprep.subr.bf16.mxu0 0
    %5835 = vmatpush1.bf16.msra.mxu0 0
    %5836 = vmatprep.subr.bf16.mxu0 0
    %5837 = vmatpush1.bf16.msra.mxu0 0
    %5838 = vmatprep.subr.bf16.mxu0 0
    %5839 = vmatpush1.bf16.msra.mxu0 0
    %5840 = vmatprep.subr.bf16.mxu0 0
    %5841 = vmatpush1.bf16.msra.mxu0 0
    %5842 = vmatprep.subr.bf16.mxu0 0
    %5843 = vmatpush1.bf16.msra.mxu0 0
    %5844 = vmatprep.subr.bf16.mxu0 0
    %5845 = vmatpush1.bf16.msra.mxu0 0
    %5846 = vmatprep.subr.bf16.mxu0 0
    %5847 = vmatpush1.bf16.msra.mxu0 %v5807
    %5848 = vmatprep.subr.bf16.mxu0 0
    %5849 = vmatpush1.bf16.msra.mxu0 %v5806
    %5850 = vmatprep.subr.bf16.mxu0 0
    %5851 = vmatpush2.bf16.msra.mxu0 0
    %5852 = vmatprep.subr.bf16.mxu0 0
    %5853 = vmatpush2.bf16.msra.mxu0 0
    %5854 = vmatprep.subr.bf16.mxu0 0
    %5855 = vmatpush2.bf16.msra.mxu0 0
    %5856 = vmatprep.subr.bf16.mxu0 0
    %5857 = vmatpush2.bf16.msra.mxu0 0
    %5858 = vmatprep.subr.bf16.mxu0 0
    %5859 = vmatpush2.bf16.msra.mxu0 0
    %5860 = vmatprep.subr.bf16.mxu0 0
    %5861 = vmatpush2.bf16.msra.mxu0 0
    %5862 = vmatprep.subr.bf16.mxu0 0
    %5863 = vmatpush2.bf16.msra.mxu0 0
    %5864 = vmatprep.subr.bf16.mxu0 0
    %5865 = vmatpush2.bf16.msra.mxu0 0
    %5866 = vmatprep.mubr.bf16.mxu0 0
    %5867 = vmatmul.mubr.bf16.gmra.mxu0 %v5811
    %v5868 = vpop.f32.mrf.mxu0
    %v5869 = vadd.f32 0.0, %v5868
    %v5870 = vpop.f32.mrf.mxu0
    %v5871 = vpop.f32.mrf.mxu0
    %v5872 = vadd.f32 0.0, %v5871
    %v5873 = vpop.f32.mrf.mxu0
    %5874 = vmatprep.mubr.bf16.mxu0 0
    %5875 = vmatmul.mubr.bf16.gmra.mxu0 %v5814
    %v5876 = vpop.f32.mrf.mxu0
    %v5877 = vadd.f32 0.0, %v5876
    %v5878 = vpop.f32.mrf.mxu0
    %v5879 = vpop.f32.mrf.mxu0
    %v5880 = vadd.f32 0.0, %v5879
    %v5881 = vpop.f32.mrf.mxu0
    %5882 = vmatprep.mubr.bf16.mxu0 0
    %5883 = vmatmul.mubr.bf16.gmra.mxu0 %v5817
    %v5884 = vpop.f32.mrf.mxu0
    %v5885 = vadd.f32 0.0, %v5884
    %v5886 = vpop.f32.mrf.mxu0
    %v5887 = vpop.f32.mrf.mxu0
    %v5888 = vadd.f32 0.0, %v5887
    %v5889 = vpop.f32.mrf.mxu0
    %5890 = vmatprep.mubr.bf16.mxu0 0
    %5891 = vmatmul.mubr.bf16.gmra.mxu0 %v5820
    %v5892 = vpop.f32.mrf.mxu0
    %v5893 = vadd.f32 0.0, %v5892
    %v5894 = vpop.f32.mrf.mxu0
    %v5895 = vpop.f32.mrf.mxu0
    %v5896 = vadd.f32 0.0, %v5895
    %v5897 = vpop.f32.mrf.mxu0
    %5898 = vmatprep.mubr.bf16.mxu0 0
    %5899 = vmatmul.mubr.bf16.gmra.mxu0 %v5823
    %v5900 = vpop.f32.mrf.mxu0
    %v5901 = vadd.f32 0.0, %v5900
    %v5902 = vpop.f32.mrf.mxu0
    %v5903 = vpop.f32.mrf.mxu0
    %v5904 = vadd.f32 0.0, %v5903
    %v5905 = vpop.f32.mrf.mxu0
    %5906 = vmatprep.mubr.bf16.mxu0 0
    %5907 = vmatmul.mubr.bf16.gmra.mxu0 %v5826
    %v5908 = vpop.f32.mrf.mxu0
    %v5909 = vadd.f32 0.0, %v5908
    %v5910 = vpop.f32.mrf.mxu0
    %v5911 = vpop.f32.mrf.mxu0
    %v5912 = vadd.f32 0.0, %v5911
    %v5913 = vpop.f32.mrf.mxu0
    %5914 = vmatprep.mubr.bf16.mxu0 0
    %5915 = vmatmul.mubr.bf16.gmra.mxu0 %v5829
    %v5916 = vpop.f32.mrf.mxu0
    %v5917 = vadd.f32 0.0, %v5916
    %v5918 = vpop.f32.mrf.mxu0
    %v5919 = vpop.f32.mrf.mxu0
    %v5920 = vadd.f32 0.0, %v5919
    %v5921 = vpop.f32.mrf.mxu0
    %5922 = vmatprep.mubr.bf16.mxu0 0
    %5923 = vmatmul.mubr.bf16.gmra.mxu0 %v5832
    %v5924 = vpop.f32.mrf.mxu0
    %v5925 = vadd.f32 0.0, %v5924
    %v5926 = vpop.f32.mrf.mxu0
    %v5927 = vpop.f32.mrf.mxu0
    %v5928 = vadd.f32 0.0, %v5927
    %v5929 = vpop.f32.mrf.mxu0
    %5930 = vdwg.mxu0
    %v5931 = vadd.f32 %v5753, %v5869
    %v5932 = vadd.f32 %v5754, %v5872
    %v5933 = vadd.f32 %v5755, %v5877
    %v5934 = vadd.f32 %v5756, %v5880
    %v5935 = vadd.f32 %v5757, %v5885
    %v5936 = vadd.f32 %v5758, %v5888
    %v5937 = vadd.f32 %v5759, %v5893
    %v5938 = vadd.f32 %v5760, %v5896
    %v5939 = vadd.f32 %v5761, %v5901
    %v5940 = vadd.f32 %v5762, %v5904
    %v5941 = vadd.f32 %v5763, %v5909
    %v5942 = vadd.f32 %v5764, %v5912
    %v5943 = vadd.f32 %v5765, %v5917
    %v5944 = vadd.f32 %v5766, %v5920
    %v5945 = vadd.f32 %v5767, %v5925
    %v5946 = vadd.f32 %v5768, %v5928
    %v5947 = vld [vmem:[%s5251 + $0x8] sm:$0xff]
    %v5948 = vld [vmem:[%s5251 + $0x20] sm:$0xff]
    %v5949 = vld [vmem:[%s5251 + $0x38] sm:$0xff]
    %v5950 = vld [vmem:[%s5251 + $0x50] sm:$0xff]
    %v5951 = vld [vmem:[%s5251 + $0x68] sm:$0xff]
    %v5952 = vld [vmem:[%s5251 + $0x80] sm:$0xff]
    %v5953 = vld [vmem:[%s5251 + $0x98] sm:$0xff]
    %v5954 = vld [vmem:[%s5251 + $0xb0] sm:$0xff]
    %v5955 = vld [vmem:[%s5251 + $0xf8] sm:$0xff]
    %v5956 = vld [vmem:[%s5251 + $0x110] sm:$0xff]
    %v5957 = vld [vmem:[%s5251 + $0x128] sm:$0xff]
    %v5958 = vld [vmem:[%s5251 + $0x140] sm:$0xff]
    %v5959 = vld [vmem:[%s5251 + $0x158] sm:$0xff]
    %v5960 = vld [vmem:[%s5251 + $0x170] sm:$0xff]
    %v5961 = vld [vmem:[%s5251 + $0x188] sm:$0xff]
    %v5962 = vld [vmem:[%s5251 + $0x1a0] sm:$0xff]
    %v5963 = vpack.c.bf16 %v5948, %v5947
    %v5964 = vpack.c.bf16 %v5950, %v5949
    %v5965 = vpack.c.bf16 %v5952, %v5951
    %v5966 = vpack.c.bf16 %v5954, %v5953
    %v5967 = vpack.c.bf16 %v5956, %v5955
    %v5968 = vpack.c.bf16 %v5958, %v5957
    %v5969 = vpack.c.bf16 %v5960, %v5959
    %v5970 = vpack.c.bf16 %v5962, %v5961
    %s5971 = scalar_lea.vmem %s3, 64
    %v5972 = vld [vmem:[%s5971] sm:$0xf]
    %v5973 = vld [vmem:[%s5971 + $0x4] sm:$0xf]
    %v5974 = vld [vmem:[%s5971 + $0x8] sm:$0xf]
    %v5975 = vld [vmem:[%s5971 + $0xc] sm:$0xf]
    %v5980 = vunpack.c.l.b16 %v5972
    %v5981 = vunpack.c.l.b16 %v5973
    %v5982 = vunpack.c.l.b16 %v5974
    %v5983 = vunpack.c.l.b16 %v5975
    %v5984 = vpack.c.b16 %v5981, %v5980
    %v5985 = vpack.c.b16 %v5983, %v5982
    %v5989 = vsel %vm241, %v5963, 0
    %v5992 = vsel %vm241, %v5964, 0
    %v5995 = vsel %vm241, %v5965, 0
    %v5998 = vsel %vm241, %v5966, 0
    %v6001 = vsel %vm241, %v5967, 0
    %v6004 = vsel %vm241, %v5968, 0
    %v6007 = vsel %vm241, %v5969, 0
    %v6010 = vsel %vm241, %v5970, 0
    %6012 = vmatprep.subr.bf16.mxu0 0
    %6013 = vmatpush1.bf16.msra.mxu0 0
    %6014 = vmatprep.subr.bf16.mxu0 0
    %6015 = vmatpush1.bf16.msra.mxu0 0
    %6016 = vmatprep.subr.bf16.mxu0 0
    %6017 = vmatpush1.bf16.msra.mxu0 0
    %6018 = vmatprep.subr.bf16.mxu0 0
    %6019 = vmatpush1.bf16.msra.mxu0 0
    %6020 = vmatprep.subr.bf16.mxu0 0
    %6021 = vmatpush1.bf16.msra.mxu0 0
    %6022 = vmatprep.subr.bf16.mxu0 0
    %6023 = vmatpush1.bf16.msra.mxu0 0
    %6024 = vmatprep.subr.bf16.mxu0 0
    %6025 = vmatpush1.bf16.msra.mxu0 %v5985
    %6026 = vmatprep.subr.bf16.mxu0 0
    %6027 = vmatpush1.bf16.msra.mxu0 %v5984
    %6028 = vmatprep.subr.bf16.mxu0 0
    %6029 = vmatpush2.bf16.msra.mxu0 0
    %6030 = vmatprep.subr.bf16.mxu0 0
    %6031 = vmatpush2.bf16.msra.mxu0 0
    %6032 = vmatprep.subr.bf16.mxu0 0
    %6033 = vmatpush2.bf16.msra.mxu0 0
    %6034 = vmatprep.subr.bf16.mxu0 0
    %6035 = vmatpush2.bf16.msra.mxu0 0
    %6036 = vmatprep.subr.bf16.mxu0 0
    %6037 = vmatpush2.bf16.msra.mxu0 0
    %6038 = vmatprep.subr.bf16.mxu0 0
    %6039 = vmatpush2.bf16.msra.mxu0 0
    %6040 = vmatprep.subr.bf16.mxu0 0
    %6041 = vmatpush2.bf16.msra.mxu0 0
    %6042 = vmatprep.subr.bf16.mxu0 0
    %6043 = vmatpush2.bf16.msra.mxu0 0
    %6044 = vmatprep.mubr.bf16.mxu0 0
    %6045 = vmatmul.mubr.bf16.gmra.mxu0 %v5989
    %v6046 = vpop.f32.mrf.mxu0
    %v6047 = vadd.f32 0.0, %v6046
    %v6048 = vpop.f32.mrf.mxu0
    %v6049 = vpop.f32.mrf.mxu0
    %v6050 = vadd.f32 0.0, %v6049
    %v6051 = vpop.f32.mrf.mxu0
    %6052 = vmatprep.mubr.bf16.mxu0 0
    %6053 = vmatmul.mubr.bf16.gmra.mxu0 %v5992
    %v6054 = vpop.f32.mrf.mxu0
    %v6055 = vadd.f32 0.0, %v6054
    %v6056 = vpop.f32.mrf.mxu0
    %v6057 = vpop.f32.mrf.mxu0
    %v6058 = vadd.f32 0.0, %v6057
    %v6059 = vpop.f32.mrf.mxu0
    %6060 = vmatprep.mubr.bf16.mxu0 0
    %6061 = vmatmul.mubr.bf16.gmra.mxu0 %v5995
    %v6062 = vpop.f32.mrf.mxu0
    %v6063 = vadd.f32 0.0, %v6062
    %v6064 = vpop.f32.mrf.mxu0
    %v6065 = vpop.f32.mrf.mxu0
    %v6066 = vadd.f32 0.0, %v6065
    %v6067 = vpop.f32.mrf.mxu0
    %6068 = vmatprep.mubr.bf16.mxu0 0
    %6069 = vmatmul.mubr.bf16.gmra.mxu0 %v5998
    %v6070 = vpop.f32.mrf.mxu0
    %v6071 = vadd.f32 0.0, %v6070
    %v6072 = vpop.f32.mrf.mxu0
    %v6073 = vpop.f32.mrf.mxu0
    %v6074 = vadd.f32 0.0, %v6073
    %v6075 = vpop.f32.mrf.mxu0
    %6076 = vmatprep.mubr.bf16.mxu0 0
    %6077 = vmatmul.mubr.bf16.gmra.mxu0 %v6001
    %v6078 = vpop.f32.mrf.mxu0
    %v6079 = vadd.f32 0.0, %v6078
    %v6080 = vpop.f32.mrf.mxu0
    %v6081 = vpop.f32.mrf.mxu0
    %v6082 = vadd.f32 0.0, %v6081
    %v6083 = vpop.f32.mrf.mxu0
    %6084 = vmatprep.mubr.bf16.mxu0 0
    %6085 = vmatmul.mubr.bf16.gmra.mxu0 %v6004
    %v6086 = vpop.f32.mrf.mxu0
    %v6087 = vadd.f32 0.0, %v6086
    %v6088 = vpop.f32.mrf.mxu0
    %v6089 = vpop.f32.mrf.mxu0
    %v6090 = vadd.f32 0.0, %v6089
    %v6091 = vpop.f32.mrf.mxu0
    %6092 = vmatprep.mubr.bf16.mxu0 0
    %6093 = vmatmul.mubr.bf16.gmra.mxu0 %v6007
    %v6094 = vpop.f32.mrf.mxu0
    %v6095 = vadd.f32 0.0, %v6094
    %v6096 = vpop.f32.mrf.mxu0
    %v6097 = vpop.f32.mrf.mxu0
    %v6098 = vadd.f32 0.0, %v6097
    %v6099 = vpop.f32.mrf.mxu0
    %6100 = vmatprep.mubr.bf16.mxu0 0
    %6101 = vmatmul.mubr.bf16.gmra.mxu0 %v6010
    %v6102 = vpop.f32.mrf.mxu0
    %v6103 = vadd.f32 0.0, %v6102
    %v6104 = vpop.f32.mrf.mxu0
    %v6105 = vpop.f32.mrf.mxu0
    %v6106 = vadd.f32 0.0, %v6105
    %v6107 = vpop.f32.mrf.mxu0
    %6108 = vdwg.mxu0
    %v6109 = vadd.f32 %v5931, %v6047
    %v6110 = vadd.f32 %v5932, %v6050
    %v6111 = vadd.f32 %v5933, %v6055
    %v6112 = vadd.f32 %v5934, %v6058
    %v6113 = vadd.f32 %v5935, %v6063
    %v6114 = vadd.f32 %v5936, %v6066
    %v6115 = vadd.f32 %v5937, %v6071
    %v6116 = vadd.f32 %v5938, %v6074
    %v6117 = vadd.f32 %v5939, %v6079
    %v6118 = vadd.f32 %v5940, %v6082
    %v6119 = vadd.f32 %v5941, %v6087
    %v6120 = vadd.f32 %v5942, %v6090
    %v6121 = vadd.f32 %v5943, %v6095
    %v6122 = vadd.f32 %v5944, %v6098
    %v6123 = vadd.f32 %v5945, %v6103
    %v6124 = vadd.f32 %v5946, %v6106
    %v6125 = vld [vmem:[%s5251 + $0x9] sm:$0xff]
    %v6126 = vld [vmem:[%s5251 + $0x21] sm:$0xff]
    %v6127 = vld [vmem:[%s5251 + $0x39] sm:$0xff]
    %v6128 = vld [vmem:[%s5251 + $0x51] sm:$0xff]
    %v6129 = vld [vmem:[%s5251 + $0x69] sm:$0xff]
    %v6130 = vld [vmem:[%s5251 + $0x81] sm:$0xff]
    %v6131 = vld [vmem:[%s5251 + $0x99] sm:$0xff]
    %v6132 = vld [vmem:[%s5251 + $0xb1] sm:$0xff]
    %v6133 = vld [vmem:[%s5251 + $0xf9] sm:$0xff]
    %v6134 = vld [vmem:[%s5251 + $0x111] sm:$0xff]
    %v6135 = vld [vmem:[%s5251 + $0x129] sm:$0xff]
    %v6136 = vld [vmem:[%s5251 + $0x141] sm:$0xff]
    %v6137 = vld [vmem:[%s5251 + $0x159] sm:$0xff]
    %v6138 = vld [vmem:[%s5251 + $0x171] sm:$0xff]
    %v6139 = vld [vmem:[%s5251 + $0x189] sm:$0xff]
    %v6140 = vld [vmem:[%s5251 + $0x1a1] sm:$0xff]
    %v6141 = vpack.c.bf16 %v6126, %v6125
    %v6142 = vpack.c.bf16 %v6128, %v6127
    %v6143 = vpack.c.bf16 %v6130, %v6129
    %v6144 = vpack.c.bf16 %v6132, %v6131
    %v6145 = vpack.c.bf16 %v6134, %v6133
    %v6146 = vpack.c.bf16 %v6136, %v6135
    %v6147 = vpack.c.bf16 %v6138, %v6137
    %v6148 = vpack.c.bf16 %v6140, %v6139
    %s6149 = scalar_lea.vmem %s3, 80
    %v6150 = vld [vmem:[%s6149] sm:$0xf]
    %v6151 = vld [vmem:[%s6149 + $0x4] sm:$0xf]
    %v6152 = vld [vmem:[%s6149 + $0x8] sm:$0xf]
    %v6153 = vld [vmem:[%s6149 + $0xc] sm:$0xf]
    %v6158 = vunpack.c.l.b16 %v6150
    %v6159 = vunpack.c.l.b16 %v6151
    %v6160 = vunpack.c.l.b16 %v6152
    %v6161 = vunpack.c.l.b16 %v6153
    %v6162 = vpack.c.b16 %v6159, %v6158
    %v6163 = vpack.c.b16 %v6161, %v6160
    %v6167 = vsel %vm241, %v6141, 0
    %v6170 = vsel %vm241, %v6142, 0
    %v6173 = vsel %vm241, %v6143, 0
    %v6176 = vsel %vm241, %v6144, 0
    %v6179 = vsel %vm241, %v6145, 0
    %v6182 = vsel %vm241, %v6146, 0
    %v6185 = vsel %vm241, %v6147, 0
    %v6188 = vsel %vm241, %v6148, 0
    %6190 = vmatprep.subr.bf16.mxu0 0
    %6191 = vmatpush1.bf16.msra.mxu0 0
    %6192 = vmatprep.subr.bf16.mxu0 0
    %6193 = vmatpush1.bf16.msra.mxu0 0
    %6194 = vmatprep.subr.bf16.mxu0 0
    %6195 = vmatpush1.bf16.msra.mxu0 0
    %6196 = vmatprep.subr.bf16.mxu0 0
    %6197 = vmatpush1.bf16.msra.mxu0 0
    %6198 = vmatprep.subr.bf16.mxu0 0
    %6199 = vmatpush1.bf16.msra.mxu0 0
    %6200 = vmatprep.subr.bf16.mxu0 0
    %6201 = vmatpush1.bf16.msra.mxu0 0
    %6202 = vmatprep.subr.bf16.mxu0 0
    %6203 = vmatpush1.bf16.msra.mxu0 %v6163
    %6204 = vmatprep.subr.bf16.mxu0 0
    %6205 = vmatpush1.bf16.msra.mxu0 %v6162
    %6206 = vmatprep.subr.bf16.mxu0 0
    %6207 = vmatpush2.bf16.msra.mxu0 0
    %6208 = vmatprep.subr.bf16.mxu0 0
    %6209 = vmatpush2.bf16.msra.mxu0 0
    %6210 = vmatprep.subr.bf16.mxu0 0
    %6211 = vmatpush2.bf16.msra.mxu0 0
    %6212 = vmatprep.subr.bf16.mxu0 0
    %6213 = vmatpush2.bf16.msra.mxu0 0
    %6214 = vmatprep.subr.bf16.mxu0 0
    %6215 = vmatpush2.bf16.msra.mxu0 0
    %6216 = vmatprep.subr.bf16.mxu0 0
    %6217 = vmatpush2.bf16.msra.mxu0 0
    %6218 = vmatprep.subr.bf16.mxu0 0
    %6219 = vmatpush2.bf16.msra.mxu0 0
    %6220 = vmatprep.subr.bf16.mxu0 0
    %6221 = vmatpush2.bf16.msra.mxu0 0
    %6222 = vmatprep.mubr.bf16.mxu0 0
    %6223 = vmatmul.mubr.bf16.gmra.mxu0 %v6167
    %v6224 = vpop.f32.mrf.mxu0
    %v6225 = vadd.f32 0.0, %v6224
    %v6226 = vpop.f32.mrf.mxu0
    %v6227 = vpop.f32.mrf.mxu0
    %v6228 = vadd.f32 0.0, %v6227
    %v6229 = vpop.f32.mrf.mxu0
    %6230 = vmatprep.mubr.bf16.mxu0 0
    %6231 = vmatmul.mubr.bf16.gmra.mxu0 %v6170
    %v6232 = vpop.f32.mrf.mxu0
    %v6233 = vadd.f32 0.0, %v6232
    %v6234 = vpop.f32.mrf.mxu0
    %v6235 = vpop.f32.mrf.mxu0
    %v6236 = vadd.f32 0.0, %v6235
    %v6237 = vpop.f32.mrf.mxu0
    %6238 = vmatprep.mubr.bf16.mxu0 0
    %6239 = vmatmul.mubr.bf16.gmra.mxu0 %v6173
    %v6240 = vpop.f32.mrf.mxu0
    %v6241 = vadd.f32 0.0, %v6240
    %v6242 = vpop.f32.mrf.mxu0
    %v6243 = vpop.f32.mrf.mxu0
    %v6244 = vadd.f32 0.0, %v6243
    %v6245 = vpop.f32.mrf.mxu0
    %6246 = vmatprep.mubr.bf16.mxu0 0
    %6247 = vmatmul.mubr.bf16.gmra.mxu0 %v6176
    %v6248 = vpop.f32.mrf.mxu0
    %v6249 = vadd.f32 0.0, %v6248
    %v6250 = vpop.f32.mrf.mxu0
    %v6251 = vpop.f32.mrf.mxu0
    %v6252 = vadd.f32 0.0, %v6251
    %v6253 = vpop.f32.mrf.mxu0
    %6254 = vmatprep.mubr.bf16.mxu0 0
    %6255 = vmatmul.mubr.bf16.gmra.mxu0 %v6179
    %v6256 = vpop.f32.mrf.mxu0
    %v6257 = vadd.f32 0.0, %v6256
    %v6258 = vpop.f32.mrf.mxu0
    %v6259 = vpop.f32.mrf.mxu0
    %v6260 = vadd.f32 0.0, %v6259
    %v6261 = vpop.f32.mrf.mxu0
    %6262 = vmatprep.mubr.bf16.mxu0 0
    %6263 = vmatmul.mubr.bf16.gmra.mxu0 %v6182
    %v6264 = vpop.f32.mrf.mxu0
    %v6265 = vadd.f32 0.0, %v6264
    %v6266 = vpop.f32.mrf.mxu0
    %v6267 = vpop.f32.mrf.mxu0
    %v6268 = vadd.f32 0.0, %v6267
    %v6269 = vpop.f32.mrf.mxu0
    %6270 = vmatprep.mubr.bf16.mxu0 0
    %6271 = vmatmul.mubr.bf16.gmra.mxu0 %v6185
    %v6272 = vpop.f32.mrf.mxu0
    %v6273 = vadd.f32 0.0, %v6272
    %v6274 = vpop.f32.mrf.mxu0
    %v6275 = vpop.f32.mrf.mxu0
    %v6276 = vadd.f32 0.0, %v6275
    %v6277 = vpop.f32.mrf.mxu0
    %6278 = vmatprep.mubr.bf16.mxu0 0
    %6279 = vmatmul.mubr.bf16.gmra.mxu0 %v6188
    %v6280 = vpop.f32.mrf.mxu0
    %v6281 = vadd.f32 0.0, %v6280
    %v6282 = vpop.f32.mrf.mxu0
    %v6283 = vpop.f32.mrf.mxu0
    %v6284 = vadd.f32 0.0, %v6283
    %v6285 = vpop.f32.mrf.mxu0
    %6286 = vdwg.mxu0
    %v6287 = vadd.f32 %v6109, %v6225
    %v6288 = vadd.f32 %v6110, %v6228
    %v6289 = vadd.f32 %v6111, %v6233
    %v6290 = vadd.f32 %v6112, %v6236
    %v6291 = vadd.f32 %v6113, %v6241
    %v6292 = vadd.f32 %v6114, %v6244
    %v6293 = vadd.f32 %v6115, %v6249
    %v6294 = vadd.f32 %v6116, %v6252
    %v6295 = vadd.f32 %v6117, %v6257
    %v6296 = vadd.f32 %v6118, %v6260
    %v6297 = vadd.f32 %v6119, %v6265
    %v6298 = vadd.f32 %v6120, %v6268
    %v6299 = vadd.f32 %v6121, %v6273
    %v6300 = vadd.f32 %v6122, %v6276
    %v6301 = vadd.f32 %v6123, %v6281
    %v6302 = vadd.f32 %v6124, %v6284
    %s6303 = scalar_lea.vmem [#allocation3], 48
    %v6304 = vld [vmem:[%s6303 + $0x7] sm:$0xff]
    %v6305 = vld [vmem:[%s6303 + $0x1f] sm:$0xff]
    %v6306 = vld [vmem:[%s6303 + $0x37] sm:$0xff]
    %v6307 = vld [vmem:[%s6303 + $0x4f] sm:$0xff]
    %v6308 = vld [vmem:[%s6303 + $0x67] sm:$0xff]
    %v6309 = vld [vmem:[%s6303 + $0x7f] sm:$0xff]
    %v6310 = vld [vmem:[%s6303 + $0x97] sm:$0xff]
    %v6311 = vld [vmem:[%s6303 + $0xaf] sm:$0xff]
    %v6312 = vld [vmem:[%s6303 + $0xf7] sm:$0xff]
    %v6313 = vld [vmem:[%s6303 + $0x10f] sm:$0xff]
    %v6314 = vld [vmem:[%s6303 + $0x127] sm:$0xff]
    %v6315 = vld [vmem:[%s6303 + $0x13f] sm:$0xff]
    %v6316 = vld [vmem:[%s6303 + $0x157] sm:$0xff]
    %v6317 = vld [vmem:[%s6303 + $0x16f] sm:$0xff]
    %v6318 = vld [vmem:[%s6303 + $0x187] sm:$0xff]
    %v6319 = vld [vmem:[%s6303 + $0x19f] sm:$0xff]
    %v6320 = vpack.c.bf16 %v6305, %v6304
    %v6321 = vpack.c.bf16 %v6307, %v6306
    %v6322 = vpack.c.bf16 %v6309, %v6308
    %v6323 = vpack.c.bf16 %v6311, %v6310
    %v6324 = vpack.c.bf16 %v6313, %v6312
    %v6325 = vpack.c.bf16 %v6315, %v6314
    %v6326 = vpack.c.bf16 %v6317, %v6316
    %v6327 = vpack.c.bf16 %v6319, %v6318
    %s6328 = scalar_lea.vmem %s3, 96
    %v6329 = vld [vmem:[%s6328] sm:$0xf]
    %v6330 = vld [vmem:[%s6328 + $0x4] sm:$0xf]
    %v6331 = vld [vmem:[%s6328 + $0x8] sm:$0xf]
    %v6332 = vld [vmem:[%s6328 + $0xc] sm:$0xf]
    %v6337 = vunpack.c.l.b16 %v6329
    %v6338 = vunpack.c.l.b16 %v6330
    %v6339 = vunpack.c.l.b16 %v6331
    %v6340 = vunpack.c.l.b16 %v6332
    %v6341 = vpack.c.b16 %v6338, %v6337
    %v6342 = vpack.c.b16 %v6340, %v6339
    %v6346 = vsel %vm241, %v6320, 0
    %v6349 = vsel %vm241, %v6321, 0
    %v6352 = vsel %vm241, %v6322, 0
    %v6355 = vsel %vm241, %v6323, 0
    %v6358 = vsel %vm241, %v6324, 0
    %v6361 = vsel %vm241, %v6325, 0
    %v6364 = vsel %vm241, %v6326, 0
    %v6367 = vsel %vm241, %v6327, 0
    %6369 = vmatprep.subr.bf16.mxu0 0
    %6370 = vmatpush1.bf16.msra.mxu0 0
    %6371 = vmatprep.subr.bf16.mxu0 0
    %6372 = vmatpush1.bf16.msra.mxu0 0
    %6373 = vmatprep.subr.bf16.mxu0 0
    %6374 = vmatpush1.bf16.msra.mxu0 0
    %6375 = vmatprep.subr.bf16.mxu0 0
    %6376 = vmatpush1.bf16.msra.mxu0 0
    %6377 = vmatprep.subr.bf16.mxu0 0
    %6378 = vmatpush1.bf16.msra.mxu0 0
    %6379 = vmatprep.subr.bf16.mxu0 0
    %6380 = vmatpush1.bf16.msra.mxu0 0
    %6381 = vmatprep.subr.bf16.mxu0 0
    %6382 = vmatpush1.bf16.msra.mxu0 %v6342
    %6383 = vmatprep.subr.bf16.mxu0 0
    %6384 = vmatpush1.bf16.msra.mxu0 %v6341
    %6385 = vmatprep.subr.bf16.mxu0 0
    %6386 = vmatpush2.bf16.msra.mxu0 0
    %6387 = vmatprep.subr.bf16.mxu0 0
    %6388 = vmatpush2.bf16.msra.mxu0 0
    %6389 = vmatprep.subr.bf16.mxu0 0
    %6390 = vmatpush2.bf16.msra.mxu0 0
    %6391 = vmatprep.subr.bf16.mxu0 0
    %6392 = vmatpush2.bf16.msra.mxu0 0
    %6393 = vmatprep.subr.bf16.mxu0 0
    %6394 = vmatpush2.bf16.msra.mxu0 0
    %6395 = vmatprep.subr.bf16.mxu0 0
    %6396 = vmatpush2.bf16.msra.mxu0 0
    %6397 = vmatprep.subr.bf16.mxu0 0
    %6398 = vmatpush2.bf16.msra.mxu0 0
    %6399 = vmatprep.subr.bf16.mxu0 0
    %6400 = vmatpush2.bf16.msra.mxu0 0
    %6401 = vmatprep.mubr.bf16.mxu0 0
    %6402 = vmatmul.mubr.bf16.gmra.mxu0 %v6346
    %v6403 = vpop.f32.mrf.mxu0
    %v6404 = vadd.f32 0.0, %v6403
    %v6405 = vpop.f32.mrf.mxu0
    %v6406 = vpop.f32.mrf.mxu0
    %v6407 = vadd.f32 0.0, %v6406
    %v6408 = vpop.f32.mrf.mxu0
    %6409 = vmatprep.mubr.bf16.mxu0 0
    %6410 = vmatmul.mubr.bf16.gmra.mxu0 %v6349
    %v6411 = vpop.f32.mrf.mxu0
    %v6412 = vadd.f32 0.0, %v6411
    %v6413 = vpop.f32.mrf.mxu0
    %v6414 = vpop.f32.mrf.mxu0
    %v6415 = vadd.f32 0.0, %v6414
    %v6416 = vpop.f32.mrf.mxu0
    %6417 = vmatprep.mubr.bf16.mxu0 0
    %6418 = vmatmul.mubr.bf16.gmra.mxu0 %v6352
    %v6419 = vpop.f32.mrf.mxu0
    %v6420 = vadd.f32 0.0, %v6419
    %v6421 = vpop.f32.mrf.mxu0
    %v6422 = vpop.f32.mrf.mxu0
    %v6423 = vadd.f32 0.0, %v6422
    %v6424 = vpop.f32.mrf.mxu0
    %6425 = vmatprep.mubr.bf16.mxu0 0
    %6426 = vmatmul.mubr.bf16.gmra.mxu0 %v6355
    %v6427 = vpop.f32.mrf.mxu0
    %v6428 = vadd.f32 0.0, %v6427
    %v6429 = vpop.f32.mrf.mxu0
    %v6430 = vpop.f32.mrf.mxu0
    %v6431 = vadd.f32 0.0, %v6430
    %v6432 = vpop.f32.mrf.mxu0
    %6433 = vmatprep.mubr.bf16.mxu0 0
    %6434 = vmatmul.mubr.bf16.gmra.mxu0 %v6358
    %v6435 = vpop.f32.mrf.mxu0
    %v6436 = vadd.f32 0.0, %v6435
    %v6437 = vpop.f32.mrf.mxu0
    %v6438 = vpop.f32.mrf.mxu0
    %v6439 = vadd.f32 0.0, %v6438
    %v6440 = vpop.f32.mrf.mxu0
    %6441 = vmatprep.mubr.bf16.mxu0 0
    %6442 = vmatmul.mubr.bf16.gmra.mxu0 %v6361
    %v6443 = vpop.f32.mrf.mxu0
    %v6444 = vadd.f32 0.0, %v6443
    %v6445 = vpop.f32.mrf.mxu0
    %v6446 = vpop.f32.mrf.mxu0
    %v6447 = vadd.f32 0.0, %v6446
    %v6448 = vpop.f32.mrf.mxu0
    %6449 = vmatprep.mubr.bf16.mxu0 0
    %6450 = vmatmul.mubr.bf16.gmra.mxu0 %v6364
    %v6451 = vpop.f32.mrf.mxu0
    %v6452 = vadd.f32 0.0, %v6451
    %v6453 = vpop.f32.mrf.mxu0
    %v6454 = vpop.f32.mrf.mxu0
    %v6455 = vadd.f32 0.0, %v6454
    %v6456 = vpop.f32.mrf.mxu0
    %6457 = vmatprep.mubr.bf16.mxu0 0
    %6458 = vmatmul.mubr.bf16.gmra.mxu0 %v6367
    %v6459 = vpop.f32.mrf.mxu0
    %v6460 = vadd.f32 0.0, %v6459
    %v6461 = vpop.f32.mrf.mxu0
    %v6462 = vpop.f32.mrf.mxu0
    %v6463 = vadd.f32 0.0, %v6462
    %v6464 = vpop.f32.mrf.mxu0
    %6465 = vdwg.mxu0
    %v6466 = vadd.f32 %v6287, %v6404
    %v6467 = vadd.f32 %v6288, %v6407
    %v6468 = vadd.f32 %v6289, %v6412
    %v6469 = vadd.f32 %v6290, %v6415
    %v6470 = vadd.f32 %v6291, %v6420
    %v6471 = vadd.f32 %v6292, %v6423
    %v6472 = vadd.f32 %v6293, %v6428
    %v6473 = vadd.f32 %v6294, %v6431
    %v6474 = vadd.f32 %v6295, %v6436
    %v6475 = vadd.f32 %v6296, %v6439
    %v6476 = vadd.f32 %v6297, %v6444
    %v6477 = vadd.f32 %v6298, %v6447
    %v6478 = vadd.f32 %v6299, %v6452
    %v6479 = vadd.f32 %v6300, %v6455
    %v6480 = vadd.f32 %v6301, %v6460
    %v6481 = vadd.f32 %v6302, %v6463
    %v6482 = vld [vmem:[%s6303 + $0x8] sm:$0xff]
    %v6483 = vld [vmem:[%s6303 + $0x20] sm:$0xff]
    %v6484 = vld [vmem:[%s6303 + $0x38] sm:$0xff]
    %v6485 = vld [vmem:[%s6303 + $0x50] sm:$0xff]
    %v6486 = vld [vmem:[%s6303 + $0x68] sm:$0xff]
    %v6487 = vld [vmem:[%s6303 + $0x80] sm:$0xff]
    %v6488 = vld [vmem:[%s6303 + $0x98] sm:$0xff]
    %v6489 = vld [vmem:[%s6303 + $0xb0] sm:$0xff]
    %v6490 = vld [vmem:[%s6303 + $0xf8] sm:$0xff]
    %v6491 = vld [vmem:[%s6303 + $0x110] sm:$0xff]
    %v6492 = vld [vmem:[%s6303 + $0x128] sm:$0xff]
    %v6493 = vld [vmem:[%s6303 + $0x140] sm:$0xff]
    %v6494 = vld [vmem:[%s6303 + $0x158] sm:$0xff]
    %v6495 = vld [vmem:[%s6303 + $0x170] sm:$0xff]
    %v6496 = vld [vmem:[%s6303 + $0x188] sm:$0xff]
    %v6497 = vld [vmem:[%s6303 + $0x1a0] sm:$0xff]
    %v6498 = vpack.c.bf16 %v6483, %v6482
    %v6499 = vpack.c.bf16 %v6485, %v6484
    %v6500 = vpack.c.bf16 %v6487, %v6486
    %v6501 = vpack.c.bf16 %v6489, %v6488
    %v6502 = vpack.c.bf16 %v6491, %v6490
    %v6503 = vpack.c.bf16 %v6493, %v6492
    %v6504 = vpack.c.bf16 %v6495, %v6494
    %v6505 = vpack.c.bf16 %v6497, %v6496
    %s6506 = scalar_lea.vmem %s3, 112
    %v6507 = vld [vmem:[%s6506] sm:$0xf]
    %v6508 = vld [vmem:[%s6506 + $0x4] sm:$0xf]
    %v6509 = vld [vmem:[%s6506 + $0x8] sm:$0xf]
    %v6510 = vld [vmem:[%s6506 + $0xc] sm:$0xf]
    %v6515 = vunpack.c.l.b16 %v6507
    %v6516 = vunpack.c.l.b16 %v6508
    %v6517 = vunpack.c.l.b16 %v6509
    %v6518 = vunpack.c.l.b16 %v6510
    %v6519 = vpack.c.b16 %v6516, %v6515
    %v6520 = vpack.c.b16 %v6518, %v6517
    %v6524 = vsel %vm241, %v6498, 0
    %v6527 = vsel %vm241, %v6499, 0
    %v6530 = vsel %vm241, %v6500, 0
    %v6533 = vsel %vm241, %v6501, 0
    %v6536 = vsel %vm241, %v6502, 0
    %v6539 = vsel %vm241, %v6503, 0
    %v6542 = vsel %vm241, %v6504, 0
    %v6545 = vsel %vm241, %v6505, 0
    %6547 = vmatprep.subr.bf16.mxu0 0
    %6548 = vmatpush1.bf16.msra.mxu0 0
    %6549 = vmatprep.subr.bf16.mxu0 0
    %6550 = vmatpush1.bf16.msra.mxu0 0
    %6551 = vmatprep.subr.bf16.mxu0 0
    %6552 = vmatpush1.bf16.msra.mxu0 0
    %6553 = vmatprep.subr.bf16.mxu0 0
    %6554 = vmatpush1.bf16.msra.mxu0 0
    %6555 = vmatprep.subr.bf16.mxu0 0
    %6556 = vmatpush1.bf16.msra.mxu0 0
    %6557 = vmatprep.subr.bf16.mxu0 0
    %6558 = vmatpush1.bf16.msra.mxu0 0
    %6559 = vmatprep.subr.bf16.mxu0 0
    %6560 = vmatpush1.bf16.msra.mxu0 %v6520
    %6561 = vmatprep.subr.bf16.mxu0 0
    %6562 = vmatpush1.bf16.msra.mxu0 %v6519
    %6563 = vmatprep.subr.bf16.mxu0 0
    %6564 = vmatpush2.bf16.msra.mxu0 0
    %6565 = vmatprep.subr.bf16.mxu0 0
    %6566 = vmatpush2.bf16.msra.mxu0 0
    %6567 = vmatprep.subr.bf16.mxu0 0
    %6568 = vmatpush2.bf16.msra.mxu0 0
    %6569 = vmatprep.subr.bf16.mxu0 0
    %6570 = vmatpush2.bf16.msra.mxu0 0
    %6571 = vmatprep.subr.bf16.mxu0 0
    %6572 = vmatpush2.bf16.msra.mxu0 0
    %6573 = vmatprep.subr.bf16.mxu0 0
    %6574 = vmatpush2.bf16.msra.mxu0 0
    %6575 = vmatprep.subr.bf16.mxu0 0
    %6576 = vmatpush2.bf16.msra.mxu0 0
    %6577 = vmatprep.subr.bf16.mxu0 0
    %6578 = vmatpush2.bf16.msra.mxu0 0
    %6579 = vmatprep.mubr.bf16.mxu0 0
    %6580 = vmatmul.mubr.bf16.gmra.mxu0 %v6524
    %v6581 = vpop.f32.mrf.mxu0
    %v6582 = vadd.f32 0.0, %v6581
    %v6583 = vpop.f32.mrf.mxu0
    %v6584 = vpop.f32.mrf.mxu0
    %v6585 = vadd.f32 0.0, %v6584
    %v6586 = vpop.f32.mrf.mxu0
    %6587 = vmatprep.mubr.bf16.mxu0 0
    %6588 = vmatmul.mubr.bf16.gmra.mxu0 %v6527
    %v6589 = vpop.f32.mrf.mxu0
    %v6590 = vadd.f32 0.0, %v6589
    %v6591 = vpop.f32.mrf.mxu0
    %v6592 = vpop.f32.mrf.mxu0
    %v6593 = vadd.f32 0.0, %v6592
    %v6594 = vpop.f32.mrf.mxu0
    %6595 = vmatprep.mubr.bf16.mxu0 0
    %6596 = vmatmul.mubr.bf16.gmra.mxu0 %v6530
    %v6597 = vpop.f32.mrf.mxu0
    %v6598 = vadd.f32 0.0, %v6597
    %v6599 = vpop.f32.mrf.mxu0
    %v6600 = vpop.f32.mrf.mxu0
    %v6601 = vadd.f32 0.0, %v6600
    %v6602 = vpop.f32.mrf.mxu0
    %6603 = vmatprep.mubr.bf16.mxu0 0
    %6604 = vmatmul.mubr.bf16.gmra.mxu0 %v6533
    %v6605 = vpop.f32.mrf.mxu0
    %v6606 = vadd.f32 0.0, %v6605
    %v6607 = vpop.f32.mrf.mxu0
    %v6608 = vpop.f32.mrf.mxu0
    %v6609 = vadd.f32 0.0, %v6608
    %v6610 = vpop.f32.mrf.mxu0
    %6611 = vmatprep.mubr.bf16.mxu0 0
    %6612 = vmatmul.mubr.bf16.gmra.mxu0 %v6536
    %v6613 = vpop.f32.mrf.mxu0
    %v6614 = vadd.f32 0.0, %v6613
    %v6615 = vpop.f32.mrf.mxu0
    %v6616 = vpop.f32.mrf.mxu0
    %v6617 = vadd.f32 0.0, %v6616
    %v6618 = vpop.f32.mrf.mxu0
    %6619 = vmatprep.mubr.bf16.mxu0 0
    %6620 = vmatmul.mubr.bf16.gmra.mxu0 %v6539
    %v6621 = vpop.f32.mrf.mxu0
    %v6622 = vadd.f32 0.0, %v6621
    %v6623 = vpop.f32.mrf.mxu0
    %v6624 = vpop.f32.mrf.mxu0
    %v6625 = vadd.f32 0.0, %v6624
    %v6626 = vpop.f32.mrf.mxu0
    %6627 = vmatprep.mubr.bf16.mxu0 0
    %6628 = vmatmul.mubr.bf16.gmra.mxu0 %v6542
    %v6629 = vpop.f32.mrf.mxu0
    %v6630 = vadd.f32 0.0, %v6629
    %v6631 = vpop.f32.mrf.mxu0
    %v6632 = vpop.f32.mrf.mxu0
    %v6633 = vadd.f32 0.0, %v6632
    %v6634 = vpop.f32.mrf.mxu0
    %6635 = vmatprep.mubr.bf16.mxu0 0
    %6636 = vmatmul.mubr.bf16.gmra.mxu0 %v6545
    %v6637 = vpop.f32.mrf.mxu0
    %v6638 = vadd.f32 0.0, %v6637
    %v6639 = vpop.f32.mrf.mxu0
    %v6640 = vpop.f32.mrf.mxu0
    %v6641 = vadd.f32 0.0, %v6640
    %v6642 = vpop.f32.mrf.mxu0
    %6643 = vdwg.mxu0
    %v6644 = vadd.f32 %v6466, %v6582
    %v6645 = vadd.f32 %v6467, %v6585
    %v6646 = vadd.f32 %v6468, %v6590
    %v6647 = vadd.f32 %v6469, %v6593
    %v6648 = vadd.f32 %v6470, %v6598
    %v6649 = vadd.f32 %v6471, %v6601
    %v6650 = vadd.f32 %v6472, %v6606
    %v6651 = vadd.f32 %v6473, %v6609
    %v6652 = vadd.f32 %v6474, %v6614
    %v6653 = vadd.f32 %v6475, %v6617
    %v6654 = vadd.f32 %v6476, %v6622
    %v6655 = vadd.f32 %v6477, %v6625
    %v6656 = vadd.f32 %v6478, %v6630
    %v6657 = vadd.f32 %v6479, %v6633
    %v6658 = vadd.f32 %v6480, %v6638
    %v6659 = vadd.f32 %v6481, %v6641
    %v6660 = vld [vmem:[%s6303 + $0x9] sm:$0xff]
    %v6661 = vld [vmem:[%s6303 + $0x21] sm:$0xff]
    %v6662 = vld [vmem:[%s6303 + $0x39] sm:$0xff]
    %v6663 = vld [vmem:[%s6303 + $0x51] sm:$0xff]
    %v6664 = vld [vmem:[%s6303 + $0x69] sm:$0xff]
    %v6665 = vld [vmem:[%s6303 + $0x81] sm:$0xff]
    %v6666 = vld [vmem:[%s6303 + $0x99] sm:$0xff]
    %v6667 = vld [vmem:[%s6303 + $0xb1] sm:$0xff]
    %v6668 = vld [vmem:[%s6303 + $0xf9] sm:$0xff]
    %v6669 = vld [vmem:[%s6303 + $0x111] sm:$0xff]
    %v6670 = vld [vmem:[%s6303 + $0x129] sm:$0xff]
    %v6671 = vld [vmem:[%s6303 + $0x141] sm:$0xff]
    %v6672 = vld [vmem:[%s6303 + $0x159] sm:$0xff]
    %v6673 = vld [vmem:[%s6303 + $0x171] sm:$0xff]
    %v6674 = vld [vmem:[%s6303 + $0x189] sm:$0xff]
    %v6675 = vld [vmem:[%s6303 + $0x1a1] sm:$0xff]
    %v6676 = vpack.c.bf16 %v6661, %v6660
    %v6677 = vpack.c.bf16 %v6663, %v6662
    %v6678 = vpack.c.bf16 %v6665, %v6664
    %v6679 = vpack.c.bf16 %v6667, %v6666
    %v6680 = vpack.c.bf16 %v6669, %v6668
    %v6681 = vpack.c.bf16 %v6671, %v6670
    %v6682 = vpack.c.bf16 %v6673, %v6672
    %v6683 = vpack.c.bf16 %v6675, %v6674
    %s6684 = scalar_lea.vmem %s3, 128
    %v6685 = vld [vmem:[%s6684] sm:$0xf]
    %v6686 = vld [vmem:[%s6684 + $0x4] sm:$0xf]
    %v6687 = vld [vmem:[%s6684 + $0x8] sm:$0xf]
    %v6688 = vld [vmem:[%s6684 + $0xc] sm:$0xf]
    %v6693 = vunpack.c.l.b16 %v6685
    %v6694 = vunpack.c.l.b16 %v6686
    %v6695 = vunpack.c.l.b16 %v6687
    %v6696 = vunpack.c.l.b16 %v6688
    %v6697 = vpack.c.b16 %v6694, %v6693
    %v6698 = vpack.c.b16 %v6696, %v6695
    %v6702 = vsel %vm241, %v6676, 0
    %v6705 = vsel %vm241, %v6677, 0
    %v6708 = vsel %vm241, %v6678, 0
    %v6711 = vsel %vm241, %v6679, 0
    %v6714 = vsel %vm241, %v6680, 0
    %v6717 = vsel %vm241, %v6681, 0
    %v6720 = vsel %vm241, %v6682, 0
    %v6723 = vsel %vm241, %v6683, 0
    %6725 = vmatprep.subr.bf16.mxu0 0
    %6726 = vmatpush1.bf16.msra.mxu0 0
    %6727 = vmatprep.subr.bf16.mxu0 0
    %6728 = vmatpush1.bf16.msra.mxu0 0
    %6729 = vmatprep.subr.bf16.mxu0 0
    %6730 = vmatpush1.bf16.msra.mxu0 0
    %6731 = vmatprep.subr.bf16.mxu0 0
    %6732 = vmatpush1.bf16.msra.mxu0 0
    %6733 = vmatprep.subr.bf16.mxu0 0
    %6734 = vmatpush1.bf16.msra.mxu0 0
    %6735 = vmatprep.subr.bf16.mxu0 0
    %6736 = vmatpush1.bf16.msra.mxu0 0
    %6737 = vmatprep.subr.bf16.mxu0 0
    %6738 = vmatpush1.bf16.msra.mxu0 %v6698
    %6739 = vmatprep.subr.bf16.mxu0 0
    %6740 = vmatpush1.bf16.msra.mxu0 %v6697
    %6741 = vmatprep.subr.bf16.mxu0 0
    %6742 = vmatpush2.bf16.msra.mxu0 0
    %6743 = vmatprep.subr.bf16.mxu0 0
    %6744 = vmatpush2.bf16.msra.mxu0 0
    %6745 = vmatprep.subr.bf16.mxu0 0
    %6746 = vmatpush2.bf16.msra.mxu0 0
    %6747 = vmatprep.subr.bf16.mxu0 0
    %6748 = vmatpush2.bf16.msra.mxu0 0
    %6749 = vmatprep.subr.bf16.mxu0 0
    %6750 = vmatpush2.bf16.msra.mxu0 0
    %6751 = vmatprep.subr.bf16.mxu0 0
    %6752 = vmatpush2.bf16.msra.mxu0 0
    %6753 = vmatprep.subr.bf16.mxu0 0
    %6754 = vmatpush2.bf16.msra.mxu0 0
    %6755 = vmatprep.subr.bf16.mxu0 0
    %6756 = vmatpush2.bf16.msra.mxu0 0
    %6757 = vmatprep.mubr.bf16.mxu0 0
    %6758 = vmatmul.mubr.bf16.gmra.mxu0 %v6702
    %v6759 = vpop.f32.mrf.mxu0
    %v6760 = vadd.f32 0.0, %v6759
    %v6761 = vpop.f32.mrf.mxu0
    %v6762 = vpop.f32.mrf.mxu0
    %v6763 = vadd.f32 0.0, %v6762
    %v6764 = vpop.f32.mrf.mxu0
    %6765 = vmatprep.mubr.bf16.mxu0 0
    %6766 = vmatmul.mubr.bf16.gmra.mxu0 %v6705
    %v6767 = vpop.f32.mrf.mxu0
    %v6768 = vadd.f32 0.0, %v6767
    %v6769 = vpop.f32.mrf.mxu0
    %v6770 = vpop.f32.mrf.mxu0
    %v6771 = vadd.f32 0.0, %v6770
    %v6772 = vpop.f32.mrf.mxu0
    %6773 = vmatprep.mubr.bf16.mxu0 0
    %6774 = vmatmul.mubr.bf16.gmra.mxu0 %v6708
    %v6775 = vpop.f32.mrf.mxu0
    %v6776 = vadd.f32 0.0, %v6775
    %v6777 = vpop.f32.mrf.mxu0
    %v6778 = vpop.f32.mrf.mxu0
    %v6779 = vadd.f32 0.0, %v6778
    %v6780 = vpop.f32.mrf.mxu0
    %6781 = vmatprep.mubr.bf16.mxu0 0
    %6782 = vmatmul.mubr.bf16.gmra.mxu0 %v6711
    %v6783 = vpop.f32.mrf.mxu0
    %v6784 = vadd.f32 0.0, %v6783
    %v6785 = vpop.f32.mrf.mxu0
    %v6786 = vpop.f32.mrf.mxu0
    %v6787 = vadd.f32 0.0, %v6786
    %v6788 = vpop.f32.mrf.mxu0
    %6789 = vmatprep.mubr.bf16.mxu0 0
    %6790 = vmatmul.mubr.bf16.gmra.mxu0 %v6714
    %v6791 = vpop.f32.mrf.mxu0
    %v6792 = vadd.f32 0.0, %v6791
    %v6793 = vpop.f32.mrf.mxu0
    %v6794 = vpop.f32.mrf.mxu0
    %v6795 = vadd.f32 0.0, %v6794
    %v6796 = vpop.f32.mrf.mxu0
    %6797 = vmatprep.mubr.bf16.mxu0 0
    %6798 = vmatmul.mubr.bf16.gmra.mxu0 %v6717
    %v6799 = vpop.f32.mrf.mxu0
    %v6800 = vadd.f32 0.0, %v6799
    %v6801 = vpop.f32.mrf.mxu0
    %v6802 = vpop.f32.mrf.mxu0
    %v6803 = vadd.f32 0.0, %v6802
    %v6804 = vpop.f32.mrf.mxu0
    %6805 = vmatprep.mubr.bf16.mxu0 0
    %6806 = vmatmul.mubr.bf16.gmra.mxu0 %v6720
    %v6807 = vpop.f32.mrf.mxu0
    %v6808 = vadd.f32 0.0, %v6807
    %v6809 = vpop.f32.mrf.mxu0
    %v6810 = vpop.f32.mrf.mxu0
    %v6811 = vadd.f32 0.0, %v6810
    %v6812 = vpop.f32.mrf.mxu0
    %6813 = vmatprep.mubr.bf16.mxu0 0
    %6814 = vmatmul.mubr.bf16.gmra.mxu0 %v6723
    %v6815 = vpop.f32.mrf.mxu0
    %v6816 = vadd.f32 0.0, %v6815
    %v6817 = vpop.f32.mrf.mxu0
    %v6818 = vpop.f32.mrf.mxu0
    %v6819 = vadd.f32 0.0, %v6818
    %v6820 = vpop.f32.mrf.mxu0
    %6821 = vdwg.mxu0
    %v6822 = vadd.f32 %v6644, %v6760
    %v6823 = vadd.f32 %v6645, %v6763
    %v6824 = vadd.f32 %v6646, %v6768
    %v6825 = vadd.f32 %v6647, %v6771
    %v6826 = vadd.f32 %v6648, %v6776
    %v6827 = vadd.f32 %v6649, %v6779
    %v6828 = vadd.f32 %v6650, %v6784
    %v6829 = vadd.f32 %v6651, %v6787
    %v6830 = vadd.f32 %v6652, %v6792
    %v6831 = vadd.f32 %v6653, %v6795
    %v6832 = vadd.f32 %v6654, %v6800
    %v6833 = vadd.f32 %v6655, %v6803
    %v6834 = vadd.f32 %v6656, %v6808
    %v6835 = vadd.f32 %v6657, %v6811
    %v6836 = vadd.f32 %v6658, %v6816
    %v6837 = vadd.f32 %v6659, %v6819
    %v6838 = vld [vmem:[%s4] sm:$0x1]
    %v6840 = vlaneseq
    %v6841 = vshrl.u32 %v6840, 7
    %v6842 = vsub.s32 0, %v6841
    %v6843 = vrot.slane %v6838, %v6842
    %v6845 = vadd.f32 %v6822, %v6843
    %v6846 = vadd.f32 %v6823, %v6843
    %v6847 = vadd.f32 %v6824, %v6843
    %v6848 = vadd.f32 %v6825, %v6843
    %v6849 = vadd.f32 %v6826, %v6843
    %v6850 = vadd.f32 %v6827, %v6843
    %v6851 = vadd.f32 %v6828, %v6843
    %v6852 = vadd.f32 %v6829, %v6843
    %v6853 = vadd.f32 %v6830, %v6843
    %v6854 = vadd.f32 %v6831, %v6843
    %v6855 = vadd.f32 %v6832, %v6843
    %v6856 = vadd.f32 %v6833, %v6843
    %v6857 = vadd.f32 %v6834, %v6843
    %v6858 = vadd.f32 %v6835, %v6843
    %v6859 = vadd.f32 %v6836, %v6843
    %v6860 = vadd.f32 %v6837, %v6843
    %v6861 = vmax.f32 %v6845, %v6846
    %v6862 = vmax.f32 %v6847, %v6848
    %v6863 = vmax.f32 %v6849, %v6850
    %v6864 = vmax.f32 %v6851, %v6852
    %v6865 = vmax.f32 %v6853, %v6854
    %v6866 = vmax.f32 %v6855, %v6856
    %v6867 = vmax.f32 %v6857, %v6858
    %v6868 = vmax.f32 %v6859, %v6860
    %6869 = vst.msk [vmem:[#allocation4] sm:$0xff] %vm241, %v6861
    %6870 = vst.msk [vmem:[#allocation4 + $0x8] sm:$0xff] %vm241, %v6862
    %6871 = vst.msk [vmem:[#allocation4 + $0x10] sm:$0xff] %vm241, %v6863
    %6872 = vst.msk [vmem:[#allocation4 + $0x18] sm:$0xff] %vm241, %v6864
    %6873 = vst.msk [vmem:[#allocation4 + $0x20] sm:$0xff] %vm241, %v6865
    %6874 = vst.msk [vmem:[#allocation4 + $0x28] sm:$0xff] %vm241, %v6866
    %6875 = vst.msk [vmem:[#allocation4 + $0x30] sm:$0xff] %vm241, %v6867
    %6876 = vst.msk [vmem:[#allocation4 + $0x38] sm:$0xff] %vm241, %v6868
    %v6877 = vld [vmem:[#allocation4] ss:$2 sm:$0xf]
    %s6878 = scalar_lea.vmem [#allocation4], 8
    %v6879 = vld [vmem:[%s6878] ss:$2 sm:$0xf]
    %s6880 = scalar_lea.vmem [#allocation4], 16
    %v6881 = vld [vmem:[%s6880] ss:$2 sm:$0xf]
    %s6882 = scalar_lea.vmem [#allocation4], 24
    %v6883 = vld [vmem:[%s6882] ss:$2 sm:$0xf]
    %s6884 = scalar_lea.vmem [#allocation4], 32
    %v6885 = vld [vmem:[%s6884] ss:$2 sm:$0xf]
    %s6886 = scalar_lea.vmem [#allocation4], 40
    %v6887 = vld [vmem:[%s6886] ss:$2 sm:$0xf]
    %s6888 = scalar_lea.vmem [#allocation4], 48
    %v6889 = vld [vmem:[%s6888] ss:$2 sm:$0xf]
    %s6890 = scalar_lea.vmem [#allocation4], 56
    %v6891 = vld [vmem:[%s6890] ss:$2 sm:$0xf]
    %s6892 = scalar_lea.vmem [#allocation4], 1
    %v6893 = vld [vmem:[%s6892] ss:$2 sm:$0xf]
    %s6894 = scalar_lea.vmem [#allocation4], 9
    %v6895 = vld [vmem:[%s6894] ss:$2 sm:$0xf]
    %s6896 = scalar_lea.vmem [#allocation4], 17
    %v6897 = vld [vmem:[%s6896] ss:$2 sm:$0xf]
    %s6898 = scalar_lea.vmem [#allocation4], 25
    %v6899 = vld [vmem:[%s6898] ss:$2 sm:$0xf]
    %s6900 = scalar_lea.vmem [#allocation4], 33
    %v6901 = vld [vmem:[%s6900] ss:$2 sm:$0xf]
    %s6902 = scalar_lea.vmem [#allocation4], 41
    %v6903 = vld [vmem:[%s6902] ss:$2 sm:$0xf]
    %s6904 = scalar_lea.vmem [#allocation4], 49
    %v6905 = vld [vmem:[%s6904] ss:$2 sm:$0xf]
    %s6906 = scalar_lea.vmem [#allocation4], 57
    %v6907 = vld [vmem:[%s6906] ss:$2 sm:$0xf]
    %v6908 = vmax.f32 %v6877, %v6893
    %v6909 = vmax.f32 %v6879, %v6895
    %v6910 = vmax.f32 %v6881, %v6897
    %v6911 = vmax.f32 %v6883, %v6899
    %v6912 = vmax.f32 %v6885, %v6901
    %v6913 = vmax.f32 %v6887, %v6903
    %v6914 = vmax.f32 %v6889, %v6905
    %v6915 = vmax.f32 %v6891, %v6907
    %v6916 = vmax.f32 %v6908, 0.0
    %v6917 = vmax.f32 %v6909, 0.0
    %v6918 = vmax.f32 %v6910, 0.0
    %v6919 = vmax.f32 %v6911, 0.0
    %v6920 = vmax.f32 %v6912, 0.0
    %v6921 = vmax.f32 %v6913, 0.0
    %v6922 = vmax.f32 %v6914, 0.0
    %v6923 = vmax.f32 %v6915, 0.0
    %vm6924 = vcmask 257024
    %6925 = vst.msk [vmem:[#allocation5] sm:$0xf] %vm6924, %v6916
    %6926 = vst.msk [vmem:[#allocation5 + $0x4] sm:$0xf] %vm6924, %v6917
    %6927 = vst.msk [vmem:[#allocation5 + $0x8] sm:$0xf] %vm6924, %v6918
    %6928 = vst.msk [vmem:[#allocation5 + $0xc] sm:$0xf] %vm6924, %v6919
    %6929 = vst.msk [vmem:[#allocation5 + $0x10] sm:$0xf] %vm6924, %v6920
    %6930 = vst.msk [vmem:[#allocation5 + $0x14] sm:$0xf] %vm6924, %v6921
    %6931 = vst.msk [vmem:[#allocation5 + $0x18] sm:$0xf] %vm6924, %v6922
    %6932 = vst.msk [vmem:[#allocation5 + $0x1c] sm:$0xf] %vm6924, %v6923
    %v6933 = vld [vmem:[#allocation5] sm:$0x1]
    %v6934 = vld [vmem:[#allocation5 + $0x10] sm:$0x1]
    %v6935 = vpack.c.bf16 %v6933, %v6933
    %v6936 = vpack.c.bf16 %v6934, %v6934
    %v6937 = vld [vmem:[%s5] sm:$0xf]
    %v6938 = vld [vmem:[%s5 + $0x4] sm:$0xf]
    %v6939 = vld [vmem:[%s5 + $0x8] sm:$0xf]
    %v6940 = vld [vmem:[%s5 + $0xc] sm:$0xf]
    %v6941 = vld [vmem:[#allocation5 + $0x1] sm:$0x1]
    %v6942 = vld [vmem:[#allocation5 + $0x11] sm:$0x1]
    %v6943 = vpack.c.bf16 %v6941, %v6941
    %v6944 = vpack.c.bf16 %v6942, %v6942
    %s6945 = scalar_lea.vmem %s5, 16
    %v6946 = vld [vmem:[%s6945] sm:$0xf]
    %v6947 = vld [vmem:[%s6945 + $0x4] sm:$0xf]
    %v6948 = vld [vmem:[%s6945 + $0x8] sm:$0xf]
    %v6949 = vld [vmem:[%s6945 + $0xc] sm:$0xf]
    %v6952 = vunpack.c.l.b16 %v6943
    %v6953 = vunpack.c.l.b16 %v6944
    %v6954 = vrot.slane %v6953, 7
    %vm6955 = vcmask 1041409
    %v6956 = vsel %vm6955, %v6954, %v6952
    %v6957 = vpack.c.b16 %v6956, %v6956
    %v6962 = vunpack.c.l.b16 %v6946
    %v6963 = vunpack.c.l.b16 %v6947
    %v6964 = vunpack.c.l.b16 %v6948
    %v6965 = vunpack.c.l.b16 %v6949
    %v6966 = vpack.c.b16 %v6963, %v6962
    %v6967 = vpack.c.b16 %v6965, %v6964
    %v6971 = vsel %vm241, %v6957, 0
    %6973 = vmatprep.subr.bf16.mxu0 0
    %6974 = vmatpush1.bf16.msra.mxu0 0
    %6975 = vmatprep.subr.bf16.mxu0 0
    %6976 = vmatpush1.bf16.msra.mxu0 0
    %6977 = vmatprep.subr.bf16.mxu0 0
    %6978 = vmatpush1.bf16.msra.mxu0 0
    %6979 = vmatprep.subr.bf16.mxu0 0
    %6980 = vmatpush1.bf16.msra.mxu0 0
    %6981 = vmatprep.subr.bf16.mxu0 0
    %6982 = vmatpush1.bf16.msra.mxu0 0
    %6983 = vmatprep.subr.bf16.mxu0 0
    %6984 = vmatpush1.bf16.msra.mxu0 0
    %6985 = vmatprep.subr.bf16.mxu0 0
    %6986 = vmatpush1.bf16.msra.mxu0 %v6967
    %6987 = vmatprep.subr.bf16.mxu0 0
    %6988 = vmatpush1.bf16.msra.mxu0 %v6966
    %6989 = vmatprep.subr.bf16.mxu0 0
    %6990 = vmatpush2.bf16.msra.mxu0 0
    %6991 = vmatprep.subr.bf16.mxu0 0
    %6992 = vmatpush2.bf16.msra.mxu0 0
    %6993 = vmatprep.subr.bf16.mxu0 0
    %6994 = vmatpush2.bf16.msra.mxu0 0
    %6995 = vmatprep.subr.bf16.mxu0 0
    %6996 = vmatpush2.bf16.msra.mxu0 0
    %6997 = vmatprep.subr.bf16.mxu0 0
    %6998 = vmatpush2.bf16.msra.mxu0 0
    %6999 = vmatprep.subr.bf16.mxu0 0
    %7000 = vmatpush2.bf16.msra.mxu0 0
    %7001 = vmatprep.subr.bf16.mxu0 0
    %7002 = vmatpush2.bf16.msra.mxu0 0
    %7003 = vmatprep.subr.bf16.mxu0 0
    %7004 = vmatpush2.bf16.msra.mxu0 0
    %7005 = vmatprep.mubr.bf16.mxu0 0
    %7006 = vmatmul.mubr.bf16.gmra.mxu0 %v6971
    %v7007 = vpop.f32.mrf.mxu0
    %v7008 = vadd.f32 0.0, %v7007
    %v7009 = vpop.f32.mrf.mxu0
    %v7010 = vpop.f32.mrf.mxu0
    %v7011 = vpop.f32.mrf.mxu0
    %7012 = vdwg.mxu0
    %v7015 = vunpack.c.l.b16 %v6935
    %v7016 = vunpack.c.l.b16 %v6936
    %v7017 = vrot.slane %v7016, 7
    %v7018 = vsel %vm6955, %v7017, %v7015
    %v7019 = vpack.c.b16 %v7018, %v7018
    %v7024 = vunpack.c.l.b16 %v6937
    %v7025 = vunpack.c.l.b16 %v6938
    %v7026 = vunpack.c.l.b16 %v6939
    %v7027 = vunpack.c.l.b16 %v6940
    %v7028 = vpack.c.b16 %v7025, %v7024
    %v7029 = vpack.c.b16 %v7027, %v7026
    %v7033 = vsel %vm241, %v7019, 0
    %7035 = vmatprep.subr.bf16.mxu0 0
    %7036 = vmatpush1.bf16.msra.mxu0 0
    %7037 = vmatprep.subr.bf16.mxu0 0
    %7038 = vmatpush1.bf16.msra.mxu0 0
    %7039 = vmatprep.subr.bf16.mxu0 0
    %7040 = vmatpush1.bf16.msra.mxu0 0
    %7041 = vmatprep.subr.bf16.mxu0 0
    %7042 = vmatpush1.bf16.msra.mxu0 0
    %7043 = vmatprep.subr.bf16.mxu0 0
    %7044 = vmatpush1.bf16.msra.mxu0 0
    %7045 = vmatprep.subr.bf16.mxu0 0
    %7046 = vmatpush1.bf16.msra.mxu0 0
    %7047 = vmatprep.subr.bf16.mxu0 0
    %7048 = vmatpush1.bf16.msra.mxu0 %v7029
    %7049 = vmatprep.subr.bf16.mxu0 0
    %7050 = vmatpush1.bf16.msra.mxu0 %v7028
    %7051 = vmatprep.subr.bf16.mxu0 0
    %7052 = vmatpush2.bf16.msra.mxu0 0
    %7053 = vmatprep.subr.bf16.mxu0 0
    %7054 = vmatpush2.bf16.msra.mxu0 0
    %7055 = vmatprep.subr.bf16.mxu0 0
    %7056 = vmatpush2.bf16.msra.mxu0 0
    %7057 = vmatprep.subr.bf16.mxu0 0
    %7058 = vmatpush2.bf16.msra.mxu0 0
    %7059 = vmatprep.subr.bf16.mxu0 0
    %7060 = vmatpush2.bf16.msra.mxu0 0
    %7061 = vmatprep.subr.bf16.mxu0 0
    %7062 = vmatpush2.bf16.msra.mxu0 0
    %7063 = vmatprep.subr.bf16.mxu0 0
    %7064 = vmatpush2.bf16.msra.mxu0 0
    %7065 = vmatprep.subr.bf16.mxu0 0
    %7066 = vmatpush2.bf16.msra.mxu0 0
    %7067 = vmatprep.mubr.bf16.mxu0 0
    %7068 = vmatmul.mubr.bf16.gmra.mxu0 %v7033
    %v7069 = vpop.f32.mrf.mxu0
    %v7070 = vadd.f32 %v7008, %v7069
    %v7071 = vpop.f32.mrf.mxu0
    %v7072 = vpop.f32.mrf.mxu0
    %v7073 = vpop.f32.mrf.mxu0
    %7074 = vdwg.mxu0
    %v7075 = vld [vmem:[#allocation5 + $0x2] sm:$0x1]
    %v7076 = vld [vmem:[#allocation5 + $0x12] sm:$0x1]
    %v7077 = vpack.c.bf16 %v7075, %v7075
    %v7078 = vpack.c.bf16 %v7076, %v7076
    %s7079 = scalar_lea.vmem %s5, 32
    %v7080 = vld [vmem:[%s7079] sm:$0xf]
    %v7081 = vld [vmem:[%s7079 + $0x4] sm:$0xf]
    %v7082 = vld [vmem:[%s7079 + $0x8] sm:$0xf]
    %v7083 = vld [vmem:[%s7079 + $0xc] sm:$0xf]
    %v7086 = vunpack.c.l.b16 %v7077
    %v7087 = vunpack.c.l.b16 %v7078
    %v7088 = vrot.slane %v7087, 7
    %v7089 = vsel %vm6955, %v7088, %v7086
    %v7090 = vpack.c.b16 %v7089, %v7089
    %v7095 = vunpack.c.l.b16 %v7080
    %v7096 = vunpack.c.l.b16 %v7081
    %v7097 = vunpack.c.l.b16 %v7082
    %v7098 = vunpack.c.l.b16 %v7083
    %v7099 = vpack.c.b16 %v7096, %v7095
    %v7100 = vpack.c.b16 %v7098, %v7097
    %v7104 = vsel %vm241, %v7090, 0
    %7106 = vmatprep.subr.bf16.mxu0 0
    %7107 = vmatpush1.bf16.msra.mxu0 0
    %7108 = vmatprep.subr.bf16.mxu0 0
    %7109 = vmatpush1.bf16.msra.mxu0 0
    %7110 = vmatprep.subr.bf16.mxu0 0
    %7111 = vmatpush1.bf16.msra.mxu0 0
    %7112 = vmatprep.subr.bf16.mxu0 0
    %7113 = vmatpush1.bf16.msra.mxu0 0
    %7114 = vmatprep.subr.bf16.mxu0 0
    %7115 = vmatpush1.bf16.msra.mxu0 0
    %7116 = vmatprep.subr.bf16.mxu0 0
    %7117 = vmatpush1.bf16.msra.mxu0 0
    %7118 = vmatprep.subr.bf16.mxu0 0
    %7119 = vmatpush1.bf16.msra.mxu0 %v7100
    %7120 = vmatprep.subr.bf16.mxu0 0
    %7121 = vmatpush1.bf16.msra.mxu0 %v7099
    %7122 = vmatprep.subr.bf16.mxu0 0
    %7123 = vmatpush2.bf16.msra.mxu0 0
    %7124 = vmatprep.subr.bf16.mxu0 0
    %7125 = vmatpush2.bf16.msra.mxu0 0
    %7126 = vmatprep.subr.bf16.mxu0 0
    %7127 = vmatpush2.bf16.msra.mxu0 0
    %7128 = vmatprep.subr.bf16.mxu0 0
    %7129 = vmatpush2.bf16.msra.mxu0 0
    %7130 = vmatprep.subr.bf16.mxu0 0
    %7131 = vmatpush2.bf16.msra.mxu0 0
    %7132 = vmatprep.subr.bf16.mxu0 0
    %7133 = vmatpush2.bf16.msra.mxu0 0
    %7134 = vmatprep.subr.bf16.mxu0 0
    %7135 = vmatpush2.bf16.msra.mxu0 0
    %7136 = vmatprep.subr.bf16.mxu0 0
    %7137 = vmatpush2.bf16.msra.mxu0 0
    %7138 = vmatprep.mubr.bf16.mxu0 0
    %7139 = vmatmul.mubr.bf16.gmra.mxu0 %v7104
    %v7140 = vpop.f32.mrf.mxu0
    %v7141 = vadd.f32 0.0, %v7140
    %v7142 = vpop.f32.mrf.mxu0
    %v7143 = vpop.f32.mrf.mxu0
    %v7144 = vpop.f32.mrf.mxu0
    %7145 = vdwg.mxu0
    %v7146 = vadd.f32 %v7070, %v7141
    %v7147 = vld [vmem:[#allocation5 + $0x3] sm:$0x1]
    %v7148 = vld [vmem:[#allocation5 + $0x13] sm:$0x1]
    %v7149 = vpack.c.bf16 %v7147, %v7147
    %v7150 = vpack.c.bf16 %v7148, %v7148
    %s7151 = scalar_lea.vmem %s5, 48
    %v7152 = vld [vmem:[%s7151] sm:$0xf]
    %v7153 = vld [vmem:[%s7151 + $0x4] sm:$0xf]
    %v7154 = vld [vmem:[%s7151 + $0x8] sm:$0xf]
    %v7155 = vld [vmem:[%s7151 + $0xc] sm:$0xf]
    %v7158 = vunpack.c.l.b16 %v7149
    %v7159 = vunpack.c.l.b16 %v7150
    %v7160 = vrot.slane %v7159, 7
    %v7161 = vsel %vm6955, %v7160, %v7158
    %v7162 = vpack.c.b16 %v7161, %v7161
    %v7167 = vunpack.c.l.b16 %v7152
    %v7168 = vunpack.c.l.b16 %v7153
    %v7169 = vunpack.c.l.b16 %v7154
    %v7170 = vunpack.c.l.b16 %v7155
    %v7171 = vpack.c.b16 %v7168, %v7167
    %v7172 = vpack.c.b16 %v7170, %v7169
    %v7176 = vsel %vm241, %v7162, 0
    %7178 = vmatprep.subr.bf16.mxu0 0
    %7179 = vmatpush1.bf16.msra.mxu0 0
    %7180 = vmatprep.subr.bf16.mxu0 0
    %7181 = vmatpush1.bf16.msra.mxu0 0
    %7182 = vmatprep.subr.bf16.mxu0 0
    %7183 = vmatpush1.bf16.msra.mxu0 0
    %7184 = vmatprep.subr.bf16.mxu0 0
    %7185 = vmatpush1.bf16.msra.mxu0 0
    %7186 = vmatprep.subr.bf16.mxu0 0
    %7187 = vmatpush1.bf16.msra.mxu0 0
    %7188 = vmatprep.subr.bf16.mxu0 0
    %7189 = vmatpush1.bf16.msra.mxu0 0
    %7190 = vmatprep.subr.bf16.mxu0 0
    %7191 = vmatpush1.bf16.msra.mxu0 %v7172
    %7192 = vmatprep.subr.bf16.mxu0 0
    %7193 = vmatpush1.bf16.msra.mxu0 %v7171
    %7194 = vmatprep.subr.bf16.mxu0 0
    %7195 = vmatpush2.bf16.msra.mxu0 0
    %7196 = vmatprep.subr.bf16.mxu0 0
    %7197 = vmatpush2.bf16.msra.mxu0 0
    %7198 = vmatprep.subr.bf16.mxu0 0
    %7199 = vmatpush2.bf16.msra.mxu0 0
    %7200 = vmatprep.subr.bf16.mxu0 0
    %7201 = vmatpush2.bf16.msra.mxu0 0
    %7202 = vmatprep.subr.bf16.mxu0 0
    %7203 = vmatpush2.bf16.msra.mxu0 0
    %7204 = vmatprep.subr.bf16.mxu0 0
    %7205 = vmatpush2.bf16.msra.mxu0 0
    %7206 = vmatprep.subr.bf16.mxu0 0
    %7207 = vmatpush2.bf16.msra.mxu0 0
    %7208 = vmatprep.subr.bf16.mxu0 0
    %7209 = vmatpush2.bf16.msra.mxu0 0
    %7210 = vmatprep.mubr.bf16.mxu0 0
    %7211 = vmatmul.mubr.bf16.gmra.mxu0 %v7176
    %v7212 = vpop.f32.mrf.mxu0
    %v7213 = vadd.f32 0.0, %v7212
    %v7214 = vpop.f32.mrf.mxu0
    %v7215 = vpop.f32.mrf.mxu0
    %v7216 = vpop.f32.mrf.mxu0
    %7217 = vdwg.mxu0
    %v7218 = vadd.f32 %v7146, %v7213
    %s7219 = scalar_lea.vmem [#allocation5], 4
    %v7220 = vld [vmem:[%s7219] sm:$0x1]
    %v7221 = vld [vmem:[%s7219 + $0x10] sm:$0x1]
    %v7222 = vpack.c.bf16 %v7220, %v7220
    %v7223 = vpack.c.bf16 %v7221, %v7221
    %s7224 = scalar_lea.vmem %s5, 64
    %v7225 = vld [vmem:[%s7224] sm:$0xf]
    %v7226 = vld [vmem:[%s7224 + $0x4] sm:$0xf]
    %v7227 = vld [vmem:[%s7224 + $0x8] sm:$0xf]
    %v7228 = vld [vmem:[%s7224 + $0xc] sm:$0xf]
    %v7231 = vunpack.c.l.b16 %v7222
    %v7232 = vunpack.c.l.b16 %v7223
    %v7233 = vrot.slane %v7232, 7
    %v7234 = vsel %vm6955, %v7233, %v7231
    %v7235 = vpack.c.b16 %v7234, %v7234
    %v7240 = vunpack.c.l.b16 %v7225
    %v7241 = vunpack.c.l.b16 %v7226
    %v7242 = vunpack.c.l.b16 %v7227
    %v7243 = vunpack.c.l.b16 %v7228
    %v7244 = vpack.c.b16 %v7241, %v7240
    %v7245 = vpack.c.b16 %v7243, %v7242
    %v7249 = vsel %vm241, %v7235, 0
    %7251 = vmatprep.subr.bf16.mxu0 0
    %7252 = vmatpush1.bf16.msra.mxu0 0
    %7253 = vmatprep.subr.bf16.mxu0 0
    %7254 = vmatpush1.bf16.msra.mxu0 0
    %7255 = vmatprep.subr.bf16.mxu0 0
    %7256 = vmatpush1.bf16.msra.mxu0 0
    %7257 = vmatprep.subr.bf16.mxu0 0
    %7258 = vmatpush1.bf16.msra.mxu0 0
    %7259 = vmatprep.subr.bf16.mxu0 0
    %7260 = vmatpush1.bf16.msra.mxu0 0
    %7261 = vmatprep.subr.bf16.mxu0 0
    %7262 = vmatpush1.bf16.msra.mxu0 0
    %7263 = vmatprep.subr.bf16.mxu0 0
    %7264 = vmatpush1.bf16.msra.mxu0 %v7245
    %7265 = vmatprep.subr.bf16.mxu0 0
    %7266 = vmatpush1.bf16.msra.mxu0 %v7244
    %7267 = vmatprep.subr.bf16.mxu0 0
    %7268 = vmatpush2.bf16.msra.mxu0 0
    %7269 = vmatprep.subr.bf16.mxu0 0
    %7270 = vmatpush2.bf16.msra.mxu0 0
    %7271 = vmatprep.subr.bf16.mxu0 0
    %7272 = vmatpush2.bf16.msra.mxu0 0
    %7273 = vmatprep.subr.bf16.mxu0 0
    %7274 = vmatpush2.bf16.msra.mxu0 0
    %7275 = vmatprep.subr.bf16.mxu0 0
    %7276 = vmatpush2.bf16.msra.mxu0 0
    %7277 = vmatprep.subr.bf16.mxu0 0
    %7278 = vmatpush2.bf16.msra.mxu0 0
    %7279 = vmatprep.subr.bf16.mxu0 0
    %7280 = vmatpush2.bf16.msra.mxu0 0
    %7281 = vmatprep.subr.bf16.mxu0 0
    %7282 = vmatpush2.bf16.msra.mxu0 0
    %7283 = vmatprep.mubr.bf16.mxu0 0
    %7284 = vmatmul.mubr.bf16.gmra.mxu0 %v7249
    %v7285 = vpop.f32.mrf.mxu0
    %v7286 = vadd.f32 0.0, %v7285
    %v7287 = vpop.f32.mrf.mxu0
    %v7288 = vpop.f32.mrf.mxu0
    %v7289 = vpop.f32.mrf.mxu0
    %7290 = vdwg.mxu0
    %v7291 = vadd.f32 %v7218, %v7286
    %v7292 = vld [vmem:[%s7219 + $0x1] sm:$0x1]
    %v7293 = vld [vmem:[%s7219 + $0x11] sm:$0x1]
    %v7294 = vpack.c.bf16 %v7292, %v7292
    %v7295 = vpack.c.bf16 %v7293, %v7293
    %s7296 = scalar_lea.vmem %s5, 80
    %v7297 = vld [vmem:[%s7296] sm:$0xf]
    %v7298 = vld [vmem:[%s7296 + $0x4] sm:$0xf]
    %v7299 = vld [vmem:[%s7296 + $0x8] sm:$0xf]
    %v7300 = vld [vmem:[%s7296 + $0xc] sm:$0xf]
    %v7303 = vunpack.c.l.b16 %v7294
    %v7304 = vunpack.c.l.b16 %v7295
    %v7305 = vrot.slane %v7304, 7
    %v7306 = vsel %vm6955, %v7305, %v7303
    %v7307 = vpack.c.b16 %v7306, %v7306
    %v7312 = vunpack.c.l.b16 %v7297
    %v7313 = vunpack.c.l.b16 %v7298
    %v7314 = vunpack.c.l.b16 %v7299
    %v7315 = vunpack.c.l.b16 %v7300
    %v7316 = vpack.c.b16 %v7313, %v7312
    %v7317 = vpack.c.b16 %v7315, %v7314
    %v7321 = vsel %vm241, %v7307, 0
    %7323 = vmatprep.subr.bf16.mxu0 0
    %7324 = vmatpush1.bf16.msra.mxu0 0
    %7325 = vmatprep.subr.bf16.mxu0 0
    %7326 = vmatpush1.bf16.msra.mxu0 0
    %7327 = vmatprep.subr.bf16.mxu0 0
    %7328 = vmatpush1.bf16.msra.mxu0 0
    %7329 = vmatprep.subr.bf16.mxu0 0
    %7330 = vmatpush1.bf16.msra.mxu0 0
    %7331 = vmatprep.subr.bf16.mxu0 0
    %7332 = vmatpush1.bf16.msra.mxu0 0
    %7333 = vmatprep.subr.bf16.mxu0 0
    %7334 = vmatpush1.bf16.msra.mxu0 0
    %7335 = vmatprep.subr.bf16.mxu0 0
    %7336 = vmatpush1.bf16.msra.mxu0 %v7317
    %7337 = vmatprep.subr.bf16.mxu0 0
    %7338 = vmatpush1.bf16.msra.mxu0 %v7316
    %7339 = vmatprep.subr.bf16.mxu0 0
    %7340 = vmatpush2.bf16.msra.mxu0 0
    %7341 = vmatprep.subr.bf16.mxu0 0
    %7342 = vmatpush2.bf16.msra.mxu0 0
    %7343 = vmatprep.subr.bf16.mxu0 0
    %7344 = vmatpush2.bf16.msra.mxu0 0
    %7345 = vmatprep.subr.bf16.mxu0 0
    %7346 = vmatpush2.bf16.msra.mxu0 0
    %7347 = vmatprep.subr.bf16.mxu0 0
    %7348 = vmatpush2.bf16.msra.mxu0 0
    %7349 = vmatprep.subr.bf16.mxu0 0
    %7350 = vmatpush2.bf16.msra.mxu0 0
    %7351 = vmatprep.subr.bf16.mxu0 0
    %7352 = vmatpush2.bf16.msra.mxu0 0
    %7353 = vmatprep.subr.bf16.mxu0 0
    %7354 = vmatpush2.bf16.msra.mxu0 0
    %7355 = vmatprep.mubr.bf16.mxu0 0
    %7356 = vmatmul.mubr.bf16.gmra.mxu0 %v7321
    %v7357 = vpop.f32.mrf.mxu0
    %v7358 = vadd.f32 0.0, %v7357
    %v7359 = vpop.f32.mrf.mxu0
    %v7360 = vpop.f32.mrf.mxu0
    %v7361 = vpop.f32.mrf.mxu0
    %7362 = vdwg.mxu0
    %v7363 = vadd.f32 %v7291, %v7358
    %v7364 = vld [vmem:[%s7219 + $0x2] sm:$0x1]
    %v7365 = vld [vmem:[%s7219 + $0x12] sm:$0x1]
    %v7366 = vpack.c.bf16 %v7364, %v7364
    %v7367 = vpack.c.bf16 %v7365, %v7365
    %s7368 = scalar_lea.vmem %s5, 96
    %v7369 = vld [vmem:[%s7368] sm:$0xf]
    %v7370 = vld [vmem:[%s7368 + $0x4] sm:$0xf]
    %v7371 = vld [vmem:[%s7368 + $0x8] sm:$0xf]
    %v7372 = vld [vmem:[%s7368 + $0xc] sm:$0xf]
    %v7375 = vunpack.c.l.b16 %v7366
    %v7376 = vunpack.c.l.b16 %v7367
    %v7377 = vrot.slane %v7376, 7
    %v7378 = vsel %vm6955, %v7377, %v7375
    %v7379 = vpack.c.b16 %v7378, %v7378
    %v7384 = vunpack.c.l.b16 %v7369
    %v7385 = vunpack.c.l.b16 %v7370
    %v7386 = vunpack.c.l.b16 %v7371
    %v7387 = vunpack.c.l.b16 %v7372
    %v7388 = vpack.c.b16 %v7385, %v7384
    %v7389 = vpack.c.b16 %v7387, %v7386
    %v7393 = vsel %vm241, %v7379, 0
    %7395 = vmatprep.subr.bf16.mxu0 0
    %7396 = vmatpush1.bf16.msra.mxu0 0
    %7397 = vmatprep.subr.bf16.mxu0 0
    %7398 = vmatpush1.bf16.msra.mxu0 0
    %7399 = vmatprep.subr.bf16.mxu0 0
    %7400 = vmatpush1.bf16.msra.mxu0 0
    %7401 = vmatprep.subr.bf16.mxu0 0
    %7402 = vmatpush1.bf16.msra.mxu0 0
    %7403 = vmatprep.subr.bf16.mxu0 0
    %7404 = vmatpush1.bf16.msra.mxu0 0
    %7405 = vmatprep.subr.bf16.mxu0 0
    %7406 = vmatpush1.bf16.msra.mxu0 0
    %7407 = vmatprep.subr.bf16.mxu0 0
    %7408 = vmatpush1.bf16.msra.mxu0 %v7389
    %7409 = vmatprep.subr.bf16.mxu0 0
    %7410 = vmatpush1.bf16.msra.mxu0 %v7388
    %7411 = vmatprep.subr.bf16.mxu0 0
    %7412 = vmatpush2.bf16.msra.mxu0 0
    %7413 = vmatprep.subr.bf16.mxu0 0
    %7414 = vmatpush2.bf16.msra.mxu0 0
    %7415 = vmatprep.subr.bf16.mxu0 0
    %7416 = vmatpush2.bf16.msra.mxu0 0
    %7417 = vmatprep.subr.bf16.mxu0 0
    %7418 = vmatpush2.bf16.msra.mxu0 0
    %7419 = vmatprep.subr.bf16.mxu0 0
    %7420 = vmatpush2.bf16.msra.mxu0 0
    %7421 = vmatprep.subr.bf16.mxu0 0
    %7422 = vmatpush2.bf16.msra.mxu0 0
    %7423 = vmatprep.subr.bf16.mxu0 0
    %7424 = vmatpush2.bf16.msra.mxu0 0
    %7425 = vmatprep.subr.bf16.mxu0 0
    %7426 = vmatpush2.bf16.msra.mxu0 0
    %7427 = vmatprep.mubr.bf16.mxu0 0
    %7428 = vmatmul.mubr.bf16.gmra.mxu0 %v7393
    %v7429 = vpop.f32.mrf.mxu0
    %v7430 = vadd.f32 0.0, %v7429
    %v7431 = vpop.f32.mrf.mxu0
    %v7432 = vpop.f32.mrf.mxu0
    %v7433 = vpop.f32.mrf.mxu0
    %7434 = vdwg.mxu0
    %v7435 = vadd.f32 %v7363, %v7430
    %v7436 = vld [vmem:[%s7219 + $0x3] sm:$0x1]
    %v7437 = vld [vmem:[%s7219 + $0x13] sm:$0x1]
    %v7438 = vpack.c.bf16 %v7436, %v7436
    %v7439 = vpack.c.bf16 %v7437, %v7437
    %s7440 = scalar_lea.vmem %s5, 112
    %v7441 = vld [vmem:[%s7440] sm:$0xf]
    %v7442 = vld [vmem:[%s7440 + $0x4] sm:$0xf]
    %v7443 = vld [vmem:[%s7440 + $0x8] sm:$0xf]
    %v7444 = vld [vmem:[%s7440 + $0xc] sm:$0xf]
    %v7447 = vunpack.c.l.b16 %v7438
    %v7448 = vunpack.c.l.b16 %v7439
    %v7449 = vrot.slane %v7448, 7
    %v7450 = vsel %vm6955, %v7449, %v7447
    %v7451 = vpack.c.b16 %v7450, %v7450
    %v7456 = vunpack.c.l.b16 %v7441
    %v7457 = vunpack.c.l.b16 %v7442
    %v7458 = vunpack.c.l.b16 %v7443
    %v7459 = vunpack.c.l.b16 %v7444
    %v7460 = vpack.c.b16 %v7457, %v7456
    %v7461 = vpack.c.b16 %v7459, %v7458
    %v7465 = vsel %vm241, %v7451, 0
    %7467 = vmatprep.subr.bf16.mxu0 0
    %7468 = vmatpush1.bf16.msra.mxu0 0
    %7469 = vmatprep.subr.bf16.mxu0 0
    %7470 = vmatpush1.bf16.msra.mxu0 0
    %7471 = vmatprep.subr.bf16.mxu0 0
    %7472 = vmatpush1.bf16.msra.mxu0 0
    %7473 = vmatprep.subr.bf16.mxu0 0
    %7474 = vmatpush1.bf16.msra.mxu0 0
    %7475 = vmatprep.subr.bf16.mxu0 0
    %7476 = vmatpush1.bf16.msra.mxu0 0
    %7477 = vmatprep.subr.bf16.mxu0 0
    %7478 = vmatpush1.bf16.msra.mxu0 0
    %7479 = vmatprep.subr.bf16.mxu0 0
    %7480 = vmatpush1.bf16.msra.mxu0 %v7461
    %7481 = vmatprep.subr.bf16.mxu0 0
    %7482 = vmatpush1.bf16.msra.mxu0 %v7460
    %7483 = vmatprep.subr.bf16.mxu0 0
    %7484 = vmatpush2.bf16.msra.mxu0 0
    %7485 = vmatprep.subr.bf16.mxu0 0
    %7486 = vmatpush2.bf16.msra.mxu0 0
    %7487 = vmatprep.subr.bf16.mxu0 0
    %7488 = vmatpush2.bf16.msra.mxu0 0
    %7489 = vmatprep.subr.bf16.mxu0 0
    %7490 = vmatpush2.bf16.msra.mxu0 0
    %7491 = vmatprep.subr.bf16.mxu0 0
    %7492 = vmatpush2.bf16.msra.mxu0 0
    %7493 = vmatprep.subr.bf16.mxu0 0
    %7494 = vmatpush2.bf16.msra.mxu0 0
    %7495 = vmatprep.subr.bf16.mxu0 0
    %7496 = vmatpush2.bf16.msra.mxu0 0
    %7497 = vmatprep.subr.bf16.mxu0 0
    %7498 = vmatpush2.bf16.msra.mxu0 0
    %7499 = vmatprep.mubr.bf16.mxu0 0
    %7500 = vmatmul.mubr.bf16.gmra.mxu0 %v7465
    %v7501 = vpop.f32.mrf.mxu0
    %v7502 = vadd.f32 0.0, %v7501
    %v7503 = vpop.f32.mrf.mxu0
    %v7504 = vpop.f32.mrf.mxu0
    %v7505 = vpop.f32.mrf.mxu0
    %7506 = vdwg.mxu0
    %v7507 = vadd.f32 %v7435, %v7502
    %s7508 = scalar_lea.vmem [#allocation5], 8
    %v7509 = vld [vmem:[%s7508] sm:$0x1]
    %v7510 = vld [vmem:[%s7508 + $0x10] sm:$0x1]
    %v7511 = vpack.c.bf16 %v7509, %v7509
    %v7512 = vpack.c.bf16 %v7510, %v7510
    %s7513 = scalar_lea.vmem %s5, 128
    %v7514 = vld [vmem:[%s7513] sm:$0xf]
    %v7515 = vld [vmem:[%s7513 + $0x4] sm:$0xf]
    %v7516 = vld [vmem:[%s7513 + $0x8] sm:$0xf]
    %v7517 = vld [vmem:[%s7513 + $0xc] sm:$0xf]
    %v7520 = vunpack.c.l.b16 %v7511
    %v7521 = vunpack.c.l.b16 %v7512
    %v7522 = vrot.slane %v7521, 7
    %v7523 = vsel %vm6955, %v7522, %v7520
    %v7524 = vpack.c.b16 %v7523, %v7523
    %v7529 = vunpack.c.l.b16 %v7514
    %v7530 = vunpack.c.l.b16 %v7515
    %v7531 = vunpack.c.l.b16 %v7516
    %v7532 = vunpack.c.l.b16 %v7517
    %v7533 = vpack.c.b16 %v7530, %v7529
    %v7534 = vpack.c.b16 %v7532, %v7531
    %v7538 = vsel %vm241, %v7524, 0
    %7540 = vmatprep.subr.bf16.mxu0 0
    %7541 = vmatpush1.bf16.msra.mxu0 0
    %7542 = vmatprep.subr.bf16.mxu0 0
    %7543 = vmatpush1.bf16.msra.mxu0 0
    %7544 = vmatprep.subr.bf16.mxu0 0
    %7545 = vmatpush1.bf16.msra.mxu0 0
    %7546 = vmatprep.subr.bf16.mxu0 0
    %7547 = vmatpush1.bf16.msra.mxu0 0
    %7548 = vmatprep.subr.bf16.mxu0 0
    %7549 = vmatpush1.bf16.msra.mxu0 0
    %7550 = vmatprep.subr.bf16.mxu0 0
    %7551 = vmatpush1.bf16.msra.mxu0 0
    %7552 = vmatprep.subr.bf16.mxu0 0
    %7553 = vmatpush1.bf16.msra.mxu0 %v7534
    %7554 = vmatprep.subr.bf16.mxu0 0
    %7555 = vmatpush1.bf16.msra.mxu0 %v7533
    %7556 = vmatprep.subr.bf16.mxu0 0
    %7557 = vmatpush2.bf16.msra.mxu0 0
    %7558 = vmatprep.subr.bf16.mxu0 0
    %7559 = vmatpush2.bf16.msra.mxu0 0
    %7560 = vmatprep.subr.bf16.mxu0 0
    %7561 = vmatpush2.bf16.msra.mxu0 0
    %7562 = vmatprep.subr.bf16.mxu0 0
    %7563 = vmatpush2.bf16.msra.mxu0 0
    %7564 = vmatprep.subr.bf16.mxu0 0
    %7565 = vmatpush2.bf16.msra.mxu0 0
    %7566 = vmatprep.subr.bf16.mxu0 0
    %7567 = vmatpush2.bf16.msra.mxu0 0
    %7568 = vmatprep.subr.bf16.mxu0 0
    %7569 = vmatpush2.bf16.msra.mxu0 0
    %7570 = vmatprep.subr.bf16.mxu0 0
    %7571 = vmatpush2.bf16.msra.mxu0 0
    %7572 = vmatprep.mubr.bf16.mxu0 0
    %7573 = vmatmul.mubr.bf16.gmra.mxu0 %v7538
    %v7574 = vpop.f32.mrf.mxu0
    %v7575 = vadd.f32 0.0, %v7574
    %v7576 = vpop.f32.mrf.mxu0
    %v7577 = vpop.f32.mrf.mxu0
    %v7578 = vpop.f32.mrf.mxu0
    %7579 = vdwg.mxu0
    %v7580 = vadd.f32 %v7507, %v7575
    %v7581 = vld [vmem:[%s7508 + $0x1] sm:$0x1]
    %v7582 = vld [vmem:[%s7508 + $0x11] sm:$0x1]
    %v7583 = vpack.c.bf16 %v7581, %v7581
    %v7584 = vpack.c.bf16 %v7582, %v7582
    %s7585 = scalar_lea.vmem %s5, 144
    %v7586 = vld [vmem:[%s7585] sm:$0xf]
    %v7587 = vld [vmem:[%s7585 + $0x4] sm:$0xf]
    %v7588 = vld [vmem:[%s7585 + $0x8] sm:$0xf]
    %v7589 = vld [vmem:[%s7585 + $0xc] sm:$0xf]
    %v7592 = vunpack.c.l.b16 %v7583
    %v7593 = vunpack.c.l.b16 %v7584
    %v7594 = vrot.slane %v7593, 7
    %v7595 = vsel %vm6955, %v7594, %v7592
    %v7596 = vpack.c.b16 %v7595, %v7595
    %v7601 = vunpack.c.l.b16 %v7586
    %v7602 = vunpack.c.l.b16 %v7587
    %v7603 = vunpack.c.l.b16 %v7588
    %v7604 = vunpack.c.l.b16 %v7589
    %v7605 = vpack.c.b16 %v7602, %v7601
    %v7606 = vpack.c.b16 %v7604, %v7603
    %v7610 = vsel %vm241, %v7596, 0
    %7612 = vmatprep.subr.bf16.mxu0 0
    %7613 = vmatpush1.bf16.msra.mxu0 0
    %7614 = vmatprep.subr.bf16.mxu0 0
    %7615 = vmatpush1.bf16.msra.mxu0 0
    %7616 = vmatprep.subr.bf16.mxu0 0
    %7617 = vmatpush1.bf16.msra.mxu0 0
    %7618 = vmatprep.subr.bf16.mxu0 0
    %7619 = vmatpush1.bf16.msra.mxu0 0
    %7620 = vmatprep.subr.bf16.mxu0 0
    %7621 = vmatpush1.bf16.msra.mxu0 0
    %7622 = vmatprep.subr.bf16.mxu0 0
    %7623 = vmatpush1.bf16.msra.mxu0 0
    %7624 = vmatprep.subr.bf16.mxu0 0
    %7625 = vmatpush1.bf16.msra.mxu0 %v7606
    %7626 = vmatprep.subr.bf16.mxu0 0
    %7627 = vmatpush1.bf16.msra.mxu0 %v7605
    %7628 = vmatprep.subr.bf16.mxu0 0
    %7629 = vmatpush2.bf16.msra.mxu0 0
    %7630 = vmatprep.subr.bf16.mxu0 0
    %7631 = vmatpush2.bf16.msra.mxu0 0
    %7632 = vmatprep.subr.bf16.mxu0 0
    %7633 = vmatpush2.bf16.msra.mxu0 0
    %7634 = vmatprep.subr.bf16.mxu0 0
    %7635 = vmatpush2.bf16.msra.mxu0 0
    %7636 = vmatprep.subr.bf16.mxu0 0
    %7637 = vmatpush2.bf16.msra.mxu0 0
    %7638 = vmatprep.subr.bf16.mxu0 0
    %7639 = vmatpush2.bf16.msra.mxu0 0
    %7640 = vmatprep.subr.bf16.mxu0 0
    %7641 = vmatpush2.bf16.msra.mxu0 0
    %7642 = vmatprep.subr.bf16.mxu0 0
    %7643 = vmatpush2.bf16.msra.mxu0 0
    %7644 = vmatprep.mubr.bf16.mxu0 0
    %7645 = vmatmul.mubr.bf16.gmra.mxu0 %v7610
    %v7646 = vpop.f32.mrf.mxu0
    %v7647 = vadd.f32 0.0, %v7646
    %v7648 = vpop.f32.mrf.mxu0
    %v7649 = vpop.f32.mrf.mxu0
    %v7650 = vpop.f32.mrf.mxu0
    %7651 = vdwg.mxu0
    %v7652 = vadd.f32 %v7580, %v7647
    %v7653 = vld [vmem:[%s7508 + $0x2] sm:$0x1]
    %v7654 = vld [vmem:[%s7508 + $0x12] sm:$0x1]
    %v7655 = vpack.c.bf16 %v7653, %v7653
    %v7656 = vpack.c.bf16 %v7654, %v7654
    %s7657 = scalar_lea.vmem %s5, 160
    %v7658 = vld [vmem:[%s7657] sm:$0xf]
    %v7659 = vld [vmem:[%s7657 + $0x4] sm:$0xf]
    %v7660 = vld [vmem:[%s7657 + $0x8] sm:$0xf]
    %v7661 = vld [vmem:[%s7657 + $0xc] sm:$0xf]
    %v7664 = vunpack.c.l.b16 %v7655
    %v7665 = vunpack.c.l.b16 %v7656
    %v7666 = vrot.slane %v7665, 7
    %v7667 = vsel %vm6955, %v7666, %v7664
    %v7668 = vpack.c.b16 %v7667, %v7667
    %v7673 = vunpack.c.l.b16 %v7658
    %v7674 = vunpack.c.l.b16 %v7659
    %v7675 = vunpack.c.l.b16 %v7660
    %v7676 = vunpack.c.l.b16 %v7661
    %v7677 = vpack.c.b16 %v7674, %v7673
    %v7678 = vpack.c.b16 %v7676, %v7675
    %v7682 = vsel %vm241, %v7668, 0
    %7684 = vmatprep.subr.bf16.mxu0 0
    %7685 = vmatpush1.bf16.msra.mxu0 0
    %7686 = vmatprep.subr.bf16.mxu0 0
    %7687 = vmatpush1.bf16.msra.mxu0 0
    %7688 = vmatprep.subr.bf16.mxu0 0
    %7689 = vmatpush1.bf16.msra.mxu0 0
    %7690 = vmatprep.subr.bf16.mxu0 0
    %7691 = vmatpush1.bf16.msra.mxu0 0
    %7692 = vmatprep.subr.bf16.mxu0 0
    %7693 = vmatpush1.bf16.msra.mxu0 0
    %7694 = vmatprep.subr.bf16.mxu0 0
    %7695 = vmatpush1.bf16.msra.mxu0 0
    %7696 = vmatprep.subr.bf16.mxu0 0
    %7697 = vmatpush1.bf16.msra.mxu0 %v7678
    %7698 = vmatprep.subr.bf16.mxu0 0
    %7699 = vmatpush1.bf16.msra.mxu0 %v7677
    %7700 = vmatprep.subr.bf16.mxu0 0
    %7701 = vmatpush2.bf16.msra.mxu0 0
    %7702 = vmatprep.subr.bf16.mxu0 0
    %7703 = vmatpush2.bf16.msra.mxu0 0
    %7704 = vmatprep.subr.bf16.mxu0 0
    %7705 = vmatpush2.bf16.msra.mxu0 0
    %7706 = vmatprep.subr.bf16.mxu0 0
    %7707 = vmatpush2.bf16.msra.mxu0 0
    %7708 = vmatprep.subr.bf16.mxu0 0
    %7709 = vmatpush2.bf16.msra.mxu0 0
    %7710 = vmatprep.subr.bf16.mxu0 0
    %7711 = vmatpush2.bf16.msra.mxu0 0
    %7712 = vmatprep.subr.bf16.mxu0 0
    %7713 = vmatpush2.bf16.msra.mxu0 0
    %7714 = vmatprep.subr.bf16.mxu0 0
    %7715 = vmatpush2.bf16.msra.mxu0 0
    %7716 = vmatprep.mubr.bf16.mxu0 0
    %7717 = vmatmul.mubr.bf16.gmra.mxu0 %v7682
    %v7718 = vpop.f32.mrf.mxu0
    %v7719 = vadd.f32 0.0, %v7718
    %v7720 = vpop.f32.mrf.mxu0
    %v7721 = vpop.f32.mrf.mxu0
    %v7722 = vpop.f32.mrf.mxu0
    %7723 = vdwg.mxu0
    %v7724 = vadd.f32 %v7652, %v7719
    %v7725 = vld [vmem:[%s7508 + $0x3] sm:$0x1]
    %v7726 = vld [vmem:[%s7508 + $0x13] sm:$0x1]
    %v7727 = vpack.c.bf16 %v7725, %v7725
    %v7728 = vpack.c.bf16 %v7726, %v7726
    %s7729 = scalar_lea.vmem %s5, 176
    %v7730 = vld [vmem:[%s7729] sm:$0xf]
    %v7731 = vld [vmem:[%s7729 + $0x4] sm:$0xf]
    %v7732 = vld [vmem:[%s7729 + $0x8] sm:$0xf]
    %v7733 = vld [vmem:[%s7729 + $0xc] sm:$0xf]
    %v7736 = vunpack.c.l.b16 %v7727
    %v7737 = vunpack.c.l.b16 %v7728
    %v7738 = vrot.slane %v7737, 7
    %v7739 = vsel %vm6955, %v7738, %v7736
    %v7740 = vpack.c.b16 %v7739, %v7739
    %v7745 = vunpack.c.l.b16 %v7730
    %v7746 = vunpack.c.l.b16 %v7731
    %v7747 = vunpack.c.l.b16 %v7732
    %v7748 = vunpack.c.l.b16 %v7733
    %v7749 = vpack.c.b16 %v7746, %v7745
    %v7750 = vpack.c.b16 %v7748, %v7747
    %v7754 = vsel %vm241, %v7740, 0
    %7756 = vmatprep.subr.bf16.mxu0 0
    %7757 = vmatpush1.bf16.msra.mxu0 0
    %7758 = vmatprep.subr.bf16.mxu0 0
    %7759 = vmatpush1.bf16.msra.mxu0 0
    %7760 = vmatprep.subr.bf16.mxu0 0
    %7761 = vmatpush1.bf16.msra.mxu0 0
    %7762 = vmatprep.subr.bf16.mxu0 0
    %7763 = vmatpush1.bf16.msra.mxu0 0
    %7764 = vmatprep.subr.bf16.mxu0 0
    %7765 = vmatpush1.bf16.msra.mxu0 0
    %7766 = vmatprep.subr.bf16.mxu0 0
    %7767 = vmatpush1.bf16.msra.mxu0 0
    %7768 = vmatprep.subr.bf16.mxu0 0
    %7769 = vmatpush1.bf16.msra.mxu0 %v7750
    %7770 = vmatprep.subr.bf16.mxu0 0
    %7771 = vmatpush1.bf16.msra.mxu0 %v7749
    %7772 = vmatprep.subr.bf16.mxu0 0
    %7773 = vmatpush2.bf16.msra.mxu0 0
    %7774 = vmatprep.subr.bf16.mxu0 0
    %7775 = vmatpush2.bf16.msra.mxu0 0
    %7776 = vmatprep.subr.bf16.mxu0 0
    %7777 = vmatpush2.bf16.msra.mxu0 0
    %7778 = vmatprep.subr.bf16.mxu0 0
    %7779 = vmatpush2.bf16.msra.mxu0 0
    %7780 = vmatprep.subr.bf16.mxu0 0
    %7781 = vmatpush2.bf16.msra.mxu0 0
    %7782 = vmatprep.subr.bf16.mxu0 0
    %7783 = vmatpush2.bf16.msra.mxu0 0
    %7784 = vmatprep.subr.bf16.mxu0 0
    %7785 = vmatpush2.bf16.msra.mxu0 0
    %7786 = vmatprep.subr.bf16.mxu0 0
    %7787 = vmatpush2.bf16.msra.mxu0 0
    %7788 = vmatprep.mubr.bf16.mxu0 0
    %7789 = vmatmul.mubr.bf16.gmra.mxu0 %v7754
    %v7790 = vpop.f32.mrf.mxu0
    %v7791 = vadd.f32 0.0, %v7790
    %v7792 = vpop.f32.mrf.mxu0
    %v7793 = vpop.f32.mrf.mxu0
    %v7794 = vpop.f32.mrf.mxu0
    %7795 = vdwg.mxu0
    %v7796 = vadd.f32 %v7724, %v7791
    %s7797 = scalar_lea.vmem [#allocation5], 12
    %v7798 = vld [vmem:[%s7797] sm:$0x1]
    %v7799 = vld [vmem:[%s7797 + $0x10] sm:$0x1]
    %v7800 = vpack.c.bf16 %v7798, %v7798
    %v7801 = vpack.c.bf16 %v7799, %v7799
    %s7802 = scalar_lea.vmem %s5, 192
    %v7803 = vld [vmem:[%s7802] sm:$0xf]
    %v7804 = vld [vmem:[%s7802 + $0x4] sm:$0xf]
    %v7805 = vld [vmem:[%s7802 + $0x8] sm:$0xf]
    %v7806 = vld [vmem:[%s7802 + $0xc] sm:$0xf]
    %v7809 = vunpack.c.l.b16 %v7800
    %v7810 = vunpack.c.l.b16 %v7801
    %v7811 = vrot.slane %v7810, 7
    %v7812 = vsel %vm6955, %v7811, %v7809
    %v7813 = vpack.c.b16 %v7812, %v7812
    %v7818 = vunpack.c.l.b16 %v7803
    %v7819 = vunpack.c.l.b16 %v7804
    %v7820 = vunpack.c.l.b16 %v7805
    %v7821 = vunpack.c.l.b16 %v7806
    %v7822 = vpack.c.b16 %v7819, %v7818
    %v7823 = vpack.c.b16 %v7821, %v7820
    %v7827 = vsel %vm241, %v7813, 0
    %7829 = vmatprep.subr.bf16.mxu0 0
    %7830 = vmatpush1.bf16.msra.mxu0 0
    %7831 = vmatprep.subr.bf16.mxu0 0
    %7832 = vmatpush1.bf16.msra.mxu0 0
    %7833 = vmatprep.subr.bf16.mxu0 0
    %7834 = vmatpush1.bf16.msra.mxu0 0
    %7835 = vmatprep.subr.bf16.mxu0 0
    %7836 = vmatpush1.bf16.msra.mxu0 0
    %7837 = vmatprep.subr.bf16.mxu0 0
    %7838 = vmatpush1.bf16.msra.mxu0 0
    %7839 = vmatprep.subr.bf16.mxu0 0
    %7840 = vmatpush1.bf16.msra.mxu0 0
    %7841 = vmatprep.subr.bf16.mxu0 0
    %7842 = vmatpush1.bf16.msra.mxu0 %v7823
    %7843 = vmatprep.subr.bf16.mxu0 0
    %7844 = vmatpush1.bf16.msra.mxu0 %v7822
    %7845 = vmatprep.subr.bf16.mxu0 0
    %7846 = vmatpush2.bf16.msra.mxu0 0
    %7847 = vmatprep.subr.bf16.mxu0 0
    %7848 = vmatpush2.bf16.msra.mxu0 0
    %7849 = vmatprep.subr.bf16.mxu0 0
    %7850 = vmatpush2.bf16.msra.mxu0 0
    %7851 = vmatprep.subr.bf16.mxu0 0
    %7852 = vmatpush2.bf16.msra.mxu0 0
    %7853 = vmatprep.subr.bf16.mxu0 0
    %7854 = vmatpush2.bf16.msra.mxu0 0
    %7855 = vmatprep.subr.bf16.mxu0 0
    %7856 = vmatpush2.bf16.msra.mxu0 0
    %7857 = vmatprep.subr.bf16.mxu0 0
    %7858 = vmatpush2.bf16.msra.mxu0 0
    %7859 = vmatprep.subr.bf16.mxu0 0
    %7860 = vmatpush2.bf16.msra.mxu0 0
    %7861 = vmatprep.mubr.bf16.mxu0 0
    %7862 = vmatmul.mubr.bf16.gmra.mxu0 %v7827
    %v7863 = vpop.f32.mrf.mxu0
    %v7864 = vadd.f32 0.0, %v7863
    %v7865 = vpop.f32.mrf.mxu0
    %v7866 = vpop.f32.mrf.mxu0
    %v7867 = vpop.f32.mrf.mxu0
    %7868 = vdwg.mxu0
    %v7869 = vadd.f32 %v7796, %v7864
    %v7870 = vld [vmem:[%s7797 + $0x1] sm:$0x1]
    %v7871 = vld [vmem:[%s7797 + $0x11] sm:$0x1]
    %v7872 = vpack.c.bf16 %v7870, %v7870
    %v7873 = vpack.c.bf16 %v7871, %v7871
    %s7874 = scalar_lea.vmem %s5, 208
    %v7875 = vld [vmem:[%s7874] sm:$0xf]
    %v7876 = vld [vmem:[%s7874 + $0x4] sm:$0xf]
    %v7877 = vld [vmem:[%s7874 + $0x8] sm:$0xf]
    %v7878 = vld [vmem:[%s7874 + $0xc] sm:$0xf]
    %v7881 = vunpack.c.l.b16 %v7872
    %v7882 = vunpack.c.l.b16 %v7873
    %v7883 = vrot.slane %v7882, 7
    %v7884 = vsel %vm6955, %v7883, %v7881
    %v7885 = vpack.c.b16 %v7884, %v7884
    %v7890 = vunpack.c.l.b16 %v7875
    %v7891 = vunpack.c.l.b16 %v7876
    %v7892 = vunpack.c.l.b16 %v7877
    %v7893 = vunpack.c.l.b16 %v7878
    %v7894 = vpack.c.b16 %v7891, %v7890
    %v7895 = vpack.c.b16 %v7893, %v7892
    %v7899 = vsel %vm241, %v7885, 0
    %7901 = vmatprep.subr.bf16.mxu0 0
    %7902 = vmatpush1.bf16.msra.mxu0 0
    %7903 = vmatprep.subr.bf16.mxu0 0
    %7904 = vmatpush1.bf16.msra.mxu0 0
    %7905 = vmatprep.subr.bf16.mxu0 0
    %7906 = vmatpush1.bf16.msra.mxu0 0
    %7907 = vmatprep.subr.bf16.mxu0 0
    %7908 = vmatpush1.bf16.msra.mxu0 0
    %7909 = vmatprep.subr.bf16.mxu0 0
    %7910 = vmatpush1.bf16.msra.mxu0 0
    %7911 = vmatprep.subr.bf16.mxu0 0
    %7912 = vmatpush1.bf16.msra.mxu0 0
    %7913 = vmatprep.subr.bf16.mxu0 0
    %7914 = vmatpush1.bf16.msra.mxu0 %v7895
    %7915 = vmatprep.subr.bf16.mxu0 0
    %7916 = vmatpush1.bf16.msra.mxu0 %v7894
    %7917 = vmatprep.subr.bf16.mxu0 0
    %7918 = vmatpush2.bf16.msra.mxu0 0
    %7919 = vmatprep.subr.bf16.mxu0 0
    %7920 = vmatpush2.bf16.msra.mxu0 0
    %7921 = vmatprep.subr.bf16.mxu0 0
    %7922 = vmatpush2.bf16.msra.mxu0 0
    %7923 = vmatprep.subr.bf16.mxu0 0
    %7924 = vmatpush2.bf16.msra.mxu0 0
    %7925 = vmatprep.subr.bf16.mxu0 0
    %7926 = vmatpush2.bf16.msra.mxu0 0
    %7927 = vmatprep.subr.bf16.mxu0 0
    %7928 = vmatpush2.bf16.msra.mxu0 0
    %7929 = vmatprep.subr.bf16.mxu0 0
    %7930 = vmatpush2.bf16.msra.mxu0 0
    %7931 = vmatprep.subr.bf16.mxu0 0
    %7932 = vmatpush2.bf16.msra.mxu0 0
    %7933 = vmatprep.mubr.bf16.mxu0 0
    %7934 = vmatmul.mubr.bf16.gmra.mxu0 %v7899
    %v7935 = vpop.f32.mrf.mxu0
    %v7936 = vadd.f32 0.0, %v7935
    %v7937 = vpop.f32.mrf.mxu0
    %v7938 = vpop.f32.mrf.mxu0
    %v7939 = vpop.f32.mrf.mxu0
    %7940 = vdwg.mxu0
    %v7941 = vadd.f32 %v7869, %v7936
    %v7942 = vld [vmem:[%s7797 + $0x2] sm:$0x1]
    %v7943 = vld [vmem:[%s7797 + $0x12] sm:$0x1]
    %v7944 = vpack.c.bf16 %v7942, %v7942
    %v7945 = vpack.c.bf16 %v7943, %v7943
    %s7946 = scalar_lea.vmem %s5, 224
    %v7947 = vld [vmem:[%s7946] sm:$0xf]
    %v7948 = vld [vmem:[%s7946 + $0x4] sm:$0xf]
    %v7949 = vld [vmem:[%s7946 + $0x8] sm:$0xf]
    %v7950 = vld [vmem:[%s7946 + $0xc] sm:$0xf]
    %v7953 = vunpack.c.l.b16 %v7944
    %v7954 = vunpack.c.l.b16 %v7945
    %v7955 = vrot.slane %v7954, 7
    %v7956 = vsel %vm6955, %v7955, %v7953
    %v7957 = vpack.c.b16 %v7956, %v7956
    %v7962 = vunpack.c.l.b16 %v7947
    %v7963 = vunpack.c.l.b16 %v7948
    %v7964 = vunpack.c.l.b16 %v7949
    %v7965 = vunpack.c.l.b16 %v7950
    %v7966 = vpack.c.b16 %v7963, %v7962
    %v7967 = vpack.c.b16 %v7965, %v7964
    %v7971 = vsel %vm241, %v7957, 0
    %7973 = vmatprep.subr.bf16.mxu0 0
    %7974 = vmatpush1.bf16.msra.mxu0 0
    %7975 = vmatprep.subr.bf16.mxu0 0
    %7976 = vmatpush1.bf16.msra.mxu0 0
    %7977 = vmatprep.subr.bf16.mxu0 0
    %7978 = vmatpush1.bf16.msra.mxu0 0
    %7979 = vmatprep.subr.bf16.mxu0 0
    %7980 = vmatpush1.bf16.msra.mxu0 0
    %7981 = vmatprep.subr.bf16.mxu0 0
    %7982 = vmatpush1.bf16.msra.mxu0 0
    %7983 = vmatprep.subr.bf16.mxu0 0
    %7984 = vmatpush1.bf16.msra.mxu0 0
    %7985 = vmatprep.subr.bf16.mxu0 0
    %7986 = vmatpush1.bf16.msra.mxu0 %v7967
    %7987 = vmatprep.subr.bf16.mxu0 0
    %7988 = vmatpush1.bf16.msra.mxu0 %v7966
    %7989 = vmatprep.subr.bf16.mxu0 0
    %7990 = vmatpush2.bf16.msra.mxu0 0
    %7991 = vmatprep.subr.bf16.mxu0 0
    %7992 = vmatpush2.bf16.msra.mxu0 0
    %7993 = vmatprep.subr.bf16.mxu0 0
    %7994 = vmatpush2.bf16.msra.mxu0 0
    %7995 = vmatprep.subr.bf16.mxu0 0
    %7996 = vmatpush2.bf16.msra.mxu0 0
    %7997 = vmatprep.subr.bf16.mxu0 0
    %7998 = vmatpush2.bf16.msra.mxu0 0
    %7999 = vmatprep.subr.bf16.mxu0 0
    %8000 = vmatpush2.bf16.msra.mxu0 0
    %8001 = vmatprep.subr.bf16.mxu0 0
    %8002 = vmatpush2.bf16.msra.mxu0 0
    %8003 = vmatprep.subr.bf16.mxu0 0
    %8004 = vmatpush2.bf16.msra.mxu0 0
    %8005 = vmatprep.mubr.bf16.mxu0 0
    %8006 = vmatmul.mubr.bf16.gmra.mxu0 %v7971
    %v8007 = vpop.f32.mrf.mxu0
    %v8008 = vadd.f32 0.0, %v8007
    %v8009 = vpop.f32.mrf.mxu0
    %v8010 = vpop.f32.mrf.mxu0
    %v8011 = vpop.f32.mrf.mxu0
    %8012 = vdwg.mxu0
    %v8013 = vadd.f32 %v7941, %v8008
    %v8014 = vld [vmem:[%s7797 + $0x3] sm:$0x1]
    %v8015 = vld [vmem:[%s7797 + $0x13] sm:$0x1]
    %v8016 = vpack.c.bf16 %v8014, %v8014
    %v8017 = vpack.c.bf16 %v8015, %v8015
    %s8018 = scalar_lea.vmem %s5, 240
    %v8019 = vld [vmem:[%s8018] sm:$0xf]
    %v8020 = vld [vmem:[%s8018 + $0x4] sm:$0xf]
    %v8021 = vld [vmem:[%s8018 + $0x8] sm:$0xf]
    %v8022 = vld [vmem:[%s8018 + $0xc] sm:$0xf]
    %v8025 = vunpack.c.l.b16 %v8016
    %v8026 = vunpack.c.l.b16 %v8017
    %v8027 = vrot.slane %v8026, 7
    %v8028 = vsel %vm6955, %v8027, %v8025
    %v8029 = vpack.c.b16 %v8028, %v8028
    %v8034 = vunpack.c.l.b16 %v8019
    %v8035 = vunpack.c.l.b16 %v8020
    %v8036 = vunpack.c.l.b16 %v8021
    %v8037 = vunpack.c.l.b16 %v8022
    %v8038 = vpack.c.b16 %v8035, %v8034
    %v8039 = vpack.c.b16 %v8037, %v8036
    %v8043 = vsel %vm241, %v8029, 0
    %8045 = vmatprep.subr.bf16.mxu0 0
    %8046 = vmatpush1.bf16.msra.mxu0 0
    %8047 = vmatprep.subr.bf16.mxu0 0
    %8048 = vmatpush1.bf16.msra.mxu0 0
    %8049 = vmatprep.subr.bf16.mxu0 0
    %8050 = vmatpush1.bf16.msra.mxu0 0
    %8051 = vmatprep.subr.bf16.mxu0 0
    %8052 = vmatpush1.bf16.msra.mxu0 0
    %8053 = vmatprep.subr.bf16.mxu0 0
    %8054 = vmatpush1.bf16.msra.mxu0 0
    %8055 = vmatprep.subr.bf16.mxu0 0
    %8056 = vmatpush1.bf16.msra.mxu0 0
    %8057 = vmatprep.subr.bf16.mxu0 0
    %8058 = vmatpush1.bf16.msra.mxu0 %v8039
    %8059 = vmatprep.subr.bf16.mxu0 0
    %8060 = vmatpush1.bf16.msra.mxu0 %v8038
    %8061 = vmatprep.subr.bf16.mxu0 0
    %8062 = vmatpush2.bf16.msra.mxu0 0
    %8063 = vmatprep.subr.bf16.mxu0 0
    %8064 = vmatpush2.bf16.msra.mxu0 0
    %8065 = vmatprep.subr.bf16.mxu0 0
    %8066 = vmatpush2.bf16.msra.mxu0 0
    %8067 = vmatprep.subr.bf16.mxu0 0
    %8068 = vmatpush2.bf16.msra.mxu0 0
    %8069 = vmatprep.subr.bf16.mxu0 0
    %8070 = vmatpush2.bf16.msra.mxu0 0
    %8071 = vmatprep.subr.bf16.mxu0 0
    %8072 = vmatpush2.bf16.msra.mxu0 0
    %8073 = vmatprep.subr.bf16.mxu0 0
    %8074 = vmatpush2.bf16.msra.mxu0 0
    %8075 = vmatprep.subr.bf16.mxu0 0
    %8076 = vmatpush2.bf16.msra.mxu0 0
    %8077 = vmatprep.mubr.bf16.mxu0 0
    %8078 = vmatmul.mubr.bf16.gmra.mxu0 %v8043
    %v8079 = vpop.f32.mrf.mxu0
    %v8080 = vadd.f32 0.0, %v8079
    %v8081 = vpop.f32.mrf.mxu0
    %v8082 = vpop.f32.mrf.mxu0
    %v8083 = vpop.f32.mrf.mxu0
    %8084 = vdwg.mxu0
    %v8085 = vadd.f32 %v8013, %v8080
    %v8086 = vld [vmem:[%s6] sm:$0x1]
    %v8088 = vlaneseq
    %v8089 = vshrl.u32 %v8088, 7
    %v8090 = vsub.s32 0, %v8089
    %v8091 = vrot.slane %v8086, %v8090
    %v8093 = vadd.f32 %v8085, %v8091
    %vm8094 = vcmask 9216
    %8095 = vst.msk [vmem:[#allocation6] sm:$0x3] %vm8094, %v8093
    // Predicated region
    $region30: #{cnn_celeba_server_forward.1} parent=1 // pred_check
      _
    $region31: #{cnn_celeba_server_forward.1} parent=1 // pred_check_branch
      %8097 = sbr.rel (0) target = $region33
    $region32: #{cnn_celeba_server_forward.1} parent=1 // pred_region
      %s8099 = ssub.s32 32, 32
      %8100 = vsyncadd [#allocation7], %s8099
      %s8102 = sshll.u32 [#allocation6], 4
      %s8103 = int_to_ptr.vmem [resolvable:$true] %s8102
      %8105 = dma.vmem_to_hbm [thread:$0]  %s8103, 32, %s7, [#allocation7]
    $region33: #{cnn_celeba_server_forward.1} parent=1 // pred_fallthru
      _
    // Predicated region
    $region34: #{cnn_celeba_server_forward.1} parent=1 // pred_check
      _
    $region35: #{cnn_celeba_server_forward.1} parent=1 // pred_check_branch
      %8107 = sbr.rel (0) target = $region37
    $region36: #{cnn_celeba_server_forward.1} parent=1 // pred_region
      %8108 = dma.done [#allocation7], 32
    $region37: #{cnn_celeba_server_forward.1} parent=1 // pred_fallthru
      _
    %8109 = vsyncpa [#allocation7], 1

</llo_original>
